<compile_context>
chip_gen: v5e
topology: v5e:2x2
jax: 0.10.0
libtpu: 0.0.40
codegen_flags: <defaults>
</compile_context>

<pallas_src>
import functools

import jax
import jax.numpy as jnp
from jax.experimental import pallas as pl
from jax.experimental.pallas import tpu as pltpu


def _round_up(v, m):
    return (v + m - 1) // m * m


def _pick_row_tile(h_out, w_out, kkc, tn):
    """Largest divisor of h_out whose per-step blocks stay a few MiB."""
    budget = 4 * 1024 * 1024

    def step_bytes(rows):
        m = rows * w_out
        # bf16 im2col slab + double-buffered bf16 out block + f32 matmul acc
        return m * kkc * 2 + 2 * m * tn * 2 + m * tn * 4

    if step_bytes(h_out) <= budget:
        return h_out
    for rows in range(h_out - 1, 0, -1):
        if h_out % rows:
            continue
        # output block (rows*w_out, tn) must keep its sublane dim /8-aligned
        if (rows * w_out) % 8:
            continue
        if step_bytes(rows) <= budget:
            return rows
    return h_out


def _conv_bn_hswish_kernel(x_ref, w_ref, scale_ref, bias_ref, o_ref, slab_ref,
                           *, k, stride, rows, w_out, c_in, collapse):
    """One (C_out tile, image, row tile) step of Conv2d + BN + Hswish.

    x_ref     : [1, Hp, Wp, C_in]        bf16  full padded image (shared by all
                                               row / C_out tiles of this image)
    w_ref     : [k*k*C_in, tn]           bf16  conv weights in im2col order
    scale_ref : [1, tn]                  f32   folded BN scale
    bias_ref  : [1, tn]                  f32   folded BN bias
    o_ref     : [1, rows*w_out, tn]      bf16
    slab_ref  : [rows*w_out, k*k*C_in]   bf16  im2col patches (VMEM only)
    """
    r0 = pl.multiple_of(pl.program_id(2) * rows, rows)   # first output row

    # In-VMEM im2col.  One copy per conv tap when possible (k*k copies per
    # step); otherwise one copy per (tap, output row).
    for t in range(k * k):
        dy, dx = divmod(t, k)
        col = t * c_in
        if collapse:                                   # stride==1, w_out%8==0
            win = x_ref[0, pl.ds(r0 + dy, rows), dx:dx + w_out, :]
            slab_ref[:, col:col + c_in] = win.reshape(rows * w_out, c_in)
        else:
            for oy in range(rows):
                row = (r0 + oy) * stride + dy
                if stride == 1:
                    strip = x_ref[0, row, dx:dx + w_out, :]
                else:
                    strip = x_ref[0, row, pl.ds(dx, w_out, stride=stride), :]
                slab_ref[oy * w_out:(oy + 1) * w_out, col:col + c_in] = strip

    # Single fused MXU matmul over K = k*k*C_in (bf16 x bf16 -> f32 value).
    acc = jnp.dot(slab_ref[...], w_ref[...], preferred_element_type=jnp.float32)

    # f32 epilogue: inference BatchNorm + Hswish, then ONE bf16 store.
    z = acc * scale_ref[...] + bias_ref[...]
    o_ref[0] = (z * jnp.clip(z + 3.0, 0.0, 6.0) * (1.0 / 6.0)).astype(o_ref.dtype)


@functools.partial(jax.jit,
                   static_argnames=("kernel_size", "stride", "padding",
                                    "collapse_window_copies"))
def conv_bn_hswish(x_nchw, w_oihw, gamma, beta, running_mean, running_var,
                   *, kernel_size, stride=1, padding=0, eps=1e-5,
                   collapse_window_copies=True):
    """Forward pass of _ConvBNHswish (groups=1, dilation=1, bias=False)."""
    N, C_in, H, W = x_nchw.shape
    C_out = w_oihw.shape[0]
    k = kernel_size

    H_out = (H + 2 * padding - k) // stride + 1
    W_out = (W + 2 * padding - k) // stride + 1
    M_img = H_out * W_out
    Hp, Wp = H + 2 * padding, W + 2 * padding
    KKC = k * k * C_in

    # Lane-dense 128-wide C_out tiles (right for every TPU generation).
    C_out_pad = _round_up(C_out, 128)
    tn = 128
    n_j = C_out_pad // tn

    rows = _pick_row_tile(H_out, W_out, KKC, tn)
    n_r = H_out // rows

    collapse = bool(collapse_window_copies) and stride == 1 and (W_out % 8 == 0)

    # ---- glue (1x input bytes): NCHW -> NHWC, spatial zero-pad, cast bf16 ----
    x = jnp.transpose(x_nchw, (0, 2, 3, 1))                      # [N,H,W,Cin]
    x = jnp.pad(x, ((0, 0), (padding, padding), (padding, padding), (0, 0)))
    x = x.astype(jnp.bfloat16)

    # ---- BatchNorm (inference) folded into per-channel f32 scale + bias -----
    scale = gamma / jnp.sqrt(running_var + eps)                  # [C_out]
    bias = beta - running_mean * scale                           # [C_out]
    scale = jnp.pad(scale, (0, C_out_pad - C_out)).reshape(1, C_out_pad)
    bias = jnp.pad(bias, (0, C_out_pad - C_out)).reshape(1, C_out_pad)
    scale = scale.astype(jnp.float32)
    bias = bias.astype(jnp.float32)

    # [Cout,Cin,kH,kW] -> im2col weight matrix [k*k*Cin, C_out_pad] (bf16).
    w = jnp.transpose(w_oihw, (2, 3, 1, 0))                      # [kH,kW,Cin,Co]
    w = jnp.pad(w, ((0, 0), (0, 0), (0, 0), (0, C_out_pad - C_out)))
    w = w.reshape(KKC, C_out_pad).astype(jnp.bfloat16)

    # ---- grid order: keep the bigger redundant HBM stream on the OUTER axis --
    img_bytes = Hp * Wp * C_in * 2
    wtile_bytes = KKC * tn * 2
    traffic_img_outer = N * img_bytes + N * n_j * wtile_bytes    # grid=(N, n_j, n_r)
    traffic_w_outer = n_j * wtile_bytes + n_j * N * img_bytes    # grid=(n_j, N, n_r)
    weights_outer = traffic_w_outer < traffic_img_outer

    if weights_outer:
        grid = (n_j, N, n_r)
        x_map = lambda j, n, r: (n, 0, 0, 0)
        w_map = lambda j, n, r: (0, j)
        s_map = lambda j, n, r: (0, j)
        o_map = lambda j, n, r: (n, r, j)
    else:
        grid = (N, n_j, n_r)
        x_map = lambda n, j, r: (n, 0, 0, 0)
        w_map = lambda n, j, r: (0, j)
        s_map = lambda n, j, r: (0, j)
        o_map = lambda n, j, r: (n, r, j)

    # VMEM budget: ~3/4 of the chip's per-core VMEM (96 MiB on v5e/v6e,
    # 48 MiB on v7x), conservatively capped.
    try:
        vmem_cap = int(pltpu.get_tpu_info().vmem_capacity_bytes)
    except Exception:
        vmem_cap = 64 * 1024 * 1024
    vmem_limit = max(32 * 1024 * 1024,
                     min(vmem_cap * 3 // 4, 100 * 1024 * 1024))

    kernel = functools.partial(
        _conv_bn_hswish_kernel, k=k, stride=stride, rows=rows,
        w_out=W_out, c_in=C_in, collapse=collapse)

    out = pl.pallas_call(
        kernel,
        out_shape=jax.ShapeDtypeStruct((N, M_img, C_out_pad), jnp.bfloat16),
        grid=grid,
        in_specs=[
            # full padded image (reused across row / C_out tiles of the image)
            pl.BlockSpec((1, Hp, Wp, C_in), x_map),
            # im2col weights / BN scale / BN bias (small, effectively resident)
            pl.BlockSpec((KKC, tn), w_map),
            pl.BlockSpec((1, tn), s_map),
            pl.BlockSpec((1, tn), s_map),
        ],
        out_specs=pl.BlockSpec((1, rows * W_out, tn), o_map),
        scratch_shapes=[pltpu.VMEM((rows * W_out, KKC), jnp.bfloat16)],
        compiler_params=pltpu.CompilerParams(
            dimension_semantics=("parallel", "parallel", "parallel"),
            vmem_limit_bytes=vmem_limit,
        ),
    )(x, w, scale, bias)

    # ---- glue: drop channel padding, back to NCHW, f32 to match the module ---
    out = out.reshape(N, H_out, W_out, C_out_pad)[..., :C_out]
    return jnp.transpose(out, (0, 3, 1, 2)).astype(jnp.float32)    # [N,Co,Ho,Wo]


def _reference(x_nchw, w_oihw, gamma, beta, running_mean, running_var,
               *, stride, padding, eps=1e-5):
    """Pure-JAX f32 reference (NCHW conv + BN + hswish) for correctness check."""
    y = jax.lax.conv_general_dilated(
        x_nchw, w_oihw,
        window_strides=(stride, stride),
        padding=((padding, padding), (padding, padding)),
        dimension_numbers=("NCHW", "OIHW", "NCHW"))
    scale = gamma / jnp.sqrt(running_var + eps)
    bias = beta - running_mean * scale
    y = y * scale[None, :, None, None] + bias[None, :, None, None]
    return y * jnp.clip(y + 3.0, 0.0, 6.0) / 6.0


if __name__ == "__main__":
    key = jax.random.PRNGKey(0)
    k_x, k_w, k_g, k_b, k_m, k_v = jax.random.split(key, 6)

    # Small module config: _ConvBNHswish(4, 8, kernel_size=3, stride=1, padding=1)
    N, C_in, H, W = 2, 4, 16, 16
    C_out, ksize, stride, padding = 8, 3, 1, 1

    x = jax.random.normal(k_x, (N, C_in, H, W), dtype=jnp.float32)
    w = jax.random.normal(k_w, (C_out, C_in, ksize, ksize), dtype=jnp.float32) * 0.1
    gamma = 1.0 + 0.1 * jax.random.normal(k_g, (C_out,), dtype=jnp.float32)
    beta = 0.1 * jax.random.normal(k_b, (C_out,), dtype=jnp.float32)
    running_mean = 0.1 * jax.random.normal(k_m, (C_out,), dtype=jnp.float32)
    running_var = jnp.abs(1.0 + 0.1 * jax.random.normal(k_v, (C_out,), dtype=jnp.float32))

    def run(collapse):
        y = conv_bn_hswish(x, w, gamma, beta, running_mean, running_var,
                           kernel_size=ksize, stride=stride, padding=padding,
                           collapse_window_copies=collapse)
        return jax.block_until_ready(y)

    try:
        out = run(True)
    except Exception:
        # Conservative fallback: per-row window copies (still one fused matmul
        # and a single bf16 output store per grid step).
        out = run(False)

    ref = _reference(x, w, gamma, beta, running_mean, running_var,
                     stride=stride, padding=padding)
    assert out.shape == (N, C_out, H, W), out.shape
    # bf16 matmul operands + bf16 output store -> loose tolerance vs f32 ref.
    max_err = float(jnp.max(jnp.abs(out - ref)))
    assert jnp.allclose(out, ref, atol=5e-2, rtol=5e-2), max_err

    print("KERNEL_OK")
</pallas_src>

<mosaic_0001>
module attributes {stable_mosaic.version = 11 : i64} {
  func.func @_conv_bn_hswish_kernel(%arg0: i32, %arg1: i32, %arg2: i32, %arg3: memref<1x18x18x4xbf16, #tpu.memory_space<vmem>>, %arg4: memref<36x128xbf16, #tpu.memory_space<vmem>>, %arg5: memref<1x128xf32, #tpu.memory_space<vmem>>, %arg6: memref<1x128xf32, #tpu.memory_space<vmem>>, %arg7: memref<1x256x128xbf16, #tpu.memory_space<vmem>>, %arg8: memref<256x36xbf16, #tpu.memory_space<vmem>>) attributes {dimension_semantics = [#tpu.dimension_semantics<parallel>, #tpu.dimension_semantics<parallel>, #tpu.dimension_semantics<parallel>], iteration_bounds = array<i64: 1, 2, 1>, scalar_prefetch = 0 : i64, scratch_operands = 1 : i64, tpu.core_type = #tpu.core_type<tc>, window_params = [{transform_indices = @transform_0, window_bounds = array<i64: 1, 18, 18, 4>}, {transform_indices = @transform_1, window_bounds = array<i64: 36, 128>}, {transform_indices = @transform_2, window_bounds = array<i64: 1, 128>}, {transform_indices = @transform_3, window_bounds = array<i64: 1, 128>}, {transform_indices = @transform_4, window_bounds = array<i64: 1, 256, 128>}]} {
    %c16_i32 = arith.constant 16 : i32
    %0 = arith.muli %arg2, %c16_i32 : i32
    %1 = tpu.assume_multiple %0, 16 : i32
    %c0_i32 = arith.constant 0 : i32
    %2 = arith.addi %1, %c0_i32 : i32
    %c0 = arith.constant 0 : index
    %3 = arith.index_cast %2 : i32 to index
    %c0_0 = arith.constant 0 : index
    %c0_1 = arith.constant 0 : index
    %4 = vector.load %arg3[%c0, %3, %c0_0, %c0_1] : memref<1x18x18x4xbf16, #tpu.memory_space<vmem>>, vector<1x16x16x4xbf16>
    %5 = vector.shape_cast %4 : vector<1x16x16x4xbf16> to vector<16x16x4xbf16>
    %6 = vector.shape_cast %5 : vector<16x16x4xbf16> to vector<256x4xbf16>
    %c0_2 = arith.constant 0 : index
    %c0_3 = arith.constant 0 : index
    %7 = vector.load %arg8[%c0_2, %c0_3] : memref<256x36xbf16, #tpu.memory_space<vmem>>, vector<256x4xbf16>
    tpu.vector_store %arg8[%c0_2, %c0_3], %6 {strides = array<i32>} : memref<256x36xbf16, #tpu.memory_space<vmem>>, vector<256x4xbf16>,
    %c0_i32_4 = arith.constant 0 : i32
    %8 = arith.addi %1, %c0_i32_4 : i32
    %c0_5 = arith.constant 0 : index
    %9 = arith.index_cast %8 : i32 to index
    %c1 = arith.constant 1 : index
    %c0_6 = arith.constant 0 : index
    %10 = vector.load %arg3[%c0_5, %9, %c1, %c0_6] : memref<1x18x18x4xbf16, #tpu.memory_space<vmem>>, vector<1x16x16x4xbf16>
    %11 = vector.shape_cast %10 : vector<1x16x16x4xbf16> to vector<16x16x4xbf16>
    %12 = vector.shape_cast %11 : vector<16x16x4xbf16> to vector<256x4xbf16>
    %c0_7 = arith.constant 0 : index
    %c4 = arith.constant 4 : index
    %13 = vector.load %arg8[%c0_7, %c4] : memref<256x36xbf16, #tpu.memory_space<vmem>>, vector<256x4xbf16>
    tpu.vector_store %arg8[%c0_7, %c4], %12 {strides = array<i32>} : memref<256x36xbf16, #tpu.memory_space<vmem>>, vector<256x4xbf16>,
    %c0_i32_8 = arith.constant 0 : i32
    %14 = arith.addi %1, %c0_i32_8 : i32
    %c0_9 = arith.constant 0 : index
    %15 = arith.index_cast %14 : i32 to index
    %c2 = arith.constant 2 : index
    %c0_10 = arith.constant 0 : index
    %16 = vector.load %arg3[%c0_9, %15, %c2, %c0_10] : memref<1x18x18x4xbf16, #tpu.memory_space<vmem>>, vector<1x16x16x4xbf16>
    %17 = vector.shape_cast %16 : vector<1x16x16x4xbf16> to vector<16x16x4xbf16>
    %18 = vector.shape_cast %17 : vector<16x16x4xbf16> to vector<256x4xbf16>
    %c0_11 = arith.constant 0 : index
    %c8 = arith.constant 8 : index
    %19 = vector.load %arg8[%c0_11, %c8] : memref<256x36xbf16, #tpu.memory_space<vmem>>, vector<256x4xbf16>
    tpu.vector_store %arg8[%c0_11, %c8], %18 {strides = array<i32>} : memref<256x36xbf16, #tpu.memory_space<vmem>>, vector<256x4xbf16>,
    %c1_i32 = arith.constant 1 : i32
    %20 = arith.addi %1, %c1_i32 : i32
    %c0_12 = arith.constant 0 : index
    %21 = arith.index_cast %20 : i32 to index
    %c0_13 = arith.constant 0 : index
    %c0_14 = arith.constant 0 : index
    %22 = vector.load %arg3[%c0_12, %21, %c0_13, %c0_14] : memref<1x18x18x4xbf16, #tpu.memory_space<vmem>>, vector<1x16x16x4xbf16>
    %23 = vector.shape_cast %22 : vector<1x16x16x4xbf16> to vector<16x16x4xbf16>
    %24 = vector.shape_cast %23 : vector<16x16x4xbf16> to vector<256x4xbf16>
    %c0_15 = arith.constant 0 : index
    %c12 = arith.constant 12 : index
    %25 = vector.load %arg8[%c0_15, %c12] : memref<256x36xbf16, #tpu.memory_space<vmem>>, vector<256x4xbf16>
    tpu.vector_store %arg8[%c0_15, %c12], %24 {strides = array<i32>} : memref<256x36xbf16, #tpu.memory_space<vmem>>, vector<256x4xbf16>,
    %c1_i32_16 = arith.constant 1 : i32
    %26 = arith.addi %1, %c1_i32_16 : i32
    %c0_17 = arith.constant 0 : index
    %27 = arith.index_cast %26 : i32 to index
    %c1_18 = arith.constant 1 : index
    %c0_19 = arith.constant 0 : index
    %28 = vector.load %arg3[%c0_17, %27, %c1_18, %c0_19] : memref<1x18x18x4xbf16, #tpu.memory_space<vmem>>, vector<1x16x16x4xbf16>
    %29 = vector.shape_cast %28 : vector<1x16x16x4xbf16> to vector<16x16x4xbf16>
    %30 = vector.shape_cast %29 : vector<16x16x4xbf16> to vector<256x4xbf16>
    %c0_20 = arith.constant 0 : index
    %c16 = arith.constant 16 : index
    %31 = vector.load %arg8[%c0_20, %c16] : memref<256x36xbf16, #tpu.memory_space<vmem>>, vector<256x4xbf16>
    tpu.vector_store %arg8[%c0_20, %c16], %30 {strides = array<i32>} : memref<256x36xbf16, #tpu.memory_space<vmem>>, vector<256x4xbf16>,
    %c1_i32_21 = arith.constant 1 : i32
    %32 = arith.addi %1, %c1_i32_21 : i32
    %c0_22 = arith.constant 0 : index
    %33 = arith.index_cast %32 : i32 to index
    %c2_23 = arith.constant 2 : index
    %c0_24 = arith.constant 0 : index
    %34 = vector.load %arg3[%c0_22, %33, %c2_23, %c0_24] : memref<1x18x18x4xbf16, #tpu.memory_space<vmem>>, vector<1x16x16x4xbf16>
    %35 = vector.shape_cast %34 : vector<1x16x16x4xbf16> to vector<16x16x4xbf16>
    %36 = vector.shape_cast %35 : vector<16x16x4xbf16> to vector<256x4xbf16>
    %c0_25 = arith.constant 0 : index
    %c20 = arith.constant 20 : index
    %37 = vector.load %arg8[%c0_25, %c20] : memref<256x36xbf16, #tpu.memory_space<vmem>>, vector<256x4xbf16>
    tpu.vector_store %arg8[%c0_25, %c20], %36 {strides = array<i32>} : memref<256x36xbf16, #tpu.memory_space<vmem>>, vector<256x4xbf16>,
    %c2_i32 = arith.constant 2 : i32
    %38 = arith.addi %1, %c2_i32 : i32
    %c0_26 = arith.constant 0 : index
    %39 = arith.index_cast %38 : i32 to index
    %c0_27 = arith.constant 0 : index
    %c0_28 = arith.constant 0 : index
    %40 = vector.load %arg3[%c0_26, %39, %c0_27, %c0_28] : memref<1x18x18x4xbf16, #tpu.memory_space<vmem>>, vector<1x16x16x4xbf16>
    %41 = vector.shape_cast %40 : vector<1x16x16x4xbf16> to vector<16x16x4xbf16>
    %42 = vector.shape_cast %41 : vector<16x16x4xbf16> to vector<256x4xbf16>
    %c0_29 = arith.constant 0 : index
    %c24 = arith.constant 24 : index
    %43 = vector.load %arg8[%c0_29, %c24] : memref<256x36xbf16, #tpu.memory_space<vmem>>, vector<256x4xbf16>
    tpu.vector_store %arg8[%c0_29, %c24], %42 {strides = array<i32>} : memref<256x36xbf16, #tpu.memory_space<vmem>>, vector<256x4xbf16>,
    %c2_i32_30 = arith.constant 2 : i32
    %44 = arith.addi %1, %c2_i32_30 : i32
    %c0_31 = arith.constant 0 : index
    %45 = arith.index_cast %44 : i32 to index
    %c1_32 = arith.constant 1 : index
    %c0_33 = arith.constant 0 : index
    %46 = vector.load %arg3[%c0_31, %45, %c1_32, %c0_33] : memref<1x18x18x4xbf16, #tpu.memory_space<vmem>>, vector<1x16x16x4xbf16>
    %47 = vector.shape_cast %46 : vector<1x16x16x4xbf16> to vector<16x16x4xbf16>
    %48 = vector.shape_cast %47 : vector<16x16x4xbf16> to vector<256x4xbf16>
    %c0_34 = arith.constant 0 : index
    %c28 = arith.constant 28 : index
    %49 = vector.load %arg8[%c0_34, %c28] : memref<256x36xbf16, #tpu.memory_space<vmem>>, vector<256x4xbf16>
    tpu.vector_store %arg8[%c0_34, %c28], %48 {strides = array<i32>} : memref<256x36xbf16, #tpu.memory_space<vmem>>, vector<256x4xbf16>,
    %c2_i32_35 = arith.constant 2 : i32
    %50 = arith.addi %1, %c2_i32_35 : i32
    %c0_36 = arith.constant 0 : index
    %51 = arith.index_cast %50 : i32 to index
    %c2_37 = arith.constant 2 : index
    %c0_38 = arith.constant 0 : index
    %52 = vector.load %arg3[%c0_36, %51, %c2_37, %c0_38] : memref<1x18x18x4xbf16, #tpu.memory_space<vmem>>, vector<1x16x16x4xbf16>
    %53 = vector.shape_cast %52 : vector<1x16x16x4xbf16> to vector<16x16x4xbf16>
    %54 = vector.shape_cast %53 : vector<16x16x4xbf16> to vector<256x4xbf16>
    %c0_39 = arith.constant 0 : index
    %c32 = arith.constant 32 : index
    %55 = vector.load %arg8[%c0_39, %c32] : memref<256x36xbf16, #tpu.memory_space<vmem>>, vector<256x4xbf16>
    tpu.vector_store %arg8[%c0_39, %c32], %54 {strides = array<i32>} : memref<256x36xbf16, #tpu.memory_space<vmem>>, vector<256x4xbf16>,
    %c0_40 = arith.constant 0 : index
    %c0_41 = arith.constant 0 : index
    %56 = vector.load %arg8[%c0_40, %c0_41] : memref<256x36xbf16, #tpu.memory_space<vmem>>, vector<256x36xbf16>
    %c0_42 = arith.constant 0 : index
    %c0_43 = arith.constant 0 : index
    %57 = vector.load %arg4[%c0_42, %c0_43] : memref<36x128xbf16, #tpu.memory_space<vmem>>, vector<36x128xbf16>
    %cst = arith.constant dense<0.000000e+00> : vector<256x128xf32>
    %58 = tpu.matmul %56, %57, %cst {dimension_numbers = #tpu.dot_dimension_numbers<[1], [0], [0], [1], [0, 0, 1, 1], [], []>} : vector<256x36xbf16>, vector<36x128xbf16>, vector<256x128xf32> -> vector<256x128xf32>
    %c0_44 = arith.constant 0 : index
    %c0_45 = arith.constant 0 : index
    %59 = vector.load %arg5[%c0_44, %c0_45] : memref<1x128xf32, #tpu.memory_space<vmem>>, vector<1x128xf32>
    %60 = vector.broadcast %59 : vector<1x128xf32> to vector<256x128xf32>
    %61 = arith.mulf %58, %60 : vector<256x128xf32>
    %c0_46 = arith.constant 0 : index
    %c0_47 = arith.constant 0 : index
    %62 = vector.load %arg6[%c0_46, %c0_47] : memref<1x128xf32, #tpu.memory_space<vmem>>, vector<1x128xf32>
    %63 = vector.broadcast %62 : vector<1x128xf32> to vector<256x128xf32>
    %64 = arith.addf %61, %63 : vector<256x128xf32>
    %cst_48 = arith.constant 3.000000e+00 : f32
    %65 = vector.broadcast %cst_48 : f32 to vector<256x128xf32>
    %66 = arith.addf %64, %65 : vector<256x128xf32>
    %cst_49 = arith.constant 0.000000e+00 : f32
    %cst_50 = arith.constant 6.000000e+00 : f32
    %67 = vector.broadcast %cst_49 : f32 to vector<256x128xf32>
    %68 = arith.maximumf %67, %66 : vector<256x128xf32>
    %69 = vector.broadcast %cst_50 : f32 to vector<256x128xf32>
    %70 = arith.minimumf %69, %68 : vector<256x128xf32>
    %71 = arith.mulf %64, %70 : vector<256x128xf32>
    %cst_51 = arith.constant 0.166666672 : f32
    %72 = vector.broadcast %cst_51 : f32 to vector<256x128xf32>
    %73 = arith.mulf %71, %72 : vector<256x128xf32>
    %74 = arith.truncf %73 : vector<256x128xf32> to vector<256x128xbf16>
    %c0_52 = arith.constant 0 : index
    %c0_53 = arith.constant 0 : index
    %c0_54 = arith.constant 0 : index
    %75 = vector.load %arg7[%c0_52, %c0_53, %c0_54] : memref<1x256x128xbf16, #tpu.memory_space<vmem>>, vector<1x256x128xbf16>
    %76 = vector.shape_cast %75 : vector<1x256x128xbf16> to vector<256x128xbf16>
    %77 = vector.shape_cast %74 : vector<256x128xbf16> to vector<1x256x128xbf16>
    tpu.vector_store %arg7[%c0_52, %c0_53, %c0_54], %77 {strides = array<i32>} : memref<1x256x128xbf16, #tpu.memory_space<vmem>>, vector<1x256x128xbf16>,
    return
  }
  func.func @transform_0(%arg0: i32, %arg1: i32, %arg2: i32) -> (i32, i32, i32, i32) {
    %c0_i32 = arith.constant 0 : i32
    %c0_i32_0 = arith.constant 0 : i32
    %c0_i32_1 = arith.constant 0 : i32
    %c0_i32_2 = arith.constant 0 : i32
    return %arg1, %c0_i32, %c0_i32_0, %c0_i32_1 : i32, i32, i32, i32
  }
  func.func @transform_1(%arg0: i32, %arg1: i32, %arg2: i32) -> (i32, i32) {
    %c0_i32 = arith.constant 0 : i32
    %c0_i32_0 = arith.constant 0 : i32
    return %c0_i32, %arg0 : i32, i32
  }
  func.func @transform_2(%arg0: i32, %arg1: i32, %arg2: i32) -> (i32, i32) {
    %c0_i32 = arith.constant 0 : i32
    %c0_i32_0 = arith.constant 0 : i32
    return %c0_i32, %arg0 : i32, i32
  }
  func.func @transform_3(%arg0: i32, %arg1: i32, %arg2: i32) -> (i32, i32) {
    %c0_i32 = arith.constant 0 : i32
    %c0_i32_0 = arith.constant 0 : i32
    return %c0_i32, %arg0 : i32, i32
  }
  func.func @transform_4(%arg0: i32, %arg1: i32, %arg2: i32) -> (i32, i32, i32) {
    %c0_i32 = arith.constant 0 : i32
    return %arg1, %arg2, %arg0 : i32, i32, i32
  }
}

module attributes {stable_mosaic.version = 11 : i64} {
  func.func @_conv_bn_hswish_kernel(%arg0: i32, %arg1: i32, %arg2: i32, %arg3: memref<1x18x18x4xbf16, #tpu.memory_space<vmem>>, %arg4: memref<36x128xbf16, #tpu.memory_space<vmem>>, %arg5: memref<1x128xf32, #tpu.memory_space<vmem>>, %arg6: memref<1x128xf32, #tpu.memory_space<vmem>>, %arg7: memref<1x256x128xbf16, #tpu.memory_space<vmem>>, %arg8: memref<256x36xbf16, #tpu.memory_space<vmem>>) attributes {dimension_semantics = [#tpu.dimension_semantics<parallel>, #tpu.dimension_semantics<parallel>, #tpu.dimension_semantics<parallel>], iteration_bounds = array<i64: 1, 2, 1>, scalar_prefetch = 0 : i64, scratch_operands = 1 : i64, tpu.core_type = #tpu.core_type<tc>, window_params = [{transform_indices = @transform_0, window_bounds = array<i64: 1, 18, 18, 4>}, {transform_indices = @transform_1, window_bounds = array<i64: 36, 128>}, {transform_indices = @transform_2, window_bounds = array<i64: 1, 128>}, {transform_indices = @transform_3, window_bounds = array<i64: 1, 128>}, {transform_indices = @transform_4, window_bounds = array<i64: 1, 256, 128>}]} {
    %c16_i32 = arith.constant 16 : i32
    %0 = arith.muli %arg2, %c16_i32 : i32
    %1 = tpu.assume_multiple %0, 16 : i32
    %c0_i32 = arith.constant 0 : i32
    %2 = arith.addi %1, %c0_i32 : i32
    %c1_i32 = arith.constant 1 : i32
    %3 = arith.muli %2, %c1_i32 : i32
    %c0_i32_0 = arith.constant 0 : i32
    %4 = arith.addi %3, %c0_i32_0 : i32
    %c0 = arith.constant 0 : index
    %5 = arith.index_cast %4 : i32 to index
    %c0_1 = arith.constant 0 : index
    %c0_2 = arith.constant 0 : index
    %6 = vector.load %arg3[%c0, %5, %c0_1, %c0_2] : memref<1x18x18x4xbf16, #tpu.memory_space<vmem>>, vector<1x1x16x4xbf16>
    %7 = vector.shape_cast %6 : vector<1x1x16x4xbf16> to vector<16x4xbf16>
    %c0_3 = arith.constant 0 : index
    %c0_4 = arith.constant 0 : index
    %8 = vector.load %arg8[%c0_3, %c0_4] : memref<256x36xbf16, #tpu.memory_space<vmem>>, vector<16x4xbf16>
    tpu.vector_store %arg8[%c0_3, %c0_4], %7 {strides = array<i32>} : memref<256x36xbf16, #tpu.memory_space<vmem>>, vector<16x4xbf16>,
    %c1_i32_5 = arith.constant 1 : i32
    %9 = arith.addi %1, %c1_i32_5 : i32
    %c1_i32_6 = arith.constant 1 : i32
    %10 = arith.muli %9, %c1_i32_6 : i32
    %c0_i32_7 = arith.constant 0 : i32
    %11 = arith.addi %10, %c0_i32_7 : i32
    %c0_8 = arith.constant 0 : index
    %12 = arith.index_cast %11 : i32 to index
    %c0_9 = arith.constant 0 : index
    %c0_10 = arith.constant 0 : index
    %13 = vector.load %arg3[%c0_8, %12, %c0_9, %c0_10] : memref<1x18x18x4xbf16, #tpu.memory_space<vmem>>, vector<1x1x16x4xbf16>
    %14 = vector.shape_cast %13 : vector<1x1x16x4xbf16> to vector<16x4xbf16>
    %c16 = arith.constant 16 : index
    %c0_11 = arith.constant 0 : index
    %15 = vector.load %arg8[%c16, %c0_11] : memref<256x36xbf16, #tpu.memory_space<vmem>>, vector<16x4xbf16>
    tpu.vector_store %arg8[%c16, %c0_11], %14 {strides = array<i32>} : memref<256x36xbf16, #tpu.memory_space<vmem>>, vector<16x4xbf16>,
    %c2_i32 = arith.constant 2 : i32
    %16 = arith.addi %1, %c2_i32 : i32
    %c1_i32_12 = arith.constant 1 : i32
    %17 = arith.muli %16, %c1_i32_12 : i32
    %c0_i32_13 = arith.constant 0 : i32
    %18 = arith.addi %17, %c0_i32_13 : i32
    %c0_14 = arith.constant 0 : index
    %19 = arith.index_cast %18 : i32 to index
    %c0_15 = arith.constant 0 : index
    %c0_16 = arith.constant 0 : index
    %20 = vector.load %arg3[%c0_14, %19, %c0_15, %c0_16] : memref<1x18x18x4xbf16, #tpu.memory_space<vmem>>, vector<1x1x16x4xbf16>
    %21 = vector.shape_cast %20 : vector<1x1x16x4xbf16> to vector<16x4xbf16>
    %c32 = arith.constant 32 : index
    %c0_17 = arith.constant 0 : index
    %22 = vector.load %arg8[%c32, %c0_17] : memref<256x36xbf16, #tpu.memory_space<vmem>>, vector<16x4xbf16>
    tpu.vector_store %arg8[%c32, %c0_17], %21 {strides = array<i32>} : memref<256x36xbf16, #tpu.memory_space<vmem>>, vector<16x4xbf16>,
    %c3_i32 = arith.constant 3 : i32
    %23 = arith.addi %1, %c3_i32 : i32
    %c1_i32_18 = arith.constant 1 : i32
    %24 = arith.muli %23, %c1_i32_18 : i32
    %c0_i32_19 = arith.constant 0 : i32
    %25 = arith.addi %24, %c0_i32_19 : i32
    %c0_20 = arith.constant 0 : index
    %26 = arith.index_cast %25 : i32 to index
    %c0_21 = arith.constant 0 : index
    %c0_22 = arith.constant 0 : index
    %27 = vector.load %arg3[%c0_20, %26, %c0_21, %c0_22] : memref<1x18x18x4xbf16, #tpu.memory_space<vmem>>, vector<1x1x16x4xbf16>
    %28 = vector.shape_cast %27 : vector<1x1x16x4xbf16> to vector<16x4xbf16>
    %c48 = arith.constant 48 : index
    %c0_23 = arith.constant 0 : index
    %29 = vector.load %arg8[%c48, %c0_23] : memref<256x36xbf16, #tpu.memory_space<vmem>>, vector<16x4xbf16>
    tpu.vector_store %arg8[%c48, %c0_23], %28 {strides = array<i32>} : memref<256x36xbf16, #tpu.memory_space<vmem>>, vector<16x4xbf16>,
    %c4_i32 = arith.constant 4 : i32
    %30 = arith.addi %1, %c4_i32 : i32
    %c1_i32_24 = arith.constant 1 : i32
    %31 = arith.muli %30, %c1_i32_24 : i32
    %c0_i32_25 = arith.constant 0 : i32
    %32 = arith.addi %31, %c0_i32_25 : i32
    %c0_26 = arith.constant 0 : index
    %33 = arith.index_cast %32 : i32 to index
    %c0_27 = arith.constant 0 : index
    %c0_28 = arith.constant 0 : index
    %34 = vector.load %arg3[%c0_26, %33, %c0_27, %c0_28] : memref<1x18x18x4xbf16, #tpu.memory_space<vmem>>, vector<1x1x16x4xbf16>
    %35 = vector.shape_cast %34 : vector<1x1x16x4xbf16> to vector<16x4xbf16>
    %c64 = arith.constant 64 : index
    %c0_29 = arith.constant 0 : index
    %36 = vector.load %arg8[%c64, %c0_29] : memref<256x36xbf16, #tpu.memory_space<vmem>>, vector<16x4xbf16>
    tpu.vector_store %arg8[%c64, %c0_29], %35 {strides = array<i32>} : memref<256x36xbf16, #tpu.memory_space<vmem>>, vector<16x4xbf16>,
    %c5_i32 = arith.constant 5 : i32
    %37 = arith.addi %1, %c5_i32 : i32
    %c1_i32_30 = arith.constant 1 : i32
    %38 = arith.muli %37, %c1_i32_30 : i32
    %c0_i32_31 = arith.constant 0 : i32
    %39 = arith.addi %38, %c0_i32_31 : i32
    %c0_32 = arith.constant 0 : index
    %40 = arith.index_cast %39 : i32 to index
    %c0_33 = arith.constant 0 : index
    %c0_34 = arith.constant 0 : index
    %41 = vector.load %arg3[%c0_32, %40, %c0_33, %c0_34] : memref<1x18x18x4xbf16, #tpu.memory_space<vmem>>, vector<1x1x16x4xbf16>
    %42 = vector.shape_cast %41 : vector<1x1x16x4xbf16> to vector<16x4xbf16>
    %c80 = arith.constant 80 : index
    %c0_35 = arith.constant 0 : index
    %43 = vector.load %arg8[%c80, %c0_35] : memref<256x36xbf16, #tpu.memory_space<vmem>>, vector<16x4xbf16>
    tpu.vector_store %arg8[%c80, %c0_35], %42 {strides = array<i32>} : memref<256x36xbf16, #tpu.memory_space<vmem>>, vector<16x4xbf16>,
    %c6_i32 = arith.constant 6 : i32
    %44 = arith.addi %1, %c6_i32 : i32
    %c1_i32_36 = arith.constant 1 : i32
    %45 = arith.muli %44, %c1_i32_36 : i32
    %c0_i32_37 = arith.constant 0 : i32
    %46 = arith.addi %45, %c0_i32_37 : i32
    %c0_38 = arith.constant 0 : index
    %47 = arith.index_cast %46 : i32 to index
    %c0_39 = arith.constant 0 : index
    %c0_40 = arith.constant 0 : index
    %48 = vector.load %arg3[%c0_38, %47, %c0_39, %c0_40] : memref<1x18x18x4xbf16, #tpu.memory_space<vmem>>, vector<1x1x16x4xbf16>
    %49 = vector.shape_cast %48 : vector<1x1x16x4xbf16> to vector<16x4xbf16>
    %c96 = arith.constant 96 : index
    %c0_41 = arith.constant 0 : index
    %50 = vector.load %arg8[%c96, %c0_41] : memref<256x36xbf16, #tpu.memory_space<vmem>>, vector<16x4xbf16>
    tpu.vector_store %arg8[%c96, %c0_41], %49 {strides = array<i32>} : memref<256x36xbf16, #tpu.memory_space<vmem>>, vector<16x4xbf16>,
    %c7_i32 = arith.constant 7 : i32
    %51 = arith.addi %1, %c7_i32 : i32
    %c1_i32_42 = arith.constant 1 : i32
    %52 = arith.muli %51, %c1_i32_42 : i32
    %c0_i32_43 = arith.constant 0 : i32
    %53 = arith.addi %52, %c0_i32_43 : i32
    %c0_44 = arith.constant 0 : index
    %54 = arith.index_cast %53 : i32 to index
    %c0_45 = arith.constant 0 : index
    %c0_46 = arith.constant 0 : index
    %55 = vector.load %arg3[%c0_44, %54, %c0_45, %c0_46] : memref<1x18x18x4xbf16, #tpu.memory_space<vmem>>, vector<1x1x16x4xbf16>
    %56 = vector.shape_cast %55 : vector<1x1x16x4xbf16> to vector<16x4xbf16>
    %c112 = arith.constant 112 : index
    %c0_47 = arith.constant 0 : index
    %57 = vector.load %arg8[%c112, %c0_47] : memref<256x36xbf16, #tpu.memory_space<vmem>>, vector<16x4xbf16>
    tpu.vector_store %arg8[%c112, %c0_47], %56 {strides = array<i32>} : memref<256x36xbf16, #tpu.memory_space<vmem>>, vector<16x4xbf16>,
    %c8_i32 = arith.constant 8 : i32
    %58 = arith.addi %1, %c8_i32 : i32
    %c1_i32_48 = arith.constant 1 : i32
    %59 = arith.muli %58, %c1_i32_48 : i32
    %c0_i32_49 = arith.constant 0 : i32
    %60 = arith.addi %59, %c0_i32_49 : i32
    %c0_50 = arith.constant 0 : index
    %61 = arith.index_cast %60 : i32 to index
    %c0_51 = arith.constant 0 : index
    %c0_52 = arith.constant 0 : index
    %62 = vector.load %arg3[%c0_50, %61, %c0_51, %c0_52] : memref<1x18x18x4xbf16, #tpu.memory_space<vmem>>, vector<1x1x16x4xbf16>
    %63 = vector.shape_cast %62 : vector<1x1x16x4xbf16> to vector<16x4xbf16>
    %c128 = arith.constant 128 : index
    %c0_53 = arith.constant 0 : index
    %64 = vector.load %arg8[%c128, %c0_53] : memref<256x36xbf16, #tpu.memory_space<vmem>>, vector<16x4xbf16>
    tpu.vector_store %arg8[%c128, %c0_53], %63 {strides = array<i32>} : memref<256x36xbf16, #tpu.memory_space<vmem>>, vector<16x4xbf16>,
    %c9_i32 = arith.constant 9 : i32
    %65 = arith.addi %1, %c9_i32 : i32
    %c1_i32_54 = arith.constant 1 : i32
    %66 = arith.muli %65, %c1_i32_54 : i32
    %c0_i32_55 = arith.constant 0 : i32
    %67 = arith.addi %66, %c0_i32_55 : i32
    %c0_56 = arith.constant 0 : index
    %68 = arith.index_cast %67 : i32 to index
    %c0_57 = arith.constant 0 : index
    %c0_58 = arith.constant 0 : index
    %69 = vector.load %arg3[%c0_56, %68, %c0_57, %c0_58] : memref<1x18x18x4xbf16, #tpu.memory_space<vmem>>, vector<1x1x16x4xbf16>
    %70 = vector.shape_cast %69 : vector<1x1x16x4xbf16> to vector<16x4xbf16>
    %c144 = arith.constant 144 : index
    %c0_59 = arith.constant 0 : index
    %71 = vector.load %arg8[%c144, %c0_59] : memref<256x36xbf16, #tpu.memory_space<vmem>>, vector<16x4xbf16>
    tpu.vector_store %arg8[%c144, %c0_59], %70 {strides = array<i32>} : memref<256x36xbf16, #tpu.memory_space<vmem>>, vector<16x4xbf16>,
    %c10_i32 = arith.constant 10 : i32
    %72 = arith.addi %1, %c10_i32 : i32
    %c1_i32_60 = arith.constant 1 : i32
    %73 = arith.muli %72, %c1_i32_60 : i32
    %c0_i32_61 = arith.constant 0 : i32
    %74 = arith.addi %73, %c0_i32_61 : i32
    %c0_62 = arith.constant 0 : index
    %75 = arith.index_cast %74 : i32 to index
    %c0_63 = arith.constant 0 : index
    %c0_64 = arith.constant 0 : index
    %76 = vector.load %arg3[%c0_62, %75, %c0_63, %c0_64] : memref<1x18x18x4xbf16, #tpu.memory_space<vmem>>, vector<1x1x16x4xbf16>
    %77 = vector.shape_cast %76 : vector<1x1x16x4xbf16> to vector<16x4xbf16>
    %c160 = arith.constant 160 : index
    %c0_65 = arith.constant 0 : index
    %78 = vector.load %arg8[%c160, %c0_65] : memref<256x36xbf16, #tpu.memory_space<vmem>>, vector<16x4xbf16>
    tpu.vector_store %arg8[%c160, %c0_65], %77 {strides = array<i32>} : memref<256x36xbf16, #tpu.memory_space<vmem>>, vector<16x4xbf16>,
    %c11_i32 = arith.constant 11 : i32
    %79 = arith.addi %1, %c11_i32 : i32
    %c1_i32_66 = arith.constant 1 : i32
    %80 = arith.muli %79, %c1_i32_66 : i32
    %c0_i32_67 = arith.constant 0 : i32
    %81 = arith.addi %80, %c0_i32_67 : i32
    %c0_68 = arith.constant 0 : index
    %82 = arith.index_cast %81 : i32 to index
    %c0_69 = arith.constant 0 : index
    %c0_70 = arith.constant 0 : index
    %83 = vector.load %arg3[%c0_68, %82, %c0_69, %c0_70] : memref<1x18x18x4xbf16, #tpu.memory_space<vmem>>, vector<1x1x16x4xbf16>
    %84 = vector.shape_cast %83 : vector<1x1x16x4xbf16> to vector<16x4xbf16>
    %c176 = arith.constant 176 : index
    %c0_71 = arith.constant 0 : index
    %85 = vector.load %arg8[%c176, %c0_71] : memref<256x36xbf16, #tpu.memory_space<vmem>>, vector<16x4xbf16>
    tpu.vector_store %arg8[%c176, %c0_71], %84 {strides = array<i32>} : memref<256x36xbf16, #tpu.memory_space<vmem>>, vector<16x4xbf16>,
    %c12_i32 = arith.constant 12 : i32
    %86 = arith.addi %1, %c12_i32 : i32
    %c1_i32_72 = arith.constant 1 : i32
    %87 = arith.muli %86, %c1_i32_72 : i32
    %c0_i32_73 = arith.constant 0 : i32
    %88 = arith.addi %87, %c0_i32_73 : i32
    %c0_74 = arith.constant 0 : index
    %89 = arith.index_cast %88 : i32 to index
    %c0_75 = arith.constant 0 : index
    %c0_76 = arith.constant 0 : index
    %90 = vector.load %arg3[%c0_74, %89, %c0_75, %c0_76] : memref<1x18x18x4xbf16, #tpu.memory_space<vmem>>, vector<1x1x16x4xbf16>
    %91 = vector.shape_cast %90 : vector<1x1x16x4xbf16> to vector<16x4xbf16>
    %c192 = arith.constant 192 : index
    %c0_77 = arith.constant 0 : index
    %92 = vector.load %arg8[%c192, %c0_77] : memref<256x36xbf16, #tpu.memory_space<vmem>>, vector<16x4xbf16>
    tpu.vector_store %arg8[%c192, %c0_77], %91 {strides = array<i32>} : memref<256x36xbf16, #tpu.memory_space<vmem>>, vector<16x4xbf16>,
    %c13_i32 = arith.constant 13 : i32
    %93 = arith.addi %1, %c13_i32 : i32
    %c1_i32_78 = arith.constant 1 : i32
    %94 = arith.muli %93, %c1_i32_78 : i32
    %c0_i32_79 = arith.constant 0 : i32
    %95 = arith.addi %94, %c0_i32_79 : i32
    %c0_80 = arith.constant 0 : index
    %96 = arith.index_cast %95 : i32 to index
    %c0_81 = arith.constant 0 : index
    %c0_82 = arith.constant 0 : index
    %97 = vector.load %arg3[%c0_80, %96, %c0_81, %c0_82] : memref<1x18x18x4xbf16, #tpu.memory_space<vmem>>, vector<1x1x16x4xbf16>
    %98 = vector.shape_cast %97 : vector<1x1x16x4xbf16> to vector<16x4xbf16>
    %c208 = arith.constant 208 : index
    %c0_83 = arith.constant 0 : index
    %99 = vector.load %arg8[%c208, %c0_83] : memref<256x36xbf16, #tpu.memory_space<vmem>>, vector<16x4xbf16>
    tpu.vector_store %arg8[%c208, %c0_83], %98 {strides = array<i32>} : memref<256x36xbf16, #tpu.memory_space<vmem>>, vector<16x4xbf16>,
    %c14_i32 = arith.constant 14 : i32
    %100 = arith.addi %1, %c14_i32 : i32
    %c1_i32_84 = arith.constant 1 : i32
    %101 = arith.muli %100, %c1_i32_84 : i32
    %c0_i32_85 = arith.constant 0 : i32
    %102 = arith.addi %101, %c0_i32_85 : i32
    %c0_86 = arith.constant 0 : index
    %103 = arith.index_cast %102 : i32 to index
    %c0_87 = arith.constant 0 : index
    %c0_88 = arith.constant 0 : index
    %104 = vector.load %arg3[%c0_86, %103, %c0_87, %c0_88] : memref<1x18x18x4xbf16, #tpu.memory_space<vmem>>, vector<1x1x16x4xbf16>
    %105 = vector.shape_cast %104 : vector<1x1x16x4xbf16> to vector<16x4xbf16>
    %c224 = arith.constant 224 : index
    %c0_89 = arith.constant 0 : index
    %106 = vector.load %arg8[%c224, %c0_89] : memref<256x36xbf16, #tpu.memory_space<vmem>>, vector<16x4xbf16>
    tpu.vector_store %arg8[%c224, %c0_89], %105 {strides = array<i32>} : memref<256x36xbf16, #tpu.memory_space<vmem>>, vector<16x4xbf16>,
    %c15_i32 = arith.constant 15 : i32
    %107 = arith.addi %1, %c15_i32 : i32
    %c1_i32_90 = arith.constant 1 : i32
    %108 = arith.muli %107, %c1_i32_90 : i32
    %c0_i32_91 = arith.constant 0 : i32
    %109 = arith.addi %108, %c0_i32_91 : i32
    %c0_92 = arith.constant 0 : index
    %110 = arith.index_cast %109 : i32 to index
    %c0_93 = arith.constant 0 : index
    %c0_94 = arith.constant 0 : index
    %111 = vector.load %arg3[%c0_92, %110, %c0_93, %c0_94] : memref<1x18x18x4xbf16, #tpu.memory_space<vmem>>, vector<1x1x16x4xbf16>
    %112 = vector.shape_cast %111 : vector<1x1x16x4xbf16> to vector<16x4xbf16>
    %c240 = arith.constant 240 : index
    %c0_95 = arith.constant 0 : index
    %113 = vector.load %arg8[%c240, %c0_95] : memref<256x36xbf16, #tpu.memory_space<vmem>>, vector<16x4xbf16>
    tpu.vector_store %arg8[%c240, %c0_95], %112 {strides = array<i32>} : memref<256x36xbf16, #tpu.memory_space<vmem>>, vector<16x4xbf16>,
    %c0_i32_96 = arith.constant 0 : i32
    %114 = arith.addi %1, %c0_i32_96 : i32
    %c1_i32_97 = arith.constant 1 : i32
    %115 = arith.muli %114, %c1_i32_97 : i32
    %c0_i32_98 = arith.constant 0 : i32
    %116 = arith.addi %115, %c0_i32_98 : i32
    %c0_99 = arith.constant 0 : index
    %117 = arith.index_cast %116 : i32 to index
    %c1 = arith.constant 1 : index
    %c0_100 = arith.constant 0 : index
    %118 = vector.load %arg3[%c0_99, %117, %c1, %c0_100] : memref<1x18x18x4xbf16, #tpu.memory_space<vmem>>, vector<1x1x16x4xbf16>
    %119 = vector.shape_cast %118 : vector<1x1x16x4xbf16> to vector<16x4xbf16>
    %c0_101 = arith.constant 0 : index
    %c4 = arith.constant 4 : index
    %120 = vector.load %arg8[%c0_101, %c4] : memref<256x36xbf16, #tpu.memory_space<vmem>>, vector<16x4xbf16>
    tpu.vector_store %arg8[%c0_101, %c4], %119 {strides = array<i32>} : memref<256x36xbf16, #tpu.memory_space<vmem>>, vector<16x4xbf16>,
    %c1_i32_102 = arith.constant 1 : i32
    %121 = arith.addi %1, %c1_i32_102 : i32
    %c1_i32_103 = arith.constant 1 : i32
    %122 = arith.muli %121, %c1_i32_103 : i32
    %c0_i32_104 = arith.constant 0 : i32
    %123 = arith.addi %122, %c0_i32_104 : i32
    %c0_105 = arith.constant 0 : index
    %124 = arith.index_cast %123 : i32 to index
    %c1_106 = arith.constant 1 : index
    %c0_107 = arith.constant 0 : index
    %125 = vector.load %arg3[%c0_105, %124, %c1_106, %c0_107] : memref<1x18x18x4xbf16, #tpu.memory_space<vmem>>, vector<1x1x16x4xbf16>
    %126 = vector.shape_cast %125 : vector<1x1x16x4xbf16> to vector<16x4xbf16>
    %c16_108 = arith.constant 16 : index
    %c4_109 = arith.constant 4 : index
    %127 = vector.load %arg8[%c16_108, %c4_109] : memref<256x36xbf16, #tpu.memory_space<vmem>>, vector<16x4xbf16>
    tpu.vector_store %arg8[%c16_108, %c4_109], %126 {strides = array<i32>} : memref<256x36xbf16, #tpu.memory_space<vmem>>, vector<16x4xbf16>,
    %c2_i32_110 = arith.constant 2 : i32
    %128 = arith.addi %1, %c2_i32_110 : i32
    %c1_i32_111 = arith.constant 1 : i32
    %129 = arith.muli %128, %c1_i32_111 : i32
    %c0_i32_112 = arith.constant 0 : i32
    %130 = arith.addi %129, %c0_i32_112 : i32
    %c0_113 = arith.constant 0 : index
    %131 = arith.index_cast %130 : i32 to index
    %c1_114 = arith.constant 1 : index
    %c0_115 = arith.constant 0 : index
    %132 = vector.load %arg3[%c0_113, %131, %c1_114, %c0_115] : memref<1x18x18x4xbf16, #tpu.memory_space<vmem>>, vector<1x1x16x4xbf16>
    %133 = vector.shape_cast %132 : vector<1x1x16x4xbf16> to vector<16x4xbf16>
    %c32_116 = arith.constant 32 : index
    %c4_117 = arith.constant 4 : index
    %134 = vector.load %arg8[%c32_116, %c4_117] : memref<256x36xbf16, #tpu.memory_space<vmem>>, vector<16x4xbf16>
    tpu.vector_store %arg8[%c32_116, %c4_117], %133 {strides = array<i32>} : memref<256x36xbf16, #tpu.memory_space<vmem>>, vector<16x4xbf16>,
    %c3_i32_118 = arith.constant 3 : i32
    %135 = arith.addi %1, %c3_i32_118 : i32
    %c1_i32_119 = arith.constant 1 : i32
    %136 = arith.muli %135, %c1_i32_119 : i32
    %c0_i32_120 = arith.constant 0 : i32
    %137 = arith.addi %136, %c0_i32_120 : i32
    %c0_121 = arith.constant 0 : index
    %138 = arith.index_cast %137 : i32 to index
    %c1_122 = arith.constant 1 : index
    %c0_123 = arith.constant 0 : index
    %139 = vector.load %arg3[%c0_121, %138, %c1_122, %c0_123] : memref<1x18x18x4xbf16, #tpu.memory_space<vmem>>, vector<1x1x16x4xbf16>
    %140 = vector.shape_cast %139 : vector<1x1x16x4xbf16> to vector<16x4xbf16>
    %c48_124 = arith.constant 48 : index
    %c4_125 = arith.constant 4 : index
    %141 = vector.load %arg8[%c48_124, %c4_125] : memref<256x36xbf16, #tpu.memory_space<vmem>>, vector<16x4xbf16>
    tpu.vector_store %arg8[%c48_124, %c4_125], %140 {strides = array<i32>} : memref<256x36xbf16, #tpu.memory_space<vmem>>, vector<16x4xbf16>,
    %c4_i32_126 = arith.constant 4 : i32
    %142 = arith.addi %1, %c4_i32_126 : i32
    %c1_i32_127 = arith.constant 1 : i32
    %143 = arith.muli %142, %c1_i32_127 : i32
    %c0_i32_128 = arith.constant 0 : i32
    %144 = arith.addi %143, %c0_i32_128 : i32
    %c0_129 = arith.constant 0 : index
    %145 = arith.index_cast %144 : i32 to index
    %c1_130 = arith.constant 1 : index
    %c0_131 = arith.constant 0 : index
    %146 = vector.load %arg3[%c0_129, %145, %c1_130, %c0_131] : memref<1x18x18x4xbf16, #tpu.memory_space<vmem>>, vector<1x1x16x4xbf16>
    %147 = vector.shape_cast %146 : vector<1x1x16x4xbf16> to vector<16x4xbf16>
    %c64_132 = arith.constant 64 : index
    %c4_133 = arith.constant 4 : index
    %148 = vector.load %arg8[%c64_132, %c4_133] : memref<256x36xbf16, #tpu.memory_space<vmem>>, vector<16x4xbf16>
    tpu.vector_store %arg8[%c64_132, %c4_133], %147 {strides = array<i32>} : memref<256x36xbf16, #tpu.memory_space<vmem>>, vector<16x4xbf16>,
    %c5_i32_134 = arith.constant 5 : i32
    %149 = arith.addi %1, %c5_i32_134 : i32
    %c1_i32_135 = arith.constant 1 : i32
    %150 = arith.muli %149, %c1_i32_135 : i32
    %c0_i32_136 = arith.constant 0 : i32
    %151 = arith.addi %150, %c0_i32_136 : i32
    %c0_137 = arith.constant 0 : index
    %152 = arith.index_cast %151 : i32 to index
    %c1_138 = arith.constant 1 : index
    %c0_139 = arith.constant 0 : index
    %153 = vector.load %arg3[%c0_137, %152, %c1_138, %c0_139] : memref<1x18x18x4xbf16, #tpu.memory_space<vmem>>, vector<1x1x16x4xbf16>
    %154 = vector.shape_cast %153 : vector<1x1x16x4xbf16> to vector<16x4xbf16>
    %c80_140 = arith.constant 80 : index
    %c4_141 = arith.constant 4 : index
    %155 = vector.load %arg8[%c80_140, %c4_141] : memref<256x36xbf16, #tpu.memory_space<vmem>>, vector<16x4xbf16>
    tpu.vector_store %arg8[%c80_140, %c4_141], %154 {strides = array<i32>} : memref<256x36xbf16, #tpu.memory_space<vmem>>, vector<16x4xbf16>,
    %c6_i32_142 = arith.constant 6 : i32
    %156 = arith.addi %1, %c6_i32_142 : i32
    %c1_i32_143 = arith.constant 1 : i32
    %157 = arith.muli %156, %c1_i32_143 : i32
    %c0_i32_144 = arith.constant 0 : i32
    %158 = arith.addi %157, %c0_i32_144 : i32
    %c0_145 = arith.constant 0 : index
    %159 = arith.index_cast %158 : i32 to index
    %c1_146 = arith.constant 1 : index
    %c0_147 = arith.constant 0 : index
    %160 = vector.load %arg3[%c0_145, %159, %c1_146, %c0_147] : memref<1x18x18x4xbf16, #tpu.memory_space<vmem>>, vector<1x1x16x4xbf16>
    %161 = vector.shape_cast %160 : vector<1x1x16x4xbf16> to vector<16x4xbf16>
    %c96_148 = arith.constant 96 : index
    %c4_149 = arith.constant 4 : index
    %162 = vector.load %arg8[%c96_148, %c4_149] : memref<256x36xbf16, #tpu.memory_space<vmem>>, vector<16x4xbf16>
    tpu.vector_store %arg8[%c96_148, %c4_149], %161 {strides = array<i32>} : memref<256x36xbf16, #tpu.memory_space<vmem>>, vector<16x4xbf16>,
    %c7_i32_150 = arith.constant 7 : i32
    %163 = arith.addi %1, %c7_i32_150 : i32
    %c1_i32_151 = arith.constant 1 : i32
    %164 = arith.muli %163, %c1_i32_151 : i32
    %c0_i32_152 = arith.constant 0 : i32
    %165 = arith.addi %164, %c0_i32_152 : i32
    %c0_153 = arith.constant 0 : index
    %166 = arith.index_cast %165 : i32 to index
    %c1_154 = arith.constant 1 : index
    %c0_155 = arith.constant 0 : index
    %167 = vector.load %arg3[%c0_153, %166, %c1_154, %c0_155] : memref<1x18x18x4xbf16, #tpu.memory_space<vmem>>, vector<1x1x16x4xbf16>
    %168 = vector.shape_cast %167 : vector<1x1x16x4xbf16> to vector<16x4xbf16>
    %c112_156 = arith.constant 112 : index
    %c4_157 = arith.constant 4 : index
    %169 = vector.load %arg8[%c112_156, %c4_157] : memref<256x36xbf16, #tpu.memory_space<vmem>>, vector<16x4xbf16>
    tpu.vector_store %arg8[%c112_156, %c4_157], %168 {strides = array<i32>} : memref<256x36xbf16, #tpu.memory_space<vmem>>, vector<16x4xbf16>,
    %c8_i32_158 = arith.constant 8 : i32
    %170 = arith.addi %1, %c8_i32_158 : i32
    %c1_i32_159 = arith.constant 1 : i32
    %171 = arith.muli %170, %c1_i32_159 : i32
    %c0_i32_160 = arith.constant 0 : i32
    %172 = arith.addi %171, %c0_i32_160 : i32
    %c0_161 = arith.constant 0 : index
    %173 = arith.index_cast %172 : i32 to index
    %c1_162 = arith.constant 1 : index
    %c0_163 = arith.constant 0 : index
    %174 = vector.load %arg3[%c0_161, %173, %c1_162, %c0_163] : memref<1x18x18x4xbf16, #tpu.memory_space<vmem>>, vector<1x1x16x4xbf16>
    %175 = vector.shape_cast %174 : vector<1x1x16x4xbf16> to vector<16x4xbf16>
    %c128_164 = arith.constant 128 : index
    %c4_165 = arith.constant 4 : index
    %176 = vector.load %arg8[%c128_164, %c4_165] : memref<256x36xbf16, #tpu.memory_space<vmem>>, vector<16x4xbf16>
    tpu.vector_store %arg8[%c128_164, %c4_165], %175 {strides = array<i32>} : memref<256x36xbf16, #tpu.memory_space<vmem>>, vector<16x4xbf16>,
    %c9_i32_166 = arith.constant 9 : i32
    %177 = arith.addi %1, %c9_i32_166 : i32
    %c1_i32_167 = arith.constant 1 : i32
    %178 = arith.muli %177, %c1_i32_167 : i32
    %c0_i32_168 = arith.constant 0 : i32
    %179 = arith.addi %178, %c0_i32_168 : i32
    %c0_169 = arith.constant 0 : index
    %180 = arith.index_cast %179 : i32 to index
    %c1_170 = arith.constant 1 : index
    %c0_171 = arith.constant 0 : index
    %181 = vector.load %arg3[%c0_169, %180, %c1_170, %c0_171] : memref<1x18x18x4xbf16, #tpu.memory_space<vmem>>, vector<1x1x16x4xbf16>
    %182 = vector.shape_cast %181 : vector<1x1x16x4xbf16> to vector<16x4xbf16>
    %c144_172 = arith.constant 144 : index
    %c4_173 = arith.constant 4 : index
    %183 = vector.load %arg8[%c144_172, %c4_173] : memref<256x36xbf16, #tpu.memory_space<vmem>>, vector<16x4xbf16>
    tpu.vector_store %arg8[%c144_172, %c4_173], %182 {strides = array<i32>} : memref<256x36xbf16, #tpu.memory_space<vmem>>, vector<16x4xbf16>,
    %c10_i32_174 = arith.constant 10 : i32
    %184 = arith.addi %1, %c10_i32_174 : i32
    %c1_i32_175 = arith.constant 1 : i32
    %185 = arith.muli %184, %c1_i32_175 : i32
    %c0_i32_176 = arith.constant 0 : i32
    %186 = arith.addi %185, %c0_i32_176 : i32
    %c0_177 = arith.constant 0 : index
    %187 = arith.index_cast %186 : i32 to index
    %c1_178 = arith.constant 1 : index
    %c0_179 = arith.constant 0 : index
    %188 = vector.load %arg3[%c0_177, %187, %c1_178, %c0_179] : memref<1x18x18x4xbf16, #tpu.memory_space<vmem>>, vector<1x1x16x4xbf16>
    %189 = vector.shape_cast %188 : vector<1x1x16x4xbf16> to vector<16x4xbf16>
    %c160_180 = arith.constant 160 : index
    %c4_181 = arith.constant 4 : index
    %190 = vector.load %arg8[%c160_180, %c4_181] : memref<256x36xbf16, #tpu.memory_space<vmem>>, vector<16x4xbf16>
    tpu.vector_store %arg8[%c160_180, %c4_181], %189 {strides = array<i32>} : memref<256x36xbf16, #tpu.memory_space<vmem>>, vector<16x4xbf16>,
    %c11_i32_182 = arith.constant 11 : i32
    %191 = arith.addi %1, %c11_i32_182 : i32
    %c1_i32_183 = arith.constant 1 : i32
    %192 = arith.muli %191, %c1_i32_183 : i32
    %c0_i32_184 = arith.constant 0 : i32
    %193 = arith.addi %192, %c0_i32_184 : i32
    %c0_185 = arith.constant 0 : index
    %194 = arith.index_cast %193 : i32 to index
    %c1_186 = arith.constant 1 : index
    %c0_187 = arith.constant 0 : index
    %195 = vector.load %arg3[%c0_185, %194, %c1_186, %c0_187] : memref<1x18x18x4xbf16, #tpu.memory_space<vmem>>, vector<1x1x16x4xbf16>
    %196 = vector.shape_cast %195 : vector<1x1x16x4xbf16> to vector<16x4xbf16>
    %c176_188 = arith.constant 176 : index
    %c4_189 = arith.constant 4 : index
    %197 = vector.load %arg8[%c176_188, %c4_189] : memref<256x36xbf16, #tpu.memory_space<vmem>>, vector<16x4xbf16>
    tpu.vector_store %arg8[%c176_188, %c4_189], %196 {strides = array<i32>} : memref<256x36xbf16, #tpu.memory_space<vmem>>, vector<16x4xbf16>,
    %c12_i32_190 = arith.constant 12 : i32
    %198 = arith.addi %1, %c12_i32_190 : i32
    %c1_i32_191 = arith.constant 1 : i32
    %199 = arith.muli %198, %c1_i32_191 : i32
    %c0_i32_192 = arith.constant 0 : i32
    %200 = arith.addi %199, %c0_i32_192 : i32
    %c0_193 = arith.constant 0 : index
    %201 = arith.index_cast %200 : i32 to index
    %c1_194 = arith.constant 1 : index
    %c0_195 = arith.constant 0 : index
    %202 = vector.load %arg3[%c0_193, %201, %c1_194, %c0_195] : memref<1x18x18x4xbf16, #tpu.memory_space<vmem>>, vector<1x1x16x4xbf16>
    %203 = vector.shape_cast %202 : vector<1x1x16x4xbf16> to vector<16x4xbf16>
    %c192_196 = arith.constant 192 : index
    %c4_197 = arith.constant 4 : index
    %204 = vector.load %arg8[%c192_196, %c4_197] : memref<256x36xbf16, #tpu.memory_space<vmem>>, vector<16x4xbf16>
    tpu.vector_store %arg8[%c192_196, %c4_197], %203 {strides = array<i32>} : memref<256x36xbf16, #tpu.memory_space<vmem>>, vector<16x4xbf16>,
    %c13_i32_198 = arith.constant 13 : i32
    %205 = arith.addi %1, %c13_i32_198 : i32
    %c1_i32_199 = arith.constant 1 : i32
    %206 = arith.muli %205, %c1_i32_199 : i32
    %c0_i32_200 = arith.constant 0 : i32
    %207 = arith.addi %206, %c0_i32_200 : i32
    %c0_201 = arith.constant 0 : index
    %208 = arith.index_cast %207 : i32 to index
    %c1_202 = arith.constant 1 : index
    %c0_203 = arith.constant 0 : index
    %209 = vector.load %arg3[%c0_201, %208, %c1_202, %c0_203] : memref<1x18x18x4xbf16, #tpu.memory_space<vmem>>, vector<1x1x16x4xbf16>
    %210 = vector.shape_cast %209 : vector<1x1x16x4xbf16> to vector<16x4xbf16>
    %c208_204 = arith.constant 208 : index
    %c4_205 = arith.constant 4 : index
    %211 = vector.load %arg8[%c208_204, %c4_205] : memref<256x36xbf16, #tpu.memory_space<vmem>>, vector<16x4xbf16>
    tpu.vector_store %arg8[%c208_204, %c4_205], %210 {strides = array<i32>} : memref<256x36xbf16, #tpu.memory_space<vmem>>, vector<16x4xbf16>,
    %c14_i32_206 = arith.constant 14 : i32
    %212 = arith.addi %1, %c14_i32_206 : i32
    %c1_i32_207 = arith.constant 1 : i32
    %213 = arith.muli %212, %c1_i32_207 : i32
    %c0_i32_208 = arith.constant 0 : i32
    %214 = arith.addi %213, %c0_i32_208 : i32
    %c0_209 = arith.constant 0 : index
    %215 = arith.index_cast %214 : i32 to index
    %c1_210 = arith.constant 1 : index
    %c0_211 = arith.constant 0 : index
    %216 = vector.load %arg3[%c0_209, %215, %c1_210, %c0_211] : memref<1x18x18x4xbf16, #tpu.memory_space<vmem>>, vector<1x1x16x4xbf16>
    %217 = vector.shape_cast %216 : vector<1x1x16x4xbf16> to vector<16x4xbf16>
    %c224_212 = arith.constant 224 : index
    %c4_213 = arith.constant 4 : index
    %218 = vector.load %arg8[%c224_212, %c4_213] : memref<256x36xbf16, #tpu.memory_space<vmem>>, vector<16x4xbf16>
    tpu.vector_store %arg8[%c224_212, %c4_213], %217 {strides = array<i32>} : memref<256x36xbf16, #tpu.memory_space<vmem>>, vector<16x4xbf16>,
    %c15_i32_214 = arith.constant 15 : i32
    %219 = arith.addi %1, %c15_i32_214 : i32
    %c1_i32_215 = arith.constant 1 : i32
    %220 = arith.muli %219, %c1_i32_215 : i32
    %c0_i32_216 = arith.constant 0 : i32
    %221 = arith.addi %220, %c0_i32_216 : i32
    %c0_217 = arith.constant 0 : index
    %222 = arith.index_cast %221 : i32 to index
    %c1_218 = arith.constant 1 : index
    %c0_219 = arith.constant 0 : index
    %223 = vector.load %arg3[%c0_217, %222, %c1_218, %c0_219] : memref<1x18x18x4xbf16, #tpu.memory_space<vmem>>, vector<1x1x16x4xbf16>
    %224 = vector.shape_cast %223 : vector<1x1x16x4xbf16> to vector<16x4xbf16>
    %c240_220 = arith.constant 240 : index
    %c4_221 = arith.constant 4 : index
    %225 = vector.load %arg8[%c240_220, %c4_221] : memref<256x36xbf16, #tpu.memory_space<vmem>>, vector<16x4xbf16>
    tpu.vector_store %arg8[%c240_220, %c4_221], %224 {strides = array<i32>} : memref<256x36xbf16, #tpu.memory_space<vmem>>, vector<16x4xbf16>,
    %c0_i32_222 = arith.constant 0 : i32
    %226 = arith.addi %1, %c0_i32_222 : i32
    %c1_i32_223 = arith.constant 1 : i32
    %227 = arith.muli %226, %c1_i32_223 : i32
    %c0_i32_224 = arith.constant 0 : i32
    %228 = arith.addi %227, %c0_i32_224 : i32
    %c0_225 = arith.constant 0 : index
    %229 = arith.index_cast %228 : i32 to index
    %c2 = arith.constant 2 : index
    %c0_226 = arith.constant 0 : index
    %230 = vector.load %arg3[%c0_225, %229, %c2, %c0_226] : memref<1x18x18x4xbf16, #tpu.memory_space<vmem>>, vector<1x1x16x4xbf16>
    %231 = vector.shape_cast %230 : vector<1x1x16x4xbf16> to vector<16x4xbf16>
    %c0_227 = arith.constant 0 : index
    %c8 = arith.constant 8 : index
    %232 = vector.load %arg8[%c0_227, %c8] : memref<256x36xbf16, #tpu.memory_space<vmem>>, vector<16x4xbf16>
    tpu.vector_store %arg8[%c0_227, %c8], %231 {strides = array<i32>} : memref<256x36xbf16, #tpu.memory_space<vmem>>, vector<16x4xbf16>,
    %c1_i32_228 = arith.constant 1 : i32
    %233 = arith.addi %1, %c1_i32_228 : i32
    %c1_i32_229 = arith.constant 1 : i32
    %234 = arith.muli %233, %c1_i32_229 : i32
    %c0_i32_230 = arith.constant 0 : i32
    %235 = arith.addi %234, %c0_i32_230 : i32
    %c0_231 = arith.constant 0 : index
    %236 = arith.index_cast %235 : i32 to index
    %c2_232 = arith.constant 2 : index
    %c0_233 = arith.constant 0 : index
    %237 = vector.load %arg3[%c0_231, %236, %c2_232, %c0_233] : memref<1x18x18x4xbf16, #tpu.memory_space<vmem>>, vector<1x1x16x4xbf16>
    %238 = vector.shape_cast %237 : vector<1x1x16x4xbf16> to vector<16x4xbf16>
    %c16_234 = arith.constant 16 : index
    %c8_235 = arith.constant 8 : index
    %239 = vector.load %arg8[%c16_234, %c8_235] : memref<256x36xbf16, #tpu.memory_space<vmem>>, vector<16x4xbf16>
    tpu.vector_store %arg8[%c16_234, %c8_235], %238 {strides = array<i32>} : memref<256x36xbf16, #tpu.memory_space<vmem>>, vector<16x4xbf16>,
    %c2_i32_236 = arith.constant 2 : i32
    %240 = arith.addi %1, %c2_i32_236 : i32
    %c1_i32_237 = arith.constant 1 : i32
    %241 = arith.muli %240, %c1_i32_237 : i32
    %c0_i32_238 = arith.constant 0 : i32
    %242 = arith.addi %241, %c0_i32_238 : i32
    %c0_239 = arith.constant 0 : index
    %243 = arith.index_cast %242 : i32 to index
    %c2_240 = arith.constant 2 : index
    %c0_241 = arith.constant 0 : index
    %244 = vector.load %arg3[%c0_239, %243, %c2_240, %c0_241] : memref<1x18x18x4xbf16, #tpu.memory_space<vmem>>, vector<1x1x16x4xbf16>
    %245 = vector.shape_cast %244 : vector<1x1x16x4xbf16> to vector<16x4xbf16>
    %c32_242 = arith.constant 32 : index
    %c8_243 = arith.constant 8 : index
    %246 = vector.load %arg8[%c32_242, %c8_243] : memref<256x36xbf16, #tpu.memory_space<vmem>>, vector<16x4xbf16>
    tpu.vector_store %arg8[%c32_242, %c8_243], %245 {strides = array<i32>} : memref<256x36xbf16, #tpu.memory_space<vmem>>, vector<16x4xbf16>,
    %c3_i32_244 = arith.constant 3 : i32
    %247 = arith.addi %1, %c3_i32_244 : i32
    %c1_i32_245 = arith.constant 1 : i32
    %248 = arith.muli %247, %c1_i32_245 : i32
    %c0_i32_246 = arith.constant 0 : i32
    %249 = arith.addi %248, %c0_i32_246 : i32
    %c0_247 = arith.constant 0 : index
    %250 = arith.index_cast %249 : i32 to index
    %c2_248 = arith.constant 2 : index
    %c0_249 = arith.constant 0 : index
    %251 = vector.load %arg3[%c0_247, %250, %c2_248, %c0_249] : memref<1x18x18x4xbf16, #tpu.memory_space<vmem>>, vector<1x1x16x4xbf16>
    %252 = vector.shape_cast %251 : vector<1x1x16x4xbf16> to vector<16x4xbf16>
    %c48_250 = arith.constant 48 : index
    %c8_251 = arith.constant 8 : index
    %253 = vector.load %arg8[%c48_250, %c8_251] : memref<256x36xbf16, #tpu.memory_space<vmem>>, vector<16x4xbf16>
    tpu.vector_store %arg8[%c48_250, %c8_251], %252 {strides = array<i32>} : memref<256x36xbf16, #tpu.memory_space<vmem>>, vector<16x4xbf16>,
    %c4_i32_252 = arith.constant 4 : i32
    %254 = arith.addi %1, %c4_i32_252 : i32
    %c1_i32_253 = arith.constant 1 : i32
    %255 = arith.muli %254, %c1_i32_253 : i32
    %c0_i32_254 = arith.constant 0 : i32
    %256 = arith.addi %255, %c0_i32_254 : i32
    %c0_255 = arith.constant 0 : index
    %257 = arith.index_cast %256 : i32 to index
    %c2_256 = arith.constant 2 : index
    %c0_257 = arith.constant 0 : index
    %258 = vector.load %arg3[%c0_255, %257, %c2_256, %c0_257] : memref<1x18x18x4xbf16, #tpu.memory_space<vmem>>, vector<1x1x16x4xbf16>
    %259 = vector.shape_cast %258 : vector<1x1x16x4xbf16> to vector<16x4xbf16>
    %c64_258 = arith.constant 64 : index
    %c8_259 = arith.constant 8 : index
    %260 = vector.load %arg8[%c64_258, %c8_259] : memref<256x36xbf16, #tpu.memory_space<vmem>>, vector<16x4xbf16>
    tpu.vector_store %arg8[%c64_258, %c8_259], %259 {strides = array<i32>} : memref<256x36xbf16, #tpu.memory_space<vmem>>, vector<16x4xbf16>,
    %c5_i32_260 = arith.constant 5 : i32
    %261 = arith.addi %1, %c5_i32_260 : i32
    %c1_i32_261 = arith.constant 1 : i32
    %262 = arith.muli %261, %c1_i32_261 : i32
    %c0_i32_262 = arith.constant 0 : i32
    %263 = arith.addi %262, %c0_i32_262 : i32
    %c0_263 = arith.constant 0 : index
    %264 = arith.index_cast %263 : i32 to index
    %c2_264 = arith.constant 2 : index
    %c0_265 = arith.constant 0 : index
    %265 = vector.load %arg3[%c0_263, %264, %c2_264, %c0_265] : memref<1x18x18x4xbf16, #tpu.memory_space<vmem>>, vector<1x1x16x4xbf16>
    %266 = vector.shape_cast %265 : vector<1x1x16x4xbf16> to vector<16x4xbf16>
    %c80_266 = arith.constant 80 : index
    %c8_267 = arith.constant 8 : index
    %267 = vector.load %arg8[%c80_266, %c8_267] : memref<256x36xbf16, #tpu.memory_space<vmem>>, vector<16x4xbf16>
    tpu.vector_store %arg8[%c80_266, %c8_267], %266 {strides = array<i32>} : memref<256x36xbf16, #tpu.memory_space<vmem>>, vector<16x4xbf16>,
    %c6_i32_268 = arith.constant 6 : i32
    %268 = arith.addi %1, %c6_i32_268 : i32
    %c1_i32_269 = arith.constant 1 : i32
    %269 = arith.muli %268, %c1_i32_269 : i32
    %c0_i32_270 = arith.constant 0 : i32
    %270 = arith.addi %269, %c0_i32_270 : i32
    %c0_271 = arith.constant 0 : index
    %271 = arith.index_cast %270 : i32 to index
    %c2_272 = arith.constant 2 : index
    %c0_273 = arith.constant 0 : index
    %272 = vector.load %arg3[%c0_271, %271, %c2_272, %c0_273] : memref<1x18x18x4xbf16, #tpu.memory_space<vmem>>, vector<1x1x16x4xbf16>
    %273 = vector.shape_cast %272 : vector<1x1x16x4xbf16> to vector<16x4xbf16>
    %c96_274 = arith.constant 96 : index
    %c8_275 = arith.constant 8 : index
    %274 = vector.load %arg8[%c96_274, %c8_275] : memref<256x36xbf16, #tpu.memory_space<vmem>>, vector<16x4xbf16>
    tpu.vector_store %arg8[%c96_274, %c8_275], %273 {strides = array<i32>} : memref<256x36xbf16, #tpu.memory_space<vmem>>, vector<16x4xbf16>,
    %c7_i32_276 = arith.constant 7 : i32
    %275 = arith.addi %1, %c7_i32_276 : i32
    %c1_i32_277 = arith.constant 1 : i32
    %276 = arith.muli %275, %c1_i32_277 : i32
    %c0_i32_278 = arith.constant 0 : i32
    %277 = arith.addi %276, %c0_i32_278 : i32
    %c0_279 = arith.constant 0 : index
    %278 = arith.index_cast %277 : i32 to index
    %c2_280 = arith.constant 2 : index
    %c0_281 = arith.constant 0 : index
    %279 = vector.load %arg3[%c0_279, %278, %c2_280, %c0_281] : memref<1x18x18x4xbf16, #tpu.memory_space<vmem>>, vector<1x1x16x4xbf16>
    %280 = vector.shape_cast %279 : vector<1x1x16x4xbf16> to vector<16x4xbf16>
    %c112_282 = arith.constant 112 : index
    %c8_283 = arith.constant 8 : index
    %281 = vector.load %arg8[%c112_282, %c8_283] : memref<256x36xbf16, #tpu.memory_space<vmem>>, vector<16x4xbf16>
    tpu.vector_store %arg8[%c112_282, %c8_283], %280 {strides = array<i32>} : memref<256x36xbf16, #tpu.memory_space<vmem>>, vector<16x4xbf16>,
    %c8_i32_284 = arith.constant 8 : i32
    %282 = arith.addi %1, %c8_i32_284 : i32
    %c1_i32_285 = arith.constant 1 : i32
    %283 = arith.muli %282, %c1_i32_285 : i32
    %c0_i32_286 = arith.constant 0 : i32
    %284 = arith.addi %283, %c0_i32_286 : i32
    %c0_287 = arith.constant 0 : index
    %285 = arith.index_cast %284 : i32 to index
    %c2_288 = arith.constant 2 : index
    %c0_289 = arith.constant 0 : index
    %286 = vector.load %arg3[%c0_287, %285, %c2_288, %c0_289] : memref<1x18x18x4xbf16, #tpu.memory_space<vmem>>, vector<1x1x16x4xbf16>
    %287 = vector.shape_cast %286 : vector<1x1x16x4xbf16> to vector<16x4xbf16>
    %c128_290 = arith.constant 128 : index
    %c8_291 = arith.constant 8 : index
    %288 = vector.load %arg8[%c128_290, %c8_291] : memref<256x36xbf16, #tpu.memory_space<vmem>>, vector<16x4xbf16>
    tpu.vector_store %arg8[%c128_290, %c8_291], %287 {strides = array<i32>} : memref<256x36xbf16, #tpu.memory_space<vmem>>, vector<16x4xbf16>,
    %c9_i32_292 = arith.constant 9 : i32
    %289 = arith.addi %1, %c9_i32_292 : i32
    %c1_i32_293 = arith.constant 1 : i32
    %290 = arith.muli %289, %c1_i32_293 : i32
    %c0_i32_294 = arith.constant 0 : i32
    %291 = arith.addi %290, %c0_i32_294 : i32
    %c0_295 = arith.constant 0 : index
    %292 = arith.index_cast %291 : i32 to index
    %c2_296 = arith.constant 2 : index
    %c0_297 = arith.constant 0 : index
    %293 = vector.load %arg3[%c0_295, %292, %c2_296, %c0_297] : memref<1x18x18x4xbf16, #tpu.memory_space<vmem>>, vector<1x1x16x4xbf16>
    %294 = vector.shape_cast %293 : vector<1x1x16x4xbf16> to vector<16x4xbf16>
    %c144_298 = arith.constant 144 : index
    %c8_299 = arith.constant 8 : index
    %295 = vector.load %arg8[%c144_298, %c8_299] : memref<256x36xbf16, #tpu.memory_space<vmem>>, vector<16x4xbf16>
    tpu.vector_store %arg8[%c144_298, %c8_299], %294 {strides = array<i32>} : memref<256x36xbf16, #tpu.memory_space<vmem>>, vector<16x4xbf16>,
    %c10_i32_300 = arith.constant 10 : i32
    %296 = arith.addi %1, %c10_i32_300 : i32
    %c1_i32_301 = arith.constant 1 : i32
    %297 = arith.muli %296, %c1_i32_301 : i32
    %c0_i32_302 = arith.constant 0 : i32
    %298 = arith.addi %297, %c0_i32_302 : i32
    %c0_303 = arith.constant 0 : index
    %299 = arith.index_cast %298 : i32 to index
    %c2_304 = arith.constant 2 : index
    %c0_305 = arith.constant 0 : index
    %300 = vector.load %arg3[%c0_303, %299, %c2_304, %c0_305] : memref<1x18x18x4xbf16, #tpu.memory_space<vmem>>, vector<1x1x16x4xbf16>
    %301 = vector.shape_cast %300 : vector<1x1x16x4xbf16> to vector<16x4xbf16>
    %c160_306 = arith.constant 160 : index
    %c8_307 = arith.constant 8 : index
    %302 = vector.load %arg8[%c160_306, %c8_307] : memref<256x36xbf16, #tpu.memory_space<vmem>>, vector<16x4xbf16>
    tpu.vector_store %arg8[%c160_306, %c8_307], %301 {strides = array<i32>} : memref<256x36xbf16, #tpu.memory_space<vmem>>, vector<16x4xbf16>,
    %c11_i32_308 = arith.constant 11 : i32
    %303 = arith.addi %1, %c11_i32_308 : i32
    %c1_i32_309 = arith.constant 1 : i32
    %304 = arith.muli %303, %c1_i32_309 : i32
    %c0_i32_310 = arith.constant 0 : i32
    %305 = arith.addi %304, %c0_i32_310 : i32
    %c0_311 = arith.constant 0 : index
    %306 = arith.index_cast %305 : i32 to index
    %c2_312 = arith.constant 2 : index
    %c0_313 = arith.constant 0 : index
    %307 = vector.load %arg3[%c0_311, %306, %c2_312, %c0_313] : memref<1x18x18x4xbf16, #tpu.memory_space<vmem>>, vector<1x1x16x4xbf16>
    %308 = vector.shape_cast %307 : vector<1x1x16x4xbf16> to vector<16x4xbf16>
    %c176_314 = arith.constant 176 : index
    %c8_315 = arith.constant 8 : index
    %309 = vector.load %arg8[%c176_314, %c8_315] : memref<256x36xbf16, #tpu.memory_space<vmem>>, vector<16x4xbf16>
    tpu.vector_store %arg8[%c176_314, %c8_315], %308 {strides = array<i32>} : memref<256x36xbf16, #tpu.memory_space<vmem>>, vector<16x4xbf16>,
    %c12_i32_316 = arith.constant 12 : i32
    %310 = arith.addi %1, %c12_i32_316 : i32
    %c1_i32_317 = arith.constant 1 : i32
    %311 = arith.muli %310, %c1_i32_317 : i32
    %c0_i32_318 = arith.constant 0 : i32
    %312 = arith.addi %311, %c0_i32_318 : i32
    %c0_319 = arith.constant 0 : index
    %313 = arith.index_cast %312 : i32 to index
    %c2_320 = arith.constant 2 : index
    %c0_321 = arith.constant 0 : index
    %314 = vector.load %arg3[%c0_319, %313, %c2_320, %c0_321] : memref<1x18x18x4xbf16, #tpu.memory_space<vmem>>, vector<1x1x16x4xbf16>
    %315 = vector.shape_cast %314 : vector<1x1x16x4xbf16> to vector<16x4xbf16>
    %c192_322 = arith.constant 192 : index
    %c8_323 = arith.constant 8 : index
    %316 = vector.load %arg8[%c192_322, %c8_323] : memref<256x36xbf16, #tpu.memory_space<vmem>>, vector<16x4xbf16>
    tpu.vector_store %arg8[%c192_322, %c8_323], %315 {strides = array<i32>} : memref<256x36xbf16, #tpu.memory_space<vmem>>, vector<16x4xbf16>,
    %c13_i32_324 = arith.constant 13 : i32
    %317 = arith.addi %1, %c13_i32_324 : i32
    %c1_i32_325 = arith.constant 1 : i32
    %318 = arith.muli %317, %c1_i32_325 : i32
    %c0_i32_326 = arith.constant 0 : i32
    %319 = arith.addi %318, %c0_i32_326 : i32
    %c0_327 = arith.constant 0 : index
    %320 = arith.index_cast %319 : i32 to index
    %c2_328 = arith.constant 2 : index
    %c0_329 = arith.constant 0 : index
    %321 = vector.load %arg3[%c0_327, %320, %c2_328, %c0_329] : memref<1x18x18x4xbf16, #tpu.memory_space<vmem>>, vector<1x1x16x4xbf16>
    %322 = vector.shape_cast %321 : vector<1x1x16x4xbf16> to vector<16x4xbf16>
    %c208_330 = arith.constant 208 : index
    %c8_331 = arith.constant 8 : index
    %323 = vector.load %arg8[%c208_330, %c8_331] : memref<256x36xbf16, #tpu.memory_space<vmem>>, vector<16x4xbf16>
    tpu.vector_store %arg8[%c208_330, %c8_331], %322 {strides = array<i32>} : memref<256x36xbf16, #tpu.memory_space<vmem>>, vector<16x4xbf16>,
    %c14_i32_332 = arith.constant 14 : i32
    %324 = arith.addi %1, %c14_i32_332 : i32
    %c1_i32_333 = arith.constant 1 : i32
    %325 = arith.muli %324, %c1_i32_333 : i32
    %c0_i32_334 = arith.constant 0 : i32
    %326 = arith.addi %325, %c0_i32_334 : i32
    %c0_335 = arith.constant 0 : index
    %327 = arith.index_cast %326 : i32 to index
    %c2_336 = arith.constant 2 : index
    %c0_337 = arith.constant 0 : index
    %328 = vector.load %arg3[%c0_335, %327, %c2_336, %c0_337] : memref<1x18x18x4xbf16, #tpu.memory_space<vmem>>, vector<1x1x16x4xbf16>
    %329 = vector.shape_cast %328 : vector<1x1x16x4xbf16> to vector<16x4xbf16>
    %c224_338 = arith.constant 224 : index
    %c8_339 = arith.constant 8 : index
    %330 = vector.load %arg8[%c224_338, %c8_339] : memref<256x36xbf16, #tpu.memory_space<vmem>>, vector<16x4xbf16>
    tpu.vector_store %arg8[%c224_338, %c8_339], %329 {strides = array<i32>} : memref<256x36xbf16, #tpu.memory_space<vmem>>, vector<16x4xbf16>,
    %c15_i32_340 = arith.constant 15 : i32
    %331 = arith.addi %1, %c15_i32_340 : i32
    %c1_i32_341 = arith.constant 1 : i32
    %332 = arith.muli %331, %c1_i32_341 : i32
    %c0_i32_342 = arith.constant 0 : i32
    %333 = arith.addi %332, %c0_i32_342 : i32
    %c0_343 = arith.constant 0 : index
    %334 = arith.index_cast %333 : i32 to index
    %c2_344 = arith.constant 2 : index
    %c0_345 = arith.constant 0 : index
    %335 = vector.load %arg3[%c0_343, %334, %c2_344, %c0_345] : memref<1x18x18x4xbf16, #tpu.memory_space<vmem>>, vector<1x1x16x4xbf16>
    %336 = vector.shape_cast %335 : vector<1x1x16x4xbf16> to vector<16x4xbf16>
    %c240_346 = arith.constant 240 : index
    %c8_347 = arith.constant 8 : index
    %337 = vector.load %arg8[%c240_346, %c8_347] : memref<256x36xbf16, #tpu.memory_space<vmem>>, vector<16x4xbf16>
    tpu.vector_store %arg8[%c240_346, %c8_347], %336 {strides = array<i32>} : memref<256x36xbf16, #tpu.memory_space<vmem>>, vector<16x4xbf16>,
    %c0_i32_348 = arith.constant 0 : i32
    %338 = arith.addi %1, %c0_i32_348 : i32
    %c1_i32_349 = arith.constant 1 : i32
    %339 = arith.muli %338, %c1_i32_349 : i32
    %c1_i32_350 = arith.constant 1 : i32
    %340 = arith.addi %339, %c1_i32_350 : i32
    %c0_351 = arith.constant 0 : index
    %341 = arith.index_cast %340 : i32 to index
    %c0_352 = arith.constant 0 : index
    %c0_353 = arith.constant 0 : index
    %342 = vector.load %arg3[%c0_351, %341, %c0_352, %c0_353] : memref<1x18x18x4xbf16, #tpu.memory_space<vmem>>, vector<1x1x16x4xbf16>
    %343 = vector.shape_cast %342 : vector<1x1x16x4xbf16> to vector<16x4xbf16>
    %c0_354 = arith.constant 0 : index
    %c12 = arith.constant 12 : index
    %344 = vector.load %arg8[%c0_354, %c12] : memref<256x36xbf16, #tpu.memory_space<vmem>>, vector<16x4xbf16>
    tpu.vector_store %arg8[%c0_354, %c12], %343 {strides = array<i32>} : memref<256x36xbf16, #tpu.memory_space<vmem>>, vector<16x4xbf16>,
    %c1_i32_355 = arith.constant 1 : i32
    %345 = arith.addi %1, %c1_i32_355 : i32
    %c1_i32_356 = arith.constant 1 : i32
    %346 = arith.muli %345, %c1_i32_356 : i32
    %c1_i32_357 = arith.constant 1 : i32
    %347 = arith.addi %346, %c1_i32_357 : i32
    %c0_358 = arith.constant 0 : index
    %348 = arith.index_cast %347 : i32 to index
    %c0_359 = arith.constant 0 : index
    %c0_360 = arith.constant 0 : index
    %349 = vector.load %arg3[%c0_358, %348, %c0_359, %c0_360] : memref<1x18x18x4xbf16, #tpu.memory_space<vmem>>, vector<1x1x16x4xbf16>
    %350 = vector.shape_cast %349 : vector<1x1x16x4xbf16> to vector<16x4xbf16>
    %c16_361 = arith.constant 16 : index
    %c12_362 = arith.constant 12 : index
    %351 = vector.load %arg8[%c16_361, %c12_362] : memref<256x36xbf16, #tpu.memory_space<vmem>>, vector<16x4xbf16>
    tpu.vector_store %arg8[%c16_361, %c12_362], %350 {strides = array<i32>} : memref<256x36xbf16, #tpu.memory_space<vmem>>, vector<16x4xbf16>,
    %c2_i32_363 = arith.constant 2 : i32
    %352 = arith.addi %1, %c2_i32_363 : i32
    %c1_i32_364 = arith.constant 1 : i32
    %353 = arith.muli %352, %c1_i32_364 : i32
    %c1_i32_365 = arith.constant 1 : i32
    %354 = arith.addi %353, %c1_i32_365 : i32
    %c0_366 = arith.constant 0 : index
    %355 = arith.index_cast %354 : i32 to index
    %c0_367 = arith.constant 0 : index
    %c0_368 = arith.constant 0 : index
    %356 = vector.load %arg3[%c0_366, %355, %c0_367, %c0_368] : memref<1x18x18x4xbf16, #tpu.memory_space<vmem>>, vector<1x1x16x4xbf16>
    %357 = vector.shape_cast %356 : vector<1x1x16x4xbf16> to vector<16x4xbf16>
    %c32_369 = arith.constant 32 : index
    %c12_370 = arith.constant 12 : index
    %358 = vector.load %arg8[%c32_369, %c12_370] : memref<256x36xbf16, #tpu.memory_space<vmem>>, vector<16x4xbf16>
    tpu.vector_store %arg8[%c32_369, %c12_370], %357 {strides = array<i32>} : memref<256x36xbf16, #tpu.memory_space<vmem>>, vector<16x4xbf16>,
    %c3_i32_371 = arith.constant 3 : i32
    %359 = arith.addi %1, %c3_i32_371 : i32
    %c1_i32_372 = arith.constant 1 : i32
    %360 = arith.muli %359, %c1_i32_372 : i32
    %c1_i32_373 = arith.constant 1 : i32
    %361 = arith.addi %360, %c1_i32_373 : i32
    %c0_374 = arith.constant 0 : index
    %362 = arith.index_cast %361 : i32 to index
    %c0_375 = arith.constant 0 : index
    %c0_376 = arith.constant 0 : index
    %363 = vector.load %arg3[%c0_374, %362, %c0_375, %c0_376] : memref<1x18x18x4xbf16, #tpu.memory_space<vmem>>, vector<1x1x16x4xbf16>
    %364 = vector.shape_cast %363 : vector<1x1x16x4xbf16> to vector<16x4xbf16>
    %c48_377 = arith.constant 48 : index
    %c12_378 = arith.constant 12 : index
    %365 = vector.load %arg8[%c48_377, %c12_378] : memref<256x36xbf16, #tpu.memory_space<vmem>>, vector<16x4xbf16>
    tpu.vector_store %arg8[%c48_377, %c12_378], %364 {strides = array<i32>} : memref<256x36xbf16, #tpu.memory_space<vmem>>, vector<16x4xbf16>,
    %c4_i32_379 = arith.constant 4 : i32
    %366 = arith.addi %1, %c4_i32_379 : i32
    %c1_i32_380 = arith.constant 1 : i32
    %367 = arith.muli %366, %c1_i32_380 : i32
    %c1_i32_381 = arith.constant 1 : i32
    %368 = arith.addi %367, %c1_i32_381 : i32
    %c0_382 = arith.constant 0 : index
    %369 = arith.index_cast %368 : i32 to index
    %c0_383 = arith.constant 0 : index
    %c0_384 = arith.constant 0 : index
    %370 = vector.load %arg3[%c0_382, %369, %c0_383, %c0_384] : memref<1x18x18x4xbf16, #tpu.memory_space<vmem>>, vector<1x1x16x4xbf16>
    %371 = vector.shape_cast %370 : vector<1x1x16x4xbf16> to vector<16x4xbf16>
    %c64_385 = arith.constant 64 : index
    %c12_386 = arith.constant 12 : index
    %372 = vector.load %arg8[%c64_385, %c12_386] : memref<256x36xbf16, #tpu.memory_space<vmem>>, vector<16x4xbf16>
    tpu.vector_store %arg8[%c64_385, %c12_386], %371 {strides = array<i32>} : memref<256x36xbf16, #tpu.memory_space<vmem>>, vector<16x4xbf16>,
    %c5_i32_387 = arith.constant 5 : i32
    %373 = arith.addi %1, %c5_i32_387 : i32
    %c1_i32_388 = arith.constant 1 : i32
    %374 = arith.muli %373, %c1_i32_388 : i32
    %c1_i32_389 = arith.constant 1 : i32
    %375 = arith.addi %374, %c1_i32_389 : i32
    %c0_390 = arith.constant 0 : index
    %376 = arith.index_cast %375 : i32 to index
    %c0_391 = arith.constant 0 : index
    %c0_392 = arith.constant 0 : index
    %377 = vector.load %arg3[%c0_390, %376, %c0_391, %c0_392] : memref<1x18x18x4xbf16, #tpu.memory_space<vmem>>, vector<1x1x16x4xbf16>
    %378 = vector.shape_cast %377 : vector<1x1x16x4xbf16> to vector<16x4xbf16>
    %c80_393 = arith.constant 80 : index
    %c12_394 = arith.constant 12 : index
    %379 = vector.load %arg8[%c80_393, %c12_394] : memref<256x36xbf16, #tpu.memory_space<vmem>>, vector<16x4xbf16>
    tpu.vector_store %arg8[%c80_393, %c12_394], %378 {strides = array<i32>} : memref<256x36xbf16, #tpu.memory_space<vmem>>, vector<16x4xbf16>,
    %c6_i32_395 = arith.constant 6 : i32
    %380 = arith.addi %1, %c6_i32_395 : i32
    %c1_i32_396 = arith.constant 1 : i32
    %381 = arith.muli %380, %c1_i32_396 : i32
    %c1_i32_397 = arith.constant 1 : i32
    %382 = arith.addi %381, %c1_i32_397 : i32
    %c0_398 = arith.constant 0 : index
    %383 = arith.index_cast %382 : i32 to index
    %c0_399 = arith.constant 0 : index
    %c0_400 = arith.constant 0 : index
    %384 = vector.load %arg3[%c0_398, %383, %c0_399, %c0_400] : memref<1x18x18x4xbf16, #tpu.memory_space<vmem>>, vector<1x1x16x4xbf16>
    %385 = vector.shape_cast %384 : vector<1x1x16x4xbf16> to vector<16x4xbf16>
    %c96_401 = arith.constant 96 : index
    %c12_402 = arith.constant 12 : index
    %386 = vector.load %arg8[%c96_401, %c12_402] : memref<256x36xbf16, #tpu.memory_space<vmem>>, vector<16x4xbf16>
    tpu.vector_store %arg8[%c96_401, %c12_402], %385 {strides = array<i32>} : memref<256x36xbf16, #tpu.memory_space<vmem>>, vector<16x4xbf16>,
    %c7_i32_403 = arith.constant 7 : i32
    %387 = arith.addi %1, %c7_i32_403 : i32
    %c1_i32_404 = arith.constant 1 : i32
    %388 = arith.muli %387, %c1_i32_404 : i32
    %c1_i32_405 = arith.constant 1 : i32
    %389 = arith.addi %388, %c1_i32_405 : i32
    %c0_406 = arith.constant 0 : index
    %390 = arith.index_cast %389 : i32 to index
    %c0_407 = arith.constant 0 : index
    %c0_408 = arith.constant 0 : index
    %391 = vector.load %arg3[%c0_406, %390, %c0_407, %c0_408] : memref<1x18x18x4xbf16, #tpu.memory_space<vmem>>, vector<1x1x16x4xbf16>
    %392 = vector.shape_cast %391 : vector<1x1x16x4xbf16> to vector<16x4xbf16>
    %c112_409 = arith.constant 112 : index
    %c12_410 = arith.constant 12 : index
    %393 = vector.load %arg8[%c112_409, %c12_410] : memref<256x36xbf16, #tpu.memory_space<vmem>>, vector<16x4xbf16>
    tpu.vector_store %arg8[%c112_409, %c12_410], %392 {strides = array<i32>} : memref<256x36xbf16, #tpu.memory_space<vmem>>, vector<16x4xbf16>,
    %c8_i32_411 = arith.constant 8 : i32
    %394 = arith.addi %1, %c8_i32_411 : i32
    %c1_i32_412 = arith.constant 1 : i32
    %395 = arith.muli %394, %c1_i32_412 : i32
    %c1_i32_413 = arith.constant 1 : i32
    %396 = arith.addi %395, %c1_i32_413 : i32
    %c0_414 = arith.constant 0 : index
    %397 = arith.index_cast %396 : i32 to index
    %c0_415 = arith.constant 0 : index
    %c0_416 = arith.constant 0 : index
    %398 = vector.load %arg3[%c0_414, %397, %c0_415, %c0_416] : memref<1x18x18x4xbf16, #tpu.memory_space<vmem>>, vector<1x1x16x4xbf16>
    %399 = vector.shape_cast %398 : vector<1x1x16x4xbf16> to vector<16x4xbf16>
    %c128_417 = arith.constant 128 : index
    %c12_418 = arith.constant 12 : index
    %400 = vector.load %arg8[%c128_417, %c12_418] : memref<256x36xbf16, #tpu.memory_space<vmem>>, vector<16x4xbf16>
    tpu.vector_store %arg8[%c128_417, %c12_418], %399 {strides = array<i32>} : memref<256x36xbf16, #tpu.memory_space<vmem>>, vector<16x4xbf16>,
    %c9_i32_419 = arith.constant 9 : i32
    %401 = arith.addi %1, %c9_i32_419 : i32
    %c1_i32_420 = arith.constant 1 : i32
    %402 = arith.muli %401, %c1_i32_420 : i32
    %c1_i32_421 = arith.constant 1 : i32
    %403 = arith.addi %402, %c1_i32_421 : i32
    %c0_422 = arith.constant 0 : index
    %404 = arith.index_cast %403 : i32 to index
    %c0_423 = arith.constant 0 : index
    %c0_424 = arith.constant 0 : index
    %405 = vector.load %arg3[%c0_422, %404, %c0_423, %c0_424] : memref<1x18x18x4xbf16, #tpu.memory_space<vmem>>, vector<1x1x16x4xbf16>
    %406 = vector.shape_cast %405 : vector<1x1x16x4xbf16> to vector<16x4xbf16>
    %c144_425 = arith.constant 144 : index
    %c12_426 = arith.constant 12 : index
    %407 = vector.load %arg8[%c144_425, %c12_426] : memref<256x36xbf16, #tpu.memory_space<vmem>>, vector<16x4xbf16>
    tpu.vector_store %arg8[%c144_425, %c12_426], %406 {strides = array<i32>} : memref<256x36xbf16, #tpu.memory_space<vmem>>, vector<16x4xbf16>,
    %c10_i32_427 = arith.constant 10 : i32
    %408 = arith.addi %1, %c10_i32_427 : i32
    %c1_i32_428 = arith.constant 1 : i32
    %409 = arith.muli %408, %c1_i32_428 : i32
    %c1_i32_429 = arith.constant 1 : i32
    %410 = arith.addi %409, %c1_i32_429 : i32
    %c0_430 = arith.constant 0 : index
    %411 = arith.index_cast %410 : i32 to index
    %c0_431 = arith.constant 0 : index
    %c0_432 = arith.constant 0 : index
    %412 = vector.load %arg3[%c0_430, %411, %c0_431, %c0_432] : memref<1x18x18x4xbf16, #tpu.memory_space<vmem>>, vector<1x1x16x4xbf16>
    %413 = vector.shape_cast %412 : vector<1x1x16x4xbf16> to vector<16x4xbf16>
    %c160_433 = arith.constant 160 : index
    %c12_434 = arith.constant 12 : index
    %414 = vector.load %arg8[%c160_433, %c12_434] : memref<256x36xbf16, #tpu.memory_space<vmem>>, vector<16x4xbf16>
    tpu.vector_store %arg8[%c160_433, %c12_434], %413 {strides = array<i32>} : memref<256x36xbf16, #tpu.memory_space<vmem>>, vector<16x4xbf16>,
    %c11_i32_435 = arith.constant 11 : i32
    %415 = arith.addi %1, %c11_i32_435 : i32
    %c1_i32_436 = arith.constant 1 : i32
    %416 = arith.muli %415, %c1_i32_436 : i32
    %c1_i32_437 = arith.constant 1 : i32
    %417 = arith.addi %416, %c1_i32_437 : i32
    %c0_438 = arith.constant 0 : index
    %418 = arith.index_cast %417 : i32 to index
    %c0_439 = arith.constant 0 : index
    %c0_440 = arith.constant 0 : index
    %419 = vector.load %arg3[%c0_438, %418, %c0_439, %c0_440] : memref<1x18x18x4xbf16, #tpu.memory_space<vmem>>, vector<1x1x16x4xbf16>
    %420 = vector.shape_cast %419 : vector<1x1x16x4xbf16> to vector<16x4xbf16>
    %c176_441 = arith.constant 176 : index
    %c12_442 = arith.constant 12 : index
    %421 = vector.load %arg8[%c176_441, %c12_442] : memref<256x36xbf16, #tpu.memory_space<vmem>>, vector<16x4xbf16>
    tpu.vector_store %arg8[%c176_441, %c12_442], %420 {strides = array<i32>} : memref<256x36xbf16, #tpu.memory_space<vmem>>, vector<16x4xbf16>,
    %c12_i32_443 = arith.constant 12 : i32
    %422 = arith.addi %1, %c12_i32_443 : i32
    %c1_i32_444 = arith.constant 1 : i32
    %423 = arith.muli %422, %c1_i32_444 : i32
    %c1_i32_445 = arith.constant 1 : i32
    %424 = arith.addi %423, %c1_i32_445 : i32
    %c0_446 = arith.constant 0 : index
    %425 = arith.index_cast %424 : i32 to index
    %c0_447 = arith.constant 0 : index
    %c0_448 = arith.constant 0 : index
    %426 = vector.load %arg3[%c0_446, %425, %c0_447, %c0_448] : memref<1x18x18x4xbf16, #tpu.memory_space<vmem>>, vector<1x1x16x4xbf16>
    %427 = vector.shape_cast %426 : vector<1x1x16x4xbf16> to vector<16x4xbf16>
    %c192_449 = arith.constant 192 : index
    %c12_450 = arith.constant 12 : index
    %428 = vector.load %arg8[%c192_449, %c12_450] : memref<256x36xbf16, #tpu.memory_space<vmem>>, vector<16x4xbf16>
    tpu.vector_store %arg8[%c192_449, %c12_450], %427 {strides = array<i32>} : memref<256x36xbf16, #tpu.memory_space<vmem>>, vector<16x4xbf16>,
    %c13_i32_451 = arith.constant 13 : i32
    %429 = arith.addi %1, %c13_i32_451 : i32
    %c1_i32_452 = arith.constant 1 : i32
    %430 = arith.muli %429, %c1_i32_452 : i32
    %c1_i32_453 = arith.constant 1 : i32
    %431 = arith.addi %430, %c1_i32_453 : i32
    %c0_454 = arith.constant 0 : index
    %432 = arith.index_cast %431 : i32 to index
    %c0_455 = arith.constant 0 : index
    %c0_456 = arith.constant 0 : index
    %433 = vector.load %arg3[%c0_454, %432, %c0_455, %c0_456] : memref<1x18x18x4xbf16, #tpu.memory_space<vmem>>, vector<1x1x16x4xbf16>
    %434 = vector.shape_cast %433 : vector<1x1x16x4xbf16> to vector<16x4xbf16>
    %c208_457 = arith.constant 208 : index
    %c12_458 = arith.constant 12 : index
    %435 = vector.load %arg8[%c208_457, %c12_458] : memref<256x36xbf16, #tpu.memory_space<vmem>>, vector<16x4xbf16>
    tpu.vector_store %arg8[%c208_457, %c12_458], %434 {strides = array<i32>} : memref<256x36xbf16, #tpu.memory_space<vmem>>, vector<16x4xbf16>,
    %c14_i32_459 = arith.constant 14 : i32
    %436 = arith.addi %1, %c14_i32_459 : i32
    %c1_i32_460 = arith.constant 1 : i32
    %437 = arith.muli %436, %c1_i32_460 : i32
    %c1_i32_461 = arith.constant 1 : i32
    %438 = arith.addi %437, %c1_i32_461 : i32
    %c0_462 = arith.constant 0 : index
    %439 = arith.index_cast %438 : i32 to index
    %c0_463 = arith.constant 0 : index
    %c0_464 = arith.constant 0 : index
    %440 = vector.load %arg3[%c0_462, %439, %c0_463, %c0_464] : memref<1x18x18x4xbf16, #tpu.memory_space<vmem>>, vector<1x1x16x4xbf16>
    %441 = vector.shape_cast %440 : vector<1x1x16x4xbf16> to vector<16x4xbf16>
    %c224_465 = arith.constant 224 : index
    %c12_466 = arith.constant 12 : index
    %442 = vector.load %arg8[%c224_465, %c12_466] : memref<256x36xbf16, #tpu.memory_space<vmem>>, vector<16x4xbf16>
    tpu.vector_store %arg8[%c224_465, %c12_466], %441 {strides = array<i32>} : memref<256x36xbf16, #tpu.memory_space<vmem>>, vector<16x4xbf16>,
    %c15_i32_467 = arith.constant 15 : i32
    %443 = arith.addi %1, %c15_i32_467 : i32
    %c1_i32_468 = arith.constant 1 : i32
    %444 = arith.muli %443, %c1_i32_468 : i32
    %c1_i32_469 = arith.constant 1 : i32
    %445 = arith.addi %444, %c1_i32_469 : i32
    %c0_470 = arith.constant 0 : index
    %446 = arith.index_cast %445 : i32 to index
    %c0_471 = arith.constant 0 : index
    %c0_472 = arith.constant 0 : index
    %447 = vector.load %arg3[%c0_470, %446, %c0_471, %c0_472] : memref<1x18x18x4xbf16, #tpu.memory_space<vmem>>, vector<1x1x16x4xbf16>
    %448 = vector.shape_cast %447 : vector<1x1x16x4xbf16> to vector<16x4xbf16>
    %c240_473 = arith.constant 240 : index
    %c12_474 = arith.constant 12 : index
    %449 = vector.load %arg8[%c240_473, %c12_474] : memref<256x36xbf16, #tpu.memory_space<vmem>>, vector<16x4xbf16>
    tpu.vector_store %arg8[%c240_473, %c12_474], %448 {strides = array<i32>} : memref<256x36xbf16, #tpu.memory_space<vmem>>, vector<16x4xbf16>,
    %c0_i32_475 = arith.constant 0 : i32
    %450 = arith.addi %1, %c0_i32_475 : i32
    %c1_i32_476 = arith.constant 1 : i32
    %451 = arith.muli %450, %c1_i32_476 : i32
    %c1_i32_477 = arith.constant 1 : i32
    %452 = arith.addi %451, %c1_i32_477 : i32
    %c0_478 = arith.constant 0 : index
    %453 = arith.index_cast %452 : i32 to index
    %c1_479 = arith.constant 1 : index
    %c0_480 = arith.constant 0 : index
    %454 = vector.load %arg3[%c0_478, %453, %c1_479, %c0_480] : memref<1x18x18x4xbf16, #tpu.memory_space<vmem>>, vector<1x1x16x4xbf16>
    %455 = vector.shape_cast %454 : vector<1x1x16x4xbf16> to vector<16x4xbf16>
    %c0_481 = arith.constant 0 : index
    %c16_482 = arith.constant 16 : index
    %456 = vector.load %arg8[%c0_481, %c16_482] : memref<256x36xbf16, #tpu.memory_space<vmem>>, vector<16x4xbf16>
    tpu.vector_store %arg8[%c0_481, %c16_482], %455 {strides = array<i32>} : memref<256x36xbf16, #tpu.memory_space<vmem>>, vector<16x4xbf16>,
    %c1_i32_483 = arith.constant 1 : i32
    %457 = arith.addi %1, %c1_i32_483 : i32
    %c1_i32_484 = arith.constant 1 : i32
    %458 = arith.muli %457, %c1_i32_484 : i32
    %c1_i32_485 = arith.constant 1 : i32
    %459 = arith.addi %458, %c1_i32_485 : i32
    %c0_486 = arith.constant 0 : index
    %460 = arith.index_cast %459 : i32 to index
    %c1_487 = arith.constant 1 : index
    %c0_488 = arith.constant 0 : index
    %461 = vector.load %arg3[%c0_486, %460, %c1_487, %c0_488] : memref<1x18x18x4xbf16, #tpu.memory_space<vmem>>, vector<1x1x16x4xbf16>
    %462 = vector.shape_cast %461 : vector<1x1x16x4xbf16> to vector<16x4xbf16>
    %c16_489 = arith.constant 16 : index
    %c16_490 = arith.constant 16 : index
    %463 = vector.load %arg8[%c16_489, %c16_490] : memref<256x36xbf16, #tpu.memory_space<vmem>>, vector<16x4xbf16>
    tpu.vector_store %arg8[%c16_489, %c16_490], %462 {strides = array<i32>} : memref<256x36xbf16, #tpu.memory_space<vmem>>, vector<16x4xbf16>,
    %c2_i32_491 = arith.constant 2 : i32
    %464 = arith.addi %1, %c2_i32_491 : i32
    %c1_i32_492 = arith.constant 1 : i32
    %465 = arith.muli %464, %c1_i32_492 : i32
    %c1_i32_493 = arith.constant 1 : i32
    %466 = arith.addi %465, %c1_i32_493 : i32
    %c0_494 = arith.constant 0 : index
    %467 = arith.index_cast %466 : i32 to index
    %c1_495 = arith.constant 1 : index
    %c0_496 = arith.constant 0 : index
    %468 = vector.load %arg3[%c0_494, %467, %c1_495, %c0_496] : memref<1x18x18x4xbf16, #tpu.memory_space<vmem>>, vector<1x1x16x4xbf16>
    %469 = vector.shape_cast %468 : vector<1x1x16x4xbf16> to vector<16x4xbf16>
    %c32_497 = arith.constant 32 : index
    %c16_498 = arith.constant 16 : index
    %470 = vector.load %arg8[%c32_497, %c16_498] : memref<256x36xbf16, #tpu.memory_space<vmem>>, vector<16x4xbf16>
    tpu.vector_store %arg8[%c32_497, %c16_498], %469 {strides = array<i32>} : memref<256x36xbf16, #tpu.memory_space<vmem>>, vector<16x4xbf16>,
    %c3_i32_499 = arith.constant 3 : i32
    %471 = arith.addi %1, %c3_i32_499 : i32
    %c1_i32_500 = arith.constant 1 : i32
    %472 = arith.muli %471, %c1_i32_500 : i32
    %c1_i32_501 = arith.constant 1 : i32
    %473 = arith.addi %472, %c1_i32_501 : i32
    %c0_502 = arith.constant 0 : index
    %474 = arith.index_cast %473 : i32 to index
    %c1_503 = arith.constant 1 : index
    %c0_504 = arith.constant 0 : index
    %475 = vector.load %arg3[%c0_502, %474, %c1_503, %c0_504] : memref<1x18x18x4xbf16, #tpu.memory_space<vmem>>, vector<1x1x16x4xbf16>
    %476 = vector.shape_cast %475 : vector<1x1x16x4xbf16> to vector<16x4xbf16>
    %c48_505 = arith.constant 48 : index
    %c16_506 = arith.constant 16 : index
    %477 = vector.load %arg8[%c48_505, %c16_506] : memref<256x36xbf16, #tpu.memory_space<vmem>>, vector<16x4xbf16>
    tpu.vector_store %arg8[%c48_505, %c16_506], %476 {strides = array<i32>} : memref<256x36xbf16, #tpu.memory_space<vmem>>, vector<16x4xbf16>,
    %c4_i32_507 = arith.constant 4 : i32
    %478 = arith.addi %1, %c4_i32_507 : i32
    %c1_i32_508 = arith.constant 1 : i32
    %479 = arith.muli %478, %c1_i32_508 : i32
    %c1_i32_509 = arith.constant 1 : i32
    %480 = arith.addi %479, %c1_i32_509 : i32
    %c0_510 = arith.constant 0 : index
    %481 = arith.index_cast %480 : i32 to index
    %c1_511 = arith.constant 1 : index
    %c0_512 = arith.constant 0 : index
    %482 = vector.load %arg3[%c0_510, %481, %c1_511, %c0_512] : memref<1x18x18x4xbf16, #tpu.memory_space<vmem>>, vector<1x1x16x4xbf16>
    %483 = vector.shape_cast %482 : vector<1x1x16x4xbf16> to vector<16x4xbf16>
    %c64_513 = arith.constant 64 : index
    %c16_514 = arith.constant 16 : index
    %484 = vector.load %arg8[%c64_513, %c16_514] : memref<256x36xbf16, #tpu.memory_space<vmem>>, vector<16x4xbf16>
    tpu.vector_store %arg8[%c64_513, %c16_514], %483 {strides = array<i32>} : memref<256x36xbf16, #tpu.memory_space<vmem>>, vector<16x4xbf16>,
    %c5_i32_515 = arith.constant 5 : i32
    %485 = arith.addi %1, %c5_i32_515 : i32
    %c1_i32_516 = arith.constant 1 : i32
    %486 = arith.muli %485, %c1_i32_516 : i32
    %c1_i32_517 = arith.constant 1 : i32
    %487 = arith.addi %486, %c1_i32_517 : i32
    %c0_518 = arith.constant 0 : index
    %488 = arith.index_cast %487 : i32 to index
    %c1_519 = arith.constant 1 : index
    %c0_520 = arith.constant 0 : index
    %489 = vector.load %arg3[%c0_518, %488, %c1_519, %c0_520] : memref<1x18x18x4xbf16, #tpu.memory_space<vmem>>, vector<1x1x16x4xbf16>
    %490 = vector.shape_cast %489 : vector<1x1x16x4xbf16> to vector<16x4xbf16>
    %c80_521 = arith.constant 80 : index
    %c16_522 = arith.constant 16 : index
    %491 = vector.load %arg8[%c80_521, %c16_522] : memref<256x36xbf16, #tpu.memory_space<vmem>>, vector<16x4xbf16>
    tpu.vector_store %arg8[%c80_521, %c16_522], %490 {strides = array<i32>} : memref<256x36xbf16, #tpu.memory_space<vmem>>, vector<16x4xbf16>,
    %c6_i32_523 = arith.constant 6 : i32
    %492 = arith.addi %1, %c6_i32_523 : i32
    %c1_i32_524 = arith.constant 1 : i32
    %493 = arith.muli %492, %c1_i32_524 : i32
    %c1_i32_525 = arith.constant 1 : i32
    %494 = arith.addi %493, %c1_i32_525 : i32
    %c0_526 = arith.constant 0 : index
    %495 = arith.index_cast %494 : i32 to index
    %c1_527 = arith.constant 1 : index
    %c0_528 = arith.constant 0 : index
    %496 = vector.load %arg3[%c0_526, %495, %c1_527, %c0_528] : memref<1x18x18x4xbf16, #tpu.memory_space<vmem>>, vector<1x1x16x4xbf16>
    %497 = vector.shape_cast %496 : vector<1x1x16x4xbf16> to vector<16x4xbf16>
    %c96_529 = arith.constant 96 : index
    %c16_530 = arith.constant 16 : index
    %498 = vector.load %arg8[%c96_529, %c16_530] : memref<256x36xbf16, #tpu.memory_space<vmem>>, vector<16x4xbf16>
    tpu.vector_store %arg8[%c96_529, %c16_530], %497 {strides = array<i32>} : memref<256x36xbf16, #tpu.memory_space<vmem>>, vector<16x4xbf16>,
    %c7_i32_531 = arith.constant 7 : i32
    %499 = arith.addi %1, %c7_i32_531 : i32
    %c1_i32_532 = arith.constant 1 : i32
    %500 = arith.muli %499, %c1_i32_532 : i32
    %c1_i32_533 = arith.constant 1 : i32
    %501 = arith.addi %500, %c1_i32_533 : i32
    %c0_534 = arith.constant 0 : index
    %502 = arith.index_cast %501 : i32 to index
    %c1_535 = arith.constant 1 : index
    %c0_536 = arith.constant 0 : index
    %503 = vector.load %arg3[%c0_534, %502, %c1_535, %c0_536] : memref<1x18x18x4xbf16, #tpu.memory_space<vmem>>, vector<1x1x16x4xbf16>
    %504 = vector.shape_cast %503 : vector<1x1x16x4xbf16> to vector<16x4xbf16>
    %c112_537 = arith.constant 112 : index
    %c16_538 = arith.constant 16 : index
    %505 = vector.load %arg8[%c112_537, %c16_538] : memref<256x36xbf16, #tpu.memory_space<vmem>>, vector<16x4xbf16>
    tpu.vector_store %arg8[%c112_537, %c16_538], %504 {strides = array<i32>} : memref<256x36xbf16, #tpu.memory_space<vmem>>, vector<16x4xbf16>,
    %c8_i32_539 = arith.constant 8 : i32
    %506 = arith.addi %1, %c8_i32_539 : i32
    %c1_i32_540 = arith.constant 1 : i32
    %507 = arith.muli %506, %c1_i32_540 : i32
    %c1_i32_541 = arith.constant 1 : i32
    %508 = arith.addi %507, %c1_i32_541 : i32
    %c0_542 = arith.constant 0 : index
    %509 = arith.index_cast %508 : i32 to index
    %c1_543 = arith.constant 1 : index
    %c0_544 = arith.constant 0 : index
    %510 = vector.load %arg3[%c0_542, %509, %c1_543, %c0_544] : memref<1x18x18x4xbf16, #tpu.memory_space<vmem>>, vector<1x1x16x4xbf16>
    %511 = vector.shape_cast %510 : vector<1x1x16x4xbf16> to vector<16x4xbf16>
    %c128_545 = arith.constant 128 : index
    %c16_546 = arith.constant 16 : index
    %512 = vector.load %arg8[%c128_545, %c16_546] : memref<256x36xbf16, #tpu.memory_space<vmem>>, vector<16x4xbf16>
    tpu.vector_store %arg8[%c128_545, %c16_546], %511 {strides = array<i32>} : memref<256x36xbf16, #tpu.memory_space<vmem>>, vector<16x4xbf16>,
    %c9_i32_547 = arith.constant 9 : i32
    %513 = arith.addi %1, %c9_i32_547 : i32
    %c1_i32_548 = arith.constant 1 : i32
    %514 = arith.muli %513, %c1_i32_548 : i32
    %c1_i32_549 = arith.constant 1 : i32
    %515 = arith.addi %514, %c1_i32_549 : i32
    %c0_550 = arith.constant 0 : index
    %516 = arith.index_cast %515 : i32 to index
    %c1_551 = arith.constant 1 : index
    %c0_552 = arith.constant 0 : index
    %517 = vector.load %arg3[%c0_550, %516, %c1_551, %c0_552] : memref<1x18x18x4xbf16, #tpu.memory_space<vmem>>, vector<1x1x16x4xbf16>
    %518 = vector.shape_cast %517 : vector<1x1x16x4xbf16> to vector<16x4xbf16>
    %c144_553 = arith.constant 144 : index
    %c16_554 = arith.constant 16 : index
    %519 = vector.load %arg8[%c144_553, %c16_554] : memref<256x36xbf16, #tpu.memory_space<vmem>>, vector<16x4xbf16>
    tpu.vector_store %arg8[%c144_553, %c16_554], %518 {strides = array<i32>} : memref<256x36xbf16, #tpu.memory_space<vmem>>, vector<16x4xbf16>,
    %c10_i32_555 = arith.constant 10 : i32
    %520 = arith.addi %1, %c10_i32_555 : i32
    %c1_i32_556 = arith.constant 1 : i32
    %521 = arith.muli %520, %c1_i32_556 : i32
    %c1_i32_557 = arith.constant 1 : i32
    %522 = arith.addi %521, %c1_i32_557 : i32
    %c0_558 = arith.constant 0 : index
    %523 = arith.index_cast %522 : i32 to index
    %c1_559 = arith.constant 1 : index
    %c0_560 = arith.constant 0 : index
    %524 = vector.load %arg3[%c0_558, %523, %c1_559, %c0_560] : memref<1x18x18x4xbf16, #tpu.memory_space<vmem>>, vector<1x1x16x4xbf16>
    %525 = vector.shape_cast %524 : vector<1x1x16x4xbf16> to vector<16x4xbf16>
    %c160_561 = arith.constant 160 : index
    %c16_562 = arith.constant 16 : index
    %526 = vector.load %arg8[%c160_561, %c16_562] : memref<256x36xbf16, #tpu.memory_space<vmem>>, vector<16x4xbf16>
    tpu.vector_store %arg8[%c160_561, %c16_562], %525 {strides = array<i32>} : memref<256x36xbf16, #tpu.memory_space<vmem>>, vector<16x4xbf16>,
    %c11_i32_563 = arith.constant 11 : i32
    %527 = arith.addi %1, %c11_i32_563 : i32
    %c1_i32_564 = arith.constant 1 : i32
    %528 = arith.muli %527, %c1_i32_564 : i32
    %c1_i32_565 = arith.constant 1 : i32
    %529 = arith.addi %528, %c1_i32_565 : i32
    %c0_566 = arith.constant 0 : index
    %530 = arith.index_cast %529 : i32 to index
    %c1_567 = arith.constant 1 : index
    %c0_568 = arith.constant 0 : index
    %531 = vector.load %arg3[%c0_566, %530, %c1_567, %c0_568] : memref<1x18x18x4xbf16, #tpu.memory_space<vmem>>, vector<1x1x16x4xbf16>
    %532 = vector.shape_cast %531 : vector<1x1x16x4xbf16> to vector<16x4xbf16>
    %c176_569 = arith.constant 176 : index
    %c16_570 = arith.constant 16 : index
    %533 = vector.load %arg8[%c176_569, %c16_570] : memref<256x36xbf16, #tpu.memory_space<vmem>>, vector<16x4xbf16>
    tpu.vector_store %arg8[%c176_569, %c16_570], %532 {strides = array<i32>} : memref<256x36xbf16, #tpu.memory_space<vmem>>, vector<16x4xbf16>,
    %c12_i32_571 = arith.constant 12 : i32
    %534 = arith.addi %1, %c12_i32_571 : i32
    %c1_i32_572 = arith.constant 1 : i32
    %535 = arith.muli %534, %c1_i32_572 : i32
    %c1_i32_573 = arith.constant 1 : i32
    %536 = arith.addi %535, %c1_i32_573 : i32
    %c0_574 = arith.constant 0 : index
    %537 = arith.index_cast %536 : i32 to index
    %c1_575 = arith.constant 1 : index
    %c0_576 = arith.constant 0 : index
    %538 = vector.load %arg3[%c0_574, %537, %c1_575, %c0_576] : memref<1x18x18x4xbf16, #tpu.memory_space<vmem>>, vector<1x1x16x4xbf16>
    %539 = vector.shape_cast %538 : vector<1x1x16x4xbf16> to vector<16x4xbf16>
    %c192_577 = arith.constant 192 : index
    %c16_578 = arith.constant 16 : index
    %540 = vector.load %arg8[%c192_577, %c16_578] : memref<256x36xbf16, #tpu.memory_space<vmem>>, vector<16x4xbf16>
    tpu.vector_store %arg8[%c192_577, %c16_578], %539 {strides = array<i32>} : memref<256x36xbf16, #tpu.memory_space<vmem>>, vector<16x4xbf16>,
    %c13_i32_579 = arith.constant 13 : i32
    %541 = arith.addi %1, %c13_i32_579 : i32
    %c1_i32_580 = arith.constant 1 : i32
    %542 = arith.muli %541, %c1_i32_580 : i32
    %c1_i32_581 = arith.constant 1 : i32
    %543 = arith.addi %542, %c1_i32_581 : i32
    %c0_582 = arith.constant 0 : index
    %544 = arith.index_cast %543 : i32 to index
    %c1_583 = arith.constant 1 : index
    %c0_584 = arith.constant 0 : index
    %545 = vector.load %arg3[%c0_582, %544, %c1_583, %c0_584] : memref<1x18x18x4xbf16, #tpu.memory_space<vmem>>, vector<1x1x16x4xbf16>
    %546 = vector.shape_cast %545 : vector<1x1x16x4xbf16> to vector<16x4xbf16>
    %c208_585 = arith.constant 208 : index
    %c16_586 = arith.constant 16 : index
    %547 = vector.load %arg8[%c208_585, %c16_586] : memref<256x36xbf16, #tpu.memory_space<vmem>>, vector<16x4xbf16>
    tpu.vector_store %arg8[%c208_585, %c16_586], %546 {strides = array<i32>} : memref<256x36xbf16, #tpu.memory_space<vmem>>, vector<16x4xbf16>,
    %c14_i32_587 = arith.constant 14 : i32
    %548 = arith.addi %1, %c14_i32_587 : i32
    %c1_i32_588 = arith.constant 1 : i32
    %549 = arith.muli %548, %c1_i32_588 : i32
    %c1_i32_589 = arith.constant 1 : i32
    %550 = arith.addi %549, %c1_i32_589 : i32
    %c0_590 = arith.constant 0 : index
    %551 = arith.index_cast %550 : i32 to index
    %c1_591 = arith.constant 1 : index
    %c0_592 = arith.constant 0 : index
    %552 = vector.load %arg3[%c0_590, %551, %c1_591, %c0_592] : memref<1x18x18x4xbf16, #tpu.memory_space<vmem>>, vector<1x1x16x4xbf16>
    %553 = vector.shape_cast %552 : vector<1x1x16x4xbf16> to vector<16x4xbf16>
    %c224_593 = arith.constant 224 : index
    %c16_594 = arith.constant 16 : index
    %554 = vector.load %arg8[%c224_593, %c16_594] : memref<256x36xbf16, #tpu.memory_space<vmem>>, vector<16x4xbf16>
    tpu.vector_store %arg8[%c224_593, %c16_594], %553 {strides = array<i32>} : memref<256x36xbf16, #tpu.memory_space<vmem>>, vector<16x4xbf16>,
    %c15_i32_595 = arith.constant 15 : i32
    %555 = arith.addi %1, %c15_i32_595 : i32
    %c1_i32_596 = arith.constant 1 : i32
    %556 = arith.muli %555, %c1_i32_596 : i32
    %c1_i32_597 = arith.constant 1 : i32
    %557 = arith.addi %556, %c1_i32_597 : i32
    %c0_598 = arith.constant 0 : index
    %558 = arith.index_cast %557 : i32 to index
    %c1_599 = arith.constant 1 : index
    %c0_600 = arith.constant 0 : index
    %559 = vector.load %arg3[%c0_598, %558, %c1_599, %c0_600] : memref<1x18x18x4xbf16, #tpu.memory_space<vmem>>, vector<1x1x16x4xbf16>
    %560 = vector.shape_cast %559 : vector<1x1x16x4xbf16> to vector<16x4xbf16>
    %c240_601 = arith.constant 240 : index
    %c16_602 = arith.constant 16 : index
    %561 = vector.load %arg8[%c240_601, %c16_602] : memref<256x36xbf16, #tpu.memory_space<vmem>>, vector<16x4xbf16>
    tpu.vector_store %arg8[%c240_601, %c16_602], %560 {strides = array<i32>} : memref<256x36xbf16, #tpu.memory_space<vmem>>, vector<16x4xbf16>,
    %c0_i32_603 = arith.constant 0 : i32
    %562 = arith.addi %1, %c0_i32_603 : i32
    %c1_i32_604 = arith.constant 1 : i32
    %563 = arith.muli %562, %c1_i32_604 : i32
    %c1_i32_605 = arith.constant 1 : i32
    %564 = arith.addi %563, %c1_i32_605 : i32
    %c0_606 = arith.constant 0 : index
    %565 = arith.index_cast %564 : i32 to index
    %c2_607 = arith.constant 2 : index
    %c0_608 = arith.constant 0 : index
    %566 = vector.load %arg3[%c0_606, %565, %c2_607, %c0_608] : memref<1x18x18x4xbf16, #tpu.memory_space<vmem>>, vector<1x1x16x4xbf16>
    %567 = vector.shape_cast %566 : vector<1x1x16x4xbf16> to vector<16x4xbf16>
    %c0_609 = arith.constant 0 : index
    %c20 = arith.constant 20 : index
    %568 = vector.load %arg8[%c0_609, %c20] : memref<256x36xbf16, #tpu.memory_space<vmem>>, vector<16x4xbf16>
    tpu.vector_store %arg8[%c0_609, %c20], %567 {strides = array<i32>} : memref<256x36xbf16, #tpu.memory_space<vmem>>, vector<16x4xbf16>,
    %c1_i32_610 = arith.constant 1 : i32
    %569 = arith.addi %1, %c1_i32_610 : i32
    %c1_i32_611 = arith.constant 1 : i32
    %570 = arith.muli %569, %c1_i32_611 : i32
    %c1_i32_612 = arith.constant 1 : i32
    %571 = arith.addi %570, %c1_i32_612 : i32
    %c0_613 = arith.constant 0 : index
    %572 = arith.index_cast %571 : i32 to index
    %c2_614 = arith.constant 2 : index
    %c0_615 = arith.constant 0 : index
    %573 = vector.load %arg3[%c0_613, %572, %c2_614, %c0_615] : memref<1x18x18x4xbf16, #tpu.memory_space<vmem>>, vector<1x1x16x4xbf16>
    %574 = vector.shape_cast %573 : vector<1x1x16x4xbf16> to vector<16x4xbf16>
    %c16_616 = arith.constant 16 : index
    %c20_617 = arith.constant 20 : index
    %575 = vector.load %arg8[%c16_616, %c20_617] : memref<256x36xbf16, #tpu.memory_space<vmem>>, vector<16x4xbf16>
    tpu.vector_store %arg8[%c16_616, %c20_617], %574 {strides = array<i32>} : memref<256x36xbf16, #tpu.memory_space<vmem>>, vector<16x4xbf16>,
    %c2_i32_618 = arith.constant 2 : i32
    %576 = arith.addi %1, %c2_i32_618 : i32
    %c1_i32_619 = arith.constant 1 : i32
    %577 = arith.muli %576, %c1_i32_619 : i32
    %c1_i32_620 = arith.constant 1 : i32
    %578 = arith.addi %577, %c1_i32_620 : i32
    %c0_621 = arith.constant 0 : index
    %579 = arith.index_cast %578 : i32 to index
    %c2_622 = arith.constant 2 : index
    %c0_623 = arith.constant 0 : index
    %580 = vector.load %arg3[%c0_621, %579, %c2_622, %c0_623] : memref<1x18x18x4xbf16, #tpu.memory_space<vmem>>, vector<1x1x16x4xbf16>
    %581 = vector.shape_cast %580 : vector<1x1x16x4xbf16> to vector<16x4xbf16>
    %c32_624 = arith.constant 32 : index
    %c20_625 = arith.constant 20 : index
    %582 = vector.load %arg8[%c32_624, %c20_625] : memref<256x36xbf16, #tpu.memory_space<vmem>>, vector<16x4xbf16>
    tpu.vector_store %arg8[%c32_624, %c20_625], %581 {strides = array<i32>} : memref<256x36xbf16, #tpu.memory_space<vmem>>, vector<16x4xbf16>,
    %c3_i32_626 = arith.constant 3 : i32
    %583 = arith.addi %1, %c3_i32_626 : i32
    %c1_i32_627 = arith.constant 1 : i32
    %584 = arith.muli %583, %c1_i32_627 : i32
    %c1_i32_628 = arith.constant 1 : i32
    %585 = arith.addi %584, %c1_i32_628 : i32
    %c0_629 = arith.constant 0 : index
    %586 = arith.index_cast %585 : i32 to index
    %c2_630 = arith.constant 2 : index
    %c0_631 = arith.constant 0 : index
    %587 = vector.load %arg3[%c0_629, %586, %c2_630, %c0_631] : memref<1x18x18x4xbf16, #tpu.memory_space<vmem>>, vector<1x1x16x4xbf16>
    %588 = vector.shape_cast %587 : vector<1x1x16x4xbf16> to vector<16x4xbf16>
    %c48_632 = arith.constant 48 : index
    %c20_633 = arith.constant 20 : index
    %589 = vector.load %arg8[%c48_632, %c20_633] : memref<256x36xbf16, #tpu.memory_space<vmem>>, vector<16x4xbf16>
    tpu.vector_store %arg8[%c48_632, %c20_633], %588 {strides = array<i32>} : memref<256x36xbf16, #tpu.memory_space<vmem>>, vector<16x4xbf16>,
    %c4_i32_634 = arith.constant 4 : i32
    %590 = arith.addi %1, %c4_i32_634 : i32
    %c1_i32_635 = arith.constant 1 : i32
    %591 = arith.muli %590, %c1_i32_635 : i32
    %c1_i32_636 = arith.constant 1 : i32
    %592 = arith.addi %591, %c1_i32_636 : i32
    %c0_637 = arith.constant 0 : index
    %593 = arith.index_cast %592 : i32 to index
    %c2_638 = arith.constant 2 : index
    %c0_639 = arith.constant 0 : index
    %594 = vector.load %arg3[%c0_637, %593, %c2_638, %c0_639] : memref<1x18x18x4xbf16, #tpu.memory_space<vmem>>, vector<1x1x16x4xbf16>
    %595 = vector.shape_cast %594 : vector<1x1x16x4xbf16> to vector<16x4xbf16>
    %c64_640 = arith.constant 64 : index
    %c20_641 = arith.constant 20 : index
    %596 = vector.load %arg8[%c64_640, %c20_641] : memref<256x36xbf16, #tpu.memory_space<vmem>>, vector<16x4xbf16>
    tpu.vector_store %arg8[%c64_640, %c20_641], %595 {strides = array<i32>} : memref<256x36xbf16, #tpu.memory_space<vmem>>, vector<16x4xbf16>,
    %c5_i32_642 = arith.constant 5 : i32
    %597 = arith.addi %1, %c5_i32_642 : i32
    %c1_i32_643 = arith.constant 1 : i32
    %598 = arith.muli %597, %c1_i32_643 : i32
    %c1_i32_644 = arith.constant 1 : i32
    %599 = arith.addi %598, %c1_i32_644 : i32
    %c0_645 = arith.constant 0 : index
    %600 = arith.index_cast %599 : i32 to index
    %c2_646 = arith.constant 2 : index
    %c0_647 = arith.constant 0 : index
    %601 = vector.load %arg3[%c0_645, %600, %c2_646, %c0_647] : memref<1x18x18x4xbf16, #tpu.memory_space<vmem>>, vector<1x1x16x4xbf16>
    %602 = vector.shape_cast %601 : vector<1x1x16x4xbf16> to vector<16x4xbf16>
    %c80_648 = arith.constant 80 : index
    %c20_649 = arith.constant 20 : index
    %603 = vector.load %arg8[%c80_648, %c20_649] : memref<256x36xbf16, #tpu.memory_space<vmem>>, vector<16x4xbf16>
    tpu.vector_store %arg8[%c80_648, %c20_649], %602 {strides = array<i32>} : memref<256x36xbf16, #tpu.memory_space<vmem>>, vector<16x4xbf16>,
    %c6_i32_650 = arith.constant 6 : i32
    %604 = arith.addi %1, %c6_i32_650 : i32
    %c1_i32_651 = arith.constant 1 : i32
    %605 = arith.muli %604, %c1_i32_651 : i32
    %c1_i32_652 = arith.constant 1 : i32
    %606 = arith.addi %605, %c1_i32_652 : i32
    %c0_653 = arith.constant 0 : index
    %607 = arith.index_cast %606 : i32 to index
    %c2_654 = arith.constant 2 : index
    %c0_655 = arith.constant 0 : index
    %608 = vector.load %arg3[%c0_653, %607, %c2_654, %c0_655] : memref<1x18x18x4xbf16, #tpu.memory_space<vmem>>, vector<1x1x16x4xbf16>
    %609 = vector.shape_cast %608 : vector<1x1x16x4xbf16> to vector<16x4xbf16>
    %c96_656 = arith.constant 96 : index
    %c20_657 = arith.constant 20 : index
    %610 = vector.load %arg8[%c96_656, %c20_657] : memref<256x36xbf16, #tpu.memory_space<vmem>>, vector<16x4xbf16>
    tpu.vector_store %arg8[%c96_656, %c20_657], %609 {strides = array<i32>} : memref<256x36xbf16, #tpu.memory_space<vmem>>, vector<16x4xbf16>,
    %c7_i32_658 = arith.constant 7 : i32
    %611 = arith.addi %1, %c7_i32_658 : i32
    %c1_i32_659 = arith.constant 1 : i32
    %612 = arith.muli %611, %c1_i32_659 : i32
    %c1_i32_660 = arith.constant 1 : i32
    %613 = arith.addi %612, %c1_i32_660 : i32
    %c0_661 = arith.constant 0 : index
    %614 = arith.index_cast %613 : i32 to index
    %c2_662 = arith.constant 2 : index
    %c0_663 = arith.constant 0 : index
    %615 = vector.load %arg3[%c0_661, %614, %c2_662, %c0_663] : memref<1x18x18x4xbf16, #tpu.memory_space<vmem>>, vector<1x1x16x4xbf16>
    %616 = vector.shape_cast %615 : vector<1x1x16x4xbf16> to vector<16x4xbf16>
    %c112_664 = arith.constant 112 : index
    %c20_665 = arith.constant 20 : index
    %617 = vector.load %arg8[%c112_664, %c20_665] : memref<256x36xbf16, #tpu.memory_space<vmem>>, vector<16x4xbf16>
    tpu.vector_store %arg8[%c112_664, %c20_665], %616 {strides = array<i32>} : memref<256x36xbf16, #tpu.memory_space<vmem>>, vector<16x4xbf16>,
    %c8_i32_666 = arith.constant 8 : i32
    %618 = arith.addi %1, %c8_i32_666 : i32
    %c1_i32_667 = arith.constant 1 : i32
    %619 = arith.muli %618, %c1_i32_667 : i32
    %c1_i32_668 = arith.constant 1 : i32
    %620 = arith.addi %619, %c1_i32_668 : i32
    %c0_669 = arith.constant 0 : index
    %621 = arith.index_cast %620 : i32 to index
    %c2_670 = arith.constant 2 : index
    %c0_671 = arith.constant 0 : index
    %622 = vector.load %arg3[%c0_669, %621, %c2_670, %c0_671] : memref<1x18x18x4xbf16, #tpu.memory_space<vmem>>, vector<1x1x16x4xbf16>
    %623 = vector.shape_cast %622 : vector<1x1x16x4xbf16> to vector<16x4xbf16>
    %c128_672 = arith.constant 128 : index
    %c20_673 = arith.constant 20 : index
    %624 = vector.load %arg8[%c128_672, %c20_673] : memref<256x36xbf16, #tpu.memory_space<vmem>>, vector<16x4xbf16>
    tpu.vector_store %arg8[%c128_672, %c20_673], %623 {strides = array<i32>} : memref<256x36xbf16, #tpu.memory_space<vmem>>, vector<16x4xbf16>,
    %c9_i32_674 = arith.constant 9 : i32
    %625 = arith.addi %1, %c9_i32_674 : i32
    %c1_i32_675 = arith.constant 1 : i32
    %626 = arith.muli %625, %c1_i32_675 : i32
    %c1_i32_676 = arith.constant 1 : i32
    %627 = arith.addi %626, %c1_i32_676 : i32
    %c0_677 = arith.constant 0 : index
    %628 = arith.index_cast %627 : i32 to index
    %c2_678 = arith.constant 2 : index
    %c0_679 = arith.constant 0 : index
    %629 = vector.load %arg3[%c0_677, %628, %c2_678, %c0_679] : memref<1x18x18x4xbf16, #tpu.memory_space<vmem>>, vector<1x1x16x4xbf16>
    %630 = vector.shape_cast %629 : vector<1x1x16x4xbf16> to vector<16x4xbf16>
    %c144_680 = arith.constant 144 : index
    %c20_681 = arith.constant 20 : index
    %631 = vector.load %arg8[%c144_680, %c20_681] : memref<256x36xbf16, #tpu.memory_space<vmem>>, vector<16x4xbf16>
    tpu.vector_store %arg8[%c144_680, %c20_681], %630 {strides = array<i32>} : memref<256x36xbf16, #tpu.memory_space<vmem>>, vector<16x4xbf16>,
    %c10_i32_682 = arith.constant 10 : i32
    %632 = arith.addi %1, %c10_i32_682 : i32
    %c1_i32_683 = arith.constant 1 : i32
    %633 = arith.muli %632, %c1_i32_683 : i32
    %c1_i32_684 = arith.constant 1 : i32
    %634 = arith.addi %633, %c1_i32_684 : i32
    %c0_685 = arith.constant 0 : index
    %635 = arith.index_cast %634 : i32 to index
    %c2_686 = arith.constant 2 : index
    %c0_687 = arith.constant 0 : index
    %636 = vector.load %arg3[%c0_685, %635, %c2_686, %c0_687] : memref<1x18x18x4xbf16, #tpu.memory_space<vmem>>, vector<1x1x16x4xbf16>
    %637 = vector.shape_cast %636 : vector<1x1x16x4xbf16> to vector<16x4xbf16>
    %c160_688 = arith.constant 160 : index
    %c20_689 = arith.constant 20 : index
    %638 = vector.load %arg8[%c160_688, %c20_689] : memref<256x36xbf16, #tpu.memory_space<vmem>>, vector<16x4xbf16>
    tpu.vector_store %arg8[%c160_688, %c20_689], %637 {strides = array<i32>} : memref<256x36xbf16, #tpu.memory_space<vmem>>, vector<16x4xbf16>,
    %c11_i32_690 = arith.constant 11 : i32
    %639 = arith.addi %1, %c11_i32_690 : i32
    %c1_i32_691 = arith.constant 1 : i32
    %640 = arith.muli %639, %c1_i32_691 : i32
    %c1_i32_692 = arith.constant 1 : i32
    %641 = arith.addi %640, %c1_i32_692 : i32
    %c0_693 = arith.constant 0 : index
    %642 = arith.index_cast %641 : i32 to index
    %c2_694 = arith.constant 2 : index
    %c0_695 = arith.constant 0 : index
    %643 = vector.load %arg3[%c0_693, %642, %c2_694, %c0_695] : memref<1x18x18x4xbf16, #tpu.memory_space<vmem>>, vector<1x1x16x4xbf16>
    %644 = vector.shape_cast %643 : vector<1x1x16x4xbf16> to vector<16x4xbf16>
    %c176_696 = arith.constant 176 : index
    %c20_697 = arith.constant 20 : index
    %645 = vector.load %arg8[%c176_696, %c20_697] : memref<256x36xbf16, #tpu.memory_space<vmem>>, vector<16x4xbf16>
    tpu.vector_store %arg8[%c176_696, %c20_697], %644 {strides = array<i32>} : memref<256x36xbf16, #tpu.memory_space<vmem>>, vector<16x4xbf16>,
    %c12_i32_698 = arith.constant 12 : i32
    %646 = arith.addi %1, %c12_i32_698 : i32
    %c1_i32_699 = arith.constant 1 : i32
    %647 = arith.muli %646, %c1_i32_699 : i32
    %c1_i32_700 = arith.constant 1 : i32
    %648 = arith.addi %647, %c1_i32_700 : i32
    %c0_701 = arith.constant 0 : index
    %649 = arith.index_cast %648 : i32 to index
    %c2_702 = arith.constant 2 : index
    %c0_703 = arith.constant 0 : index
    %650 = vector.load %arg3[%c0_701, %649, %c2_702, %c0_703] : memref<1x18x18x4xbf16, #tpu.memory_space<vmem>>, vector<1x1x16x4xbf16>
    %651 = vector.shape_cast %650 : vector<1x1x16x4xbf16> to vector<16x4xbf16>
    %c192_704 = arith.constant 192 : index
    %c20_705 = arith.constant 20 : index
    %652 = vector.load %arg8[%c192_704, %c20_705] : memref<256x36xbf16, #tpu.memory_space<vmem>>, vector<16x4xbf16>
    tpu.vector_store %arg8[%c192_704, %c20_705], %651 {strides = array<i32>} : memref<256x36xbf16, #tpu.memory_space<vmem>>, vector<16x4xbf16>,
    %c13_i32_706 = arith.constant 13 : i32
    %653 = arith.addi %1, %c13_i32_706 : i32
    %c1_i32_707 = arith.constant 1 : i32
    %654 = arith.muli %653, %c1_i32_707 : i32
    %c1_i32_708 = arith.constant 1 : i32
    %655 = arith.addi %654, %c1_i32_708 : i32
    %c0_709 = arith.constant 0 : index
    %656 = arith.index_cast %655 : i32 to index
    %c2_710 = arith.constant 2 : index
    %c0_711 = arith.constant 0 : index
    %657 = vector.load %arg3[%c0_709, %656, %c2_710, %c0_711] : memref<1x18x18x4xbf16, #tpu.memory_space<vmem>>, vector<1x1x16x4xbf16>
    %658 = vector.shape_cast %657 : vector<1x1x16x4xbf16> to vector<16x4xbf16>
    %c208_712 = arith.constant 208 : index
    %c20_713 = arith.constant 20 : index
    %659 = vector.load %arg8[%c208_712, %c20_713] : memref<256x36xbf16, #tpu.memory_space<vmem>>, vector<16x4xbf16>
    tpu.vector_store %arg8[%c208_712, %c20_713], %658 {strides = array<i32>} : memref<256x36xbf16, #tpu.memory_space<vmem>>, vector<16x4xbf16>,
    %c14_i32_714 = arith.constant 14 : i32
    %660 = arith.addi %1, %c14_i32_714 : i32
    %c1_i32_715 = arith.constant 1 : i32
    %661 = arith.muli %660, %c1_i32_715 : i32
    %c1_i32_716 = arith.constant 1 : i32
    %662 = arith.addi %661, %c1_i32_716 : i32
    %c0_717 = arith.constant 0 : index
    %663 = arith.index_cast %662 : i32 to index
    %c2_718 = arith.constant 2 : index
    %c0_719 = arith.constant 0 : index
    %664 = vector.load %arg3[%c0_717, %663, %c2_718, %c0_719] : memref<1x18x18x4xbf16, #tpu.memory_space<vmem>>, vector<1x1x16x4xbf16>
    %665 = vector.shape_cast %664 : vector<1x1x16x4xbf16> to vector<16x4xbf16>
    %c224_720 = arith.constant 224 : index
    %c20_721 = arith.constant 20 : index
    %666 = vector.load %arg8[%c224_720, %c20_721] : memref<256x36xbf16, #tpu.memory_space<vmem>>, vector<16x4xbf16>
    tpu.vector_store %arg8[%c224_720, %c20_721], %665 {strides = array<i32>} : memref<256x36xbf16, #tpu.memory_space<vmem>>, vector<16x4xbf16>,
    %c15_i32_722 = arith.constant 15 : i32
    %667 = arith.addi %1, %c15_i32_722 : i32
    %c1_i32_723 = arith.constant 1 : i32
    %668 = arith.muli %667, %c1_i32_723 : i32
    %c1_i32_724 = arith.constant 1 : i32
    %669 = arith.addi %668, %c1_i32_724 : i32
    %c0_725 = arith.constant 0 : index
    %670 = arith.index_cast %669 : i32 to index
    %c2_726 = arith.constant 2 : index
    %c0_727 = arith.constant 0 : index
    %671 = vector.load %arg3[%c0_725, %670, %c2_726, %c0_727] : memref<1x18x18x4xbf16, #tpu.memory_space<vmem>>, vector<1x1x16x4xbf16>
    %672 = vector.shape_cast %671 : vector<1x1x16x4xbf16> to vector<16x4xbf16>
    %c240_728 = arith.constant 240 : index
    %c20_729 = arith.constant 20 : index
    %673 = vector.load %arg8[%c240_728, %c20_729] : memref<256x36xbf16, #tpu.memory_space<vmem>>, vector<16x4xbf16>
    tpu.vector_store %arg8[%c240_728, %c20_729], %672 {strides = array<i32>} : memref<256x36xbf16, #tpu.memory_space<vmem>>, vector<16x4xbf16>,
    %c0_i32_730 = arith.constant 0 : i32
    %674 = arith.addi %1, %c0_i32_730 : i32
    %c1_i32_731 = arith.constant 1 : i32
    %675 = arith.muli %674, %c1_i32_731 : i32
    %c2_i32_732 = arith.constant 2 : i32
    %676 = arith.addi %675, %c2_i32_732 : i32
    %c0_733 = arith.constant 0 : index
    %677 = arith.index_cast %676 : i32 to index
    %c0_734 = arith.constant 0 : index
    %c0_735 = arith.constant 0 : index
    %678 = vector.load %arg3[%c0_733, %677, %c0_734, %c0_735] : memref<1x18x18x4xbf16, #tpu.memory_space<vmem>>, vector<1x1x16x4xbf16>
    %679 = vector.shape_cast %678 : vector<1x1x16x4xbf16> to vector<16x4xbf16>
    %c0_736 = arith.constant 0 : index
    %c24 = arith.constant 24 : index
    %680 = vector.load %arg8[%c0_736, %c24] : memref<256x36xbf16, #tpu.memory_space<vmem>>, vector<16x4xbf16>
    tpu.vector_store %arg8[%c0_736, %c24], %679 {strides = array<i32>} : memref<256x36xbf16, #tpu.memory_space<vmem>>, vector<16x4xbf16>,
    %c1_i32_737 = arith.constant 1 : i32
    %681 = arith.addi %1, %c1_i32_737 : i32
    %c1_i32_738 = arith.constant 1 : i32
    %682 = arith.muli %681, %c1_i32_738 : i32
    %c2_i32_739 = arith.constant 2 : i32
    %683 = arith.addi %682, %c2_i32_739 : i32
    %c0_740 = arith.constant 0 : index
    %684 = arith.index_cast %683 : i32 to index
    %c0_741 = arith.constant 0 : index
    %c0_742 = arith.constant 0 : index
    %685 = vector.load %arg3[%c0_740, %684, %c0_741, %c0_742] : memref<1x18x18x4xbf16, #tpu.memory_space<vmem>>, vector<1x1x16x4xbf16>
    %686 = vector.shape_cast %685 : vector<1x1x16x4xbf16> to vector<16x4xbf16>
    %c16_743 = arith.constant 16 : index
    %c24_744 = arith.constant 24 : index
    %687 = vector.load %arg8[%c16_743, %c24_744] : memref<256x36xbf16, #tpu.memory_space<vmem>>, vector<16x4xbf16>
    tpu.vector_store %arg8[%c16_743, %c24_744], %686 {strides = array<i32>} : memref<256x36xbf16, #tpu.memory_space<vmem>>, vector<16x4xbf16>,
    %c2_i32_745 = arith.constant 2 : i32
    %688 = arith.addi %1, %c2_i32_745 : i32
    %c1_i32_746 = arith.constant 1 : i32
    %689 = arith.muli %688, %c1_i32_746 : i32
    %c2_i32_747 = arith.constant 2 : i32
    %690 = arith.addi %689, %c2_i32_747 : i32
    %c0_748 = arith.constant 0 : index
    %691 = arith.index_cast %690 : i32 to index
    %c0_749 = arith.constant 0 : index
    %c0_750 = arith.constant 0 : index
    %692 = vector.load %arg3[%c0_748, %691, %c0_749, %c0_750] : memref<1x18x18x4xbf16, #tpu.memory_space<vmem>>, vector<1x1x16x4xbf16>
    %693 = vector.shape_cast %692 : vector<1x1x16x4xbf16> to vector<16x4xbf16>
    %c32_751 = arith.constant 32 : index
    %c24_752 = arith.constant 24 : index
    %694 = vector.load %arg8[%c32_751, %c24_752] : memref<256x36xbf16, #tpu.memory_space<vmem>>, vector<16x4xbf16>
    tpu.vector_store %arg8[%c32_751, %c24_752], %693 {strides = array<i32>} : memref<256x36xbf16, #tpu.memory_space<vmem>>, vector<16x4xbf16>,
    %c3_i32_753 = arith.constant 3 : i32
    %695 = arith.addi %1, %c3_i32_753 : i32
    %c1_i32_754 = arith.constant 1 : i32
    %696 = arith.muli %695, %c1_i32_754 : i32
    %c2_i32_755 = arith.constant 2 : i32
    %697 = arith.addi %696, %c2_i32_755 : i32
    %c0_756 = arith.constant 0 : index
    %698 = arith.index_cast %697 : i32 to index
    %c0_757 = arith.constant 0 : index
    %c0_758 = arith.constant 0 : index
    %699 = vector.load %arg3[%c0_756, %698, %c0_757, %c0_758] : memref<1x18x18x4xbf16, #tpu.memory_space<vmem>>, vector<1x1x16x4xbf16>
    %700 = vector.shape_cast %699 : vector<1x1x16x4xbf16> to vector<16x4xbf16>
    %c48_759 = arith.constant 48 : index
    %c24_760 = arith.constant 24 : index
    %701 = vector.load %arg8[%c48_759, %c24_760] : memref<256x36xbf16, #tpu.memory_space<vmem>>, vector<16x4xbf16>
    tpu.vector_store %arg8[%c48_759, %c24_760], %700 {strides = array<i32>} : memref<256x36xbf16, #tpu.memory_space<vmem>>, vector<16x4xbf16>,
    %c4_i32_761 = arith.constant 4 : i32
    %702 = arith.addi %1, %c4_i32_761 : i32
    %c1_i32_762 = arith.constant 1 : i32
    %703 = arith.muli %702, %c1_i32_762 : i32
    %c2_i32_763 = arith.constant 2 : i32
    %704 = arith.addi %703, %c2_i32_763 : i32
    %c0_764 = arith.constant 0 : index
    %705 = arith.index_cast %704 : i32 to index
    %c0_765 = arith.constant 0 : index
    %c0_766 = arith.constant 0 : index
    %706 = vector.load %arg3[%c0_764, %705, %c0_765, %c0_766] : memref<1x18x18x4xbf16, #tpu.memory_space<vmem>>, vector<1x1x16x4xbf16>
    %707 = vector.shape_cast %706 : vector<1x1x16x4xbf16> to vector<16x4xbf16>
    %c64_767 = arith.constant 64 : index
    %c24_768 = arith.constant 24 : index
    %708 = vector.load %arg8[%c64_767, %c24_768] : memref<256x36xbf16, #tpu.memory_space<vmem>>, vector<16x4xbf16>
    tpu.vector_store %arg8[%c64_767, %c24_768], %707 {strides = array<i32>} : memref<256x36xbf16, #tpu.memory_space<vmem>>, vector<16x4xbf16>,
    %c5_i32_769 = arith.constant 5 : i32
    %709 = arith.addi %1, %c5_i32_769 : i32
    %c1_i32_770 = arith.constant 1 : i32
    %710 = arith.muli %709, %c1_i32_770 : i32
    %c2_i32_771 = arith.constant 2 : i32
    %711 = arith.addi %710, %c2_i32_771 : i32
    %c0_772 = arith.constant 0 : index
    %712 = arith.index_cast %711 : i32 to index
    %c0_773 = arith.constant 0 : index
    %c0_774 = arith.constant 0 : index
    %713 = vector.load %arg3[%c0_772, %712, %c0_773, %c0_774] : memref<1x18x18x4xbf16, #tpu.memory_space<vmem>>, vector<1x1x16x4xbf16>
    %714 = vector.shape_cast %713 : vector<1x1x16x4xbf16> to vector<16x4xbf16>
    %c80_775 = arith.constant 80 : index
    %c24_776 = arith.constant 24 : index
    %715 = vector.load %arg8[%c80_775, %c24_776] : memref<256x36xbf16, #tpu.memory_space<vmem>>, vector<16x4xbf16>
    tpu.vector_store %arg8[%c80_775, %c24_776], %714 {strides = array<i32>} : memref<256x36xbf16, #tpu.memory_space<vmem>>, vector<16x4xbf16>,
    %c6_i32_777 = arith.constant 6 : i32
    %716 = arith.addi %1, %c6_i32_777 : i32
    %c1_i32_778 = arith.constant 1 : i32
    %717 = arith.muli %716, %c1_i32_778 : i32
    %c2_i32_779 = arith.constant 2 : i32
    %718 = arith.addi %717, %c2_i32_779 : i32
    %c0_780 = arith.constant 0 : index
    %719 = arith.index_cast %718 : i32 to index
    %c0_781 = arith.constant 0 : index
    %c0_782 = arith.constant 0 : index
    %720 = vector.load %arg3[%c0_780, %719, %c0_781, %c0_782] : memref<1x18x18x4xbf16, #tpu.memory_space<vmem>>, vector<1x1x16x4xbf16>
    %721 = vector.shape_cast %720 : vector<1x1x16x4xbf16> to vector<16x4xbf16>
    %c96_783 = arith.constant 96 : index
    %c24_784 = arith.constant 24 : index
    %722 = vector.load %arg8[%c96_783, %c24_784] : memref<256x36xbf16, #tpu.memory_space<vmem>>, vector<16x4xbf16>
    tpu.vector_store %arg8[%c96_783, %c24_784], %721 {strides = array<i32>} : memref<256x36xbf16, #tpu.memory_space<vmem>>, vector<16x4xbf16>,
    %c7_i32_785 = arith.constant 7 : i32
    %723 = arith.addi %1, %c7_i32_785 : i32
    %c1_i32_786 = arith.constant 1 : i32
    %724 = arith.muli %723, %c1_i32_786 : i32
    %c2_i32_787 = arith.constant 2 : i32
    %725 = arith.addi %724, %c2_i32_787 : i32
    %c0_788 = arith.constant 0 : index
    %726 = arith.index_cast %725 : i32 to index
    %c0_789 = arith.constant 0 : index
    %c0_790 = arith.constant 0 : index
    %727 = vector.load %arg3[%c0_788, %726, %c0_789, %c0_790] : memref<1x18x18x4xbf16, #tpu.memory_space<vmem>>, vector<1x1x16x4xbf16>
    %728 = vector.shape_cast %727 : vector<1x1x16x4xbf16> to vector<16x4xbf16>
    %c112_791 = arith.constant 112 : index
    %c24_792 = arith.constant 24 : index
    %729 = vector.load %arg8[%c112_791, %c24_792] : memref<256x36xbf16, #tpu.memory_space<vmem>>, vector<16x4xbf16>
    tpu.vector_store %arg8[%c112_791, %c24_792], %728 {strides = array<i32>} : memref<256x36xbf16, #tpu.memory_space<vmem>>, vector<16x4xbf16>,
    %c8_i32_793 = arith.constant 8 : i32
    %730 = arith.addi %1, %c8_i32_793 : i32
    %c1_i32_794 = arith.constant 1 : i32
    %731 = arith.muli %730, %c1_i32_794 : i32
    %c2_i32_795 = arith.constant 2 : i32
    %732 = arith.addi %731, %c2_i32_795 : i32
    %c0_796 = arith.constant 0 : index
    %733 = arith.index_cast %732 : i32 to index
    %c0_797 = arith.constant 0 : index
    %c0_798 = arith.constant 0 : index
    %734 = vector.load %arg3[%c0_796, %733, %c0_797, %c0_798] : memref<1x18x18x4xbf16, #tpu.memory_space<vmem>>, vector<1x1x16x4xbf16>
    %735 = vector.shape_cast %734 : vector<1x1x16x4xbf16> to vector<16x4xbf16>
    %c128_799 = arith.constant 128 : index
    %c24_800 = arith.constant 24 : index
    %736 = vector.load %arg8[%c128_799, %c24_800] : memref<256x36xbf16, #tpu.memory_space<vmem>>, vector<16x4xbf16>
    tpu.vector_store %arg8[%c128_799, %c24_800], %735 {strides = array<i32>} : memref<256x36xbf16, #tpu.memory_space<vmem>>, vector<16x4xbf16>,
    %c9_i32_801 = arith.constant 9 : i32
    %737 = arith.addi %1, %c9_i32_801 : i32
    %c1_i32_802 = arith.constant 1 : i32
    %738 = arith.muli %737, %c1_i32_802 : i32
    %c2_i32_803 = arith.constant 2 : i32
    %739 = arith.addi %738, %c2_i32_803 : i32
    %c0_804 = arith.constant 0 : index
    %740 = arith.index_cast %739 : i32 to index
    %c0_805 = arith.constant 0 : index
    %c0_806 = arith.constant 0 : index
    %741 = vector.load %arg3[%c0_804, %740, %c0_805, %c0_806] : memref<1x18x18x4xbf16, #tpu.memory_space<vmem>>, vector<1x1x16x4xbf16>
    %742 = vector.shape_cast %741 : vector<1x1x16x4xbf16> to vector<16x4xbf16>
    %c144_807 = arith.constant 144 : index
    %c24_808 = arith.constant 24 : index
    %743 = vector.load %arg8[%c144_807, %c24_808] : memref<256x36xbf16, #tpu.memory_space<vmem>>, vector<16x4xbf16>
    tpu.vector_store %arg8[%c144_807, %c24_808], %742 {strides = array<i32>} : memref<256x36xbf16, #tpu.memory_space<vmem>>, vector<16x4xbf16>,
    %c10_i32_809 = arith.constant 10 : i32
    %744 = arith.addi %1, %c10_i32_809 : i32
    %c1_i32_810 = arith.constant 1 : i32
    %745 = arith.muli %744, %c1_i32_810 : i32
    %c2_i32_811 = arith.constant 2 : i32
    %746 = arith.addi %745, %c2_i32_811 : i32
    %c0_812 = arith.constant 0 : index
    %747 = arith.index_cast %746 : i32 to index
    %c0_813 = arith.constant 0 : index
    %c0_814 = arith.constant 0 : index
    %748 = vector.load %arg3[%c0_812, %747, %c0_813, %c0_814] : memref<1x18x18x4xbf16, #tpu.memory_space<vmem>>, vector<1x1x16x4xbf16>
    %749 = vector.shape_cast %748 : vector<1x1x16x4xbf16> to vector<16x4xbf16>
    %c160_815 = arith.constant 160 : index
    %c24_816 = arith.constant 24 : index
    %750 = vector.load %arg8[%c160_815, %c24_816] : memref<256x36xbf16, #tpu.memory_space<vmem>>, vector<16x4xbf16>
    tpu.vector_store %arg8[%c160_815, %c24_816], %749 {strides = array<i32>} : memref<256x36xbf16, #tpu.memory_space<vmem>>, vector<16x4xbf16>,
    %c11_i32_817 = arith.constant 11 : i32
    %751 = arith.addi %1, %c11_i32_817 : i32
    %c1_i32_818 = arith.constant 1 : i32
    %752 = arith.muli %751, %c1_i32_818 : i32
    %c2_i32_819 = arith.constant 2 : i32
    %753 = arith.addi %752, %c2_i32_819 : i32
    %c0_820 = arith.constant 0 : index
    %754 = arith.index_cast %753 : i32 to index
    %c0_821 = arith.constant 0 : index
    %c0_822 = arith.constant 0 : index
    %755 = vector.load %arg3[%c0_820, %754, %c0_821, %c0_822] : memref<1x18x18x4xbf16, #tpu.memory_space<vmem>>, vector<1x1x16x4xbf16>
    %756 = vector.shape_cast %755 : vector<1x1x16x4xbf16> to vector<16x4xbf16>
    %c176_823 = arith.constant 176 : index
    %c24_824 = arith.constant 24 : index
    %757 = vector.load %arg8[%c176_823, %c24_824] : memref<256x36xbf16, #tpu.memory_space<vmem>>, vector<16x4xbf16>
    tpu.vector_store %arg8[%c176_823, %c24_824], %756 {strides = array<i32>} : memref<256x36xbf16, #tpu.memory_space<vmem>>, vector<16x4xbf16>,
    %c12_i32_825 = arith.constant 12 : i32
    %758 = arith.addi %1, %c12_i32_825 : i32
    %c1_i32_826 = arith.constant 1 : i32
    %759 = arith.muli %758, %c1_i32_826 : i32
    %c2_i32_827 = arith.constant 2 : i32
    %760 = arith.addi %759, %c2_i32_827 : i32
    %c0_828 = arith.constant 0 : index
    %761 = arith.index_cast %760 : i32 to index
    %c0_829 = arith.constant 0 : index
    %c0_830 = arith.constant 0 : index
    %762 = vector.load %arg3[%c0_828, %761, %c0_829, %c0_830] : memref<1x18x18x4xbf16, #tpu.memory_space<vmem>>, vector<1x1x16x4xbf16>
    %763 = vector.shape_cast %762 : vector<1x1x16x4xbf16> to vector<16x4xbf16>
    %c192_831 = arith.constant 192 : index
    %c24_832 = arith.constant 24 : index
    %764 = vector.load %arg8[%c192_831, %c24_832] : memref<256x36xbf16, #tpu.memory_space<vmem>>, vector<16x4xbf16>
    tpu.vector_store %arg8[%c192_831, %c24_832], %763 {strides = array<i32>} : memref<256x36xbf16, #tpu.memory_space<vmem>>, vector<16x4xbf16>,
    %c13_i32_833 = arith.constant 13 : i32
    %765 = arith.addi %1, %c13_i32_833 : i32
    %c1_i32_834 = arith.constant 1 : i32
    %766 = arith.muli %765, %c1_i32_834 : i32
    %c2_i32_835 = arith.constant 2 : i32
    %767 = arith.addi %766, %c2_i32_835 : i32
    %c0_836 = arith.constant 0 : index
    %768 = arith.index_cast %767 : i32 to index
    %c0_837 = arith.constant 0 : index
    %c0_838 = arith.constant 0 : index
    %769 = vector.load %arg3[%c0_836, %768, %c0_837, %c0_838] : memref<1x18x18x4xbf16, #tpu.memory_space<vmem>>, vector<1x1x16x4xbf16>
    %770 = vector.shape_cast %769 : vector<1x1x16x4xbf16> to vector<16x4xbf16>
    %c208_839 = arith.constant 208 : index
    %c24_840 = arith.constant 24 : index
    %771 = vector.load %arg8[%c208_839, %c24_840] : memref<256x36xbf16, #tpu.memory_space<vmem>>, vector<16x4xbf16>
    tpu.vector_store %arg8[%c208_839, %c24_840], %770 {strides = array<i32>} : memref<256x36xbf16, #tpu.memory_space<vmem>>, vector<16x4xbf16>,
    %c14_i32_841 = arith.constant 14 : i32
    %772 = arith.addi %1, %c14_i32_841 : i32
    %c1_i32_842 = arith.constant 1 : i32
    %773 = arith.muli %772, %c1_i32_842 : i32
    %c2_i32_843 = arith.constant 2 : i32
    %774 = arith.addi %773, %c2_i32_843 : i32
    %c0_844 = arith.constant 0 : index
    %775 = arith.index_cast %774 : i32 to index
    %c0_845 = arith.constant 0 : index
    %c0_846 = arith.constant 0 : index
    %776 = vector.load %arg3[%c0_844, %775, %c0_845, %c0_846] : memref<1x18x18x4xbf16, #tpu.memory_space<vmem>>, vector<1x1x16x4xbf16>
    %777 = vector.shape_cast %776 : vector<1x1x16x4xbf16> to vector<16x4xbf16>
    %c224_847 = arith.constant 224 : index
    %c24_848 = arith.constant 24 : index
    %778 = vector.load %arg8[%c224_847, %c24_848] : memref<256x36xbf16, #tpu.memory_space<vmem>>, vector<16x4xbf16>
    tpu.vector_store %arg8[%c224_847, %c24_848], %777 {strides = array<i32>} : memref<256x36xbf16, #tpu.memory_space<vmem>>, vector<16x4xbf16>,
    %c15_i32_849 = arith.constant 15 : i32
    %779 = arith.addi %1, %c15_i32_849 : i32
    %c1_i32_850 = arith.constant 1 : i32
    %780 = arith.muli %779, %c1_i32_850 : i32
    %c2_i32_851 = arith.constant 2 : i32
    %781 = arith.addi %780, %c2_i32_851 : i32
    %c0_852 = arith.constant 0 : index
    %782 = arith.index_cast %781 : i32 to index
    %c0_853 = arith.constant 0 : index
    %c0_854 = arith.constant 0 : index
    %783 = vector.load %arg3[%c0_852, %782, %c0_853, %c0_854] : memref<1x18x18x4xbf16, #tpu.memory_space<vmem>>, vector<1x1x16x4xbf16>
    %784 = vector.shape_cast %783 : vector<1x1x16x4xbf16> to vector<16x4xbf16>
    %c240_855 = arith.constant 240 : index
    %c24_856 = arith.constant 24 : index
    %785 = vector.load %arg8[%c240_855, %c24_856] : memref<256x36xbf16, #tpu.memory_space<vmem>>, vector<16x4xbf16>
    tpu.vector_store %arg8[%c240_855, %c24_856], %784 {strides = array<i32>} : memref<256x36xbf16, #tpu.memory_space<vmem>>, vector<16x4xbf16>,
    %c0_i32_857 = arith.constant 0 : i32
    %786 = arith.addi %1, %c0_i32_857 : i32
    %c1_i32_858 = arith.constant 1 : i32
    %787 = arith.muli %786, %c1_i32_858 : i32
    %c2_i32_859 = arith.constant 2 : i32
    %788 = arith.addi %787, %c2_i32_859 : i32
    %c0_860 = arith.constant 0 : index
    %789 = arith.index_cast %788 : i32 to index
    %c1_861 = arith.constant 1 : index
    %c0_862 = arith.constant 0 : index
    %790 = vector.load %arg3[%c0_860, %789, %c1_861, %c0_862] : memref<1x18x18x4xbf16, #tpu.memory_space<vmem>>, vector<1x1x16x4xbf16>
    %791 = vector.shape_cast %790 : vector<1x1x16x4xbf16> to vector<16x4xbf16>
    %c0_863 = arith.constant 0 : index
    %c28 = arith.constant 28 : index
    %792 = vector.load %arg8[%c0_863, %c28] : memref<256x36xbf16, #tpu.memory_space<vmem>>, vector<16x4xbf16>
    tpu.vector_store %arg8[%c0_863, %c28], %791 {strides = array<i32>} : memref<256x36xbf16, #tpu.memory_space<vmem>>, vector<16x4xbf16>,
    %c1_i32_864 = arith.constant 1 : i32
    %793 = arith.addi %1, %c1_i32_864 : i32
    %c1_i32_865 = arith.constant 1 : i32
    %794 = arith.muli %793, %c1_i32_865 : i32
    %c2_i32_866 = arith.constant 2 : i32
    %795 = arith.addi %794, %c2_i32_866 : i32
    %c0_867 = arith.constant 0 : index
    %796 = arith.index_cast %795 : i32 to index
    %c1_868 = arith.constant 1 : index
    %c0_869 = arith.constant 0 : index
    %797 = vector.load %arg3[%c0_867, %796, %c1_868, %c0_869] : memref<1x18x18x4xbf16, #tpu.memory_space<vmem>>, vector<1x1x16x4xbf16>
    %798 = vector.shape_cast %797 : vector<1x1x16x4xbf16> to vector<16x4xbf16>
    %c16_870 = arith.constant 16 : index
    %c28_871 = arith.constant 28 : index
    %799 = vector.load %arg8[%c16_870, %c28_871] : memref<256x36xbf16, #tpu.memory_space<vmem>>, vector<16x4xbf16>
    tpu.vector_store %arg8[%c16_870, %c28_871], %798 {strides = array<i32>} : memref<256x36xbf16, #tpu.memory_space<vmem>>, vector<16x4xbf16>,
    %c2_i32_872 = arith.constant 2 : i32
    %800 = arith.addi %1, %c2_i32_872 : i32
    %c1_i32_873 = arith.constant 1 : i32
    %801 = arith.muli %800, %c1_i32_873 : i32
    %c2_i32_874 = arith.constant 2 : i32
    %802 = arith.addi %801, %c2_i32_874 : i32
    %c0_875 = arith.constant 0 : index
    %803 = arith.index_cast %802 : i32 to index
    %c1_876 = arith.constant 1 : index
    %c0_877 = arith.constant 0 : index
    %804 = vector.load %arg3[%c0_875, %803, %c1_876, %c0_877] : memref<1x18x18x4xbf16, #tpu.memory_space<vmem>>, vector<1x1x16x4xbf16>
    %805 = vector.shape_cast %804 : vector<1x1x16x4xbf16> to vector<16x4xbf16>
    %c32_878 = arith.constant 32 : index
    %c28_879 = arith.constant 28 : index
    %806 = vector.load %arg8[%c32_878, %c28_879] : memref<256x36xbf16, #tpu.memory_space<vmem>>, vector<16x4xbf16>
    tpu.vector_store %arg8[%c32_878, %c28_879], %805 {strides = array<i32>} : memref<256x36xbf16, #tpu.memory_space<vmem>>, vector<16x4xbf16>,
    %c3_i32_880 = arith.constant 3 : i32
    %807 = arith.addi %1, %c3_i32_880 : i32
    %c1_i32_881 = arith.constant 1 : i32
    %808 = arith.muli %807, %c1_i32_881 : i32
    %c2_i32_882 = arith.constant 2 : i32
    %809 = arith.addi %808, %c2_i32_882 : i32
    %c0_883 = arith.constant 0 : index
    %810 = arith.index_cast %809 : i32 to index
    %c1_884 = arith.constant 1 : index
    %c0_885 = arith.constant 0 : index
    %811 = vector.load %arg3[%c0_883, %810, %c1_884, %c0_885] : memref<1x18x18x4xbf16, #tpu.memory_space<vmem>>, vector<1x1x16x4xbf16>
    %812 = vector.shape_cast %811 : vector<1x1x16x4xbf16> to vector<16x4xbf16>
    %c48_886 = arith.constant 48 : index
    %c28_887 = arith.constant 28 : index
    %813 = vector.load %arg8[%c48_886, %c28_887] : memref<256x36xbf16, #tpu.memory_space<vmem>>, vector<16x4xbf16>
    tpu.vector_store %arg8[%c48_886, %c28_887], %812 {strides = array<i32>} : memref<256x36xbf16, #tpu.memory_space<vmem>>, vector<16x4xbf16>,
    %c4_i32_888 = arith.constant 4 : i32
    %814 = arith.addi %1, %c4_i32_888 : i32
    %c1_i32_889 = arith.constant 1 : i32
    %815 = arith.muli %814, %c1_i32_889 : i32
    %c2_i32_890 = arith.constant 2 : i32
    %816 = arith.addi %815, %c2_i32_890 : i32
    %c0_891 = arith.constant 0 : index
    %817 = arith.index_cast %816 : i32 to index
    %c1_892 = arith.constant 1 : index
    %c0_893 = arith.constant 0 : index
    %818 = vector.load %arg3[%c0_891, %817, %c1_892, %c0_893] : memref<1x18x18x4xbf16, #tpu.memory_space<vmem>>, vector<1x1x16x4xbf16>
    %819 = vector.shape_cast %818 : vector<1x1x16x4xbf16> to vector<16x4xbf16>
    %c64_894 = arith.constant 64 : index
    %c28_895 = arith.constant 28 : index
    %820 = vector.load %arg8[%c64_894, %c28_895] : memref<256x36xbf16, #tpu.memory_space<vmem>>, vector<16x4xbf16>
    tpu.vector_store %arg8[%c64_894, %c28_895], %819 {strides = array<i32>} : memref<256x36xbf16, #tpu.memory_space<vmem>>, vector<16x4xbf16>,
    %c5_i32_896 = arith.constant 5 : i32
    %821 = arith.addi %1, %c5_i32_896 : i32
    %c1_i32_897 = arith.constant 1 : i32
    %822 = arith.muli %821, %c1_i32_897 : i32
    %c2_i32_898 = arith.constant 2 : i32
    %823 = arith.addi %822, %c2_i32_898 : i32
    %c0_899 = arith.constant 0 : index
    %824 = arith.index_cast %823 : i32 to index
    %c1_900 = arith.constant 1 : index
    %c0_901 = arith.constant 0 : index
    %825 = vector.load %arg3[%c0_899, %824, %c1_900, %c0_901] : memref<1x18x18x4xbf16, #tpu.memory_space<vmem>>, vector<1x1x16x4xbf16>
    %826 = vector.shape_cast %825 : vector<1x1x16x4xbf16> to vector<16x4xbf16>
    %c80_902 = arith.constant 80 : index
    %c28_903 = arith.constant 28 : index
    %827 = vector.load %arg8[%c80_902, %c28_903] : memref<256x36xbf16, #tpu.memory_space<vmem>>, vector<16x4xbf16>
    tpu.vector_store %arg8[%c80_902, %c28_903], %826 {strides = array<i32>} : memref<256x36xbf16, #tpu.memory_space<vmem>>, vector<16x4xbf16>,
    %c6_i32_904 = arith.constant 6 : i32
    %828 = arith.addi %1, %c6_i32_904 : i32
    %c1_i32_905 = arith.constant 1 : i32
    %829 = arith.muli %828, %c1_i32_905 : i32
    %c2_i32_906 = arith.constant 2 : i32
    %830 = arith.addi %829, %c2_i32_906 : i32
    %c0_907 = arith.constant 0 : index
    %831 = arith.index_cast %830 : i32 to index
    %c1_908 = arith.constant 1 : index
    %c0_909 = arith.constant 0 : index
    %832 = vector.load %arg3[%c0_907, %831, %c1_908, %c0_909] : memref<1x18x18x4xbf16, #tpu.memory_space<vmem>>, vector<1x1x16x4xbf16>
    %833 = vector.shape_cast %832 : vector<1x1x16x4xbf16> to vector<16x4xbf16>
    %c96_910 = arith.constant 96 : index
    %c28_911 = arith.constant 28 : index
    %834 = vector.load %arg8[%c96_910, %c28_911] : memref<256x36xbf16, #tpu.memory_space<vmem>>, vector<16x4xbf16>
    tpu.vector_store %arg8[%c96_910, %c28_911], %833 {strides = array<i32>} : memref<256x36xbf16, #tpu.memory_space<vmem>>, vector<16x4xbf16>,
    %c7_i32_912 = arith.constant 7 : i32
    %835 = arith.addi %1, %c7_i32_912 : i32
    %c1_i32_913 = arith.constant 1 : i32
    %836 = arith.muli %835, %c1_i32_913 : i32
    %c2_i32_914 = arith.constant 2 : i32
    %837 = arith.addi %836, %c2_i32_914 : i32
    %c0_915 = arith.constant 0 : index
    %838 = arith.index_cast %837 : i32 to index
    %c1_916 = arith.constant 1 : index
    %c0_917 = arith.constant 0 : index
    %839 = vector.load %arg3[%c0_915, %838, %c1_916, %c0_917] : memref<1x18x18x4xbf16, #tpu.memory_space<vmem>>, vector<1x1x16x4xbf16>
    %840 = vector.shape_cast %839 : vector<1x1x16x4xbf16> to vector<16x4xbf16>
    %c112_918 = arith.constant 112 : index
    %c28_919 = arith.constant 28 : index
    %841 = vector.load %arg8[%c112_918, %c28_919] : memref<256x36xbf16, #tpu.memory_space<vmem>>, vector<16x4xbf16>
    tpu.vector_store %arg8[%c112_918, %c28_919], %840 {strides = array<i32>} : memref<256x36xbf16, #tpu.memory_space<vmem>>, vector<16x4xbf16>,
    %c8_i32_920 = arith.constant 8 : i32
    %842 = arith.addi %1, %c8_i32_920 : i32
    %c1_i32_921 = arith.constant 1 : i32
    %843 = arith.muli %842, %c1_i32_921 : i32
    %c2_i32_922 = arith.constant 2 : i32
    %844 = arith.addi %843, %c2_i32_922 : i32
    %c0_923 = arith.constant 0 : index
    %845 = arith.index_cast %844 : i32 to index
    %c1_924 = arith.constant 1 : index
    %c0_925 = arith.constant 0 : index
    %846 = vector.load %arg3[%c0_923, %845, %c1_924, %c0_925] : memref<1x18x18x4xbf16, #tpu.memory_space<vmem>>, vector<1x1x16x4xbf16>
    %847 = vector.shape_cast %846 : vector<1x1x16x4xbf16> to vector<16x4xbf16>
    %c128_926 = arith.constant 128 : index
    %c28_927 = arith.constant 28 : index
    %848 = vector.load %arg8[%c128_926, %c28_927] : memref<256x36xbf16, #tpu.memory_space<vmem>>, vector<16x4xbf16>
    tpu.vector_store %arg8[%c128_926, %c28_927], %847 {strides = array<i32>} : memref<256x36xbf16, #tpu.memory_space<vmem>>, vector<16x4xbf16>,
    %c9_i32_928 = arith.constant 9 : i32
    %849 = arith.addi %1, %c9_i32_928 : i32
    %c1_i32_929 = arith.constant 1 : i32
    %850 = arith.muli %849, %c1_i32_929 : i32
    %c2_i32_930 = arith.constant 2 : i32
    %851 = arith.addi %850, %c2_i32_930 : i32
    %c0_931 = arith.constant 0 : index
    %852 = arith.index_cast %851 : i32 to index
    %c1_932 = arith.constant 1 : index
    %c0_933 = arith.constant 0 : index
    %853 = vector.load %arg3[%c0_931, %852, %c1_932, %c0_933] : memref<1x18x18x4xbf16, #tpu.memory_space<vmem>>, vector<1x1x16x4xbf16>
    %854 = vector.shape_cast %853 : vector<1x1x16x4xbf16> to vector<16x4xbf16>
    %c144_934 = arith.constant 144 : index
    %c28_935 = arith.constant 28 : index
    %855 = vector.load %arg8[%c144_934, %c28_935] : memref<256x36xbf16, #tpu.memory_space<vmem>>, vector<16x4xbf16>
    tpu.vector_store %arg8[%c144_934, %c28_935], %854 {strides = array<i32>} : memref<256x36xbf16, #tpu.memory_space<vmem>>, vector<16x4xbf16>,
    %c10_i32_936 = arith.constant 10 : i32
    %856 = arith.addi %1, %c10_i32_936 : i32
    %c1_i32_937 = arith.constant 1 : i32
    %857 = arith.muli %856, %c1_i32_937 : i32
    %c2_i32_938 = arith.constant 2 : i32
    %858 = arith.addi %857, %c2_i32_938 : i32
    %c0_939 = arith.constant 0 : index
    %859 = arith.index_cast %858 : i32 to index
    %c1_940 = arith.constant 1 : index
    %c0_941 = arith.constant 0 : index
    %860 = vector.load %arg3[%c0_939, %859, %c1_940, %c0_941] : memref<1x18x18x4xbf16, #tpu.memory_space<vmem>>, vector<1x1x16x4xbf16>
    %861 = vector.shape_cast %860 : vector<1x1x16x4xbf16> to vector<16x4xbf16>
    %c160_942 = arith.constant 160 : index
    %c28_943 = arith.constant 28 : index
    %862 = vector.load %arg8[%c160_942, %c28_943] : memref<256x36xbf16, #tpu.memory_space<vmem>>, vector<16x4xbf16>
    tpu.vector_store %arg8[%c160_942, %c28_943], %861 {strides = array<i32>} : memref<256x36xbf16, #tpu.memory_space<vmem>>, vector<16x4xbf16>,
    %c11_i32_944 = arith.constant 11 : i32
    %863 = arith.addi %1, %c11_i32_944 : i32
    %c1_i32_945 = arith.constant 1 : i32
    %864 = arith.muli %863, %c1_i32_945 : i32
    %c2_i32_946 = arith.constant 2 : i32
    %865 = arith.addi %864, %c2_i32_946 : i32
    %c0_947 = arith.constant 0 : index
    %866 = arith.index_cast %865 : i32 to index
    %c1_948 = arith.constant 1 : index
    %c0_949 = arith.constant 0 : index
    %867 = vector.load %arg3[%c0_947, %866, %c1_948, %c0_949] : memref<1x18x18x4xbf16, #tpu.memory_space<vmem>>, vector<1x1x16x4xbf16>
    %868 = vector.shape_cast %867 : vector<1x1x16x4xbf16> to vector<16x4xbf16>
    %c176_950 = arith.constant 176 : index
    %c28_951 = arith.constant 28 : index
    %869 = vector.load %arg8[%c176_950, %c28_951] : memref<256x36xbf16, #tpu.memory_space<vmem>>, vector<16x4xbf16>
    tpu.vector_store %arg8[%c176_950, %c28_951], %868 {strides = array<i32>} : memref<256x36xbf16, #tpu.memory_space<vmem>>, vector<16x4xbf16>,
    %c12_i32_952 = arith.constant 12 : i32
    %870 = arith.addi %1, %c12_i32_952 : i32
    %c1_i32_953 = arith.constant 1 : i32
    %871 = arith.muli %870, %c1_i32_953 : i32
    %c2_i32_954 = arith.constant 2 : i32
    %872 = arith.addi %871, %c2_i32_954 : i32
    %c0_955 = arith.constant 0 : index
    %873 = arith.index_cast %872 : i32 to index
    %c1_956 = arith.constant 1 : index
    %c0_957 = arith.constant 0 : index
    %874 = vector.load %arg3[%c0_955, %873, %c1_956, %c0_957] : memref<1x18x18x4xbf16, #tpu.memory_space<vmem>>, vector<1x1x16x4xbf16>
    %875 = vector.shape_cast %874 : vector<1x1x16x4xbf16> to vector<16x4xbf16>
    %c192_958 = arith.constant 192 : index
    %c28_959 = arith.constant 28 : index
    %876 = vector.load %arg8[%c192_958, %c28_959] : memref<256x36xbf16, #tpu.memory_space<vmem>>, vector<16x4xbf16>
    tpu.vector_store %arg8[%c192_958, %c28_959], %875 {strides = array<i32>} : memref<256x36xbf16, #tpu.memory_space<vmem>>, vector<16x4xbf16>,
    %c13_i32_960 = arith.constant 13 : i32
    %877 = arith.addi %1, %c13_i32_960 : i32
    %c1_i32_961 = arith.constant 1 : i32
    %878 = arith.muli %877, %c1_i32_961 : i32
    %c2_i32_962 = arith.constant 2 : i32
    %879 = arith.addi %878, %c2_i32_962 : i32
    %c0_963 = arith.constant 0 : index
    %880 = arith.index_cast %879 : i32 to index
    %c1_964 = arith.constant 1 : index
    %c0_965 = arith.constant 0 : index
    %881 = vector.load %arg3[%c0_963, %880, %c1_964, %c0_965] : memref<1x18x18x4xbf16, #tpu.memory_space<vmem>>, vector<1x1x16x4xbf16>
    %882 = vector.shape_cast %881 : vector<1x1x16x4xbf16> to vector<16x4xbf16>
    %c208_966 = arith.constant 208 : index
    %c28_967 = arith.constant 28 : index
    %883 = vector.load %arg8[%c208_966, %c28_967] : memref<256x36xbf16, #tpu.memory_space<vmem>>, vector<16x4xbf16>
    tpu.vector_store %arg8[%c208_966, %c28_967], %882 {strides = array<i32>} : memref<256x36xbf16, #tpu.memory_space<vmem>>, vector<16x4xbf16>,
    %c14_i32_968 = arith.constant 14 : i32
    %884 = arith.addi %1, %c14_i32_968 : i32
    %c1_i32_969 = arith.constant 1 : i32
    %885 = arith.muli %884, %c1_i32_969 : i32
    %c2_i32_970 = arith.constant 2 : i32
    %886 = arith.addi %885, %c2_i32_970 : i32
    %c0_971 = arith.constant 0 : index
    %887 = arith.index_cast %886 : i32 to index
    %c1_972 = arith.constant 1 : index
    %c0_973 = arith.constant 0 : index
    %888 = vector.load %arg3[%c0_971, %887, %c1_972, %c0_973] : memref<1x18x18x4xbf16, #tpu.memory_space<vmem>>, vector<1x1x16x4xbf16>
    %889 = vector.shape_cast %888 : vector<1x1x16x4xbf16> to vector<16x4xbf16>
    %c224_974 = arith.constant 224 : index
    %c28_975 = arith.constant 28 : index
    %890 = vector.load %arg8[%c224_974, %c28_975] : memref<256x36xbf16, #tpu.memory_space<vmem>>, vector<16x4xbf16>
    tpu.vector_store %arg8[%c224_974, %c28_975], %889 {strides = array<i32>} : memref<256x36xbf16, #tpu.memory_space<vmem>>, vector<16x4xbf16>,
    %c15_i32_976 = arith.constant 15 : i32
    %891 = arith.addi %1, %c15_i32_976 : i32
    %c1_i32_977 = arith.constant 1 : i32
    %892 = arith.muli %891, %c1_i32_977 : i32
    %c2_i32_978 = arith.constant 2 : i32
    %893 = arith.addi %892, %c2_i32_978 : i32
    %c0_979 = arith.constant 0 : index
    %894 = arith.index_cast %893 : i32 to index
    %c1_980 = arith.constant 1 : index
    %c0_981 = arith.constant 0 : index
    %895 = vector.load %arg3[%c0_979, %894, %c1_980, %c0_981] : memref<1x18x18x4xbf16, #tpu.memory_space<vmem>>, vector<1x1x16x4xbf16>
    %896 = vector.shape_cast %895 : vector<1x1x16x4xbf16> to vector<16x4xbf16>
    %c240_982 = arith.constant 240 : index
    %c28_983 = arith.constant 28 : index
    %897 = vector.load %arg8[%c240_982, %c28_983] : memref<256x36xbf16, #tpu.memory_space<vmem>>, vector<16x4xbf16>
    tpu.vector_store %arg8[%c240_982, %c28_983], %896 {strides = array<i32>} : memref<256x36xbf16, #tpu.memory_space<vmem>>, vector<16x4xbf16>,
    %c0_i32_984 = arith.constant 0 : i32
    %898 = arith.addi %1, %c0_i32_984 : i32
    %c1_i32_985 = arith.constant 1 : i32
    %899 = arith.muli %898, %c1_i32_985 : i32
    %c2_i32_986 = arith.constant 2 : i32
    %900 = arith.addi %899, %c2_i32_986 : i32
    %c0_987 = arith.constant 0 : index
    %901 = arith.index_cast %900 : i32 to index
    %c2_988 = arith.constant 2 : index
    %c0_989 = arith.constant 0 : index
    %902 = vector.load %arg3[%c0_987, %901, %c2_988, %c0_989] : memref<1x18x18x4xbf16, #tpu.memory_space<vmem>>, vector<1x1x16x4xbf16>
    %903 = vector.shape_cast %902 : vector<1x1x16x4xbf16> to vector<16x4xbf16>
    %c0_990 = arith.constant 0 : index
    %c32_991 = arith.constant 32 : index
    %904 = vector.load %arg8[%c0_990, %c32_991] : memref<256x36xbf16, #tpu.memory_space<vmem>>, vector<16x4xbf16>
    tpu.vector_store %arg8[%c0_990, %c32_991], %903 {strides = array<i32>} : memref<256x36xbf16, #tpu.memory_space<vmem>>, vector<16x4xbf16>,
    %c1_i32_992 = arith.constant 1 : i32
    %905 = arith.addi %1, %c1_i32_992 : i32
    %c1_i32_993 = arith.constant 1 : i32
    %906 = arith.muli %905, %c1_i32_993 : i32
    %c2_i32_994 = arith.constant 2 : i32
    %907 = arith.addi %906, %c2_i32_994 : i32
    %c0_995 = arith.constant 0 : index
    %908 = arith.index_cast %907 : i32 to index
    %c2_996 = arith.constant 2 : index
    %c0_997 = arith.constant 0 : index
    %909 = vector.load %arg3[%c0_995, %908, %c2_996, %c0_997] : memref<1x18x18x4xbf16, #tpu.memory_space<vmem>>, vector<1x1x16x4xbf16>
    %910 = vector.shape_cast %909 : vector<1x1x16x4xbf16> to vector<16x4xbf16>
    %c16_998 = arith.constant 16 : index
    %c32_999 = arith.constant 32 : index
    %911 = vector.load %arg8[%c16_998, %c32_999] : memref<256x36xbf16, #tpu.memory_space<vmem>>, vector<16x4xbf16>
    tpu.vector_store %arg8[%c16_998, %c32_999], %910 {strides = array<i32>} : memref<256x36xbf16, #tpu.memory_space<vmem>>, vector<16x4xbf16>,
    %c2_i32_1000 = arith.constant 2 : i32
    %912 = arith.addi %1, %c2_i32_1000 : i32
    %c1_i32_1001 = arith.constant 1 : i32
    %913 = arith.muli %912, %c1_i32_1001 : i32
    %c2_i32_1002 = arith.constant 2 : i32
    %914 = arith.addi %913, %c2_i32_1002 : i32
    %c0_1003 = arith.constant 0 : index
    %915 = arith.index_cast %914 : i32 to index
    %c2_1004 = arith.constant 2 : index
    %c0_1005 = arith.constant 0 : index
    %916 = vector.load %arg3[%c0_1003, %915, %c2_1004, %c0_1005] : memref<1x18x18x4xbf16, #tpu.memory_space<vmem>>, vector<1x1x16x4xbf16>
    %917 = vector.shape_cast %916 : vector<1x1x16x4xbf16> to vector<16x4xbf16>
    %c32_1006 = arith.constant 32 : index
    %c32_1007 = arith.constant 32 : index
    %918 = vector.load %arg8[%c32_1006, %c32_1007] : memref<256x36xbf16, #tpu.memory_space<vmem>>, vector<16x4xbf16>
    tpu.vector_store %arg8[%c32_1006, %c32_1007], %917 {strides = array<i32>} : memref<256x36xbf16, #tpu.memory_space<vmem>>, vector<16x4xbf16>,
    %c3_i32_1008 = arith.constant 3 : i32
    %919 = arith.addi %1, %c3_i32_1008 : i32
    %c1_i32_1009 = arith.constant 1 : i32
    %920 = arith.muli %919, %c1_i32_1009 : i32
    %c2_i32_1010 = arith.constant 2 : i32
    %921 = arith.addi %920, %c2_i32_1010 : i32
    %c0_1011 = arith.constant 0 : index
    %922 = arith.index_cast %921 : i32 to index
    %c2_1012 = arith.constant 2 : index
    %c0_1013 = arith.constant 0 : index
    %923 = vector.load %arg3[%c0_1011, %922, %c2_1012, %c0_1013] : memref<1x18x18x4xbf16, #tpu.memory_space<vmem>>, vector<1x1x16x4xbf16>
    %924 = vector.shape_cast %923 : vector<1x1x16x4xbf16> to vector<16x4xbf16>
    %c48_1014 = arith.constant 48 : index
    %c32_1015 = arith.constant 32 : index
    %925 = vector.load %arg8[%c48_1014, %c32_1015] : memref<256x36xbf16, #tpu.memory_space<vmem>>, vector<16x4xbf16>
    tpu.vector_store %arg8[%c48_1014, %c32_1015], %924 {strides = array<i32>} : memref<256x36xbf16, #tpu.memory_space<vmem>>, vector<16x4xbf16>,
    %c4_i32_1016 = arith.constant 4 : i32
    %926 = arith.addi %1, %c4_i32_1016 : i32
    %c1_i32_1017 = arith.constant 1 : i32
    %927 = arith.muli %926, %c1_i32_1017 : i32
    %c2_i32_1018 = arith.constant 2 : i32
    %928 = arith.addi %927, %c2_i32_1018 : i32
    %c0_1019 = arith.constant 0 : index
    %929 = arith.index_cast %928 : i32 to index
    %c2_1020 = arith.constant 2 : index
    %c0_1021 = arith.constant 0 : index
    %930 = vector.load %arg3[%c0_1019, %929, %c2_1020, %c0_1021] : memref<1x18x18x4xbf16, #tpu.memory_space<vmem>>, vector<1x1x16x4xbf16>
    %931 = vector.shape_cast %930 : vector<1x1x16x4xbf16> to vector<16x4xbf16>
    %c64_1022 = arith.constant 64 : index
    %c32_1023 = arith.constant 32 : index
    %932 = vector.load %arg8[%c64_1022, %c32_1023] : memref<256x36xbf16, #tpu.memory_space<vmem>>, vector<16x4xbf16>
    tpu.vector_store %arg8[%c64_1022, %c32_1023], %931 {strides = array<i32>} : memref<256x36xbf16, #tpu.memory_space<vmem>>, vector<16x4xbf16>,
    %c5_i32_1024 = arith.constant 5 : i32
    %933 = arith.addi %1, %c5_i32_1024 : i32
    %c1_i32_1025 = arith.constant 1 : i32
    %934 = arith.muli %933, %c1_i32_1025 : i32
    %c2_i32_1026 = arith.constant 2 : i32
    %935 = arith.addi %934, %c2_i32_1026 : i32
    %c0_1027 = arith.constant 0 : index
    %936 = arith.index_cast %935 : i32 to index
    %c2_1028 = arith.constant 2 : index
    %c0_1029 = arith.constant 0 : index
    %937 = vector.load %arg3[%c0_1027, %936, %c2_1028, %c0_1029] : memref<1x18x18x4xbf16, #tpu.memory_space<vmem>>, vector<1x1x16x4xbf16>
    %938 = vector.shape_cast %937 : vector<1x1x16x4xbf16> to vector<16x4xbf16>
    %c80_1030 = arith.constant 80 : index
    %c32_1031 = arith.constant 32 : index
    %939 = vector.load %arg8[%c80_1030, %c32_1031] : memref<256x36xbf16, #tpu.memory_space<vmem>>, vector<16x4xbf16>
    tpu.vector_store %arg8[%c80_1030, %c32_1031], %938 {strides = array<i32>} : memref<256x36xbf16, #tpu.memory_space<vmem>>, vector<16x4xbf16>,
    %c6_i32_1032 = arith.constant 6 : i32
    %940 = arith.addi %1, %c6_i32_1032 : i32
    %c1_i32_1033 = arith.constant 1 : i32
    %941 = arith.muli %940, %c1_i32_1033 : i32
    %c2_i32_1034 = arith.constant 2 : i32
    %942 = arith.addi %941, %c2_i32_1034 : i32
    %c0_1035 = arith.constant 0 : index
    %943 = arith.index_cast %942 : i32 to index
    %c2_1036 = arith.constant 2 : index
    %c0_1037 = arith.constant 0 : index
    %944 = vector.load %arg3[%c0_1035, %943, %c2_1036, %c0_1037] : memref<1x18x18x4xbf16, #tpu.memory_space<vmem>>, vector<1x1x16x4xbf16>
    %945 = vector.shape_cast %944 : vector<1x1x16x4xbf16> to vector<16x4xbf16>
    %c96_1038 = arith.constant 96 : index
    %c32_1039 = arith.constant 32 : index
    %946 = vector.load %arg8[%c96_1038, %c32_1039] : memref<256x36xbf16, #tpu.memory_space<vmem>>, vector<16x4xbf16>
    tpu.vector_store %arg8[%c96_1038, %c32_1039], %945 {strides = array<i32>} : memref<256x36xbf16, #tpu.memory_space<vmem>>, vector<16x4xbf16>,
    %c7_i32_1040 = arith.constant 7 : i32
    %947 = arith.addi %1, %c7_i32_1040 : i32
    %c1_i32_1041 = arith.constant 1 : i32
    %948 = arith.muli %947, %c1_i32_1041 : i32
    %c2_i32_1042 = arith.constant 2 : i32
    %949 = arith.addi %948, %c2_i32_1042 : i32
    %c0_1043 = arith.constant 0 : index
    %950 = arith.index_cast %949 : i32 to index
    %c2_1044 = arith.constant 2 : index
    %c0_1045 = arith.constant 0 : index
    %951 = vector.load %arg3[%c0_1043, %950, %c2_1044, %c0_1045] : memref<1x18x18x4xbf16, #tpu.memory_space<vmem>>, vector<1x1x16x4xbf16>
    %952 = vector.shape_cast %951 : vector<1x1x16x4xbf16> to vector<16x4xbf16>
    %c112_1046 = arith.constant 112 : index
    %c32_1047 = arith.constant 32 : index
    %953 = vector.load %arg8[%c112_1046, %c32_1047] : memref<256x36xbf16, #tpu.memory_space<vmem>>, vector<16x4xbf16>
    tpu.vector_store %arg8[%c112_1046, %c32_1047], %952 {strides = array<i32>} : memref<256x36xbf16, #tpu.memory_space<vmem>>, vector<16x4xbf16>,
    %c8_i32_1048 = arith.constant 8 : i32
    %954 = arith.addi %1, %c8_i32_1048 : i32
    %c1_i32_1049 = arith.constant 1 : i32
    %955 = arith.muli %954, %c1_i32_1049 : i32
    %c2_i32_1050 = arith.constant 2 : i32
    %956 = arith.addi %955, %c2_i32_1050 : i32
    %c0_1051 = arith.constant 0 : index
    %957 = arith.index_cast %956 : i32 to index
    %c2_1052 = arith.constant 2 : index
    %c0_1053 = arith.constant 0 : index
    %958 = vector.load %arg3[%c0_1051, %957, %c2_1052, %c0_1053] : memref<1x18x18x4xbf16, #tpu.memory_space<vmem>>, vector<1x1x16x4xbf16>
    %959 = vector.shape_cast %958 : vector<1x1x16x4xbf16> to vector<16x4xbf16>
    %c128_1054 = arith.constant 128 : index
    %c32_1055 = arith.constant 32 : index
    %960 = vector.load %arg8[%c128_1054, %c32_1055] : memref<256x36xbf16, #tpu.memory_space<vmem>>, vector<16x4xbf16>
    tpu.vector_store %arg8[%c128_1054, %c32_1055], %959 {strides = array<i32>} : memref<256x36xbf16, #tpu.memory_space<vmem>>, vector<16x4xbf16>,
    %c9_i32_1056 = arith.constant 9 : i32
    %961 = arith.addi %1, %c9_i32_1056 : i32
    %c1_i32_1057 = arith.constant 1 : i32
    %962 = arith.muli %961, %c1_i32_1057 : i32
    %c2_i32_1058 = arith.constant 2 : i32
    %963 = arith.addi %962, %c2_i32_1058 : i32
    %c0_1059 = arith.constant 0 : index
    %964 = arith.index_cast %963 : i32 to index
    %c2_1060 = arith.constant 2 : index
    %c0_1061 = arith.constant 0 : index
    %965 = vector.load %arg3[%c0_1059, %964, %c2_1060, %c0_1061] : memref<1x18x18x4xbf16, #tpu.memory_space<vmem>>, vector<1x1x16x4xbf16>
    %966 = vector.shape_cast %965 : vector<1x1x16x4xbf16> to vector<16x4xbf16>
    %c144_1062 = arith.constant 144 : index
    %c32_1063 = arith.constant 32 : index
    %967 = vector.load %arg8[%c144_1062, %c32_1063] : memref<256x36xbf16, #tpu.memory_space<vmem>>, vector<16x4xbf16>
    tpu.vector_store %arg8[%c144_1062, %c32_1063], %966 {strides = array<i32>} : memref<256x36xbf16, #tpu.memory_space<vmem>>, vector<16x4xbf16>,
    %c10_i32_1064 = arith.constant 10 : i32
    %968 = arith.addi %1, %c10_i32_1064 : i32
    %c1_i32_1065 = arith.constant 1 : i32
    %969 = arith.muli %968, %c1_i32_1065 : i32
    %c2_i32_1066 = arith.constant 2 : i32
    %970 = arith.addi %969, %c2_i32_1066 : i32
    %c0_1067 = arith.constant 0 : index
    %971 = arith.index_cast %970 : i32 to index
    %c2_1068 = arith.constant 2 : index
    %c0_1069 = arith.constant 0 : index
    %972 = vector.load %arg3[%c0_1067, %971, %c2_1068, %c0_1069] : memref<1x18x18x4xbf16, #tpu.memory_space<vmem>>, vector<1x1x16x4xbf16>
    %973 = vector.shape_cast %972 : vector<1x1x16x4xbf16> to vector<16x4xbf16>
    %c160_1070 = arith.constant 160 : index
    %c32_1071 = arith.constant 32 : index
    %974 = vector.load %arg8[%c160_1070, %c32_1071] : memref<256x36xbf16, #tpu.memory_space<vmem>>, vector<16x4xbf16>
    tpu.vector_store %arg8[%c160_1070, %c32_1071], %973 {strides = array<i32>} : memref<256x36xbf16, #tpu.memory_space<vmem>>, vector<16x4xbf16>,
    %c11_i32_1072 = arith.constant 11 : i32
    %975 = arith.addi %1, %c11_i32_1072 : i32
    %c1_i32_1073 = arith.constant 1 : i32
    %976 = arith.muli %975, %c1_i32_1073 : i32
    %c2_i32_1074 = arith.constant 2 : i32
    %977 = arith.addi %976, %c2_i32_1074 : i32
    %c0_1075 = arith.constant 0 : index
    %978 = arith.index_cast %977 : i32 to index
    %c2_1076 = arith.constant 2 : index
    %c0_1077 = arith.constant 0 : index
    %979 = vector.load %arg3[%c0_1075, %978, %c2_1076, %c0_1077] : memref<1x18x18x4xbf16, #tpu.memory_space<vmem>>, vector<1x1x16x4xbf16>
    %980 = vector.shape_cast %979 : vector<1x1x16x4xbf16> to vector<16x4xbf16>
    %c176_1078 = arith.constant 176 : index
    %c32_1079 = arith.constant 32 : index
    %981 = vector.load %arg8[%c176_1078, %c32_1079] : memref<256x36xbf16, #tpu.memory_space<vmem>>, vector<16x4xbf16>
    tpu.vector_store %arg8[%c176_1078, %c32_1079], %980 {strides = array<i32>} : memref<256x36xbf16, #tpu.memory_space<vmem>>, vector<16x4xbf16>,
    %c12_i32_1080 = arith.constant 12 : i32
    %982 = arith.addi %1, %c12_i32_1080 : i32
    %c1_i32_1081 = arith.constant 1 : i32
    %983 = arith.muli %982, %c1_i32_1081 : i32
    %c2_i32_1082 = arith.constant 2 : i32
    %984 = arith.addi %983, %c2_i32_1082 : i32
    %c0_1083 = arith.constant 0 : index
    %985 = arith.index_cast %984 : i32 to index
    %c2_1084 = arith.constant 2 : index
    %c0_1085 = arith.constant 0 : index
    %986 = vector.load %arg3[%c0_1083, %985, %c2_1084, %c0_1085] : memref<1x18x18x4xbf16, #tpu.memory_space<vmem>>, vector<1x1x16x4xbf16>
    %987 = vector.shape_cast %986 : vector<1x1x16x4xbf16> to vector<16x4xbf16>
    %c192_1086 = arith.constant 192 : index
    %c32_1087 = arith.constant 32 : index
    %988 = vector.load %arg8[%c192_1086, %c32_1087] : memref<256x36xbf16, #tpu.memory_space<vmem>>, vector<16x4xbf16>
    tpu.vector_store %arg8[%c192_1086, %c32_1087], %987 {strides = array<i32>} : memref<256x36xbf16, #tpu.memory_space<vmem>>, vector<16x4xbf16>,
    %c13_i32_1088 = arith.constant 13 : i32
    %989 = arith.addi %1, %c13_i32_1088 : i32
    %c1_i32_1089 = arith.constant 1 : i32
    %990 = arith.muli %989, %c1_i32_1089 : i32
    %c2_i32_1090 = arith.constant 2 : i32
    %991 = arith.addi %990, %c2_i32_1090 : i32
    %c0_1091 = arith.constant 0 : index
    %992 = arith.index_cast %991 : i32 to index
    %c2_1092 = arith.constant 2 : index
    %c0_1093 = arith.constant 0 : index
    %993 = vector.load %arg3[%c0_1091, %992, %c2_1092, %c0_1093] : memref<1x18x18x4xbf16, #tpu.memory_space<vmem>>, vector<1x1x16x4xbf16>
    %994 = vector.shape_cast %993 : vector<1x1x16x4xbf16> to vector<16x4xbf16>
    %c208_1094 = arith.constant 208 : index
    %c32_1095 = arith.constant 32 : index
    %995 = vector.load %arg8[%c208_1094, %c32_1095] : memref<256x36xbf16, #tpu.memory_space<vmem>>, vector<16x4xbf16>
    tpu.vector_store %arg8[%c208_1094, %c32_1095], %994 {strides = array<i32>} : memref<256x36xbf16, #tpu.memory_space<vmem>>, vector<16x4xbf16>,
    %c14_i32_1096 = arith.constant 14 : i32
    %996 = arith.addi %1, %c14_i32_1096 : i32
    %c1_i32_1097 = arith.constant 1 : i32
    %997 = arith.muli %996, %c1_i32_1097 : i32
    %c2_i32_1098 = arith.constant 2 : i32
    %998 = arith.addi %997, %c2_i32_1098 : i32
    %c0_1099 = arith.constant 0 : index
    %999 = arith.index_cast %998 : i32 to index
    %c2_1100 = arith.constant 2 : index
    %c0_1101 = arith.constant 0 : index
    %1000 = vector.load %arg3[%c0_1099, %999, %c2_1100, %c0_1101] : memref<1x18x18x4xbf16, #tpu.memory_space<vmem>>, vector<1x1x16x4xbf16>
    %1001 = vector.shape_cast %1000 : vector<1x1x16x4xbf16> to vector<16x4xbf16>
    %c224_1102 = arith.constant 224 : index
    %c32_1103 = arith.constant 32 : index
    %1002 = vector.load %arg8[%c224_1102, %c32_1103] : memref<256x36xbf16, #tpu.memory_space<vmem>>, vector<16x4xbf16>
    tpu.vector_store %arg8[%c224_1102, %c32_1103], %1001 {strides = array<i32>} : memref<256x36xbf16, #tpu.memory_space<vmem>>, vector<16x4xbf16>,
    %c15_i32_1104 = arith.constant 15 : i32
    %1003 = arith.addi %1, %c15_i32_1104 : i32
    %c1_i32_1105 = arith.constant 1 : i32
    %1004 = arith.muli %1003, %c1_i32_1105 : i32
    %c2_i32_1106 = arith.constant 2 : i32
    %1005 = arith.addi %1004, %c2_i32_1106 : i32
    %c0_1107 = arith.constant 0 : index
    %1006 = arith.index_cast %1005 : i32 to index
    %c2_1108 = arith.constant 2 : index
    %c0_1109 = arith.constant 0 : index
    %1007 = vector.load %arg3[%c0_1107, %1006, %c2_1108, %c0_1109] : memref<1x18x18x4xbf16, #tpu.memory_space<vmem>>, vector<1x1x16x4xbf16>
    %1008 = vector.shape_cast %1007 : vector<1x1x16x4xbf16> to vector<16x4xbf16>
    %c240_1110 = arith.constant 240 : index
    %c32_1111 = arith.constant 32 : index
    %1009 = vector.load %arg8[%c240_1110, %c32_1111] : memref<256x36xbf16, #tpu.memory_space<vmem>>, vector<16x4xbf16>
    tpu.vector_store %arg8[%c240_1110, %c32_1111], %1008 {strides = array<i32>} : memref<256x36xbf16, #tpu.memory_space<vmem>>, vector<16x4xbf16>,
    %c0_1112 = arith.constant 0 : index
    %c0_1113 = arith.constant 0 : index
    %1010 = vector.load %arg8[%c0_1112, %c0_1113] : memref<256x36xbf16, #tpu.memory_space<vmem>>, vector<256x36xbf16>
    %c0_1114 = arith.constant 0 : index
    %c0_1115 = arith.constant 0 : index
    %1011 = vector.load %arg4[%c0_1114, %c0_1115] : memref<36x128xbf16, #tpu.memory_space<vmem>>, vector<36x128xbf16>
    %cst = arith.constant dense<0.000000e+00> : vector<256x128xf32>
    %1012 = tpu.matmul %1010, %1011, %cst {dimension_numbers = #tpu.dot_dimension_numbers<[1], [0], [0], [1], [0, 0, 1, 1], [], []>} : vector<256x36xbf16>, vector<36x128xbf16>, vector<256x128xf32> -> vector<256x128xf32>
    %c0_1116 = arith.constant 0 : index
    %c0_1117 = arith.constant 0 : index
    %1013 = vector.load %arg5[%c0_1116, %c0_1117] : memref<1x128xf32, #tpu.memory_space<vmem>>, vector<1x128xf32>
    %1014 = vector.broadcast %1013 : vector<1x128xf32> to vector<256x128xf32>
    %1015 = arith.mulf %1012, %1014 : vector<256x128xf32>
    %c0_1118 = arith.constant 0 : index
    %c0_1119 = arith.constant 0 : index
    %1016 = vector.load %arg6[%c0_1118, %c0_1119] : memref<1x128xf32, #tpu.memory_space<vmem>>, vector<1x128xf32>
    %1017 = vector.broadcast %1016 : vector<1x128xf32> to vector<256x128xf32>
    %1018 = arith.addf %1015, %1017 : vector<256x128xf32>
    %cst_1120 = arith.constant 3.000000e+00 : f32
    %1019 = vector.broadcast %cst_1120 : f32 to vector<256x128xf32>
    %1020 = arith.addf %1018, %1019 : vector<256x128xf32>
    %cst_1121 = arith.constant 0.000000e+00 : f32
    %cst_1122 = arith.constant 6.000000e+00 : f32
    %1021 = vector.broadcast %cst_1121 : f32 to vector<256x128xf32>
    %1022 = arith.maximumf %1021, %1020 : vector<256x128xf32>
    %1023 = vector.broadcast %cst_1122 : f32 to vector<256x128xf32>
    %1024 = arith.minimumf %1023, %1022 : vector<256x128xf32>
    %1025 = arith.mulf %1018, %1024 : vector<256x128xf32>
    %cst_1123 = arith.constant 0.166666672 : f32
    %1026 = vector.broadcast %cst_1123 : f32 to vector<256x128xf32>
    %1027 = arith.mulf %1025, %1026 : vector<256x128xf32>
    %1028 = arith.truncf %1027 : vector<256x128xf32> to vector<256x128xbf16>
    %c0_1124 = arith.constant 0 : index
    %c0_1125 = arith.constant 0 : index
    %c0_1126 = arith.constant 0 : index
    %1029 = vector.load %arg7[%c0_1124, %c0_1125, %c0_1126] : memref<1x256x128xbf16, #tpu.memory_space<vmem>>, vector<1x256x128xbf16>
    %1030 = vector.shape_cast %1029 : vector<1x256x128xbf16> to vector<256x128xbf16>
    %1031 = vector.shape_cast %1028 : vector<256x128xbf16> to vector<1x256x128xbf16>
    tpu.vector_store %arg7[%c0_1124, %c0_1125, %c0_1126], %1031 {strides = array<i32>} : memref<1x256x128xbf16, #tpu.memory_space<vmem>>, vector<1x256x128xbf16>,
    return
  }
  func.func @transform_0(%arg0: i32, %arg1: i32, %arg2: i32) -> (i32, i32, i32, i32) {
    %c0_i32 = arith.constant 0 : i32
    %c0_i32_0 = arith.constant 0 : i32
    %c0_i32_1 = arith.constant 0 : i32
    %c0_i32_2 = arith.constant 0 : i32
    return %arg1, %c0_i32, %c0_i32_0, %c0_i32_1 : i32, i32, i32, i32
  }
  func.func @transform_1(%arg0: i32, %arg1: i32, %arg2: i32) -> (i32, i32) {
    %c0_i32 = arith.constant 0 : i32
    %c0_i32_0 = arith.constant 0 : i32
    return %c0_i32, %arg0 : i32, i32
  }
  func.func @transform_2(%arg0: i32, %arg1: i32, %arg2: i32) -> (i32, i32) {
    %c0_i32 = arith.constant 0 : i32
    %c0_i32_0 = arith.constant 0 : i32
    return %c0_i32, %arg0 : i32, i32
  }
  func.func @transform_3(%arg0: i32, %arg1: i32, %arg2: i32) -> (i32, i32) {
    %c0_i32 = arith.constant 0 : i32
    %c0_i32_0 = arith.constant 0 : i32
    return %c0_i32, %arg0 : i32, i32
  }
  func.func @transform_4(%arg0: i32, %arg1: i32, %arg2: i32) -> (i32, i32, i32) {
    %c0_i32 = arith.constant 0 : i32
    return %arg1, %arg2, %arg0 : i32, i32, i32
  }
}

</mosaic_0001>

<llo_original>
// kernel: conv_bn_hswish.1
$region0: #{conv_bn_hswish.1}
  #allocation0 [shape = 'u32[]', space=smem, size = 0x4, offset = 0x4, fixed_abs, tag = 'smem constant byte address 0x4 - core index']
  #allocation1 [shape = 'u32[72,128]{1,0:T(1,128)}', space=vmem, size = 0x9000, scoped, tag = 'internal scratch']
  #allocation2 [shape = 'bf16[256,36]{1,0:T(8,128)(2,1)}', space=vmem, size = 0x10000, scoped, tag = 'scratch operand']
  %s0 = inlined_call_operand.vmem [shape: bf16[2,18,18,4], index: 0, kind: input, shape index: {}]
  %s1 = inlined_call_operand.vmem [shape: bf16[36,128], index: 1, kind: input, shape index: {}]
  %s2 = inlined_call_operand.vmem [shape: f32[1,128], index: 2, kind: input, shape index: {}]
  %s3 = inlined_call_operand.vmem [shape: f32[1,128], index: 3, kind: input, shape index: {}]
  %s4 = inlined_call_operand.vmem [shape: bf16[2,256,128], index: 4, kind: output, shape index: {}]
  %s5 = sld [smem:[#allocation0]]
  $region49: #{conv_bn_hswish.1} parent=0
    _
  %s7 = ssub.s32 1, %s5
  %s8 = scalar_select 0, %s7, %s5
  loop: start=0, step=1, limit=4
  $region2: #{conv_bn_hswish.1} parent=0 // loop_pre_header
    _
  $region3: #{conv_bn_hswish.1} parent=0 // loop_header
    %s10 = sphi 0, %s14
    %p11 = scmp.ge.s32.totalorder %s10, 4
    %s17 = sphi 0, %s36
    %s18 = sphi 0, %s32
    %s19 = sphi 0, %s28
    %s20 = sphi 0, %s17
    %s21 = sphi 0, %s18
    %s22 = sphi 0, %s19
    %s23 = sphi 0, %s20
    %s24 = sphi 0, %s21
    %s25 = sphi 0, %s22
    %s39 = sphi 0, %s41
    %s42 = sphi 0, %s39
    %s43 = sphi 0, %s42
    %s59 = sphi 0, %s43
    %s65 = sphi 0, %s67
    %s68 = sphi 0, %s65
    %s69 = sphi 0, %s68
    %s85 = sphi 0, %s69
    %s91 = sphi 0, %s93
    %s94 = sphi 0, %s91
    %s95 = sphi 0, %s94
    %s111 = sphi 0, %s95
    %s117 = sphi 0, %s119
    %s120 = sphi 0, %s117
    %s121 = sphi 0, %s120
    %s137 = sphi 0, %s121
    %s147 = sphi 0, %s149
    %s150 = sphi 0, %s147
    %s151 = sphi 0, %s150
    %s167 = sphi 0, %s151
  $region4: #{conv_bn_hswish.1} parent=0 // loop_header_branch
    %13 = sbr.rel (%p11) target = $region8
  $region5: #{conv_bn_hswish.1} parent=0 // loop_body
    %s15 = ssub.s32 %s10, 1
    %s16 = ssub.s32 %s10, 2
    %s26 = sadd.s32 1, %s19
    %p27 = scmp.ge.s32.totalorder %s26, 1
    %s28 = scalar_select %p27, 0, %s26
    %s29 = sadd.s32 1, %s18
    %s30 = scalar_select %p27, %s29, %s18
    %p31 = scmp.ge.s32.totalorder %s30, 2
    %s32 = scalar_select %p31, 0, %s30
    %s33 = sadd.s32 1, %s17
    %s34 = scalar_select %p31, %s33, %s17
    %p35 = scmp.ge.s32.totalorder %s34, 1
    %s36 = scalar_select %p35, 0, %s34
    %s37 = ssub.s32 %s18, %s32
    %p38 = scmp.eq.s32.totalorder %s37, 0
    %s40 = sadd.s32 %s39, 1
    %s41 = scalar_select %p38, %s39, %s40
    %p44 = pneg %p38
    %p45 = scmp.eq.s32.totalorder %s10, 1
    %p46 = por %p44, %p45
    %p47 = scmp.ne.s32.totalorder %s39, %s42
    %p48 = scmp.eq.s32.totalorder %s10, 0
    %p49 = por %p47, %p48
    %p50 = scmp.ne.s32.totalorder %s39, %s42
    %p51 = scmp.eq.s32.totalorder %s15, 1
    %p52 = por %p50, %p51
    %p53 = scmp.ne.s32.totalorder %s42, %s43
    %p54 = scmp.eq.s32.totalorder %s15, 0
    %p55 = por %p53, %p54
    %p56 = scmp.ne.s32.totalorder %s42, %s43
    %p57 = scmp.eq.s32.totalorder %s16, 1
    %p58 = por %p56, %p57
    %p60 = scmp.ne.s32.totalorder %s43, %s59
    %p61 = scmp.eq.s32.totalorder %s16, 0
    %p62 = por %p60, %p61
    %s63 = ssub.s32 %s17, %s36
    %p64 = scmp.eq.s32.totalorder %s63, 0
    %s66 = sadd.s32 %s65, 1
    %s67 = scalar_select %p64, %s65, %s66
    %p70 = pneg %p64
    %p71 = scmp.eq.s32.totalorder %s10, 1
    %p72 = por %p70, %p71
    %p73 = scmp.ne.s32.totalorder %s65, %s68
    %p74 = scmp.eq.s32.totalorder %s10, 0
    %p75 = por %p73, %p74
    %p76 = scmp.ne.s32.totalorder %s65, %s68
    %p77 = scmp.eq.s32.totalorder %s15, 1
    %p78 = por %p76, %p77
    %p79 = scmp.ne.s32.totalorder %s68, %s69
    %p80 = scmp.eq.s32.totalorder %s15, 0
    %p81 = por %p79, %p80
    %p82 = scmp.ne.s32.totalorder %s68, %s69
    %p83 = scmp.eq.s32.totalorder %s16, 1
    %p84 = por %p82, %p83
    %p86 = scmp.ne.s32.totalorder %s69, %s85
    %p87 = scmp.eq.s32.totalorder %s16, 0
    %p88 = por %p86, %p87
    %s89 = ssub.s32 %s17, %s36
    %p90 = scmp.eq.s32.totalorder %s89, 0
    %s92 = sadd.s32 %s91, 1
    %s93 = scalar_select %p90, %s91, %s92
    %p96 = pneg %p90
    %p97 = scmp.eq.s32.totalorder %s10, 1
    %p98 = por %p96, %p97
    %p99 = scmp.ne.s32.totalorder %s91, %s94
    %p100 = scmp.eq.s32.totalorder %s10, 0
    %p101 = por %p99, %p100
    %p102 = scmp.ne.s32.totalorder %s91, %s94
    %p103 = scmp.eq.s32.totalorder %s15, 1
    %p104 = por %p102, %p103
    %p105 = scmp.ne.s32.totalorder %s94, %s95
    %p106 = scmp.eq.s32.totalorder %s15, 0
    %p107 = por %p105, %p106
    %p108 = scmp.ne.s32.totalorder %s94, %s95
    %p109 = scmp.eq.s32.totalorder %s16, 1
    %p110 = por %p108, %p109
    %p112 = scmp.ne.s32.totalorder %s95, %s111
    %p113 = scmp.eq.s32.totalorder %s16, 0
    %p114 = por %p112, %p113
    %s115 = ssub.s32 %s17, %s36
    %p116 = scmp.eq.s32.totalorder %s115, 0
    %s118 = sadd.s32 %s117, 1
    %s119 = scalar_select %p116, %s117, %s118
    %p122 = pneg %p116
    %p123 = scmp.eq.s32.totalorder %s10, 1
    %p124 = por %p122, %p123
    %p125 = scmp.ne.s32.totalorder %s117, %s120
    %p126 = scmp.eq.s32.totalorder %s10, 0
    %p127 = por %p125, %p126
    %p128 = scmp.ne.s32.totalorder %s117, %s120
    %p129 = scmp.eq.s32.totalorder %s15, 1
    %p130 = por %p128, %p129
    %p131 = scmp.ne.s32.totalorder %s120, %s121
    %p132 = scmp.eq.s32.totalorder %s15, 0
    %p133 = por %p131, %p132
    %p134 = scmp.ne.s32.totalorder %s120, %s121
    %p135 = scmp.eq.s32.totalorder %s16, 1
    %p136 = por %p134, %p135
    %p138 = scmp.ne.s32.totalorder %s121, %s137
    %p139 = scmp.eq.s32.totalorder %s16, 0
    %p140 = por %p138, %p139
    %s141 = ssub.s32 %s18, %s32
    %s142 = ssub.s32 %s19, %s28
    %s143 = sor.u32 %s141, %s142
    %s144 = ssub.s32 %s17, %s36
    %s145 = sor.u32 %s143, %s144
    %p146 = scmp.eq.s32.totalorder %s145, 0
    %s148 = sadd.s32 %s147, 1
    %s149 = scalar_select %p146, %s147, %s148
    %p152 = pneg %p146
    %p153 = scmp.eq.s32.totalorder %s10, 1
    %p154 = por %p152, %p153
    %p155 = scmp.ne.s32.totalorder %s147, %s150
    %p156 = scmp.eq.s32.totalorder %s10, 0
    %p157 = por %p155, %p156
    %p158 = scmp.ne.s32.totalorder %s147, %s150
    %p159 = scmp.eq.s32.totalorder %s15, 1
    %p160 = por %p158, %p159
    %p161 = scmp.ne.s32.totalorder %s150, %s151
    %p162 = scmp.eq.s32.totalorder %s15, 0
    %p163 = por %p161, %p162
    %p164 = scmp.ne.s32.totalorder %s150, %s151
    %p165 = scmp.eq.s32.totalorder %s16, 1
    %p166 = por %p164, %p165
    %p168 = scmp.ne.s32.totalorder %s151, %s167
    %p169 = scmp.eq.s32.totalorder %s16, 0
    %p170 = por %p168, %p169
    %p171 = scmp.le.s32.totalorder 1, %s10
    %p172 = scmp.lt.s32.totalorder %s10, 3
    %p173 = pnand %p171, %p172
    %p174 = pneg %p173
    // Predicated region
    $region9: #{conv_bn_hswish.1} parent=5 // pred_check
      _
    $region10: #{conv_bn_hswish.1} parent=5 // pred_check_branch
      %176 = sbr.rel (%p173) target = $region12
    $region11: #{conv_bn_hswish.1} parent=5 // pred_region
      %s177 = ssub.s32 %s10, 1
      // Predicated region
      $region13: #{conv_bn_hswish.1} parent=11 // pred_check
        %p178 = pneg %p81
      $region14: #{conv_bn_hswish.1} parent=11 // pred_check_branch
        %180 = sbr.rel (%p178) target = $region16
      $region15: #{conv_bn_hswish.1} parent=11 // pred_region
        %p181 = scmp.lt.s32.totalorder %s20, 0
        %s182 = scalar_select %p181, %s20, 0
        %s183 = smul.addr %s182, 4
        %s184 = scalar_lea.vmem %s1, %s183
      $region16: #{conv_bn_hswish.1} parent=11 // pred_fallthru
        _
      // Predicated region
      $region17: #{conv_bn_hswish.1} parent=11 // pred_check
        %p185 = pneg %p107
      $region18: #{conv_bn_hswish.1} parent=11 // pred_check_branch
        %187 = sbr.rel (%p185) target = $region20
      $region19: #{conv_bn_hswish.1} parent=11 // pred_region
        %p188 = scmp.lt.s32.totalorder %s20, 0
        %s189 = scalar_select %p188, %s20, 0
        %s190 = scalar_lea.vmem %s2, %s189
      $region20: #{conv_bn_hswish.1} parent=11 // pred_fallthru
        _
      // Predicated region
      $region21: #{conv_bn_hswish.1} parent=11 // pred_check
        %p191 = pneg %p133
      $region22: #{conv_bn_hswish.1} parent=11 // pred_check_branch
        %193 = sbr.rel (%p191) target = $region24
      $region23: #{conv_bn_hswish.1} parent=11 // pred_region
        %p194 = scmp.lt.s32.totalorder %s20, 0
        %s195 = scalar_select %p194, %s20, 0
        %s196 = scalar_lea.vmem %s3, %s195
      $region24: #{conv_bn_hswish.1} parent=11 // pred_fallthru
        _
    $region12: #{conv_bn_hswish.1} parent=5 // pred_fallthru
      _
    %p197 = scmp.lt.s32.totalorder %s10, 2
    // Predicated region
    $region25: #{conv_bn_hswish.1} parent=5 // pred_check
      %p198 = pneg %p197
    $region26: #{conv_bn_hswish.1} parent=5 // pred_check_branch
      %200 = sbr.rel (%p198) target = $region28
    $region27: #{conv_bn_hswish.1} parent=5 // pred_region
      // Predicated region
      $region29: #{conv_bn_hswish.1} parent=27 // pred_check
        %p201 = pneg %p49
      $region30: #{conv_bn_hswish.1} parent=27 // pred_check_branch
        %203 = sbr.rel (%p201) target = $region32
      $region31: #{conv_bn_hswish.1} parent=27 // pred_region
        %p204 = scmp.lt.s32.totalorder %s18, 1
        %s205 = scalar_select %p204, %s18, 1
        %s206 = smul.addr %s205, 54
        %s207 = smul.addr %s206, 4
        %s208 = scalar_lea.vmem %s0, %s207
      $region32: #{conv_bn_hswish.1} parent=27 // pred_fallthru
        _
    $region28: #{conv_bn_hswish.1} parent=5 // pred_fallthru
      _
    %p209 = scmp.le.s32.totalorder 1, %s10
    %p210 = scmp.lt.s32.totalorder %s10, 3
    %p211 = pnand %p209, %p210
    %p212 = pneg %p211
    // Predicated region
    $region33: #{conv_bn_hswish.1} parent=5 // pred_check
      _
    $region34: #{conv_bn_hswish.1} parent=5 // pred_check_branch
      %214 = sbr.rel (%p211) target = $region36
    $region35: #{conv_bn_hswish.1} parent=5 // pred_region
      %s215 = ssub.s32 %s10, 1
      %p216 = scmp.lt.s32.totalorder %s21, 1
      %s217 = scalar_select %p216, %s21, 1
      %s218 = smul.addr %s217, 54
      %s219 = smul.addr %s218, 4
      %s220 = scalar_lea.vmem %s0, %s219
      %p221 = pneg %p55
      %p222 = pneg %p52
      %p223 = scmp.lt.s32.totalorder %s20, 0
      %s224 = scalar_select %p223, %s20, 0
      %s225 = smul.addr %s224, 4
      %s226 = scalar_lea.vmem %s1, %s225
      %p227 = pneg %p81
      %p228 = pneg %p78
      %p229 = scmp.lt.s32.totalorder %s20, 0
      %s230 = scalar_select %p229, %s20, 0
      %s231 = scalar_lea.vmem %s2, %s230
      %p232 = pneg %p107
      %p233 = pneg %p104
      %p234 = scmp.lt.s32.totalorder %s20, 0
      %s235 = scalar_select %p234, %s20, 0
      %s236 = scalar_lea.vmem %s3, %s235
      %p237 = pneg %p133
      %p238 = pneg %p130
      %p239 = pneg %p163
      %p240 = pneg %p160
      %s241 = smul.u32 32, %s22
      %p242 = scmp.lt.s32.totalorder %s21, 1
      %s243 = scalar_select %p242, %s21, 1
      %p244 = scmp.lt.s32.totalorder %s241, 31
      %s245 = scalar_select %p244, %s241, 31
      %p246 = scmp.lt.s32.totalorder %s20, 0
      %s247 = scalar_select %p246, %s20, 0
      %s248 = sadd.s32 %s247, %s245
      %s249 = smul.addr %s243, 32
      %s250 = sadd.s32 %s248, %s249
      %s251 = smul.addr %s250, 4
      %s252 = scalar_lea.vmem %s4, %s251
      %p253 = scmp.lt.s32.totalorder %s21, 1
      %s254 = scalar_select %p253, %s21, 1
      %s255 = smul.addr %s254, 54
      %s256 = smul.addr %s255, 4
      %s257 = scalar_lea.vmem %s0, %s256
      %p258 = scmp.lt.s32.totalorder %s20, 0
      %s259 = scalar_select %p258, %s20, 0
      %s260 = smul.addr %s259, 4
      %s261 = scalar_lea.vmem %s1, %s260
      %p262 = scmp.lt.s32.totalorder %s20, 0
      %s263 = scalar_select %p262, %s20, 0
      %s264 = scalar_lea.vmem %s2, %s263
      %p265 = scmp.lt.s32.totalorder %s20, 0
      %s266 = scalar_select %p265, %s20, 0
      %s267 = scalar_lea.vmem %s3, %s266
      %s268 = smul.u32 32, %s22
      %p269 = scmp.lt.s32.totalorder %s21, 1
      %s270 = scalar_select %p269, %s21, 1
      %p271 = scmp.lt.s32.totalorder %s268, 31
      %s272 = scalar_select %p271, %s268, 31
      %p273 = scmp.lt.s32.totalorder %s20, 0
      %s274 = scalar_select %p273, %s20, 0
      %s275 = sadd.s32 %s274, %s272
      %s276 = smul.addr %s270, 32
      %s277 = sadd.s32 %s275, %s276
      %s278 = smul.addr %s277, 4
      %s279 = scalar_lea.vmem %s4, %s278
      %s280 = smul.u32 32, %s22
      %s282 = smul.u32 %s22, 16
      %s283 = smul.u32 %s282, 3
      %s284 = smul.addr %s283, 4
      %s285 = scalar_lea.vmem %s257, %s284
      %v286 = vld [vmem:[%s285] sm:$0xf]
      %v287 = vld [vmem:[%s285 + $0x4] sm:$0xf]
      %v288 = vld [vmem:[%s285 + $0xc] sm:$0xf]
      %v289 = vld [vmem:[%s285 + $0x10] sm:$0xf]
      %v290 = vld [vmem:[%s285 + $0x18] sm:$0xf]
      %v291 = vld [vmem:[%s285 + $0x1c] sm:$0xf]
      %v292 = vld [vmem:[%s285 + $0x24] sm:$0xf]
      %v293 = vld [vmem:[%s285 + $0x28] sm:$0xf]
      %v294 = vld [vmem:[%s285 + $0x30] sm:$0xf]
      %v295 = vld [vmem:[%s285 + $0x34] sm:$0xf]
      %v296 = vld [vmem:[%s285 + $0x3c] sm:$0xf]
      %v297 = vld [vmem:[%s285 + $0x40] sm:$0xf]
      %v298 = vld [vmem:[%s285 + $0x48] sm:$0xf]
      %v299 = vld [vmem:[%s285 + $0x4c] sm:$0xf]
      %v300 = vld [vmem:[%s285 + $0x54] sm:$0xf]
      %v301 = vld [vmem:[%s285 + $0x58] sm:$0xf]
      %v302 = vld [vmem:[%s285 + $0x60] sm:$0xf]
      %v303 = vld [vmem:[%s285 + $0x64] sm:$0xf]
      %v304 = vld [vmem:[%s285 + $0x6c] sm:$0xf]
      %v305 = vld [vmem:[%s285 + $0x70] sm:$0xf]
      %v306 = vld [vmem:[%s285 + $0x78] sm:$0xf]
      %v307 = vld [vmem:[%s285 + $0x7c] sm:$0xf]
      %v308 = vld [vmem:[%s285 + $0x84] sm:$0xf]
      %v309 = vld [vmem:[%s285 + $0x88] sm:$0xf]
      %v310 = vld [vmem:[%s285 + $0x90] sm:$0xf]
      %v311 = vld [vmem:[%s285 + $0x94] sm:$0xf]
      %v312 = vld [vmem:[%s285 + $0x9c] sm:$0xf]
      %v313 = vld [vmem:[%s285 + $0xa0] sm:$0xf]
      %v314 = vld [vmem:[%s285 + $0xa8] sm:$0xf]
      %v315 = vld [vmem:[%s285 + $0xac] sm:$0xf]
      %v316 = vld [vmem:[%s285 + $0xb4] sm:$0xf]
      %v317 = vld [vmem:[%s285 + $0xb8] sm:$0xf]
      %vm318 = vcmask 27648
      %319 = vst.msk [vmem:[#allocation2] sm:$0xf] %vm318, %v286
      %320 = vst.msk [vmem:[#allocation2 + $0x4] sm:$0xf] %vm318, %v287
      %321 = vst.msk [vmem:[#allocation2 + $0x8] sm:$0xf] %vm318, %v288
      %322 = vst.msk [vmem:[#allocation2 + $0xc] sm:$0xf] %vm318, %v289
      %323 = vst.msk [vmem:[#allocation2 + $0x10] sm:$0xf] %vm318, %v290
      %324 = vst.msk [vmem:[#allocation2 + $0x14] sm:$0xf] %vm318, %v291
      %325 = vst.msk [vmem:[#allocation2 + $0x18] sm:$0xf] %vm318, %v292
      %326 = vst.msk [vmem:[#allocation2 + $0x1c] sm:$0xf] %vm318, %v293
      %327 = vst.msk [vmem:[#allocation2 + $0x20] sm:$0xf] %vm318, %v294
      %328 = vst.msk [vmem:[#allocation2 + $0x24] sm:$0xf] %vm318, %v295
      %329 = vst.msk [vmem:[#allocation2 + $0x28] sm:$0xf] %vm318, %v296
      %330 = vst.msk [vmem:[#allocation2 + $0x2c] sm:$0xf] %vm318, %v297
      %331 = vst.msk [vmem:[#allocation2 + $0x30] sm:$0xf] %vm318, %v298
      %332 = vst.msk [vmem:[#allocation2 + $0x34] sm:$0xf] %vm318, %v299
      %333 = vst.msk [vmem:[#allocation2 + $0x38] sm:$0xf] %vm318, %v300
      %334 = vst.msk [vmem:[#allocation2 + $0x3c] sm:$0xf] %vm318, %v301
      %335 = vst.msk [vmem:[#allocation2 + $0x40] sm:$0xf] %vm318, %v302
      %336 = vst.msk [vmem:[#allocation2 + $0x44] sm:$0xf] %vm318, %v303
      %337 = vst.msk [vmem:[#allocation2 + $0x48] sm:$0xf] %vm318, %v304
      %338 = vst.msk [vmem:[#allocation2 + $0x4c] sm:$0xf] %vm318, %v305
      %339 = vst.msk [vmem:[#allocation2 + $0x50] sm:$0xf] %vm318, %v306
      %340 = vst.msk [vmem:[#allocation2 + $0x54] sm:$0xf] %vm318, %v307
      %341 = vst.msk [vmem:[#allocation2 + $0x58] sm:$0xf] %vm318, %v308
      %342 = vst.msk [vmem:[#allocation2 + $0x5c] sm:$0xf] %vm318, %v309
      %343 = vst.msk [vmem:[#allocation2 + $0x60] sm:$0xf] %vm318, %v310
      %344 = vst.msk [vmem:[#allocation2 + $0x64] sm:$0xf] %vm318, %v311
      %345 = vst.msk [vmem:[#allocation2 + $0x68] sm:$0xf] %vm318, %v312
      %346 = vst.msk [vmem:[#allocation2 + $0x6c] sm:$0xf] %vm318, %v313
      %347 = vst.msk [vmem:[#allocation2 + $0x70] sm:$0xf] %vm318, %v314
      %348 = vst.msk [vmem:[#allocation2 + $0x74] sm:$0xf] %vm318, %v315
      %349 = vst.msk [vmem:[#allocation2 + $0x78] sm:$0xf] %vm318, %v316
      %350 = vst.msk [vmem:[#allocation2 + $0x7c] sm:$0xf] %vm318, %v317
      %v351 = vld [vmem:[%s285] sm:$0xf]
      %v352 = vld [vmem:[%s285 + $0x4] sm:$0xf]
      %v353 = vld [vmem:[%s285 + $0x8] sm:$0x1]
      %v354 = vld [vmem:[%s285 + $0xc] sm:$0xf]
      %v355 = vld [vmem:[%s285 + $0x10] sm:$0xf]
      %v356 = vld [vmem:[%s285 + $0x14] sm:$0x1]
      %v357 = vld [vmem:[%s285 + $0x18] sm:$0xf]
      %v358 = vld [vmem:[%s285 + $0x1c] sm:$0xf]
      %v359 = vld [vmem:[%s285 + $0x20] sm:$0x1]
      %v360 = vld [vmem:[%s285 + $0x24] sm:$0xf]
      %v361 = vld [vmem:[%s285 + $0x28] sm:$0xf]
      %v362 = vld [vmem:[%s285 + $0x2c] sm:$0x1]
      %v363 = vld [vmem:[%s285 + $0x30] sm:$0xf]
      %v364 = vld [vmem:[%s285 + $0x34] sm:$0xf]
      %v365 = vld [vmem:[%s285 + $0x38] sm:$0x1]
      %v366 = vld [vmem:[%s285 + $0x3c] sm:$0xf]
      %v367 = vld [vmem:[%s285 + $0x40] sm:$0xf]
      %v368 = vld [vmem:[%s285 + $0x44] sm:$0x1]
      %v369 = vld [vmem:[%s285 + $0x48] sm:$0xf]
      %v370 = vld [vmem:[%s285 + $0x4c] sm:$0xf]
      %v371 = vld [vmem:[%s285 + $0x50] sm:$0x1]
      %v372 = vld [vmem:[%s285 + $0x54] sm:$0xf]
      %v373 = vld [vmem:[%s285 + $0x58] sm:$0xf]
      %v374 = vld [vmem:[%s285 + $0x5c] sm:$0x1]
      %v375 = vld [vmem:[%s285 + $0x60] sm:$0xf]
      %v376 = vld [vmem:[%s285 + $0x64] sm:$0xf]
      %v377 = vld [vmem:[%s285 + $0x68] sm:$0x1]
      %v378 = vld [vmem:[%s285 + $0x6c] sm:$0xf]
      %v379 = vld [vmem:[%s285 + $0x70] sm:$0xf]
      %v380 = vld [vmem:[%s285 + $0x74] sm:$0x1]
      %v381 = vld [vmem:[%s285 + $0x78] sm:$0xf]
      %v382 = vld [vmem:[%s285 + $0x7c] sm:$0xf]
      %v383 = vld [vmem:[%s285 + $0x80] sm:$0x1]
      %v384 = vld [vmem:[%s285 + $0x84] sm:$0xf]
      %v385 = vld [vmem:[%s285 + $0x88] sm:$0xf]
      %v386 = vld [vmem:[%s285 + $0x8c] sm:$0x1]
      %v387 = vld [vmem:[%s285 + $0x90] sm:$0xf]
      %v388 = vld [vmem:[%s285 + $0x94] sm:$0xf]
      %v389 = vld [vmem:[%s285 + $0x98] sm:$0x1]
      %v390 = vld [vmem:[%s285 + $0x9c] sm:$0xf]
      %v391 = vld [vmem:[%s285 + $0xa0] sm:$0xf]
      %v392 = vld [vmem:[%s285 + $0xa4] sm:$0x1]
      %v393 = vld [vmem:[%s285 + $0xa8] sm:$0xf]
      %v394 = vld [vmem:[%s285 + $0xac] sm:$0xf]
      %v395 = vld [vmem:[%s285 + $0xb0] sm:$0x1]
      %v396 = vld [vmem:[%s285 + $0xb4] sm:$0xf]
      %v397 = vld [vmem:[%s285 + $0xb8] sm:$0xf]
      %v398 = vld [vmem:[%s285 + $0xbc] sm:$0x1]
      %vm399 = vsmask.f32 3328
      %vm400 = vsmask.f32 7440
      %vm401 = vmor %vm399, %vm400
      %v403 = vshrl.u32 %v351, 16
      %v405 = vrot.slane %v403, 4
      %v406 = vshll.u32 %v351, 16
      %v408 = vrot.slane %v406, 5
      %v409 = vor.u32 %v405, %v408
      %v410 = vrot.slane %v409, 4
      %v412 = vshll.u32 %v352, 16
      %v414 = vrot.slane %v412, 5
      %v415 = vsel %vm401, %v410, %v414
      %v416 = vshrl.u32 %v352, 16
      %v418 = vrot.slane %v416, 4
      %v419 = vor.u32 %v418, %v414
      %v420 = vrot.slane %v419, 4
      %v422 = vshll.u32 %v353, 16
      %v424 = vrot.slane %v422, 5
      %v425 = vsel %vm401, %v420, %v424
      %v427 = vshrl.u32 %v354, 16
      %v429 = vrot.slane %v427, 4
      %v430 = vshll.u32 %v354, 16
      %v432 = vrot.slane %v430, 5
      %v433 = vor.u32 %v429, %v432
      %v434 = vrot.slane %v433, 4
      %v436 = vshll.u32 %v355, 16
      %v438 = vrot.slane %v436, 5
      %v439 = vsel %vm401, %v434, %v438
      %v440 = vshrl.u32 %v355, 16
      %v442 = vrot.slane %v440, 4
      %v443 = vor.u32 %v442, %v438
      %v444 = vrot.slane %v443, 4
      %v446 = vshll.u32 %v356, 16
      %v448 = vrot.slane %v446, 5
      %v449 = vsel %vm401, %v444, %v448
      %v451 = vshrl.u32 %v357, 16
      %v453 = vrot.slane %v451, 4
      %v454 = vshll.u32 %v357, 16
      %v456 = vrot.slane %v454, 5
      %v457 = vor.u32 %v453, %v456
      %v458 = vrot.slane %v457, 4
      %v460 = vshll.u32 %v358, 16
      %v462 = vrot.slane %v460, 5
      %v463 = vsel %vm401, %v458, %v462
      %v464 = vshrl.u32 %v358, 16
      %v466 = vrot.slane %v464, 4
      %v467 = vor.u32 %v466, %v462
      %v468 = vrot.slane %v467, 4
      %v470 = vshll.u32 %v359, 16
      %v472 = vrot.slane %v470, 5
      %v473 = vsel %vm401, %v468, %v472
      %v475 = vshrl.u32 %v360, 16
      %v477 = vrot.slane %v475, 4
      %v478 = vshll.u32 %v360, 16
      %v480 = vrot.slane %v478, 5
      %v481 = vor.u32 %v477, %v480
      %v482 = vrot.slane %v481, 4
      %v484 = vshll.u32 %v361, 16
      %v486 = vrot.slane %v484, 5
      %v487 = vsel %vm401, %v482, %v486
      %v488 = vshrl.u32 %v361, 16
      %v490 = vrot.slane %v488, 4
      %v491 = vor.u32 %v490, %v486
      %v492 = vrot.slane %v491, 4
      %v494 = vshll.u32 %v362, 16
      %v496 = vrot.slane %v494, 5
      %v497 = vsel %vm401, %v492, %v496
      %v499 = vshrl.u32 %v363, 16
      %v501 = vrot.slane %v499, 4
      %v502 = vshll.u32 %v363, 16
      %v504 = vrot.slane %v502, 5
      %v505 = vor.u32 %v501, %v504
      %v506 = vrot.slane %v505, 4
      %v508 = vshll.u32 %v364, 16
      %v510 = vrot.slane %v508, 5
      %v511 = vsel %vm401, %v506, %v510
      %v512 = vshrl.u32 %v364, 16
      %v514 = vrot.slane %v512, 4
      %v515 = vor.u32 %v514, %v510
      %v516 = vrot.slane %v515, 4
      %v518 = vshll.u32 %v365, 16
      %v520 = vrot.slane %v518, 5
      %v521 = vsel %vm401, %v516, %v520
      %v523 = vshrl.u32 %v366, 16
      %v525 = vrot.slane %v523, 4
      %v526 = vshll.u32 %v366, 16
      %v528 = vrot.slane %v526, 5
      %v529 = vor.u32 %v525, %v528
      %v530 = vrot.slane %v529, 4
      %v532 = vshll.u32 %v367, 16
      %v534 = vrot.slane %v532, 5
      %v535 = vsel %vm401, %v530, %v534
      %v536 = vshrl.u32 %v367, 16
      %v538 = vrot.slane %v536, 4
      %v539 = vor.u32 %v538, %v534
      %v540 = vrot.slane %v539, 4
      %v542 = vshll.u32 %v368, 16
      %v544 = vrot.slane %v542, 5
      %v545 = vsel %vm401, %v540, %v544
      %v547 = vshrl.u32 %v369, 16
      %v549 = vrot.slane %v547, 4
      %v550 = vshll.u32 %v369, 16
      %v552 = vrot.slane %v550, 5
      %v553 = vor.u32 %v549, %v552
      %v554 = vrot.slane %v553, 4
      %v556 = vshll.u32 %v370, 16
      %v558 = vrot.slane %v556, 5
      %v559 = vsel %vm401, %v554, %v558
      %v560 = vshrl.u32 %v370, 16
      %v562 = vrot.slane %v560, 4
      %v563 = vor.u32 %v562, %v558
      %v564 = vrot.slane %v563, 4
      %v566 = vshll.u32 %v371, 16
      %v568 = vrot.slane %v566, 5
      %v569 = vsel %vm401, %v564, %v568
      %v571 = vshrl.u32 %v372, 16
      %v573 = vrot.slane %v571, 4
      %v574 = vshll.u32 %v372, 16
      %v576 = vrot.slane %v574, 5
      %v577 = vor.u32 %v573, %v576
      %v578 = vrot.slane %v577, 4
      %v580 = vshll.u32 %v373, 16
      %v582 = vrot.slane %v580, 5
      %v583 = vsel %vm401, %v578, %v582
      %v584 = vshrl.u32 %v373, 16
      %v586 = vrot.slane %v584, 4
      %v587 = vor.u32 %v586, %v582
      %v588 = vrot.slane %v587, 4
      %v590 = vshll.u32 %v374, 16
      %v592 = vrot.slane %v590, 5
      %v593 = vsel %vm401, %v588, %v592
      %v595 = vshrl.u32 %v375, 16
      %v597 = vrot.slane %v595, 4
      %v598 = vshll.u32 %v375, 16
      %v600 = vrot.slane %v598, 5
      %v601 = vor.u32 %v597, %v600
      %v602 = vrot.slane %v601, 4
      %v604 = vshll.u32 %v376, 16
      %v606 = vrot.slane %v604, 5
      %v607 = vsel %vm401, %v602, %v606
      %v608 = vshrl.u32 %v376, 16
      %v610 = vrot.slane %v608, 4
      %v611 = vor.u32 %v610, %v606
      %v612 = vrot.slane %v611, 4
      %v614 = vshll.u32 %v377, 16
      %v616 = vrot.slane %v614, 5
      %v617 = vsel %vm401, %v612, %v616
      %v619 = vshrl.u32 %v378, 16
      %v621 = vrot.slane %v619, 4
      %v622 = vshll.u32 %v378, 16
      %v624 = vrot.slane %v622, 5
      %v625 = vor.u32 %v621, %v624
      %v626 = vrot.slane %v625, 4
      %v628 = vshll.u32 %v379, 16
      %v630 = vrot.slane %v628, 5
      %v631 = vsel %vm401, %v626, %v630
      %v632 = vshrl.u32 %v379, 16
      %v634 = vrot.slane %v632, 4
      %v635 = vor.u32 %v634, %v630
      %v636 = vrot.slane %v635, 4
      %v638 = vshll.u32 %v380, 16
      %v640 = vrot.slane %v638, 5
      %v641 = vsel %vm401, %v636, %v640
      %v643 = vshrl.u32 %v381, 16
      %v645 = vrot.slane %v643, 4
      %v646 = vshll.u32 %v381, 16
      %v648 = vrot.slane %v646, 5
      %v649 = vor.u32 %v645, %v648
      %v650 = vrot.slane %v649, 4
      %v652 = vshll.u32 %v382, 16
      %v654 = vrot.slane %v652, 5
      %v655 = vsel %vm401, %v650, %v654
      %v656 = vshrl.u32 %v382, 16
      %v658 = vrot.slane %v656, 4
      %v659 = vor.u32 %v658, %v654
      %v660 = vrot.slane %v659, 4
      %v662 = vshll.u32 %v383, 16
      %v664 = vrot.slane %v662, 5
      %v665 = vsel %vm401, %v660, %v664
      %v667 = vshrl.u32 %v384, 16
      %v669 = vrot.slane %v667, 4
      %v670 = vshll.u32 %v384, 16
      %v672 = vrot.slane %v670, 5
      %v673 = vor.u32 %v669, %v672
      %v674 = vrot.slane %v673, 4
      %v676 = vshll.u32 %v385, 16
      %v678 = vrot.slane %v676, 5
      %v679 = vsel %vm401, %v674, %v678
      %v680 = vshrl.u32 %v385, 16
      %v682 = vrot.slane %v680, 4
      %v683 = vor.u32 %v682, %v678
      %v684 = vrot.slane %v683, 4
      %v686 = vshll.u32 %v386, 16
      %v688 = vrot.slane %v686, 5
      %v689 = vsel %vm401, %v684, %v688
      %v691 = vshrl.u32 %v387, 16
      %v693 = vrot.slane %v691, 4
      %v694 = vshll.u32 %v387, 16
      %v696 = vrot.slane %v694, 5
      %v697 = vor.u32 %v693, %v696
      %v698 = vrot.slane %v697, 4
      %v700 = vshll.u32 %v388, 16
      %v702 = vrot.slane %v700, 5
      %v703 = vsel %vm401, %v698, %v702
      %v704 = vshrl.u32 %v388, 16
      %v706 = vrot.slane %v704, 4
      %v707 = vor.u32 %v706, %v702
      %v708 = vrot.slane %v707, 4
      %v710 = vshll.u32 %v389, 16
      %v712 = vrot.slane %v710, 5
      %v713 = vsel %vm401, %v708, %v712
      %v715 = vshrl.u32 %v390, 16
      %v717 = vrot.slane %v715, 4
      %v718 = vshll.u32 %v390, 16
      %v720 = vrot.slane %v718, 5
      %v721 = vor.u32 %v717, %v720
      %v722 = vrot.slane %v721, 4
      %v724 = vshll.u32 %v391, 16
      %v726 = vrot.slane %v724, 5
      %v727 = vsel %vm401, %v722, %v726
      %v728 = vshrl.u32 %v391, 16
      %v730 = vrot.slane %v728, 4
      %v731 = vor.u32 %v730, %v726
      %v732 = vrot.slane %v731, 4
      %v734 = vshll.u32 %v392, 16
      %v736 = vrot.slane %v734, 5
      %v737 = vsel %vm401, %v732, %v736
      %v739 = vshrl.u32 %v393, 16
      %v741 = vrot.slane %v739, 4
      %v742 = vshll.u32 %v393, 16
      %v744 = vrot.slane %v742, 5
      %v745 = vor.u32 %v741, %v744
      %v746 = vrot.slane %v745, 4
      %v748 = vshll.u32 %v394, 16
      %v750 = vrot.slane %v748, 5
      %v751 = vsel %vm401, %v746, %v750
      %v752 = vshrl.u32 %v394, 16
      %v754 = vrot.slane %v752, 4
      %v755 = vor.u32 %v754, %v750
      %v756 = vrot.slane %v755, 4
      %v758 = vshll.u32 %v395, 16
      %v760 = vrot.slane %v758, 5
      %v761 = vsel %vm401, %v756, %v760
      %v763 = vshrl.u32 %v396, 16
      %v765 = vrot.slane %v763, 4
      %v766 = vshll.u32 %v396, 16
      %v768 = vrot.slane %v766, 5
      %v769 = vor.u32 %v765, %v768
      %v770 = vrot.slane %v769, 4
      %v772 = vshll.u32 %v397, 16
      %v774 = vrot.slane %v772, 5
      %v775 = vsel %vm401, %v770, %v774
      %v776 = vshrl.u32 %v397, 16
      %v778 = vrot.slane %v776, 4
      %v779 = vor.u32 %v778, %v774
      %v780 = vrot.slane %v779, 4
      %v782 = vshll.u32 %v398, 16
      %v784 = vrot.slane %v782, 5
      %v785 = vsel %vm401, %v780, %v784
      %786 = vrot.lane.b32.xlu0 %v415, 4
      %v787 = vpop.permute.xlu0 %786
      %788 = vrot.lane.b32.xlu0 %v425, 4
      %v789 = vpop.permute.xlu0 %788
      %790 = vrot.lane.b32.xlu0 %v439, 4
      %v791 = vpop.permute.xlu0 %790
      %792 = vrot.lane.b32.xlu0 %v449, 4
      %v793 = vpop.permute.xlu0 %792
      %794 = vrot.lane.b32.xlu0 %v463, 4
      %v795 = vpop.permute.xlu0 %794
      %796 = vrot.lane.b32.xlu0 %v473, 4
      %v797 = vpop.permute.xlu0 %796
      %798 = vrot.lane.b32.xlu0 %v487, 4
      %v799 = vpop.permute.xlu0 %798
      %800 = vrot.lane.b32.xlu0 %v497, 4
      %v801 = vpop.permute.xlu0 %800
      %802 = vrot.lane.b32.xlu0 %v511, 4
      %v803 = vpop.permute.xlu0 %802
      %804 = vrot.lane.b32.xlu0 %v521, 4
      %v805 = vpop.permute.xlu0 %804
      %806 = vrot.lane.b32.xlu0 %v535, 4
      %v807 = vpop.permute.xlu0 %806
      %808 = vrot.lane.b32.xlu0 %v545, 4
      %v809 = vpop.permute.xlu0 %808
      %810 = vrot.lane.b32.xlu0 %v559, 4
      %v811 = vpop.permute.xlu0 %810
      %812 = vrot.lane.b32.xlu0 %v569, 4
      %v813 = vpop.permute.xlu0 %812
      %814 = vrot.lane.b32.xlu0 %v583, 4
      %v815 = vpop.permute.xlu0 %814
      %816 = vrot.lane.b32.xlu0 %v593, 4
      %v817 = vpop.permute.xlu0 %816
      %818 = vrot.lane.b32.xlu0 %v607, 4
      %v819 = vpop.permute.xlu0 %818
      %820 = vrot.lane.b32.xlu0 %v617, 4
      %v821 = vpop.permute.xlu0 %820
      %822 = vrot.lane.b32.xlu0 %v631, 4
      %v823 = vpop.permute.xlu0 %822
      %824 = vrot.lane.b32.xlu0 %v641, 4
      %v825 = vpop.permute.xlu0 %824
      %826 = vrot.lane.b32.xlu0 %v655, 4
      %v827 = vpop.permute.xlu0 %826
      %828 = vrot.lane.b32.xlu0 %v665, 4
      %v829 = vpop.permute.xlu0 %828
      %830 = vrot.lane.b32.xlu0 %v679, 4
      %v831 = vpop.permute.xlu0 %830
      %832 = vrot.lane.b32.xlu0 %v689, 4
      %v833 = vpop.permute.xlu0 %832
      %834 = vrot.lane.b32.xlu0 %v703, 4
      %v835 = vpop.permute.xlu0 %834
      %836 = vrot.lane.b32.xlu0 %v713, 4
      %v837 = vpop.permute.xlu0 %836
      %838 = vrot.lane.b32.xlu0 %v727, 4
      %v839 = vpop.permute.xlu0 %838
      %840 = vrot.lane.b32.xlu0 %v737, 4
      %v841 = vpop.permute.xlu0 %840
      %842 = vrot.lane.b32.xlu0 %v751, 4
      %v843 = vpop.permute.xlu0 %842
      %844 = vrot.lane.b32.xlu0 %v761, 4
      %v845 = vpop.permute.xlu0 %844
      %846 = vrot.lane.b32.xlu0 %v775, 4
      %v847 = vpop.permute.xlu0 %846
      %848 = vrot.lane.b32.xlu0 %v785, 4
      %v849 = vpop.permute.xlu0 %848
      %vm882 = vcmask 60448
      %883 = vst.msk [vmem:[#allocation2] sm:$0xf] %vm882, %v787
      %884 = vst.msk [vmem:[#allocation2 + $0x4] sm:$0xf] %vm882, %v789
      %885 = vst.msk [vmem:[#allocation2 + $0x8] sm:$0xf] %vm882, %v791
      %886 = vst.msk [vmem:[#allocation2 + $0xc] sm:$0xf] %vm882, %v793
      %887 = vst.msk [vmem:[#allocation2 + $0x10] sm:$0xf] %vm882, %v795
      %888 = vst.msk [vmem:[#allocation2 + $0x14] sm:$0xf] %vm882, %v797
      %889 = vst.msk [vmem:[#allocation2 + $0x18] sm:$0xf] %vm882, %v799
      %890 = vst.msk [vmem:[#allocation2 + $0x1c] sm:$0xf] %vm882, %v801
      %891 = vst.msk [vmem:[#allocation2 + $0x20] sm:$0xf] %vm882, %v803
      %892 = vst.msk [vmem:[#allocation2 + $0x24] sm:$0xf] %vm882, %v805
      %893 = vst.msk [vmem:[#allocation2 + $0x28] sm:$0xf] %vm882, %v807
      %894 = vst.msk [vmem:[#allocation2 + $0x2c] sm:$0xf] %vm882, %v809
      %895 = vst.msk [vmem:[#allocation2 + $0x30] sm:$0xf] %vm882, %v811
      %896 = vst.msk [vmem:[#allocation2 + $0x34] sm:$0xf] %vm882, %v813
      %897 = vst.msk [vmem:[#allocation2 + $0x38] sm:$0xf] %vm882, %v815
      %898 = vst.msk [vmem:[#allocation2 + $0x3c] sm:$0xf] %vm882, %v817
      %899 = vst.msk [vmem:[#allocation2 + $0x40] sm:$0xf] %vm882, %v819
      %900 = vst.msk [vmem:[#allocation2 + $0x44] sm:$0xf] %vm882, %v821
      %901 = vst.msk [vmem:[#allocation2 + $0x48] sm:$0xf] %vm882, %v823
      %902 = vst.msk [vmem:[#allocation2 + $0x4c] sm:$0xf] %vm882, %v825
      %903 = vst.msk [vmem:[#allocation2 + $0x50] sm:$0xf] %vm882, %v827
      %904 = vst.msk [vmem:[#allocation2 + $0x54] sm:$0xf] %vm882, %v829
      %905 = vst.msk [vmem:[#allocation2 + $0x58] sm:$0xf] %vm882, %v831
      %906 = vst.msk [vmem:[#allocation2 + $0x5c] sm:$0xf] %vm882, %v833
      %907 = vst.msk [vmem:[#allocation2 + $0x60] sm:$0xf] %vm882, %v835
      %908 = vst.msk [vmem:[#allocation2 + $0x64] sm:$0xf] %vm882, %v837
      %909 = vst.msk [vmem:[#allocation2 + $0x68] sm:$0xf] %vm882, %v839
      %910 = vst.msk [vmem:[#allocation2 + $0x6c] sm:$0xf] %vm882, %v841
      %911 = vst.msk [vmem:[#allocation2 + $0x70] sm:$0xf] %vm882, %v843
      %912 = vst.msk [vmem:[#allocation2 + $0x74] sm:$0xf] %vm882, %v845
      %913 = vst.msk [vmem:[#allocation2 + $0x78] sm:$0xf] %vm882, %v847
      %914 = vst.msk [vmem:[#allocation2 + $0x7c] sm:$0xf] %vm882, %v849
      %v915 = vld [vmem:[%s285] sm:$0xe]
      %v916 = vld [vmem:[%s285 + $0x4] sm:$0xf]
      %v917 = vld [vmem:[%s285 + $0x8] sm:$0x1]
      %v918 = vld [vmem:[%s285 + $0xc] sm:$0xe]
      %v919 = vld [vmem:[%s285 + $0x10] sm:$0xf]
      %v920 = vld [vmem:[%s285 + $0x14] sm:$0x1]
      %v921 = vld [vmem:[%s285 + $0x18] sm:$0xe]
      %v922 = vld [vmem:[%s285 + $0x1c] sm:$0xf]
      %v923 = vld [vmem:[%s285 + $0x20] sm:$0x1]
      %v924 = vld [vmem:[%s285 + $0x24] sm:$0xe]
      %v925 = vld [vmem:[%s285 + $0x28] sm:$0xf]
      %v926 = vld [vmem:[%s285 + $0x2c] sm:$0x1]
      %v927 = vld [vmem:[%s285 + $0x30] sm:$0xe]
      %v928 = vld [vmem:[%s285 + $0x34] sm:$0xf]
      %v929 = vld [vmem:[%s285 + $0x38] sm:$0x1]
      %v930 = vld [vmem:[%s285 + $0x3c] sm:$0xe]
      %v931 = vld [vmem:[%s285 + $0x40] sm:$0xf]
      %v932 = vld [vmem:[%s285 + $0x44] sm:$0x1]
      %v933 = vld [vmem:[%s285 + $0x48] sm:$0xe]
      %v934 = vld [vmem:[%s285 + $0x4c] sm:$0xf]
      %v935 = vld [vmem:[%s285 + $0x50] sm:$0x1]
      %v936 = vld [vmem:[%s285 + $0x54] sm:$0xe]
      %v937 = vld [vmem:[%s285 + $0x58] sm:$0xf]
      %v938 = vld [vmem:[%s285 + $0x5c] sm:$0x1]
      %v939 = vld [vmem:[%s285 + $0x60] sm:$0xe]
      %v940 = vld [vmem:[%s285 + $0x64] sm:$0xf]
      %v941 = vld [vmem:[%s285 + $0x68] sm:$0x1]
      %v942 = vld [vmem:[%s285 + $0x6c] sm:$0xe]
      %v943 = vld [vmem:[%s285 + $0x70] sm:$0xf]
      %v944 = vld [vmem:[%s285 + $0x74] sm:$0x1]
      %v945 = vld [vmem:[%s285 + $0x78] sm:$0xe]
      %v946 = vld [vmem:[%s285 + $0x7c] sm:$0xf]
      %v947 = vld [vmem:[%s285 + $0x80] sm:$0x1]
      %v948 = vld [vmem:[%s285 + $0x84] sm:$0xe]
      %v949 = vld [vmem:[%s285 + $0x88] sm:$0xf]
      %v950 = vld [vmem:[%s285 + $0x8c] sm:$0x1]
      %v951 = vld [vmem:[%s285 + $0x90] sm:$0xe]
      %v952 = vld [vmem:[%s285 + $0x94] sm:$0xf]
      %v953 = vld [vmem:[%s285 + $0x98] sm:$0x1]
      %v954 = vld [vmem:[%s285 + $0x9c] sm:$0xe]
      %v955 = vld [vmem:[%s285 + $0xa0] sm:$0xf]
      %v956 = vld [vmem:[%s285 + $0xa4] sm:$0x1]
      %v957 = vld [vmem:[%s285 + $0xa8] sm:$0xe]
      %v958 = vld [vmem:[%s285 + $0xac] sm:$0xf]
      %v959 = vld [vmem:[%s285 + $0xb0] sm:$0x1]
      %v960 = vld [vmem:[%s285 + $0xb4] sm:$0xe]
      %v961 = vld [vmem:[%s285 + $0xb8] sm:$0xf]
      %v962 = vld [vmem:[%s285 + $0xbc] sm:$0x1]
      %vm1011 = vcmask 1042432
      %vm1012 = vcmask 1046532
      %vm1013 = vmor %vm1011, %vm1012
      %v1014 = vrot.slane %v915, 5
      %v1015 = vrot.slane %v1014, 4
      %v1016 = vrot.slane %v916, 5
      %v1017 = vsel %vm1013, %v1015, %v1016
      %v1018 = vrot.slane %v1016, 4
      %v1019 = vrot.slane %v917, 5
      %v1020 = vsel %vm1013, %v1018, %v1019
      %v1021 = vrot.slane %v918, 5
      %v1022 = vrot.slane %v1021, 4
      %v1023 = vrot.slane %v919, 5
      %v1024 = vsel %vm1013, %v1022, %v1023
      %v1025 = vrot.slane %v1023, 4
      %v1026 = vrot.slane %v920, 5
      %v1027 = vsel %vm1013, %v1025, %v1026
      %v1028 = vrot.slane %v921, 5
      %v1029 = vrot.slane %v1028, 4
      %v1030 = vrot.slane %v922, 5
      %v1031 = vsel %vm1013, %v1029, %v1030
      %v1032 = vrot.slane %v1030, 4
      %v1033 = vrot.slane %v923, 5
      %v1034 = vsel %vm1013, %v1032, %v1033
      %v1035 = vrot.slane %v924, 5
      %v1036 = vrot.slane %v1035, 4
      %v1037 = vrot.slane %v925, 5
      %v1038 = vsel %vm1013, %v1036, %v1037
      %v1039 = vrot.slane %v1037, 4
      %v1040 = vrot.slane %v926, 5
      %v1041 = vsel %vm1013, %v1039, %v1040
      %v1042 = vrot.slane %v927, 5
      %v1043 = vrot.slane %v1042, 4
      %v1044 = vrot.slane %v928, 5
      %v1045 = vsel %vm1013, %v1043, %v1044
      %v1046 = vrot.slane %v1044, 4
      %v1047 = vrot.slane %v929, 5
      %v1048 = vsel %vm1013, %v1046, %v1047
      %v1049 = vrot.slane %v930, 5
      %v1050 = vrot.slane %v1049, 4
      %v1051 = vrot.slane %v931, 5
      %v1052 = vsel %vm1013, %v1050, %v1051
      %v1053 = vrot.slane %v1051, 4
      %v1054 = vrot.slane %v932, 5
      %v1055 = vsel %vm1013, %v1053, %v1054
      %v1056 = vrot.slane %v933, 5
      %v1057 = vrot.slane %v1056, 4
      %v1058 = vrot.slane %v934, 5
      %v1059 = vsel %vm1013, %v1057, %v1058
      %v1060 = vrot.slane %v1058, 4
      %v1061 = vrot.slane %v935, 5
      %v1062 = vsel %vm1013, %v1060, %v1061
      %v1063 = vrot.slane %v936, 5
      %v1064 = vrot.slane %v1063, 4
      %v1065 = vrot.slane %v937, 5
      %v1066 = vsel %vm1013, %v1064, %v1065
      %v1067 = vrot.slane %v1065, 4
      %v1068 = vrot.slane %v938, 5
      %v1069 = vsel %vm1013, %v1067, %v1068
      %v1070 = vrot.slane %v939, 5
      %v1071 = vrot.slane %v1070, 4
      %v1072 = vrot.slane %v940, 5
      %v1073 = vsel %vm1013, %v1071, %v1072
      %v1074 = vrot.slane %v1072, 4
      %v1075 = vrot.slane %v941, 5
      %v1076 = vsel %vm1013, %v1074, %v1075
      %v1077 = vrot.slane %v942, 5
      %v1078 = vrot.slane %v1077, 4
      %v1079 = vrot.slane %v943, 5
      %v1080 = vsel %vm1013, %v1078, %v1079
      %v1081 = vrot.slane %v1079, 4
      %v1082 = vrot.slane %v944, 5
      %v1083 = vsel %vm1013, %v1081, %v1082
      %v1084 = vrot.slane %v945, 5
      %v1085 = vrot.slane %v1084, 4
      %v1086 = vrot.slane %v946, 5
      %v1087 = vsel %vm1013, %v1085, %v1086
      %v1088 = vrot.slane %v1086, 4
      %v1089 = vrot.slane %v947, 5
      %v1090 = vsel %vm1013, %v1088, %v1089
      %v1091 = vrot.slane %v948, 5
      %v1092 = vrot.slane %v1091, 4
      %v1093 = vrot.slane %v949, 5
      %v1094 = vsel %vm1013, %v1092, %v1093
      %v1095 = vrot.slane %v1093, 4
      %v1096 = vrot.slane %v950, 5
      %v1097 = vsel %vm1013, %v1095, %v1096
      %v1098 = vrot.slane %v951, 5
      %v1099 = vrot.slane %v1098, 4
      %v1100 = vrot.slane %v952, 5
      %v1101 = vsel %vm1013, %v1099, %v1100
      %v1102 = vrot.slane %v1100, 4
      %v1103 = vrot.slane %v953, 5
      %v1104 = vsel %vm1013, %v1102, %v1103
      %v1105 = vrot.slane %v954, 5
      %v1106 = vrot.slane %v1105, 4
      %v1107 = vrot.slane %v955, 5
      %v1108 = vsel %vm1013, %v1106, %v1107
      %v1109 = vrot.slane %v1107, 4
      %v1110 = vrot.slane %v956, 5
      %v1111 = vsel %vm1013, %v1109, %v1110
      %v1112 = vrot.slane %v957, 5
      %v1113 = vrot.slane %v1112, 4
      %v1114 = vrot.slane %v958, 5
      %v1115 = vsel %vm1013, %v1113, %v1114
      %v1116 = vrot.slane %v1114, 4
      %v1117 = vrot.slane %v959, 5
      %v1118 = vsel %vm1013, %v1116, %v1117
      %v1119 = vrot.slane %v960, 5
      %v1120 = vrot.slane %v1119, 4
      %v1121 = vrot.slane %v961, 5
      %v1122 = vsel %vm1013, %v1120, %v1121
      %v1123 = vrot.slane %v1121, 4
      %v1124 = vrot.slane %v962, 5
      %v1125 = vsel %vm1013, %v1123, %v1124
      %1126 = vrot.lane.b32.xlu0 %v1017, 8
      %v1127 = vpop.permute.xlu0 %1126
      %1128 = vrot.lane.b32.xlu0 %v1020, 8
      %v1129 = vpop.permute.xlu0 %1128
      %1130 = vrot.lane.b32.xlu0 %v1024, 8
      %v1131 = vpop.permute.xlu0 %1130
      %1132 = vrot.lane.b32.xlu0 %v1027, 8
      %v1133 = vpop.permute.xlu0 %1132
      %1134 = vrot.lane.b32.xlu0 %v1031, 8
      %v1135 = vpop.permute.xlu0 %1134
      %1136 = vrot.lane.b32.xlu0 %v1034, 8
      %v1137 = vpop.permute.xlu0 %1136
      %1138 = vrot.lane.b32.xlu0 %v1038, 8
      %v1139 = vpop.permute.xlu0 %1138
      %1140 = vrot.lane.b32.xlu0 %v1041, 8
      %v1141 = vpop.permute.xlu0 %1140
      %1142 = vrot.lane.b32.xlu0 %v1045, 8
      %v1143 = vpop.permute.xlu0 %1142
      %1144 = vrot.lane.b32.xlu0 %v1048, 8
      %v1145 = vpop.permute.xlu0 %1144
      %1146 = vrot.lane.b32.xlu0 %v1052, 8
      %v1147 = vpop.permute.xlu0 %1146
      %1148 = vrot.lane.b32.xlu0 %v1055, 8
      %v1149 = vpop.permute.xlu0 %1148
      %1150 = vrot.lane.b32.xlu0 %v1059, 8
      %v1151 = vpop.permute.xlu0 %1150
      %1152 = vrot.lane.b32.xlu0 %v1062, 8
      %v1153 = vpop.permute.xlu0 %1152
      %1154 = vrot.lane.b32.xlu0 %v1066, 8
      %v1155 = vpop.permute.xlu0 %1154
      %1156 = vrot.lane.b32.xlu0 %v1069, 8
      %v1157 = vpop.permute.xlu0 %1156
      %1158 = vrot.lane.b32.xlu0 %v1073, 8
      %v1159 = vpop.permute.xlu0 %1158
      %1160 = vrot.lane.b32.xlu0 %v1076, 8
      %v1161 = vpop.permute.xlu0 %1160
      %1162 = vrot.lane.b32.xlu0 %v1080, 8
      %v1163 = vpop.permute.xlu0 %1162
      %1164 = vrot.lane.b32.xlu0 %v1083, 8
      %v1165 = vpop.permute.xlu0 %1164
      %1166 = vrot.lane.b32.xlu0 %v1087, 8
      %v1167 = vpop.permute.xlu0 %1166
      %1168 = vrot.lane.b32.xlu0 %v1090, 8
      %v1169 = vpop.permute.xlu0 %1168
      %1170 = vrot.lane.b32.xlu0 %v1094, 8
      %v1171 = vpop.permute.xlu0 %1170
      %1172 = vrot.lane.b32.xlu0 %v1097, 8
      %v1173 = vpop.permute.xlu0 %1172
      %1174 = vrot.lane.b32.xlu0 %v1101, 8
      %v1175 = vpop.permute.xlu0 %1174
      %1176 = vrot.lane.b32.xlu0 %v1104, 8
      %v1177 = vpop.permute.xlu0 %1176
      %1178 = vrot.lane.b32.xlu0 %v1108, 8
      %v1179 = vpop.permute.xlu0 %1178
      %1180 = vrot.lane.b32.xlu0 %v1111, 8
      %v1181 = vpop.permute.xlu0 %1180
      %1182 = vrot.lane.b32.xlu0 %v1115, 8
      %v1183 = vpop.permute.xlu0 %1182
      %1184 = vrot.lane.b32.xlu0 %v1118, 8
      %v1185 = vpop.permute.xlu0 %1184
      %1186 = vrot.lane.b32.xlu0 %v1122, 8
      %v1187 = vpop.permute.xlu0 %1186
      %1188 = vrot.lane.b32.xlu0 %v1125, 8
      %v1189 = vpop.permute.xlu0 %1188
      %vm1222 = vcmask 93248
      %1223 = vst.msk [vmem:[#allocation2] sm:$0xf] %vm1222, %v1127
      %1224 = vst.msk [vmem:[#allocation2 + $0x4] sm:$0xf] %vm1222, %v1129
      %1225 = vst.msk [vmem:[#allocation2 + $0x8] sm:$0xf] %vm1222, %v1131
      %1226 = vst.msk [vmem:[#allocation2 + $0xc] sm:$0xf] %vm1222, %v1133
      %1227 = vst.msk [vmem:[#allocation2 + $0x10] sm:$0xf] %vm1222, %v1135
      %1228 = vst.msk [vmem:[#allocation2 + $0x14] sm:$0xf] %vm1222, %v1137
      %1229 = vst.msk [vmem:[#allocation2 + $0x18] sm:$0xf] %vm1222, %v1139
      %1230 = vst.msk [vmem:[#allocation2 + $0x1c] sm:$0xf] %vm1222, %v1141
      %1231 = vst.msk [vmem:[#allocation2 + $0x20] sm:$0xf] %vm1222, %v1143
      %1232 = vst.msk [vmem:[#allocation2 + $0x24] sm:$0xf] %vm1222, %v1145
      %1233 = vst.msk [vmem:[#allocation2 + $0x28] sm:$0xf] %vm1222, %v1147
      %1234 = vst.msk [vmem:[#allocation2 + $0x2c] sm:$0xf] %vm1222, %v1149
      %1235 = vst.msk [vmem:[#allocation2 + $0x30] sm:$0xf] %vm1222, %v1151
      %1236 = vst.msk [vmem:[#allocation2 + $0x34] sm:$0xf] %vm1222, %v1153
      %1237 = vst.msk [vmem:[#allocation2 + $0x38] sm:$0xf] %vm1222, %v1155
      %1238 = vst.msk [vmem:[#allocation2 + $0x3c] sm:$0xf] %vm1222, %v1157
      %1239 = vst.msk [vmem:[#allocation2 + $0x40] sm:$0xf] %vm1222, %v1159
      %1240 = vst.msk [vmem:[#allocation2 + $0x44] sm:$0xf] %vm1222, %v1161
      %1241 = vst.msk [vmem:[#allocation2 + $0x48] sm:$0xf] %vm1222, %v1163
      %1242 = vst.msk [vmem:[#allocation2 + $0x4c] sm:$0xf] %vm1222, %v1165
      %1243 = vst.msk [vmem:[#allocation2 + $0x50] sm:$0xf] %vm1222, %v1167
      %1244 = vst.msk [vmem:[#allocation2 + $0x54] sm:$0xf] %vm1222, %v1169
      %1245 = vst.msk [vmem:[#allocation2 + $0x58] sm:$0xf] %vm1222, %v1171
      %1246 = vst.msk [vmem:[#allocation2 + $0x5c] sm:$0xf] %vm1222, %v1173
      %1247 = vst.msk [vmem:[#allocation2 + $0x60] sm:$0xf] %vm1222, %v1175
      %1248 = vst.msk [vmem:[#allocation2 + $0x64] sm:$0xf] %vm1222, %v1177
      %1249 = vst.msk [vmem:[#allocation2 + $0x68] sm:$0xf] %vm1222, %v1179
      %1250 = vst.msk [vmem:[#allocation2 + $0x6c] sm:$0xf] %vm1222, %v1181
      %1251 = vst.msk [vmem:[#allocation2 + $0x70] sm:$0xf] %vm1222, %v1183
      %1252 = vst.msk [vmem:[#allocation2 + $0x74] sm:$0xf] %vm1222, %v1185
      %1253 = vst.msk [vmem:[#allocation2 + $0x78] sm:$0xf] %vm1222, %v1187
      %1254 = vst.msk [vmem:[#allocation2 + $0x7c] sm:$0xf] %vm1222, %v1189
      %s1255 = sadd.s32 %s282, 1
      %s1256 = smul.u32 %s1255, 3
      %s1257 = smul.addr %s1256, 4
      %s1258 = scalar_lea.vmem %s257, %s1257
      %v1259 = vld [vmem:[%s1258] sm:$0xf]
      %v1260 = vld [vmem:[%s1258 + $0x4] sm:$0xf]
      %v1261 = vld [vmem:[%s1258 + $0xc] sm:$0xf]
      %v1262 = vld [vmem:[%s1258 + $0x10] sm:$0xf]
      %v1263 = vld [vmem:[%s1258 + $0x18] sm:$0xf]
      %v1264 = vld [vmem:[%s1258 + $0x1c] sm:$0xf]
      %v1265 = vld [vmem:[%s1258 + $0x24] sm:$0xf]
      %v1266 = vld [vmem:[%s1258 + $0x28] sm:$0xf]
      %v1267 = vld [vmem:[%s1258 + $0x30] sm:$0xf]
      %v1268 = vld [vmem:[%s1258 + $0x34] sm:$0xf]
      %v1269 = vld [vmem:[%s1258 + $0x3c] sm:$0xf]
      %v1270 = vld [vmem:[%s1258 + $0x40] sm:$0xf]
      %v1271 = vld [vmem:[%s1258 + $0x48] sm:$0xf]
      %v1272 = vld [vmem:[%s1258 + $0x4c] sm:$0xf]
      %v1273 = vld [vmem:[%s1258 + $0x54] sm:$0xf]
      %v1274 = vld [vmem:[%s1258 + $0x58] sm:$0xf]
      %v1275 = vld [vmem:[%s1258 + $0x60] sm:$0xf]
      %v1276 = vld [vmem:[%s1258 + $0x64] sm:$0xf]
      %v1277 = vld [vmem:[%s1258 + $0x6c] sm:$0xf]
      %v1278 = vld [vmem:[%s1258 + $0x70] sm:$0xf]
      %v1279 = vld [vmem:[%s1258 + $0x78] sm:$0xf]
      %v1280 = vld [vmem:[%s1258 + $0x7c] sm:$0xf]
      %v1281 = vld [vmem:[%s1258 + $0x84] sm:$0xf]
      %v1282 = vld [vmem:[%s1258 + $0x88] sm:$0xf]
      %v1283 = vld [vmem:[%s1258 + $0x90] sm:$0xf]
      %v1284 = vld [vmem:[%s1258 + $0x94] sm:$0xf]
      %v1285 = vld [vmem:[%s1258 + $0x9c] sm:$0xf]
      %v1286 = vld [vmem:[%s1258 + $0xa0] sm:$0xf]
      %v1287 = vld [vmem:[%s1258 + $0xa8] sm:$0xf]
      %v1288 = vld [vmem:[%s1258 + $0xac] sm:$0xf]
      %v1289 = vld [vmem:[%s1258 + $0xb4] sm:$0xf]
      %v1290 = vld [vmem:[%s1258 + $0xb8] sm:$0xf]
      %1323 = vrot.lane.b32.xlu0 %v1259, 12
      %v1324 = vpop.permute.xlu0 %1323
      %1325 = vrot.lane.b32.xlu0 %v1260, 12
      %v1326 = vpop.permute.xlu0 %1325
      %1327 = vrot.lane.b32.xlu0 %v1261, 12
      %v1328 = vpop.permute.xlu0 %1327
      %1329 = vrot.lane.b32.xlu0 %v1262, 12
      %v1330 = vpop.permute.xlu0 %1329
      %1331 = vrot.lane.b32.xlu0 %v1263, 12
      %v1332 = vpop.permute.xlu0 %1331
      %1333 = vrot.lane.b32.xlu0 %v1264, 12
      %v1334 = vpop.permute.xlu0 %1333
      %1335 = vrot.lane.b32.xlu0 %v1265, 12
      %v1336 = vpop.permute.xlu0 %1335
      %1337 = vrot.lane.b32.xlu0 %v1266, 12
      %v1338 = vpop.permute.xlu0 %1337
      %1339 = vrot.lane.b32.xlu0 %v1267, 12
      %v1340 = vpop.permute.xlu0 %1339
      %1341 = vrot.lane.b32.xlu0 %v1268, 12
      %v1342 = vpop.permute.xlu0 %1341
      %1343 = vrot.lane.b32.xlu0 %v1269, 12
      %v1344 = vpop.permute.xlu0 %1343
      %1345 = vrot.lane.b32.xlu0 %v1270, 12
      %v1346 = vpop.permute.xlu0 %1345
      %1347 = vrot.lane.b32.xlu0 %v1271, 12
      %v1348 = vpop.permute.xlu0 %1347
      %1349 = vrot.lane.b32.xlu0 %v1272, 12
      %v1350 = vpop.permute.xlu0 %1349
      %1351 = vrot.lane.b32.xlu0 %v1273, 12
      %v1352 = vpop.permute.xlu0 %1351
      %1353 = vrot.lane.b32.xlu0 %v1274, 12
      %v1354 = vpop.permute.xlu0 %1353
      %1355 = vrot.lane.b32.xlu0 %v1275, 12
      %v1356 = vpop.permute.xlu0 %1355
      %1357 = vrot.lane.b32.xlu0 %v1276, 12
      %v1358 = vpop.permute.xlu0 %1357
      %1359 = vrot.lane.b32.xlu0 %v1277, 12
      %v1360 = vpop.permute.xlu0 %1359
      %1361 = vrot.lane.b32.xlu0 %v1278, 12
      %v1362 = vpop.permute.xlu0 %1361
      %1363 = vrot.lane.b32.xlu0 %v1279, 12
      %v1364 = vpop.permute.xlu0 %1363
      %1365 = vrot.lane.b32.xlu0 %v1280, 12
      %v1366 = vpop.permute.xlu0 %1365
      %1367 = vrot.lane.b32.xlu0 %v1281, 12
      %v1368 = vpop.permute.xlu0 %1367
      %1369 = vrot.lane.b32.xlu0 %v1282, 12
      %v1370 = vpop.permute.xlu0 %1369
      %1371 = vrot.lane.b32.xlu0 %v1283, 12
      %v1372 = vpop.permute.xlu0 %1371
      %1373 = vrot.lane.b32.xlu0 %v1284, 12
      %v1374 = vpop.permute.xlu0 %1373
      %1375 = vrot.lane.b32.xlu0 %v1285, 12
      %v1376 = vpop.permute.xlu0 %1375
      %1377 = vrot.lane.b32.xlu0 %v1286, 12
      %v1378 = vpop.permute.xlu0 %1377
      %1379 = vrot.lane.b32.xlu0 %v1287, 12
      %v1380 = vpop.permute.xlu0 %1379
      %1381 = vrot.lane.b32.xlu0 %v1288, 12
      %v1382 = vpop.permute.xlu0 %1381
      %1383 = vrot.lane.b32.xlu0 %v1289, 12
      %v1384 = vpop.permute.xlu0 %1383
      %1385 = vrot.lane.b32.xlu0 %v1290, 12
      %v1386 = vpop.permute.xlu0 %1385
      %vm1419 = vcmask 126048
      %1420 = vst.msk [vmem:[#allocation2] sm:$0xf] %vm1419, %v1324
      %1421 = vst.msk [vmem:[#allocation2 + $0x4] sm:$0xf] %vm1419, %v1326
      %1422 = vst.msk [vmem:[#allocation2 + $0x8] sm:$0xf] %vm1419, %v1328
      %1423 = vst.msk [vmem:[#allocation2 + $0xc] sm:$0xf] %vm1419, %v1330
      %1424 = vst.msk [vmem:[#allocation2 + $0x10] sm:$0xf] %vm1419, %v1332
      %1425 = vst.msk [vmem:[#allocation2 + $0x14] sm:$0xf] %vm1419, %v1334
      %1426 = vst.msk [vmem:[#allocation2 + $0x18] sm:$0xf] %vm1419, %v1336
      %1427 = vst.msk [vmem:[#allocation2 + $0x1c] sm:$0xf] %vm1419, %v1338
      %1428 = vst.msk [vmem:[#allocation2 + $0x20] sm:$0xf] %vm1419, %v1340
      %1429 = vst.msk [vmem:[#allocation2 + $0x24] sm:$0xf] %vm1419, %v1342
      %1430 = vst.msk [vmem:[#allocation2 + $0x28] sm:$0xf] %vm1419, %v1344
      %1431 = vst.msk [vmem:[#allocation2 + $0x2c] sm:$0xf] %vm1419, %v1346
      %1432 = vst.msk [vmem:[#allocation2 + $0x30] sm:$0xf] %vm1419, %v1348
      %1433 = vst.msk [vmem:[#allocation2 + $0x34] sm:$0xf] %vm1419, %v1350
      %1434 = vst.msk [vmem:[#allocation2 + $0x38] sm:$0xf] %vm1419, %v1352
      %1435 = vst.msk [vmem:[#allocation2 + $0x3c] sm:$0xf] %vm1419, %v1354
      %1436 = vst.msk [vmem:[#allocation2 + $0x40] sm:$0xf] %vm1419, %v1356
      %1437 = vst.msk [vmem:[#allocation2 + $0x44] sm:$0xf] %vm1419, %v1358
      %1438 = vst.msk [vmem:[#allocation2 + $0x48] sm:$0xf] %vm1419, %v1360
      %1439 = vst.msk [vmem:[#allocation2 + $0x4c] sm:$0xf] %vm1419, %v1362
      %1440 = vst.msk [vmem:[#allocation2 + $0x50] sm:$0xf] %vm1419, %v1364
      %1441 = vst.msk [vmem:[#allocation2 + $0x54] sm:$0xf] %vm1419, %v1366
      %1442 = vst.msk [vmem:[#allocation2 + $0x58] sm:$0xf] %vm1419, %v1368
      %1443 = vst.msk [vmem:[#allocation2 + $0x5c] sm:$0xf] %vm1419, %v1370
      %1444 = vst.msk [vmem:[#allocation2 + $0x60] sm:$0xf] %vm1419, %v1372
      %1445 = vst.msk [vmem:[#allocation2 + $0x64] sm:$0xf] %vm1419, %v1374
      %1446 = vst.msk [vmem:[#allocation2 + $0x68] sm:$0xf] %vm1419, %v1376
      %1447 = vst.msk [vmem:[#allocation2 + $0x6c] sm:$0xf] %vm1419, %v1378
      %1448 = vst.msk [vmem:[#allocation2 + $0x70] sm:$0xf] %vm1419, %v1380
      %1449 = vst.msk [vmem:[#allocation2 + $0x74] sm:$0xf] %vm1419, %v1382
      %1450 = vst.msk [vmem:[#allocation2 + $0x78] sm:$0xf] %vm1419, %v1384
      %1451 = vst.msk [vmem:[#allocation2 + $0x7c] sm:$0xf] %vm1419, %v1386
      %v1452 = vld [vmem:[%s1258] sm:$0xf]
      %v1453 = vld [vmem:[%s1258 + $0x4] sm:$0xf]
      %v1454 = vld [vmem:[%s1258 + $0x8] sm:$0x1]
      %v1455 = vld [vmem:[%s1258 + $0xc] sm:$0xf]
      %v1456 = vld [vmem:[%s1258 + $0x10] sm:$0xf]
      %v1457 = vld [vmem:[%s1258 + $0x14] sm:$0x1]
      %v1458 = vld [vmem:[%s1258 + $0x18] sm:$0xf]
      %v1459 = vld [vmem:[%s1258 + $0x1c] sm:$0xf]
      %v1460 = vld [vmem:[%s1258 + $0x20] sm:$0x1]
      %v1461 = vld [vmem:[%s1258 + $0x24] sm:$0xf]
      %v1462 = vld [vmem:[%s1258 + $0x28] sm:$0xf]
      %v1463 = vld [vmem:[%s1258 + $0x2c] sm:$0x1]
      %v1464 = vld [vmem:[%s1258 + $0x30] sm:$0xf]
      %v1465 = vld [vmem:[%s1258 + $0x34] sm:$0xf]
      %v1466 = vld [vmem:[%s1258 + $0x38] sm:$0x1]
      %v1467 = vld [vmem:[%s1258 + $0x3c] sm:$0xf]
      %v1468 = vld [vmem:[%s1258 + $0x40] sm:$0xf]
      %v1469 = vld [vmem:[%s1258 + $0x44] sm:$0x1]
      %v1470 = vld [vmem:[%s1258 + $0x48] sm:$0xf]
      %v1471 = vld [vmem:[%s1258 + $0x4c] sm:$0xf]
      %v1472 = vld [vmem:[%s1258 + $0x50] sm:$0x1]
      %v1473 = vld [vmem:[%s1258 + $0x54] sm:$0xf]
      %v1474 = vld [vmem:[%s1258 + $0x58] sm:$0xf]
      %v1475 = vld [vmem:[%s1258 + $0x5c] sm:$0x1]
      %v1476 = vld [vmem:[%s1258 + $0x60] sm:$0xf]
      %v1477 = vld [vmem:[%s1258 + $0x64] sm:$0xf]
      %v1478 = vld [vmem:[%s1258 + $0x68] sm:$0x1]
      %v1479 = vld [vmem:[%s1258 + $0x6c] sm:$0xf]
      %v1480 = vld [vmem:[%s1258 + $0x70] sm:$0xf]
      %v1481 = vld [vmem:[%s1258 + $0x74] sm:$0x1]
      %v1482 = vld [vmem:[%s1258 + $0x78] sm:$0xf]
      %v1483 = vld [vmem:[%s1258 + $0x7c] sm:$0xf]
      %v1484 = vld [vmem:[%s1258 + $0x80] sm:$0x1]
      %v1485 = vld [vmem:[%s1258 + $0x84] sm:$0xf]
      %v1486 = vld [vmem:[%s1258 + $0x88] sm:$0xf]
      %v1487 = vld [vmem:[%s1258 + $0x8c] sm:$0x1]
      %v1488 = vld [vmem:[%s1258 + $0x90] sm:$0xf]
      %v1489 = vld [vmem:[%s1258 + $0x94] sm:$0xf]
      %v1490 = vld [vmem:[%s1258 + $0x98] sm:$0x1]
      %v1491 = vld [vmem:[%s1258 + $0x9c] sm:$0xf]
      %v1492 = vld [vmem:[%s1258 + $0xa0] sm:$0xf]
      %v1493 = vld [vmem:[%s1258 + $0xa4] sm:$0x1]
      %v1494 = vld [vmem:[%s1258 + $0xa8] sm:$0xf]
      %v1495 = vld [vmem:[%s1258 + $0xac] sm:$0xf]
      %v1496 = vld [vmem:[%s1258 + $0xb0] sm:$0x1]
      %v1497 = vld [vmem:[%s1258 + $0xb4] sm:$0xf]
      %v1498 = vld [vmem:[%s1258 + $0xb8] sm:$0xf]
      %v1499 = vld [vmem:[%s1258 + $0xbc] sm:$0x1]
      %v1501 = vshrl.u32 %v1452, 16
      %v1503 = vrot.slane %v1501, 4
      %v1504 = vshll.u32 %v1452, 16
      %v1506 = vrot.slane %v1504, 5
      %v1507 = vor.u32 %v1503, %v1506
      %v1508 = vrot.slane %v1507, 4
      %v1510 = vshll.u32 %v1453, 16
      %v1512 = vrot.slane %v1510, 5
      %v1513 = vsel %vm401, %v1508, %v1512
      %v1514 = vshrl.u32 %v1453, 16
      %v1516 = vrot.slane %v1514, 4
      %v1517 = vor.u32 %v1516, %v1512
      %v1518 = vrot.slane %v1517, 4
      %v1520 = vshll.u32 %v1454, 16
      %v1522 = vrot.slane %v1520, 5
      %v1523 = vsel %vm401, %v1518, %v1522
      %v1525 = vshrl.u32 %v1455, 16
      %v1527 = vrot.slane %v1525, 4
      %v1528 = vshll.u32 %v1455, 16
      %v1530 = vrot.slane %v1528, 5
      %v1531 = vor.u32 %v1527, %v1530
      %v1532 = vrot.slane %v1531, 4
      %v1534 = vshll.u32 %v1456, 16
      %v1536 = vrot.slane %v1534, 5
      %v1537 = vsel %vm401, %v1532, %v1536
      %v1538 = vshrl.u32 %v1456, 16
      %v1540 = vrot.slane %v1538, 4
      %v1541 = vor.u32 %v1540, %v1536
      %v1542 = vrot.slane %v1541, 4
      %v1544 = vshll.u32 %v1457, 16
      %v1546 = vrot.slane %v1544, 5
      %v1547 = vsel %vm401, %v1542, %v1546
      %v1549 = vshrl.u32 %v1458, 16
      %v1551 = vrot.slane %v1549, 4
      %v1552 = vshll.u32 %v1458, 16
      %v1554 = vrot.slane %v1552, 5
      %v1555 = vor.u32 %v1551, %v1554
      %v1556 = vrot.slane %v1555, 4
      %v1558 = vshll.u32 %v1459, 16
      %v1560 = vrot.slane %v1558, 5
      %v1561 = vsel %vm401, %v1556, %v1560
      %v1562 = vshrl.u32 %v1459, 16
      %v1564 = vrot.slane %v1562, 4
      %v1565 = vor.u32 %v1564, %v1560
      %v1566 = vrot.slane %v1565, 4
      %v1568 = vshll.u32 %v1460, 16
      %v1570 = vrot.slane %v1568, 5
      %v1571 = vsel %vm401, %v1566, %v1570
      %v1573 = vshrl.u32 %v1461, 16
      %v1575 = vrot.slane %v1573, 4
      %v1576 = vshll.u32 %v1461, 16
      %v1578 = vrot.slane %v1576, 5
      %v1579 = vor.u32 %v1575, %v1578
      %v1580 = vrot.slane %v1579, 4
      %v1582 = vshll.u32 %v1462, 16
      %v1584 = vrot.slane %v1582, 5
      %v1585 = vsel %vm401, %v1580, %v1584
      %v1586 = vshrl.u32 %v1462, 16
      %v1588 = vrot.slane %v1586, 4
      %v1589 = vor.u32 %v1588, %v1584
      %v1590 = vrot.slane %v1589, 4
      %v1592 = vshll.u32 %v1463, 16
      %v1594 = vrot.slane %v1592, 5
      %v1595 = vsel %vm401, %v1590, %v1594
      %v1597 = vshrl.u32 %v1464, 16
      %v1599 = vrot.slane %v1597, 4
      %v1600 = vshll.u32 %v1464, 16
      %v1602 = vrot.slane %v1600, 5
      %v1603 = vor.u32 %v1599, %v1602
      %v1604 = vrot.slane %v1603, 4
      %v1606 = vshll.u32 %v1465, 16
      %v1608 = vrot.slane %v1606, 5
      %v1609 = vsel %vm401, %v1604, %v1608
      %v1610 = vshrl.u32 %v1465, 16
      %v1612 = vrot.slane %v1610, 4
      %v1613 = vor.u32 %v1612, %v1608
      %v1614 = vrot.slane %v1613, 4
      %v1616 = vshll.u32 %v1466, 16
      %v1618 = vrot.slane %v1616, 5
      %v1619 = vsel %vm401, %v1614, %v1618
      %v1621 = vshrl.u32 %v1467, 16
      %v1623 = vrot.slane %v1621, 4
      %v1624 = vshll.u32 %v1467, 16
      %v1626 = vrot.slane %v1624, 5
      %v1627 = vor.u32 %v1623, %v1626
      %v1628 = vrot.slane %v1627, 4
      %v1630 = vshll.u32 %v1468, 16
      %v1632 = vrot.slane %v1630, 5
      %v1633 = vsel %vm401, %v1628, %v1632
      %v1634 = vshrl.u32 %v1468, 16
      %v1636 = vrot.slane %v1634, 4
      %v1637 = vor.u32 %v1636, %v1632
      %v1638 = vrot.slane %v1637, 4
      %v1640 = vshll.u32 %v1469, 16
      %v1642 = vrot.slane %v1640, 5
      %v1643 = vsel %vm401, %v1638, %v1642
      %v1645 = vshrl.u32 %v1470, 16
      %v1647 = vrot.slane %v1645, 4
      %v1648 = vshll.u32 %v1470, 16
      %v1650 = vrot.slane %v1648, 5
      %v1651 = vor.u32 %v1647, %v1650
      %v1652 = vrot.slane %v1651, 4
      %v1654 = vshll.u32 %v1471, 16
      %v1656 = vrot.slane %v1654, 5
      %v1657 = vsel %vm401, %v1652, %v1656
      %v1658 = vshrl.u32 %v1471, 16
      %v1660 = vrot.slane %v1658, 4
      %v1661 = vor.u32 %v1660, %v1656
      %v1662 = vrot.slane %v1661, 4
      %v1664 = vshll.u32 %v1472, 16
      %v1666 = vrot.slane %v1664, 5
      %v1667 = vsel %vm401, %v1662, %v1666
      %v1669 = vshrl.u32 %v1473, 16
      %v1671 = vrot.slane %v1669, 4
      %v1672 = vshll.u32 %v1473, 16
      %v1674 = vrot.slane %v1672, 5
      %v1675 = vor.u32 %v1671, %v1674
      %v1676 = vrot.slane %v1675, 4
      %v1678 = vshll.u32 %v1474, 16
      %v1680 = vrot.slane %v1678, 5
      %v1681 = vsel %vm401, %v1676, %v1680
      %v1682 = vshrl.u32 %v1474, 16
      %v1684 = vrot.slane %v1682, 4
      %v1685 = vor.u32 %v1684, %v1680
      %v1686 = vrot.slane %v1685, 4
      %v1688 = vshll.u32 %v1475, 16
      %v1690 = vrot.slane %v1688, 5
      %v1691 = vsel %vm401, %v1686, %v1690
      %v1693 = vshrl.u32 %v1476, 16
      %v1695 = vrot.slane %v1693, 4
      %v1696 = vshll.u32 %v1476, 16
      %v1698 = vrot.slane %v1696, 5
      %v1699 = vor.u32 %v1695, %v1698
      %v1700 = vrot.slane %v1699, 4
      %v1702 = vshll.u32 %v1477, 16
      %v1704 = vrot.slane %v1702, 5
      %v1705 = vsel %vm401, %v1700, %v1704
      %v1706 = vshrl.u32 %v1477, 16
      %v1708 = vrot.slane %v1706, 4
      %v1709 = vor.u32 %v1708, %v1704
      %v1710 = vrot.slane %v1709, 4
      %v1712 = vshll.u32 %v1478, 16
      %v1714 = vrot.slane %v1712, 5
      %v1715 = vsel %vm401, %v1710, %v1714
      %v1717 = vshrl.u32 %v1479, 16
      %v1719 = vrot.slane %v1717, 4
      %v1720 = vshll.u32 %v1479, 16
      %v1722 = vrot.slane %v1720, 5
      %v1723 = vor.u32 %v1719, %v1722
      %v1724 = vrot.slane %v1723, 4
      %v1726 = vshll.u32 %v1480, 16
      %v1728 = vrot.slane %v1726, 5
      %v1729 = vsel %vm401, %v1724, %v1728
      %v1730 = vshrl.u32 %v1480, 16
      %v1732 = vrot.slane %v1730, 4
      %v1733 = vor.u32 %v1732, %v1728
      %v1734 = vrot.slane %v1733, 4
      %v1736 = vshll.u32 %v1481, 16
      %v1738 = vrot.slane %v1736, 5
      %v1739 = vsel %vm401, %v1734, %v1738
      %v1741 = vshrl.u32 %v1482, 16
      %v1743 = vrot.slane %v1741, 4
      %v1744 = vshll.u32 %v1482, 16
      %v1746 = vrot.slane %v1744, 5
      %v1747 = vor.u32 %v1743, %v1746
      %v1748 = vrot.slane %v1747, 4
      %v1750 = vshll.u32 %v1483, 16
      %v1752 = vrot.slane %v1750, 5
      %v1753 = vsel %vm401, %v1748, %v1752
      %v1754 = vshrl.u32 %v1483, 16
      %v1756 = vrot.slane %v1754, 4
      %v1757 = vor.u32 %v1756, %v1752
      %v1758 = vrot.slane %v1757, 4
      %v1760 = vshll.u32 %v1484, 16
      %v1762 = vrot.slane %v1760, 5
      %v1763 = vsel %vm401, %v1758, %v1762
      %v1765 = vshrl.u32 %v1485, 16
      %v1767 = vrot.slane %v1765, 4
      %v1768 = vshll.u32 %v1485, 16
      %v1770 = vrot.slane %v1768, 5
      %v1771 = vor.u32 %v1767, %v1770
      %v1772 = vrot.slane %v1771, 4
      %v1774 = vshll.u32 %v1486, 16
      %v1776 = vrot.slane %v1774, 5
      %v1777 = vsel %vm401, %v1772, %v1776
      %v1778 = vshrl.u32 %v1486, 16
      %v1780 = vrot.slane %v1778, 4
      %v1781 = vor.u32 %v1780, %v1776
      %v1782 = vrot.slane %v1781, 4
      %v1784 = vshll.u32 %v1487, 16
      %v1786 = vrot.slane %v1784, 5
      %v1787 = vsel %vm401, %v1782, %v1786
      %v1789 = vshrl.u32 %v1488, 16
      %v1791 = vrot.slane %v1789, 4
      %v1792 = vshll.u32 %v1488, 16
      %v1794 = vrot.slane %v1792, 5
      %v1795 = vor.u32 %v1791, %v1794
      %v1796 = vrot.slane %v1795, 4
      %v1798 = vshll.u32 %v1489, 16
      %v1800 = vrot.slane %v1798, 5
      %v1801 = vsel %vm401, %v1796, %v1800
      %v1802 = vshrl.u32 %v1489, 16
      %v1804 = vrot.slane %v1802, 4
      %v1805 = vor.u32 %v1804, %v1800
      %v1806 = vrot.slane %v1805, 4
      %v1808 = vshll.u32 %v1490, 16
      %v1810 = vrot.slane %v1808, 5
      %v1811 = vsel %vm401, %v1806, %v1810
      %v1813 = vshrl.u32 %v1491, 16
      %v1815 = vrot.slane %v1813, 4
      %v1816 = vshll.u32 %v1491, 16
      %v1818 = vrot.slane %v1816, 5
      %v1819 = vor.u32 %v1815, %v1818
      %v1820 = vrot.slane %v1819, 4
      %v1822 = vshll.u32 %v1492, 16
      %v1824 = vrot.slane %v1822, 5
      %v1825 = vsel %vm401, %v1820, %v1824
      %v1826 = vshrl.u32 %v1492, 16
      %v1828 = vrot.slane %v1826, 4
      %v1829 = vor.u32 %v1828, %v1824
      %v1830 = vrot.slane %v1829, 4
      %v1832 = vshll.u32 %v1493, 16
      %v1834 = vrot.slane %v1832, 5
      %v1835 = vsel %vm401, %v1830, %v1834
      %v1837 = vshrl.u32 %v1494, 16
      %v1839 = vrot.slane %v1837, 4
      %v1840 = vshll.u32 %v1494, 16
      %v1842 = vrot.slane %v1840, 5
      %v1843 = vor.u32 %v1839, %v1842
      %v1844 = vrot.slane %v1843, 4
      %v1846 = vshll.u32 %v1495, 16
      %v1848 = vrot.slane %v1846, 5
      %v1849 = vsel %vm401, %v1844, %v1848
      %v1850 = vshrl.u32 %v1495, 16
      %v1852 = vrot.slane %v1850, 4
      %v1853 = vor.u32 %v1852, %v1848
      %v1854 = vrot.slane %v1853, 4
      %v1856 = vshll.u32 %v1496, 16
      %v1858 = vrot.slane %v1856, 5
      %v1859 = vsel %vm401, %v1854, %v1858
      %v1861 = vshrl.u32 %v1497, 16
      %v1863 = vrot.slane %v1861, 4
      %v1864 = vshll.u32 %v1497, 16
      %v1866 = vrot.slane %v1864, 5
      %v1867 = vor.u32 %v1863, %v1866
      %v1868 = vrot.slane %v1867, 4
      %v1870 = vshll.u32 %v1498, 16
      %v1872 = vrot.slane %v1870, 5
      %v1873 = vsel %vm401, %v1868, %v1872
      %v1874 = vshrl.u32 %v1498, 16
      %v1876 = vrot.slane %v1874, 4
      %v1877 = vor.u32 %v1876, %v1872
      %v1878 = vrot.slane %v1877, 4
      %v1880 = vshll.u32 %v1499, 16
      %v1882 = vrot.slane %v1880, 5
      %v1883 = vsel %vm401, %v1878, %v1882
      %1884 = vrot.lane.b32.xlu0 %v1513, 16
      %v1885 = vpop.permute.xlu0 %1884
      %1886 = vrot.lane.b32.xlu0 %v1523, 16
      %v1887 = vpop.permute.xlu0 %1886
      %1888 = vrot.lane.b32.xlu0 %v1537, 16
      %v1889 = vpop.permute.xlu0 %1888
      %1890 = vrot.lane.b32.xlu0 %v1547, 16
      %v1891 = vpop.permute.xlu0 %1890
      %1892 = vrot.lane.b32.xlu0 %v1561, 16
      %v1893 = vpop.permute.xlu0 %1892
      %1894 = vrot.lane.b32.xlu0 %v1571, 16
      %v1895 = vpop.permute.xlu0 %1894
      %1896 = vrot.lane.b32.xlu0 %v1585, 16
      %v1897 = vpop.permute.xlu0 %1896
      %1898 = vrot.lane.b32.xlu0 %v1595, 16
      %v1899 = vpop.permute.xlu0 %1898
      %1900 = vrot.lane.b32.xlu0 %v1609, 16
      %v1901 = vpop.permute.xlu0 %1900
      %1902 = vrot.lane.b32.xlu0 %v1619, 16
      %v1903 = vpop.permute.xlu0 %1902
      %1904 = vrot.lane.b32.xlu0 %v1633, 16
      %v1905 = vpop.permute.xlu0 %1904
      %1906 = vrot.lane.b32.xlu0 %v1643, 16
      %v1907 = vpop.permute.xlu0 %1906
      %1908 = vrot.lane.b32.xlu0 %v1657, 16
      %v1909 = vpop.permute.xlu0 %1908
      %1910 = vrot.lane.b32.xlu0 %v1667, 16
      %v1911 = vpop.permute.xlu0 %1910
      %1912 = vrot.lane.b32.xlu0 %v1681, 16
      %v1913 = vpop.permute.xlu0 %1912
      %1914 = vrot.lane.b32.xlu0 %v1691, 16
      %v1915 = vpop.permute.xlu0 %1914
      %1916 = vrot.lane.b32.xlu0 %v1705, 16
      %v1917 = vpop.permute.xlu0 %1916
      %1918 = vrot.lane.b32.xlu0 %v1715, 16
      %v1919 = vpop.permute.xlu0 %1918
      %1920 = vrot.lane.b32.xlu0 %v1729, 16
      %v1921 = vpop.permute.xlu0 %1920
      %1922 = vrot.lane.b32.xlu0 %v1739, 16
      %v1923 = vpop.permute.xlu0 %1922
      %1924 = vrot.lane.b32.xlu0 %v1753, 16
      %v1925 = vpop.permute.xlu0 %1924
      %1926 = vrot.lane.b32.xlu0 %v1763, 16
      %v1927 = vpop.permute.xlu0 %1926
      %1928 = vrot.lane.b32.xlu0 %v1777, 16
      %v1929 = vpop.permute.xlu0 %1928
      %1930 = vrot.lane.b32.xlu0 %v1787, 16
      %v1931 = vpop.permute.xlu0 %1930
      %1932 = vrot.lane.b32.xlu0 %v1801, 16
      %v1933 = vpop.permute.xlu0 %1932
      %1934 = vrot.lane.b32.xlu0 %v1811, 16
      %v1935 = vpop.permute.xlu0 %1934
      %1936 = vrot.lane.b32.xlu0 %v1825, 16
      %v1937 = vpop.permute.xlu0 %1936
      %1938 = vrot.lane.b32.xlu0 %v1835, 16
      %v1939 = vpop.permute.xlu0 %1938
      %1940 = vrot.lane.b32.xlu0 %v1849, 16
      %v1941 = vpop.permute.xlu0 %1940
      %1942 = vrot.lane.b32.xlu0 %v1859, 16
      %v1943 = vpop.permute.xlu0 %1942
      %1944 = vrot.lane.b32.xlu0 %v1873, 16
      %v1945 = vpop.permute.xlu0 %1944
      %1946 = vrot.lane.b32.xlu0 %v1883, 16
      %v1947 = vpop.permute.xlu0 %1946
      %vm1980 = vcmask 158848
      %1981 = vst.msk [vmem:[#allocation2] sm:$0xf] %vm1980, %v1885
      %1982 = vst.msk [vmem:[#allocation2 + $0x4] sm:$0xf] %vm1980, %v1887
      %1983 = vst.msk [vmem:[#allocation2 + $0x8] sm:$0xf] %vm1980, %v1889
      %1984 = vst.msk [vmem:[#allocation2 + $0xc] sm:$0xf] %vm1980, %v1891
      %1985 = vst.msk [vmem:[#allocation2 + $0x10] sm:$0xf] %vm1980, %v1893
      %1986 = vst.msk [vmem:[#allocation2 + $0x14] sm:$0xf] %vm1980, %v1895
      %1987 = vst.msk [vmem:[#allocation2 + $0x18] sm:$0xf] %vm1980, %v1897
      %1988 = vst.msk [vmem:[#allocation2 + $0x1c] sm:$0xf] %vm1980, %v1899
      %1989 = vst.msk [vmem:[#allocation2 + $0x20] sm:$0xf] %vm1980, %v1901
      %1990 = vst.msk [vmem:[#allocation2 + $0x24] sm:$0xf] %vm1980, %v1903
      %1991 = vst.msk [vmem:[#allocation2 + $0x28] sm:$0xf] %vm1980, %v1905
      %1992 = vst.msk [vmem:[#allocation2 + $0x2c] sm:$0xf] %vm1980, %v1907
      %1993 = vst.msk [vmem:[#allocation2 + $0x30] sm:$0xf] %vm1980, %v1909
      %1994 = vst.msk [vmem:[#allocation2 + $0x34] sm:$0xf] %vm1980, %v1911
      %1995 = vst.msk [vmem:[#allocation2 + $0x38] sm:$0xf] %vm1980, %v1913
      %1996 = vst.msk [vmem:[#allocation2 + $0x3c] sm:$0xf] %vm1980, %v1915
      %1997 = vst.msk [vmem:[#allocation2 + $0x40] sm:$0xf] %vm1980, %v1917
      %1998 = vst.msk [vmem:[#allocation2 + $0x44] sm:$0xf] %vm1980, %v1919
      %1999 = vst.msk [vmem:[#allocation2 + $0x48] sm:$0xf] %vm1980, %v1921
      %2000 = vst.msk [vmem:[#allocation2 + $0x4c] sm:$0xf] %vm1980, %v1923
      %2001 = vst.msk [vmem:[#allocation2 + $0x50] sm:$0xf] %vm1980, %v1925
      %2002 = vst.msk [vmem:[#allocation2 + $0x54] sm:$0xf] %vm1980, %v1927
      %2003 = vst.msk [vmem:[#allocation2 + $0x58] sm:$0xf] %vm1980, %v1929
      %2004 = vst.msk [vmem:[#allocation2 + $0x5c] sm:$0xf] %vm1980, %v1931
      %2005 = vst.msk [vmem:[#allocation2 + $0x60] sm:$0xf] %vm1980, %v1933
      %2006 = vst.msk [vmem:[#allocation2 + $0x64] sm:$0xf] %vm1980, %v1935
      %2007 = vst.msk [vmem:[#allocation2 + $0x68] sm:$0xf] %vm1980, %v1937
      %2008 = vst.msk [vmem:[#allocation2 + $0x6c] sm:$0xf] %vm1980, %v1939
      %2009 = vst.msk [vmem:[#allocation2 + $0x70] sm:$0xf] %vm1980, %v1941
      %2010 = vst.msk [vmem:[#allocation2 + $0x74] sm:$0xf] %vm1980, %v1943
      %2011 = vst.msk [vmem:[#allocation2 + $0x78] sm:$0xf] %vm1980, %v1945
      %2012 = vst.msk [vmem:[#allocation2 + $0x7c] sm:$0xf] %vm1980, %v1947
      %v2013 = vld [vmem:[%s1258] sm:$0xe]
      %v2014 = vld [vmem:[%s1258 + $0x4] sm:$0xf]
      %v2015 = vld [vmem:[%s1258 + $0x8] sm:$0x1]
      %v2016 = vld [vmem:[%s1258 + $0xc] sm:$0xe]
      %v2017 = vld [vmem:[%s1258 + $0x10] sm:$0xf]
      %v2018 = vld [vmem:[%s1258 + $0x14] sm:$0x1]
      %v2019 = vld [vmem:[%s1258 + $0x18] sm:$0xe]
      %v2020 = vld [vmem:[%s1258 + $0x1c] sm:$0xf]
      %v2021 = vld [vmem:[%s1258 + $0x20] sm:$0x1]
      %v2022 = vld [vmem:[%s1258 + $0x24] sm:$0xe]
      %v2023 = vld [vmem:[%s1258 + $0x28] sm:$0xf]
      %v2024 = vld [vmem:[%s1258 + $0x2c] sm:$0x1]
      %v2025 = vld [vmem:[%s1258 + $0x30] sm:$0xe]
      %v2026 = vld [vmem:[%s1258 + $0x34] sm:$0xf]
      %v2027 = vld [vmem:[%s1258 + $0x38] sm:$0x1]
      %v2028 = vld [vmem:[%s1258 + $0x3c] sm:$0xe]
      %v2029 = vld [vmem:[%s1258 + $0x40] sm:$0xf]
      %v2030 = vld [vmem:[%s1258 + $0x44] sm:$0x1]
      %v2031 = vld [vmem:[%s1258 + $0x48] sm:$0xe]
      %v2032 = vld [vmem:[%s1258 + $0x4c] sm:$0xf]
      %v2033 = vld [vmem:[%s1258 + $0x50] sm:$0x1]
      %v2034 = vld [vmem:[%s1258 + $0x54] sm:$0xe]
      %v2035 = vld [vmem:[%s1258 + $0x58] sm:$0xf]
      %v2036 = vld [vmem:[%s1258 + $0x5c] sm:$0x1]
      %v2037 = vld [vmem:[%s1258 + $0x60] sm:$0xe]
      %v2038 = vld [vmem:[%s1258 + $0x64] sm:$0xf]
      %v2039 = vld [vmem:[%s1258 + $0x68] sm:$0x1]
      %v2040 = vld [vmem:[%s1258 + $0x6c] sm:$0xe]
      %v2041 = vld [vmem:[%s1258 + $0x70] sm:$0xf]
      %v2042 = vld [vmem:[%s1258 + $0x74] sm:$0x1]
      %v2043 = vld [vmem:[%s1258 + $0x78] sm:$0xe]
      %v2044 = vld [vmem:[%s1258 + $0x7c] sm:$0xf]
      %v2045 = vld [vmem:[%s1258 + $0x80] sm:$0x1]
      %v2046 = vld [vmem:[%s1258 + $0x84] sm:$0xe]
      %v2047 = vld [vmem:[%s1258 + $0x88] sm:$0xf]
      %v2048 = vld [vmem:[%s1258 + $0x8c] sm:$0x1]
      %v2049 = vld [vmem:[%s1258 + $0x90] sm:$0xe]
      %v2050 = vld [vmem:[%s1258 + $0x94] sm:$0xf]
      %v2051 = vld [vmem:[%s1258 + $0x98] sm:$0x1]
      %v2052 = vld [vmem:[%s1258 + $0x9c] sm:$0xe]
      %v2053 = vld [vmem:[%s1258 + $0xa0] sm:$0xf]
      %v2054 = vld [vmem:[%s1258 + $0xa4] sm:$0x1]
      %v2055 = vld [vmem:[%s1258 + $0xa8] sm:$0xe]
      %v2056 = vld [vmem:[%s1258 + $0xac] sm:$0xf]
      %v2057 = vld [vmem:[%s1258 + $0xb0] sm:$0x1]
      %v2058 = vld [vmem:[%s1258 + $0xb4] sm:$0xe]
      %v2059 = vld [vmem:[%s1258 + $0xb8] sm:$0xf]
      %v2060 = vld [vmem:[%s1258 + $0xbc] sm:$0x1]
      %v2109 = vrot.slane %v2013, 5
      %v2110 = vrot.slane %v2109, 4
      %v2111 = vrot.slane %v2014, 5
      %v2112 = vsel %vm1013, %v2110, %v2111
      %v2113 = vrot.slane %v2111, 4
      %v2114 = vrot.slane %v2015, 5
      %v2115 = vsel %vm1013, %v2113, %v2114
      %v2116 = vrot.slane %v2016, 5
      %v2117 = vrot.slane %v2116, 4
      %v2118 = vrot.slane %v2017, 5
      %v2119 = vsel %vm1013, %v2117, %v2118
      %v2120 = vrot.slane %v2118, 4
      %v2121 = vrot.slane %v2018, 5
      %v2122 = vsel %vm1013, %v2120, %v2121
      %v2123 = vrot.slane %v2019, 5
      %v2124 = vrot.slane %v2123, 4
      %v2125 = vrot.slane %v2020, 5
      %v2126 = vsel %vm1013, %v2124, %v2125
      %v2127 = vrot.slane %v2125, 4
      %v2128 = vrot.slane %v2021, 5
      %v2129 = vsel %vm1013, %v2127, %v2128
      %v2130 = vrot.slane %v2022, 5
      %v2131 = vrot.slane %v2130, 4
      %v2132 = vrot.slane %v2023, 5
      %v2133 = vsel %vm1013, %v2131, %v2132
      %v2134 = vrot.slane %v2132, 4
      %v2135 = vrot.slane %v2024, 5
      %v2136 = vsel %vm1013, %v2134, %v2135
      %v2137 = vrot.slane %v2025, 5
      %v2138 = vrot.slane %v2137, 4
      %v2139 = vrot.slane %v2026, 5
      %v2140 = vsel %vm1013, %v2138, %v2139
      %v2141 = vrot.slane %v2139, 4
      %v2142 = vrot.slane %v2027, 5
      %v2143 = vsel %vm1013, %v2141, %v2142
      %v2144 = vrot.slane %v2028, 5
      %v2145 = vrot.slane %v2144, 4
      %v2146 = vrot.slane %v2029, 5
      %v2147 = vsel %vm1013, %v2145, %v2146
      %v2148 = vrot.slane %v2146, 4
      %v2149 = vrot.slane %v2030, 5
      %v2150 = vsel %vm1013, %v2148, %v2149
      %v2151 = vrot.slane %v2031, 5
      %v2152 = vrot.slane %v2151, 4
      %v2153 = vrot.slane %v2032, 5
      %v2154 = vsel %vm1013, %v2152, %v2153
      %v2155 = vrot.slane %v2153, 4
      %v2156 = vrot.slane %v2033, 5
      %v2157 = vsel %vm1013, %v2155, %v2156
      %v2158 = vrot.slane %v2034, 5
      %v2159 = vrot.slane %v2158, 4
      %v2160 = vrot.slane %v2035, 5
      %v2161 = vsel %vm1013, %v2159, %v2160
      %v2162 = vrot.slane %v2160, 4
      %v2163 = vrot.slane %v2036, 5
      %v2164 = vsel %vm1013, %v2162, %v2163
      %v2165 = vrot.slane %v2037, 5
      %v2166 = vrot.slane %v2165, 4
      %v2167 = vrot.slane %v2038, 5
      %v2168 = vsel %vm1013, %v2166, %v2167
      %v2169 = vrot.slane %v2167, 4
      %v2170 = vrot.slane %v2039, 5
      %v2171 = vsel %vm1013, %v2169, %v2170
      %v2172 = vrot.slane %v2040, 5
      %v2173 = vrot.slane %v2172, 4
      %v2174 = vrot.slane %v2041, 5
      %v2175 = vsel %vm1013, %v2173, %v2174
      %v2176 = vrot.slane %v2174, 4
      %v2177 = vrot.slane %v2042, 5
      %v2178 = vsel %vm1013, %v2176, %v2177
      %v2179 = vrot.slane %v2043, 5
      %v2180 = vrot.slane %v2179, 4
      %v2181 = vrot.slane %v2044, 5
      %v2182 = vsel %vm1013, %v2180, %v2181
      %v2183 = vrot.slane %v2181, 4
      %v2184 = vrot.slane %v2045, 5
      %v2185 = vsel %vm1013, %v2183, %v2184
      %v2186 = vrot.slane %v2046, 5
      %v2187 = vrot.slane %v2186, 4
      %v2188 = vrot.slane %v2047, 5
      %v2189 = vsel %vm1013, %v2187, %v2188
      %v2190 = vrot.slane %v2188, 4
      %v2191 = vrot.slane %v2048, 5
      %v2192 = vsel %vm1013, %v2190, %v2191
      %v2193 = vrot.slane %v2049, 5
      %v2194 = vrot.slane %v2193, 4
      %v2195 = vrot.slane %v2050, 5
      %v2196 = vsel %vm1013, %v2194, %v2195
      %v2197 = vrot.slane %v2195, 4
      %v2198 = vrot.slane %v2051, 5
      %v2199 = vsel %vm1013, %v2197, %v2198
      %v2200 = vrot.slane %v2052, 5
      %v2201 = vrot.slane %v2200, 4
      %v2202 = vrot.slane %v2053, 5
      %v2203 = vsel %vm1013, %v2201, %v2202
      %v2204 = vrot.slane %v2202, 4
      %v2205 = vrot.slane %v2054, 5
      %v2206 = vsel %vm1013, %v2204, %v2205
      %v2207 = vrot.slane %v2055, 5
      %v2208 = vrot.slane %v2207, 4
      %v2209 = vrot.slane %v2056, 5
      %v2210 = vsel %vm1013, %v2208, %v2209
      %v2211 = vrot.slane %v2209, 4
      %v2212 = vrot.slane %v2057, 5
      %v2213 = vsel %vm1013, %v2211, %v2212
      %v2214 = vrot.slane %v2058, 5
      %v2215 = vrot.slane %v2214, 4
      %v2216 = vrot.slane %v2059, 5
      %v2217 = vsel %vm1013, %v2215, %v2216
      %v2218 = vrot.slane %v2216, 4
      %v2219 = vrot.slane %v2060, 5
      %v2220 = vsel %vm1013, %v2218, %v2219
      %2221 = vrot.lane.b32.xlu0 %v2112, 20
      %v2222 = vpop.permute.xlu0 %2221
      %2223 = vrot.lane.b32.xlu0 %v2115, 20
      %v2224 = vpop.permute.xlu0 %2223
      %2225 = vrot.lane.b32.xlu0 %v2119, 20
      %v2226 = vpop.permute.xlu0 %2225
      %2227 = vrot.lane.b32.xlu0 %v2122, 20
      %v2228 = vpop.permute.xlu0 %2227
      %2229 = vrot.lane.b32.xlu0 %v2126, 20
      %v2230 = vpop.permute.xlu0 %2229
      %2231 = vrot.lane.b32.xlu0 %v2129, 20
      %v2232 = vpop.permute.xlu0 %2231
      %2233 = vrot.lane.b32.xlu0 %v2133, 20
      %v2234 = vpop.permute.xlu0 %2233
      %2235 = vrot.lane.b32.xlu0 %v2136, 20
      %v2236 = vpop.permute.xlu0 %2235
      %2237 = vrot.lane.b32.xlu0 %v2140, 20
      %v2238 = vpop.permute.xlu0 %2237
      %2239 = vrot.lane.b32.xlu0 %v2143, 20
      %v2240 = vpop.permute.xlu0 %2239
      %2241 = vrot.lane.b32.xlu0 %v2147, 20
      %v2242 = vpop.permute.xlu0 %2241
      %2243 = vrot.lane.b32.xlu0 %v2150, 20
      %v2244 = vpop.permute.xlu0 %2243
      %2245 = vrot.lane.b32.xlu0 %v2154, 20
      %v2246 = vpop.permute.xlu0 %2245
      %2247 = vrot.lane.b32.xlu0 %v2157, 20
      %v2248 = vpop.permute.xlu0 %2247
      %2249 = vrot.lane.b32.xlu0 %v2161, 20
      %v2250 = vpop.permute.xlu0 %2249
      %2251 = vrot.lane.b32.xlu0 %v2164, 20
      %v2252 = vpop.permute.xlu0 %2251
      %2253 = vrot.lane.b32.xlu0 %v2168, 20
      %v2254 = vpop.permute.xlu0 %2253
      %2255 = vrot.lane.b32.xlu0 %v2171, 20
      %v2256 = vpop.permute.xlu0 %2255
      %2257 = vrot.lane.b32.xlu0 %v2175, 20
      %v2258 = vpop.permute.xlu0 %2257
      %2259 = vrot.lane.b32.xlu0 %v2178, 20
      %v2260 = vpop.permute.xlu0 %2259
      %2261 = vrot.lane.b32.xlu0 %v2182, 20
      %v2262 = vpop.permute.xlu0 %2261
      %2263 = vrot.lane.b32.xlu0 %v2185, 20
      %v2264 = vpop.permute.xlu0 %2263
      %2265 = vrot.lane.b32.xlu0 %v2189, 20
      %v2266 = vpop.permute.xlu0 %2265
      %2267 = vrot.lane.b32.xlu0 %v2192, 20
      %v2268 = vpop.permute.xlu0 %2267
      %2269 = vrot.lane.b32.xlu0 %v2196, 20
      %v2270 = vpop.permute.xlu0 %2269
      %2271 = vrot.lane.b32.xlu0 %v2199, 20
      %v2272 = vpop.permute.xlu0 %2271
      %2273 = vrot.lane.b32.xlu0 %v2203, 20
      %v2274 = vpop.permute.xlu0 %2273
      %2275 = vrot.lane.b32.xlu0 %v2206, 20
      %v2276 = vpop.permute.xlu0 %2275
      %2277 = vrot.lane.b32.xlu0 %v2210, 20
      %v2278 = vpop.permute.xlu0 %2277
      %2279 = vrot.lane.b32.xlu0 %v2213, 20
      %v2280 = vpop.permute.xlu0 %2279
      %2281 = vrot.lane.b32.xlu0 %v2217, 20
      %v2282 = vpop.permute.xlu0 %2281
      %2283 = vrot.lane.b32.xlu0 %v2220, 20
      %v2284 = vpop.permute.xlu0 %2283
      %vm2317 = vcmask 191648
      %2318 = vst.msk [vmem:[#allocation2] sm:$0xf] %vm2317, %v2222
      %2319 = vst.msk [vmem:[#allocation2 + $0x4] sm:$0xf] %vm2317, %v2224
      %2320 = vst.msk [vmem:[#allocation2 + $0x8] sm:$0xf] %vm2317, %v2226
      %2321 = vst.msk [vmem:[#allocation2 + $0xc] sm:$0xf] %vm2317, %v2228
      %2322 = vst.msk [vmem:[#allocation2 + $0x10] sm:$0xf] %vm2317, %v2230
      %2323 = vst.msk [vmem:[#allocation2 + $0x14] sm:$0xf] %vm2317, %v2232
      %2324 = vst.msk [vmem:[#allocation2 + $0x18] sm:$0xf] %vm2317, %v2234
      %2325 = vst.msk [vmem:[#allocation2 + $0x1c] sm:$0xf] %vm2317, %v2236
      %2326 = vst.msk [vmem:[#allocation2 + $0x20] sm:$0xf] %vm2317, %v2238
      %2327 = vst.msk [vmem:[#allocation2 + $0x24] sm:$0xf] %vm2317, %v2240
      %2328 = vst.msk [vmem:[#allocation2 + $0x28] sm:$0xf] %vm2317, %v2242
      %2329 = vst.msk [vmem:[#allocation2 + $0x2c] sm:$0xf] %vm2317, %v2244
      %2330 = vst.msk [vmem:[#allocation2 + $0x30] sm:$0xf] %vm2317, %v2246
      %2331 = vst.msk [vmem:[#allocation2 + $0x34] sm:$0xf] %vm2317, %v2248
      %2332 = vst.msk [vmem:[#allocation2 + $0x38] sm:$0xf] %vm2317, %v2250
      %2333 = vst.msk [vmem:[#allocation2 + $0x3c] sm:$0xf] %vm2317, %v2252
      %2334 = vst.msk [vmem:[#allocation2 + $0x40] sm:$0xf] %vm2317, %v2254
      %2335 = vst.msk [vmem:[#allocation2 + $0x44] sm:$0xf] %vm2317, %v2256
      %2336 = vst.msk [vmem:[#allocation2 + $0x48] sm:$0xf] %vm2317, %v2258
      %2337 = vst.msk [vmem:[#allocation2 + $0x4c] sm:$0xf] %vm2317, %v2260
      %2338 = vst.msk [vmem:[#allocation2 + $0x50] sm:$0xf] %vm2317, %v2262
      %2339 = vst.msk [vmem:[#allocation2 + $0x54] sm:$0xf] %vm2317, %v2264
      %2340 = vst.msk [vmem:[#allocation2 + $0x58] sm:$0xf] %vm2317, %v2266
      %2341 = vst.msk [vmem:[#allocation2 + $0x5c] sm:$0xf] %vm2317, %v2268
      %2342 = vst.msk [vmem:[#allocation2 + $0x60] sm:$0xf] %vm2317, %v2270
      %2343 = vst.msk [vmem:[#allocation2 + $0x64] sm:$0xf] %vm2317, %v2272
      %2344 = vst.msk [vmem:[#allocation2 + $0x68] sm:$0xf] %vm2317, %v2274
      %2345 = vst.msk [vmem:[#allocation2 + $0x6c] sm:$0xf] %vm2317, %v2276
      %2346 = vst.msk [vmem:[#allocation2 + $0x70] sm:$0xf] %vm2317, %v2278
      %2347 = vst.msk [vmem:[#allocation2 + $0x74] sm:$0xf] %vm2317, %v2280
      %2348 = vst.msk [vmem:[#allocation2 + $0x78] sm:$0xf] %vm2317, %v2282
      %2349 = vst.msk [vmem:[#allocation2 + $0x7c] sm:$0xf] %vm2317, %v2284
      %s2350 = sadd.s32 %s282, 2
      %s2351 = smul.u32 %s2350, 3
      %s2352 = smul.addr %s2351, 4
      %s2353 = scalar_lea.vmem %s257, %s2352
      %v2354 = vld [vmem:[%s2353] sm:$0xf]
      %v2355 = vld [vmem:[%s2353 + $0x4] sm:$0xf]
      %v2356 = vld [vmem:[%s2353 + $0xc] sm:$0xf]
      %v2357 = vld [vmem:[%s2353 + $0x10] sm:$0xf]
      %v2358 = vld [vmem:[%s2353 + $0x18] sm:$0xf]
      %v2359 = vld [vmem:[%s2353 + $0x1c] sm:$0xf]
      %v2360 = vld [vmem:[%s2353 + $0x24] sm:$0xf]
      %v2361 = vld [vmem:[%s2353 + $0x28] sm:$0xf]
      %v2362 = vld [vmem:[%s2353 + $0x30] sm:$0xf]
      %v2363 = vld [vmem:[%s2353 + $0x34] sm:$0xf]
      %v2364 = vld [vmem:[%s2353 + $0x3c] sm:$0xf]
      %v2365 = vld [vmem:[%s2353 + $0x40] sm:$0xf]
      %v2366 = vld [vmem:[%s2353 + $0x48] sm:$0xf]
      %v2367 = vld [vmem:[%s2353 + $0x4c] sm:$0xf]
      %v2368 = vld [vmem:[%s2353 + $0x54] sm:$0xf]
      %v2369 = vld [vmem:[%s2353 + $0x58] sm:$0xf]
      %v2370 = vld [vmem:[%s2353 + $0x60] sm:$0xf]
      %v2371 = vld [vmem:[%s2353 + $0x64] sm:$0xf]
      %v2372 = vld [vmem:[%s2353 + $0x6c] sm:$0xf]
      %v2373 = vld [vmem:[%s2353 + $0x70] sm:$0xf]
      %v2374 = vld [vmem:[%s2353 + $0x78] sm:$0xf]
      %v2375 = vld [vmem:[%s2353 + $0x7c] sm:$0xf]
      %v2376 = vld [vmem:[%s2353 + $0x84] sm:$0xf]
      %v2377 = vld [vmem:[%s2353 + $0x88] sm:$0xf]
      %v2378 = vld [vmem:[%s2353 + $0x90] sm:$0xf]
      %v2379 = vld [vmem:[%s2353 + $0x94] sm:$0xf]
      %v2380 = vld [vmem:[%s2353 + $0x9c] sm:$0xf]
      %v2381 = vld [vmem:[%s2353 + $0xa0] sm:$0xf]
      %v2382 = vld [vmem:[%s2353 + $0xa8] sm:$0xf]
      %v2383 = vld [vmem:[%s2353 + $0xac] sm:$0xf]
      %v2384 = vld [vmem:[%s2353 + $0xb4] sm:$0xf]
      %v2385 = vld [vmem:[%s2353 + $0xb8] sm:$0xf]
      %2418 = vrot.lane.b32.xlu0 %v2354, 24
      %v2419 = vpop.permute.xlu0 %2418
      %2420 = vrot.lane.b32.xlu0 %v2355, 24
      %v2421 = vpop.permute.xlu0 %2420
      %2422 = vrot.lane.b32.xlu0 %v2356, 24
      %v2423 = vpop.permute.xlu0 %2422
      %2424 = vrot.lane.b32.xlu0 %v2357, 24
      %v2425 = vpop.permute.xlu0 %2424
      %2426 = vrot.lane.b32.xlu0 %v2358, 24
      %v2427 = vpop.permute.xlu0 %2426
      %2428 = vrot.lane.b32.xlu0 %v2359, 24
      %v2429 = vpop.permute.xlu0 %2428
      %2430 = vrot.lane.b32.xlu0 %v2360, 24
      %v2431 = vpop.permute.xlu0 %2430
      %2432 = vrot.lane.b32.xlu0 %v2361, 24
      %v2433 = vpop.permute.xlu0 %2432
      %2434 = vrot.lane.b32.xlu0 %v2362, 24
      %v2435 = vpop.permute.xlu0 %2434
      %2436 = vrot.lane.b32.xlu0 %v2363, 24
      %v2437 = vpop.permute.xlu0 %2436
      %2438 = vrot.lane.b32.xlu0 %v2364, 24
      %v2439 = vpop.permute.xlu0 %2438
      %2440 = vrot.lane.b32.xlu0 %v2365, 24
      %v2441 = vpop.permute.xlu0 %2440
      %2442 = vrot.lane.b32.xlu0 %v2366, 24
      %v2443 = vpop.permute.xlu0 %2442
      %2444 = vrot.lane.b32.xlu0 %v2367, 24
      %v2445 = vpop.permute.xlu0 %2444
      %2446 = vrot.lane.b32.xlu0 %v2368, 24
      %v2447 = vpop.permute.xlu0 %2446
      %2448 = vrot.lane.b32.xlu0 %v2369, 24
      %v2449 = vpop.permute.xlu0 %2448
      %2450 = vrot.lane.b32.xlu0 %v2370, 24
      %v2451 = vpop.permute.xlu0 %2450
      %2452 = vrot.lane.b32.xlu0 %v2371, 24
      %v2453 = vpop.permute.xlu0 %2452
      %2454 = vrot.lane.b32.xlu0 %v2372, 24
      %v2455 = vpop.permute.xlu0 %2454
      %2456 = vrot.lane.b32.xlu0 %v2373, 24
      %v2457 = vpop.permute.xlu0 %2456
      %2458 = vrot.lane.b32.xlu0 %v2374, 24
      %v2459 = vpop.permute.xlu0 %2458
      %2460 = vrot.lane.b32.xlu0 %v2375, 24
      %v2461 = vpop.permute.xlu0 %2460
      %2462 = vrot.lane.b32.xlu0 %v2376, 24
      %v2463 = vpop.permute.xlu0 %2462
      %2464 = vrot.lane.b32.xlu0 %v2377, 24
      %v2465 = vpop.permute.xlu0 %2464
      %2466 = vrot.lane.b32.xlu0 %v2378, 24
      %v2467 = vpop.permute.xlu0 %2466
      %2468 = vrot.lane.b32.xlu0 %v2379, 24
      %v2469 = vpop.permute.xlu0 %2468
      %2470 = vrot.lane.b32.xlu0 %v2380, 24
      %v2471 = vpop.permute.xlu0 %2470
      %2472 = vrot.lane.b32.xlu0 %v2381, 24
      %v2473 = vpop.permute.xlu0 %2472
      %2474 = vrot.lane.b32.xlu0 %v2382, 24
      %v2475 = vpop.permute.xlu0 %2474
      %2476 = vrot.lane.b32.xlu0 %v2383, 24
      %v2477 = vpop.permute.xlu0 %2476
      %2478 = vrot.lane.b32.xlu0 %v2384, 24
      %v2479 = vpop.permute.xlu0 %2478
      %2480 = vrot.lane.b32.xlu0 %v2385, 24
      %v2481 = vpop.permute.xlu0 %2480
      %vm2514 = vcmask 224448
      %2515 = vst.msk [vmem:[#allocation2] sm:$0xf] %vm2514, %v2419
      %2516 = vst.msk [vmem:[#allocation2 + $0x4] sm:$0xf] %vm2514, %v2421
      %2517 = vst.msk [vmem:[#allocation2 + $0x8] sm:$0xf] %vm2514, %v2423
      %2518 = vst.msk [vmem:[#allocation2 + $0xc] sm:$0xf] %vm2514, %v2425
      %2519 = vst.msk [vmem:[#allocation2 + $0x10] sm:$0xf] %vm2514, %v2427
      %2520 = vst.msk [vmem:[#allocation2 + $0x14] sm:$0xf] %vm2514, %v2429
      %2521 = vst.msk [vmem:[#allocation2 + $0x18] sm:$0xf] %vm2514, %v2431
      %2522 = vst.msk [vmem:[#allocation2 + $0x1c] sm:$0xf] %vm2514, %v2433
      %2523 = vst.msk [vmem:[#allocation2 + $0x20] sm:$0xf] %vm2514, %v2435
      %2524 = vst.msk [vmem:[#allocation2 + $0x24] sm:$0xf] %vm2514, %v2437
      %2525 = vst.msk [vmem:[#allocation2 + $0x28] sm:$0xf] %vm2514, %v2439
      %2526 = vst.msk [vmem:[#allocation2 + $0x2c] sm:$0xf] %vm2514, %v2441
      %2527 = vst.msk [vmem:[#allocation2 + $0x30] sm:$0xf] %vm2514, %v2443
      %2528 = vst.msk [vmem:[#allocation2 + $0x34] sm:$0xf] %vm2514, %v2445
      %2529 = vst.msk [vmem:[#allocation2 + $0x38] sm:$0xf] %vm2514, %v2447
      %2530 = vst.msk [vmem:[#allocation2 + $0x3c] sm:$0xf] %vm2514, %v2449
      %2531 = vst.msk [vmem:[#allocation2 + $0x40] sm:$0xf] %vm2514, %v2451
      %2532 = vst.msk [vmem:[#allocation2 + $0x44] sm:$0xf] %vm2514, %v2453
      %2533 = vst.msk [vmem:[#allocation2 + $0x48] sm:$0xf] %vm2514, %v2455
      %2534 = vst.msk [vmem:[#allocation2 + $0x4c] sm:$0xf] %vm2514, %v2457
      %2535 = vst.msk [vmem:[#allocation2 + $0x50] sm:$0xf] %vm2514, %v2459
      %2536 = vst.msk [vmem:[#allocation2 + $0x54] sm:$0xf] %vm2514, %v2461
      %2537 = vst.msk [vmem:[#allocation2 + $0x58] sm:$0xf] %vm2514, %v2463
      %2538 = vst.msk [vmem:[#allocation2 + $0x5c] sm:$0xf] %vm2514, %v2465
      %2539 = vst.msk [vmem:[#allocation2 + $0x60] sm:$0xf] %vm2514, %v2467
      %2540 = vst.msk [vmem:[#allocation2 + $0x64] sm:$0xf] %vm2514, %v2469
      %2541 = vst.msk [vmem:[#allocation2 + $0x68] sm:$0xf] %vm2514, %v2471
      %2542 = vst.msk [vmem:[#allocation2 + $0x6c] sm:$0xf] %vm2514, %v2473
      %2543 = vst.msk [vmem:[#allocation2 + $0x70] sm:$0xf] %vm2514, %v2475
      %2544 = vst.msk [vmem:[#allocation2 + $0x74] sm:$0xf] %vm2514, %v2477
      %2545 = vst.msk [vmem:[#allocation2 + $0x78] sm:$0xf] %vm2514, %v2479
      %2546 = vst.msk [vmem:[#allocation2 + $0x7c] sm:$0xf] %vm2514, %v2481
      %v2547 = vld [vmem:[%s2353] sm:$0xf]
      %v2548 = vld [vmem:[%s2353 + $0x4] sm:$0xf]
      %v2549 = vld [vmem:[%s2353 + $0x8] sm:$0x1]
      %v2550 = vld [vmem:[%s2353 + $0xc] sm:$0xf]
      %v2551 = vld [vmem:[%s2353 + $0x10] sm:$0xf]
      %v2552 = vld [vmem:[%s2353 + $0x14] sm:$0x1]
      %v2553 = vld [vmem:[%s2353 + $0x18] sm:$0xf]
      %v2554 = vld [vmem:[%s2353 + $0x1c] sm:$0xf]
      %v2555 = vld [vmem:[%s2353 + $0x20] sm:$0x1]
      %v2556 = vld [vmem:[%s2353 + $0x24] sm:$0xf]
      %v2557 = vld [vmem:[%s2353 + $0x28] sm:$0xf]
      %v2558 = vld [vmem:[%s2353 + $0x2c] sm:$0x1]
      %v2559 = vld [vmem:[%s2353 + $0x30] sm:$0xf]
      %v2560 = vld [vmem:[%s2353 + $0x34] sm:$0xf]
      %v2561 = vld [vmem:[%s2353 + $0x38] sm:$0x1]
      %v2562 = vld [vmem:[%s2353 + $0x3c] sm:$0xf]
      %v2563 = vld [vmem:[%s2353 + $0x40] sm:$0xf]
      %v2564 = vld [vmem:[%s2353 + $0x44] sm:$0x1]
      %v2565 = vld [vmem:[%s2353 + $0x48] sm:$0xf]
      %v2566 = vld [vmem:[%s2353 + $0x4c] sm:$0xf]
      %v2567 = vld [vmem:[%s2353 + $0x50] sm:$0x1]
      %v2568 = vld [vmem:[%s2353 + $0x54] sm:$0xf]
      %v2569 = vld [vmem:[%s2353 + $0x58] sm:$0xf]
      %v2570 = vld [vmem:[%s2353 + $0x5c] sm:$0x1]
      %v2571 = vld [vmem:[%s2353 + $0x60] sm:$0xf]
      %v2572 = vld [vmem:[%s2353 + $0x64] sm:$0xf]
      %v2573 = vld [vmem:[%s2353 + $0x68] sm:$0x1]
      %v2574 = vld [vmem:[%s2353 + $0x6c] sm:$0xf]
      %v2575 = vld [vmem:[%s2353 + $0x70] sm:$0xf]
      %v2576 = vld [vmem:[%s2353 + $0x74] sm:$0x1]
      %v2577 = vld [vmem:[%s2353 + $0x78] sm:$0xf]
      %v2578 = vld [vmem:[%s2353 + $0x7c] sm:$0xf]
      %v2579 = vld [vmem:[%s2353 + $0x80] sm:$0x1]
      %v2580 = vld [vmem:[%s2353 + $0x84] sm:$0xf]
      %v2581 = vld [vmem:[%s2353 + $0x88] sm:$0xf]
      %v2582 = vld [vmem:[%s2353 + $0x8c] sm:$0x1]
      %v2583 = vld [vmem:[%s2353 + $0x90] sm:$0xf]
      %v2584 = vld [vmem:[%s2353 + $0x94] sm:$0xf]
      %v2585 = vld [vmem:[%s2353 + $0x98] sm:$0x1]
      %v2586 = vld [vmem:[%s2353 + $0x9c] sm:$0xf]
      %v2587 = vld [vmem:[%s2353 + $0xa0] sm:$0xf]
      %v2588 = vld [vmem:[%s2353 + $0xa4] sm:$0x1]
      %v2589 = vld [vmem:[%s2353 + $0xa8] sm:$0xf]
      %v2590 = vld [vmem:[%s2353 + $0xac] sm:$0xf]
      %v2591 = vld [vmem:[%s2353 + $0xb0] sm:$0x1]
      %v2592 = vld [vmem:[%s2353 + $0xb4] sm:$0xf]
      %v2593 = vld [vmem:[%s2353 + $0xb8] sm:$0xf]
      %v2594 = vld [vmem:[%s2353 + $0xbc] sm:$0x1]
      %v2596 = vshrl.u32 %v2547, 16
      %v2598 = vrot.slane %v2596, 4
      %v2599 = vshll.u32 %v2547, 16
      %v2601 = vrot.slane %v2599, 5
      %v2602 = vor.u32 %v2598, %v2601
      %v2603 = vrot.slane %v2602, 4
      %v2605 = vshll.u32 %v2548, 16
      %v2607 = vrot.slane %v2605, 5
      %v2608 = vsel %vm401, %v2603, %v2607
      %v2609 = vshrl.u32 %v2548, 16
      %v2611 = vrot.slane %v2609, 4
      %v2612 = vor.u32 %v2611, %v2607
      %v2613 = vrot.slane %v2612, 4
      %v2615 = vshll.u32 %v2549, 16
      %v2617 = vrot.slane %v2615, 5
      %v2618 = vsel %vm401, %v2613, %v2617
      %v2620 = vshrl.u32 %v2550, 16
      %v2622 = vrot.slane %v2620, 4
      %v2623 = vshll.u32 %v2550, 16
      %v2625 = vrot.slane %v2623, 5
      %v2626 = vor.u32 %v2622, %v2625
      %v2627 = vrot.slane %v2626, 4
      %v2629 = vshll.u32 %v2551, 16
      %v2631 = vrot.slane %v2629, 5
      %v2632 = vsel %vm401, %v2627, %v2631
      %v2633 = vshrl.u32 %v2551, 16
      %v2635 = vrot.slane %v2633, 4
      %v2636 = vor.u32 %v2635, %v2631
      %v2637 = vrot.slane %v2636, 4
      %v2639 = vshll.u32 %v2552, 16
      %v2641 = vrot.slane %v2639, 5
      %v2642 = vsel %vm401, %v2637, %v2641
      %v2644 = vshrl.u32 %v2553, 16
      %v2646 = vrot.slane %v2644, 4
      %v2647 = vshll.u32 %v2553, 16
      %v2649 = vrot.slane %v2647, 5
      %v2650 = vor.u32 %v2646, %v2649
      %v2651 = vrot.slane %v2650, 4
      %v2653 = vshll.u32 %v2554, 16
      %v2655 = vrot.slane %v2653, 5
      %v2656 = vsel %vm401, %v2651, %v2655
      %v2657 = vshrl.u32 %v2554, 16
      %v2659 = vrot.slane %v2657, 4
      %v2660 = vor.u32 %v2659, %v2655
      %v2661 = vrot.slane %v2660, 4
      %v2663 = vshll.u32 %v2555, 16
      %v2665 = vrot.slane %v2663, 5
      %v2666 = vsel %vm401, %v2661, %v2665
      %v2668 = vshrl.u32 %v2556, 16
      %v2670 = vrot.slane %v2668, 4
      %v2671 = vshll.u32 %v2556, 16
      %v2673 = vrot.slane %v2671, 5
      %v2674 = vor.u32 %v2670, %v2673
      %v2675 = vrot.slane %v2674, 4
      %v2677 = vshll.u32 %v2557, 16
      %v2679 = vrot.slane %v2677, 5
      %v2680 = vsel %vm401, %v2675, %v2679
      %v2681 = vshrl.u32 %v2557, 16
      %v2683 = vrot.slane %v2681, 4
      %v2684 = vor.u32 %v2683, %v2679
      %v2685 = vrot.slane %v2684, 4
      %v2687 = vshll.u32 %v2558, 16
      %v2689 = vrot.slane %v2687, 5
      %v2690 = vsel %vm401, %v2685, %v2689
      %v2692 = vshrl.u32 %v2559, 16
      %v2694 = vrot.slane %v2692, 4
      %v2695 = vshll.u32 %v2559, 16
      %v2697 = vrot.slane %v2695, 5
      %v2698 = vor.u32 %v2694, %v2697
      %v2699 = vrot.slane %v2698, 4
      %v2701 = vshll.u32 %v2560, 16
      %v2703 = vrot.slane %v2701, 5
      %v2704 = vsel %vm401, %v2699, %v2703
      %v2705 = vshrl.u32 %v2560, 16
      %v2707 = vrot.slane %v2705, 4
      %v2708 = vor.u32 %v2707, %v2703
      %v2709 = vrot.slane %v2708, 4
      %v2711 = vshll.u32 %v2561, 16
      %v2713 = vrot.slane %v2711, 5
      %v2714 = vsel %vm401, %v2709, %v2713
      %v2716 = vshrl.u32 %v2562, 16
      %v2718 = vrot.slane %v2716, 4
      %v2719 = vshll.u32 %v2562, 16
      %v2721 = vrot.slane %v2719, 5
      %v2722 = vor.u32 %v2718, %v2721
      %v2723 = vrot.slane %v2722, 4
      %v2725 = vshll.u32 %v2563, 16
      %v2727 = vrot.slane %v2725, 5
      %v2728 = vsel %vm401, %v2723, %v2727
      %v2729 = vshrl.u32 %v2563, 16
      %v2731 = vrot.slane %v2729, 4
      %v2732 = vor.u32 %v2731, %v2727
      %v2733 = vrot.slane %v2732, 4
      %v2735 = vshll.u32 %v2564, 16
      %v2737 = vrot.slane %v2735, 5
      %v2738 = vsel %vm401, %v2733, %v2737
      %v2740 = vshrl.u32 %v2565, 16
      %v2742 = vrot.slane %v2740, 4
      %v2743 = vshll.u32 %v2565, 16
      %v2745 = vrot.slane %v2743, 5
      %v2746 = vor.u32 %v2742, %v2745
      %v2747 = vrot.slane %v2746, 4
      %v2749 = vshll.u32 %v2566, 16
      %v2751 = vrot.slane %v2749, 5
      %v2752 = vsel %vm401, %v2747, %v2751
      %v2753 = vshrl.u32 %v2566, 16
      %v2755 = vrot.slane %v2753, 4
      %v2756 = vor.u32 %v2755, %v2751
      %v2757 = vrot.slane %v2756, 4
      %v2759 = vshll.u32 %v2567, 16
      %v2761 = vrot.slane %v2759, 5
      %v2762 = vsel %vm401, %v2757, %v2761
      %v2764 = vshrl.u32 %v2568, 16
      %v2766 = vrot.slane %v2764, 4
      %v2767 = vshll.u32 %v2568, 16
      %v2769 = vrot.slane %v2767, 5
      %v2770 = vor.u32 %v2766, %v2769
      %v2771 = vrot.slane %v2770, 4
      %v2773 = vshll.u32 %v2569, 16
      %v2775 = vrot.slane %v2773, 5
      %v2776 = vsel %vm401, %v2771, %v2775
      %v2777 = vshrl.u32 %v2569, 16
      %v2779 = vrot.slane %v2777, 4
      %v2780 = vor.u32 %v2779, %v2775
      %v2781 = vrot.slane %v2780, 4
      %v2783 = vshll.u32 %v2570, 16
      %v2785 = vrot.slane %v2783, 5
      %v2786 = vsel %vm401, %v2781, %v2785
      %v2788 = vshrl.u32 %v2571, 16
      %v2790 = vrot.slane %v2788, 4
      %v2791 = vshll.u32 %v2571, 16
      %v2793 = vrot.slane %v2791, 5
      %v2794 = vor.u32 %v2790, %v2793
      %v2795 = vrot.slane %v2794, 4
      %v2797 = vshll.u32 %v2572, 16
      %v2799 = vrot.slane %v2797, 5
      %v2800 = vsel %vm401, %v2795, %v2799
      %v2801 = vshrl.u32 %v2572, 16
      %v2803 = vrot.slane %v2801, 4
      %v2804 = vor.u32 %v2803, %v2799
      %v2805 = vrot.slane %v2804, 4
      %v2807 = vshll.u32 %v2573, 16
      %v2809 = vrot.slane %v2807, 5
      %v2810 = vsel %vm401, %v2805, %v2809
      %v2812 = vshrl.u32 %v2574, 16
      %v2814 = vrot.slane %v2812, 4
      %v2815 = vshll.u32 %v2574, 16
      %v2817 = vrot.slane %v2815, 5
      %v2818 = vor.u32 %v2814, %v2817
      %v2819 = vrot.slane %v2818, 4
      %v2821 = vshll.u32 %v2575, 16
      %v2823 = vrot.slane %v2821, 5
      %v2824 = vsel %vm401, %v2819, %v2823
      %v2825 = vshrl.u32 %v2575, 16
      %v2827 = vrot.slane %v2825, 4
      %v2828 = vor.u32 %v2827, %v2823
      %v2829 = vrot.slane %v2828, 4
      %v2831 = vshll.u32 %v2576, 16
      %v2833 = vrot.slane %v2831, 5
      %v2834 = vsel %vm401, %v2829, %v2833
      %v2836 = vshrl.u32 %v2577, 16
      %v2838 = vrot.slane %v2836, 4
      %v2839 = vshll.u32 %v2577, 16
      %v2841 = vrot.slane %v2839, 5
      %v2842 = vor.u32 %v2838, %v2841
      %v2843 = vrot.slane %v2842, 4
      %v2845 = vshll.u32 %v2578, 16
      %v2847 = vrot.slane %v2845, 5
      %v2848 = vsel %vm401, %v2843, %v2847
      %v2849 = vshrl.u32 %v2578, 16
      %v2851 = vrot.slane %v2849, 4
      %v2852 = vor.u32 %v2851, %v2847
      %v2853 = vrot.slane %v2852, 4
      %v2855 = vshll.u32 %v2579, 16
      %v2857 = vrot.slane %v2855, 5
      %v2858 = vsel %vm401, %v2853, %v2857
      %v2860 = vshrl.u32 %v2580, 16
      %v2862 = vrot.slane %v2860, 4
      %v2863 = vshll.u32 %v2580, 16
      %v2865 = vrot.slane %v2863, 5
      %v2866 = vor.u32 %v2862, %v2865
      %v2867 = vrot.slane %v2866, 4
      %v2869 = vshll.u32 %v2581, 16
      %v2871 = vrot.slane %v2869, 5
      %v2872 = vsel %vm401, %v2867, %v2871
      %v2873 = vshrl.u32 %v2581, 16
      %v2875 = vrot.slane %v2873, 4
      %v2876 = vor.u32 %v2875, %v2871
      %v2877 = vrot.slane %v2876, 4
      %v2879 = vshll.u32 %v2582, 16
      %v2881 = vrot.slane %v2879, 5
      %v2882 = vsel %vm401, %v2877, %v2881
      %v2884 = vshrl.u32 %v2583, 16
      %v2886 = vrot.slane %v2884, 4
      %v2887 = vshll.u32 %v2583, 16
      %v2889 = vrot.slane %v2887, 5
      %v2890 = vor.u32 %v2886, %v2889
      %v2891 = vrot.slane %v2890, 4
      %v2893 = vshll.u32 %v2584, 16
      %v2895 = vrot.slane %v2893, 5
      %v2896 = vsel %vm401, %v2891, %v2895
      %v2897 = vshrl.u32 %v2584, 16
      %v2899 = vrot.slane %v2897, 4
      %v2900 = vor.u32 %v2899, %v2895
      %v2901 = vrot.slane %v2900, 4
      %v2903 = vshll.u32 %v2585, 16
      %v2905 = vrot.slane %v2903, 5
      %v2906 = vsel %vm401, %v2901, %v2905
      %v2908 = vshrl.u32 %v2586, 16
      %v2910 = vrot.slane %v2908, 4
      %v2911 = vshll.u32 %v2586, 16
      %v2913 = vrot.slane %v2911, 5
      %v2914 = vor.u32 %v2910, %v2913
      %v2915 = vrot.slane %v2914, 4
      %v2917 = vshll.u32 %v2587, 16
      %v2919 = vrot.slane %v2917, 5
      %v2920 = vsel %vm401, %v2915, %v2919
      %v2921 = vshrl.u32 %v2587, 16
      %v2923 = vrot.slane %v2921, 4
      %v2924 = vor.u32 %v2923, %v2919
      %v2925 = vrot.slane %v2924, 4
      %v2927 = vshll.u32 %v2588, 16
      %v2929 = vrot.slane %v2927, 5
      %v2930 = vsel %vm401, %v2925, %v2929
      %v2932 = vshrl.u32 %v2589, 16
      %v2934 = vrot.slane %v2932, 4
      %v2935 = vshll.u32 %v2589, 16
      %v2937 = vrot.slane %v2935, 5
      %v2938 = vor.u32 %v2934, %v2937
      %v2939 = vrot.slane %v2938, 4
      %v2941 = vshll.u32 %v2590, 16
      %v2943 = vrot.slane %v2941, 5
      %v2944 = vsel %vm401, %v2939, %v2943
      %v2945 = vshrl.u32 %v2590, 16
      %v2947 = vrot.slane %v2945, 4
      %v2948 = vor.u32 %v2947, %v2943
      %v2949 = vrot.slane %v2948, 4
      %v2951 = vshll.u32 %v2591, 16
      %v2953 = vrot.slane %v2951, 5
      %v2954 = vsel %vm401, %v2949, %v2953
      %v2956 = vshrl.u32 %v2592, 16
      %v2958 = vrot.slane %v2956, 4
      %v2959 = vshll.u32 %v2592, 16
      %v2961 = vrot.slane %v2959, 5
      %v2962 = vor.u32 %v2958, %v2961
      %v2963 = vrot.slane %v2962, 4
      %v2965 = vshll.u32 %v2593, 16
      %v2967 = vrot.slane %v2965, 5
      %v2968 = vsel %vm401, %v2963, %v2967
      %v2969 = vshrl.u32 %v2593, 16
      %v2971 = vrot.slane %v2969, 4
      %v2972 = vor.u32 %v2971, %v2967
      %v2973 = vrot.slane %v2972, 4
      %v2975 = vshll.u32 %v2594, 16
      %v2977 = vrot.slane %v2975, 5
      %v2978 = vsel %vm401, %v2973, %v2977
      %2979 = vrot.lane.b32.xlu0 %v2608, 28
      %v2980 = vpop.permute.xlu0 %2979
      %2981 = vrot.lane.b32.xlu0 %v2618, 28
      %v2982 = vpop.permute.xlu0 %2981
      %2983 = vrot.lane.b32.xlu0 %v2632, 28
      %v2984 = vpop.permute.xlu0 %2983
      %2985 = vrot.lane.b32.xlu0 %v2642, 28
      %v2986 = vpop.permute.xlu0 %2985
      %2987 = vrot.lane.b32.xlu0 %v2656, 28
      %v2988 = vpop.permute.xlu0 %2987
      %2989 = vrot.lane.b32.xlu0 %v2666, 28
      %v2990 = vpop.permute.xlu0 %2989
      %2991 = vrot.lane.b32.xlu0 %v2680, 28
      %v2992 = vpop.permute.xlu0 %2991
      %2993 = vrot.lane.b32.xlu0 %v2690, 28
      %v2994 = vpop.permute.xlu0 %2993
      %2995 = vrot.lane.b32.xlu0 %v2704, 28
      %v2996 = vpop.permute.xlu0 %2995
      %2997 = vrot.lane.b32.xlu0 %v2714, 28
      %v2998 = vpop.permute.xlu0 %2997
      %2999 = vrot.lane.b32.xlu0 %v2728, 28
      %v3000 = vpop.permute.xlu0 %2999
      %3001 = vrot.lane.b32.xlu0 %v2738, 28
      %v3002 = vpop.permute.xlu0 %3001
      %3003 = vrot.lane.b32.xlu0 %v2752, 28
      %v3004 = vpop.permute.xlu0 %3003
      %3005 = vrot.lane.b32.xlu0 %v2762, 28
      %v3006 = vpop.permute.xlu0 %3005
      %3007 = vrot.lane.b32.xlu0 %v2776, 28
      %v3008 = vpop.permute.xlu0 %3007
      %3009 = vrot.lane.b32.xlu0 %v2786, 28
      %v3010 = vpop.permute.xlu0 %3009
      %3011 = vrot.lane.b32.xlu0 %v2800, 28
      %v3012 = vpop.permute.xlu0 %3011
      %3013 = vrot.lane.b32.xlu0 %v2810, 28
      %v3014 = vpop.permute.xlu0 %3013
      %3015 = vrot.lane.b32.xlu0 %v2824, 28
      %v3016 = vpop.permute.xlu0 %3015
      %3017 = vrot.lane.b32.xlu0 %v2834, 28
      %v3018 = vpop.permute.xlu0 %3017
      %3019 = vrot.lane.b32.xlu0 %v2848, 28
      %v3020 = vpop.permute.xlu0 %3019
      %3021 = vrot.lane.b32.xlu0 %v2858, 28
      %v3022 = vpop.permute.xlu0 %3021
      %3023 = vrot.lane.b32.xlu0 %v2872, 28
      %v3024 = vpop.permute.xlu0 %3023
      %3025 = vrot.lane.b32.xlu0 %v2882, 28
      %v3026 = vpop.permute.xlu0 %3025
      %3027 = vrot.lane.b32.xlu0 %v2896, 28
      %v3028 = vpop.permute.xlu0 %3027
      %3029 = vrot.lane.b32.xlu0 %v2906, 28
      %v3030 = vpop.permute.xlu0 %3029
      %3031 = vrot.lane.b32.xlu0 %v2920, 28
      %v3032 = vpop.permute.xlu0 %3031
      %3033 = vrot.lane.b32.xlu0 %v2930, 28
      %v3034 = vpop.permute.xlu0 %3033
      %3035 = vrot.lane.b32.xlu0 %v2944, 28
      %v3036 = vpop.permute.xlu0 %3035
      %3037 = vrot.lane.b32.xlu0 %v2954, 28
      %v3038 = vpop.permute.xlu0 %3037
      %3039 = vrot.lane.b32.xlu0 %v2968, 28
      %v3040 = vpop.permute.xlu0 %3039
      %3041 = vrot.lane.b32.xlu0 %v2978, 28
      %v3042 = vpop.permute.xlu0 %3041
      %vm3075 = vcmask 257248
      %3076 = vst.msk [vmem:[#allocation2] sm:$0xf] %vm3075, %v2980
      %3077 = vst.msk [vmem:[#allocation2 + $0x4] sm:$0xf] %vm3075, %v2982
      %3078 = vst.msk [vmem:[#allocation2 + $0x8] sm:$0xf] %vm3075, %v2984
      %3079 = vst.msk [vmem:[#allocation2 + $0xc] sm:$0xf] %vm3075, %v2986
      %3080 = vst.msk [vmem:[#allocation2 + $0x10] sm:$0xf] %vm3075, %v2988
      %3081 = vst.msk [vmem:[#allocation2 + $0x14] sm:$0xf] %vm3075, %v2990
      %3082 = vst.msk [vmem:[#allocation2 + $0x18] sm:$0xf] %vm3075, %v2992
      %3083 = vst.msk [vmem:[#allocation2 + $0x1c] sm:$0xf] %vm3075, %v2994
      %3084 = vst.msk [vmem:[#allocation2 + $0x20] sm:$0xf] %vm3075, %v2996
      %3085 = vst.msk [vmem:[#allocation2 + $0x24] sm:$0xf] %vm3075, %v2998
      %3086 = vst.msk [vmem:[#allocation2 + $0x28] sm:$0xf] %vm3075, %v3000
      %3087 = vst.msk [vmem:[#allocation2 + $0x2c] sm:$0xf] %vm3075, %v3002
      %3088 = vst.msk [vmem:[#allocation2 + $0x30] sm:$0xf] %vm3075, %v3004
      %3089 = vst.msk [vmem:[#allocation2 + $0x34] sm:$0xf] %vm3075, %v3006
      %3090 = vst.msk [vmem:[#allocation2 + $0x38] sm:$0xf] %vm3075, %v3008
      %3091 = vst.msk [vmem:[#allocation2 + $0x3c] sm:$0xf] %vm3075, %v3010
      %3092 = vst.msk [vmem:[#allocation2 + $0x40] sm:$0xf] %vm3075, %v3012
      %3093 = vst.msk [vmem:[#allocation2 + $0x44] sm:$0xf] %vm3075, %v3014
      %3094 = vst.msk [vmem:[#allocation2 + $0x48] sm:$0xf] %vm3075, %v3016
      %3095 = vst.msk [vmem:[#allocation2 + $0x4c] sm:$0xf] %vm3075, %v3018
      %3096 = vst.msk [vmem:[#allocation2 + $0x50] sm:$0xf] %vm3075, %v3020
      %3097 = vst.msk [vmem:[#allocation2 + $0x54] sm:$0xf] %vm3075, %v3022
      %3098 = vst.msk [vmem:[#allocation2 + $0x58] sm:$0xf] %vm3075, %v3024
      %3099 = vst.msk [vmem:[#allocation2 + $0x5c] sm:$0xf] %vm3075, %v3026
      %3100 = vst.msk [vmem:[#allocation2 + $0x60] sm:$0xf] %vm3075, %v3028
      %3101 = vst.msk [vmem:[#allocation2 + $0x64] sm:$0xf] %vm3075, %v3030
      %3102 = vst.msk [vmem:[#allocation2 + $0x68] sm:$0xf] %vm3075, %v3032
      %3103 = vst.msk [vmem:[#allocation2 + $0x6c] sm:$0xf] %vm3075, %v3034
      %3104 = vst.msk [vmem:[#allocation2 + $0x70] sm:$0xf] %vm3075, %v3036
      %3105 = vst.msk [vmem:[#allocation2 + $0x74] sm:$0xf] %vm3075, %v3038
      %3106 = vst.msk [vmem:[#allocation2 + $0x78] sm:$0xf] %vm3075, %v3040
      %3107 = vst.msk [vmem:[#allocation2 + $0x7c] sm:$0xf] %vm3075, %v3042
      %v3108 = vld [vmem:[%s2353] sm:$0xe]
      %v3109 = vld [vmem:[%s2353 + $0x4] sm:$0xf]
      %v3110 = vld [vmem:[%s2353 + $0x8] sm:$0x1]
      %v3111 = vld [vmem:[%s2353 + $0xc] sm:$0xe]
      %v3112 = vld [vmem:[%s2353 + $0x10] sm:$0xf]
      %v3113 = vld [vmem:[%s2353 + $0x14] sm:$0x1]
      %v3114 = vld [vmem:[%s2353 + $0x18] sm:$0xe]
      %v3115 = vld [vmem:[%s2353 + $0x1c] sm:$0xf]
      %v3116 = vld [vmem:[%s2353 + $0x20] sm:$0x1]
      %v3117 = vld [vmem:[%s2353 + $0x24] sm:$0xe]
      %v3118 = vld [vmem:[%s2353 + $0x28] sm:$0xf]
      %v3119 = vld [vmem:[%s2353 + $0x2c] sm:$0x1]
      %v3120 = vld [vmem:[%s2353 + $0x30] sm:$0xe]
      %v3121 = vld [vmem:[%s2353 + $0x34] sm:$0xf]
      %v3122 = vld [vmem:[%s2353 + $0x38] sm:$0x1]
      %v3123 = vld [vmem:[%s2353 + $0x3c] sm:$0xe]
      %v3124 = vld [vmem:[%s2353 + $0x40] sm:$0xf]
      %v3125 = vld [vmem:[%s2353 + $0x44] sm:$0x1]
      %v3126 = vld [vmem:[%s2353 + $0x48] sm:$0xe]
      %v3127 = vld [vmem:[%s2353 + $0x4c] sm:$0xf]
      %v3128 = vld [vmem:[%s2353 + $0x50] sm:$0x1]
      %v3129 = vld [vmem:[%s2353 + $0x54] sm:$0xe]
      %v3130 = vld [vmem:[%s2353 + $0x58] sm:$0xf]
      %v3131 = vld [vmem:[%s2353 + $0x5c] sm:$0x1]
      %v3132 = vld [vmem:[%s2353 + $0x60] sm:$0xe]
      %v3133 = vld [vmem:[%s2353 + $0x64] sm:$0xf]
      %v3134 = vld [vmem:[%s2353 + $0x68] sm:$0x1]
      %v3135 = vld [vmem:[%s2353 + $0x6c] sm:$0xe]
      %v3136 = vld [vmem:[%s2353 + $0x70] sm:$0xf]
      %v3137 = vld [vmem:[%s2353 + $0x74] sm:$0x1]
      %v3138 = vld [vmem:[%s2353 + $0x78] sm:$0xe]
      %v3139 = vld [vmem:[%s2353 + $0x7c] sm:$0xf]
      %v3140 = vld [vmem:[%s2353 + $0x80] sm:$0x1]
      %v3141 = vld [vmem:[%s2353 + $0x84] sm:$0xe]
      %v3142 = vld [vmem:[%s2353 + $0x88] sm:$0xf]
      %v3143 = vld [vmem:[%s2353 + $0x8c] sm:$0x1]
      %v3144 = vld [vmem:[%s2353 + $0x90] sm:$0xe]
      %v3145 = vld [vmem:[%s2353 + $0x94] sm:$0xf]
      %v3146 = vld [vmem:[%s2353 + $0x98] sm:$0x1]
      %v3147 = vld [vmem:[%s2353 + $0x9c] sm:$0xe]
      %v3148 = vld [vmem:[%s2353 + $0xa0] sm:$0xf]
      %v3149 = vld [vmem:[%s2353 + $0xa4] sm:$0x1]
      %v3150 = vld [vmem:[%s2353 + $0xa8] sm:$0xe]
      %v3151 = vld [vmem:[%s2353 + $0xac] sm:$0xf]
      %v3152 = vld [vmem:[%s2353 + $0xb0] sm:$0x1]
      %v3153 = vld [vmem:[%s2353 + $0xb4] sm:$0xe]
      %v3154 = vld [vmem:[%s2353 + $0xb8] sm:$0xf]
      %v3155 = vld [vmem:[%s2353 + $0xbc] sm:$0x1]
      %v3204 = vrot.slane %v3108, 5
      %v3205 = vrot.slane %v3204, 4
      %v3206 = vrot.slane %v3109, 5
      %v3207 = vsel %vm1013, %v3205, %v3206
      %v3208 = vrot.slane %v3206, 4
      %v3209 = vrot.slane %v3110, 5
      %v3210 = vsel %vm1013, %v3208, %v3209
      %v3211 = vrot.slane %v3111, 5
      %v3212 = vrot.slane %v3211, 4
      %v3213 = vrot.slane %v3112, 5
      %v3214 = vsel %vm1013, %v3212, %v3213
      %v3215 = vrot.slane %v3213, 4
      %v3216 = vrot.slane %v3113, 5
      %v3217 = vsel %vm1013, %v3215, %v3216
      %v3218 = vrot.slane %v3114, 5
      %v3219 = vrot.slane %v3218, 4
      %v3220 = vrot.slane %v3115, 5
      %v3221 = vsel %vm1013, %v3219, %v3220
      %v3222 = vrot.slane %v3220, 4
      %v3223 = vrot.slane %v3116, 5
      %v3224 = vsel %vm1013, %v3222, %v3223
      %v3225 = vrot.slane %v3117, 5
      %v3226 = vrot.slane %v3225, 4
      %v3227 = vrot.slane %v3118, 5
      %v3228 = vsel %vm1013, %v3226, %v3227
      %v3229 = vrot.slane %v3227, 4
      %v3230 = vrot.slane %v3119, 5
      %v3231 = vsel %vm1013, %v3229, %v3230
      %v3232 = vrot.slane %v3120, 5
      %v3233 = vrot.slane %v3232, 4
      %v3234 = vrot.slane %v3121, 5
      %v3235 = vsel %vm1013, %v3233, %v3234
      %v3236 = vrot.slane %v3234, 4
      %v3237 = vrot.slane %v3122, 5
      %v3238 = vsel %vm1013, %v3236, %v3237
      %v3239 = vrot.slane %v3123, 5
      %v3240 = vrot.slane %v3239, 4
      %v3241 = vrot.slane %v3124, 5
      %v3242 = vsel %vm1013, %v3240, %v3241
      %v3243 = vrot.slane %v3241, 4
      %v3244 = vrot.slane %v3125, 5
      %v3245 = vsel %vm1013, %v3243, %v3244
      %v3246 = vrot.slane %v3126, 5
      %v3247 = vrot.slane %v3246, 4
      %v3248 = vrot.slane %v3127, 5
      %v3249 = vsel %vm1013, %v3247, %v3248
      %v3250 = vrot.slane %v3248, 4
      %v3251 = vrot.slane %v3128, 5
      %v3252 = vsel %vm1013, %v3250, %v3251
      %v3253 = vrot.slane %v3129, 5
      %v3254 = vrot.slane %v3253, 4
      %v3255 = vrot.slane %v3130, 5
      %v3256 = vsel %vm1013, %v3254, %v3255
      %v3257 = vrot.slane %v3255, 4
      %v3258 = vrot.slane %v3131, 5
      %v3259 = vsel %vm1013, %v3257, %v3258
      %v3260 = vrot.slane %v3132, 5
      %v3261 = vrot.slane %v3260, 4
      %v3262 = vrot.slane %v3133, 5
      %v3263 = vsel %vm1013, %v3261, %v3262
      %v3264 = vrot.slane %v3262, 4
      %v3265 = vrot.slane %v3134, 5
      %v3266 = vsel %vm1013, %v3264, %v3265
      %v3267 = vrot.slane %v3135, 5
      %v3268 = vrot.slane %v3267, 4
      %v3269 = vrot.slane %v3136, 5
      %v3270 = vsel %vm1013, %v3268, %v3269
      %v3271 = vrot.slane %v3269, 4
      %v3272 = vrot.slane %v3137, 5
      %v3273 = vsel %vm1013, %v3271, %v3272
      %v3274 = vrot.slane %v3138, 5
      %v3275 = vrot.slane %v3274, 4
      %v3276 = vrot.slane %v3139, 5
      %v3277 = vsel %vm1013, %v3275, %v3276
      %v3278 = vrot.slane %v3276, 4
      %v3279 = vrot.slane %v3140, 5
      %v3280 = vsel %vm1013, %v3278, %v3279
      %v3281 = vrot.slane %v3141, 5
      %v3282 = vrot.slane %v3281, 4
      %v3283 = vrot.slane %v3142, 5
      %v3284 = vsel %vm1013, %v3282, %v3283
      %v3285 = vrot.slane %v3283, 4
      %v3286 = vrot.slane %v3143, 5
      %v3287 = vsel %vm1013, %v3285, %v3286
      %v3288 = vrot.slane %v3144, 5
      %v3289 = vrot.slane %v3288, 4
      %v3290 = vrot.slane %v3145, 5
      %v3291 = vsel %vm1013, %v3289, %v3290
      %v3292 = vrot.slane %v3290, 4
      %v3293 = vrot.slane %v3146, 5
      %v3294 = vsel %vm1013, %v3292, %v3293
      %v3295 = vrot.slane %v3147, 5
      %v3296 = vrot.slane %v3295, 4
      %v3297 = vrot.slane %v3148, 5
      %v3298 = vsel %vm1013, %v3296, %v3297
      %v3299 = vrot.slane %v3297, 4
      %v3300 = vrot.slane %v3149, 5
      %v3301 = vsel %vm1013, %v3299, %v3300
      %v3302 = vrot.slane %v3150, 5
      %v3303 = vrot.slane %v3302, 4
      %v3304 = vrot.slane %v3151, 5
      %v3305 = vsel %vm1013, %v3303, %v3304
      %v3306 = vrot.slane %v3304, 4
      %v3307 = vrot.slane %v3152, 5
      %v3308 = vsel %vm1013, %v3306, %v3307
      %v3309 = vrot.slane %v3153, 5
      %v3310 = vrot.slane %v3309, 4
      %v3311 = vrot.slane %v3154, 5
      %v3312 = vsel %vm1013, %v3310, %v3311
      %v3313 = vrot.slane %v3311, 4
      %v3314 = vrot.slane %v3155, 5
      %v3315 = vsel %vm1013, %v3313, %v3314
      %3316 = vrot.lane.b32.xlu0 %v3207, 32
      %v3317 = vpop.permute.xlu0 %3316
      %3318 = vrot.lane.b32.xlu0 %v3210, 32
      %v3319 = vpop.permute.xlu0 %3318
      %3320 = vrot.lane.b32.xlu0 %v3214, 32
      %v3321 = vpop.permute.xlu0 %3320
      %3322 = vrot.lane.b32.xlu0 %v3217, 32
      %v3323 = vpop.permute.xlu0 %3322
      %3324 = vrot.lane.b32.xlu0 %v3221, 32
      %v3325 = vpop.permute.xlu0 %3324
      %3326 = vrot.lane.b32.xlu0 %v3224, 32
      %v3327 = vpop.permute.xlu0 %3326
      %3328 = vrot.lane.b32.xlu0 %v3228, 32
      %v3329 = vpop.permute.xlu0 %3328
      %3330 = vrot.lane.b32.xlu0 %v3231, 32
      %v3331 = vpop.permute.xlu0 %3330
      %3332 = vrot.lane.b32.xlu0 %v3235, 32
      %v3333 = vpop.permute.xlu0 %3332
      %3334 = vrot.lane.b32.xlu0 %v3238, 32
      %v3335 = vpop.permute.xlu0 %3334
      %3336 = vrot.lane.b32.xlu0 %v3242, 32
      %v3337 = vpop.permute.xlu0 %3336
      %3338 = vrot.lane.b32.xlu0 %v3245, 32
      %v3339 = vpop.permute.xlu0 %3338
      %3340 = vrot.lane.b32.xlu0 %v3249, 32
      %v3341 = vpop.permute.xlu0 %3340
      %3342 = vrot.lane.b32.xlu0 %v3252, 32
      %v3343 = vpop.permute.xlu0 %3342
      %3344 = vrot.lane.b32.xlu0 %v3256, 32
      %v3345 = vpop.permute.xlu0 %3344
      %3346 = vrot.lane.b32.xlu0 %v3259, 32
      %v3347 = vpop.permute.xlu0 %3346
      %3348 = vrot.lane.b32.xlu0 %v3263, 32
      %v3349 = vpop.permute.xlu0 %3348
      %3350 = vrot.lane.b32.xlu0 %v3266, 32
      %v3351 = vpop.permute.xlu0 %3350
      %3352 = vrot.lane.b32.xlu0 %v3270, 32
      %v3353 = vpop.permute.xlu0 %3352
      %3354 = vrot.lane.b32.xlu0 %v3273, 32
      %v3355 = vpop.permute.xlu0 %3354
      %3356 = vrot.lane.b32.xlu0 %v3277, 32
      %v3357 = vpop.permute.xlu0 %3356
      %3358 = vrot.lane.b32.xlu0 %v3280, 32
      %v3359 = vpop.permute.xlu0 %3358
      %3360 = vrot.lane.b32.xlu0 %v3284, 32
      %v3361 = vpop.permute.xlu0 %3360
      %3362 = vrot.lane.b32.xlu0 %v3287, 32
      %v3363 = vpop.permute.xlu0 %3362
      %3364 = vrot.lane.b32.xlu0 %v3291, 32
      %v3365 = vpop.permute.xlu0 %3364
      %3366 = vrot.lane.b32.xlu0 %v3294, 32
      %v3367 = vpop.permute.xlu0 %3366
      %3368 = vrot.lane.b32.xlu0 %v3298, 32
      %v3369 = vpop.permute.xlu0 %3368
      %3370 = vrot.lane.b32.xlu0 %v3301, 32
      %v3371 = vpop.permute.xlu0 %3370
      %3372 = vrot.lane.b32.xlu0 %v3305, 32
      %v3373 = vpop.permute.xlu0 %3372
      %3374 = vrot.lane.b32.xlu0 %v3308, 32
      %v3375 = vpop.permute.xlu0 %3374
      %3376 = vrot.lane.b32.xlu0 %v3312, 32
      %v3377 = vpop.permute.xlu0 %3376
      %3378 = vrot.lane.b32.xlu0 %v3315, 32
      %v3379 = vpop.permute.xlu0 %3378
      %vm3412 = vcmask 290048
      %3413 = vst.msk [vmem:[#allocation2] sm:$0xf] %vm3412, %v3317
      %3414 = vst.msk [vmem:[#allocation2 + $0x4] sm:$0xf] %vm3412, %v3319
      %3415 = vst.msk [vmem:[#allocation2 + $0x8] sm:$0xf] %vm3412, %v3321
      %3416 = vst.msk [vmem:[#allocation2 + $0xc] sm:$0xf] %vm3412, %v3323
      %3417 = vst.msk [vmem:[#allocation2 + $0x10] sm:$0xf] %vm3412, %v3325
      %3418 = vst.msk [vmem:[#allocation2 + $0x14] sm:$0xf] %vm3412, %v3327
      %3419 = vst.msk [vmem:[#allocation2 + $0x18] sm:$0xf] %vm3412, %v3329
      %3420 = vst.msk [vmem:[#allocation2 + $0x1c] sm:$0xf] %vm3412, %v3331
      %3421 = vst.msk [vmem:[#allocation2 + $0x20] sm:$0xf] %vm3412, %v3333
      %3422 = vst.msk [vmem:[#allocation2 + $0x24] sm:$0xf] %vm3412, %v3335
      %3423 = vst.msk [vmem:[#allocation2 + $0x28] sm:$0xf] %vm3412, %v3337
      %3424 = vst.msk [vmem:[#allocation2 + $0x2c] sm:$0xf] %vm3412, %v3339
      %3425 = vst.msk [vmem:[#allocation2 + $0x30] sm:$0xf] %vm3412, %v3341
      %3426 = vst.msk [vmem:[#allocation2 + $0x34] sm:$0xf] %vm3412, %v3343
      %3427 = vst.msk [vmem:[#allocation2 + $0x38] sm:$0xf] %vm3412, %v3345
      %3428 = vst.msk [vmem:[#allocation2 + $0x3c] sm:$0xf] %vm3412, %v3347
      %3429 = vst.msk [vmem:[#allocation2 + $0x40] sm:$0xf] %vm3412, %v3349
      %3430 = vst.msk [vmem:[#allocation2 + $0x44] sm:$0xf] %vm3412, %v3351
      %3431 = vst.msk [vmem:[#allocation2 + $0x48] sm:$0xf] %vm3412, %v3353
      %3432 = vst.msk [vmem:[#allocation2 + $0x4c] sm:$0xf] %vm3412, %v3355
      %3433 = vst.msk [vmem:[#allocation2 + $0x50] sm:$0xf] %vm3412, %v3357
      %3434 = vst.msk [vmem:[#allocation2 + $0x54] sm:$0xf] %vm3412, %v3359
      %3435 = vst.msk [vmem:[#allocation2 + $0x58] sm:$0xf] %vm3412, %v3361
      %3436 = vst.msk [vmem:[#allocation2 + $0x5c] sm:$0xf] %vm3412, %v3363
      %3437 = vst.msk [vmem:[#allocation2 + $0x60] sm:$0xf] %vm3412, %v3365
      %3438 = vst.msk [vmem:[#allocation2 + $0x64] sm:$0xf] %vm3412, %v3367
      %3439 = vst.msk [vmem:[#allocation2 + $0x68] sm:$0xf] %vm3412, %v3369
      %3440 = vst.msk [vmem:[#allocation2 + $0x6c] sm:$0xf] %vm3412, %v3371
      %3441 = vst.msk [vmem:[#allocation2 + $0x70] sm:$0xf] %vm3412, %v3373
      %3442 = vst.msk [vmem:[#allocation2 + $0x74] sm:$0xf] %vm3412, %v3375
      %3443 = vst.msk [vmem:[#allocation2 + $0x78] sm:$0xf] %vm3412, %v3377
      %3444 = vst.msk [vmem:[#allocation2 + $0x7c] sm:$0xf] %vm3412, %v3379
      %v3445 = vld [vmem:[#allocation2] sm:$0xf]
      %v3446 = vld [vmem:[#allocation2 + $0x4] sm:$0xf]
      %v3447 = vld [vmem:[#allocation2 + $0x8] sm:$0xf]
      %v3448 = vld [vmem:[#allocation2 + $0xc] sm:$0xf]
      %v3449 = vld [vmem:[#allocation2 + $0x10] sm:$0xf]
      %v3450 = vld [vmem:[#allocation2 + $0x14] sm:$0xf]
      %v3451 = vld [vmem:[#allocation2 + $0x18] sm:$0xf]
      %v3452 = vld [vmem:[#allocation2 + $0x1c] sm:$0xf]
      %v3453 = vld [vmem:[#allocation2 + $0x20] sm:$0xf]
      %v3454 = vld [vmem:[#allocation2 + $0x24] sm:$0xf]
      %v3455 = vld [vmem:[#allocation2 + $0x28] sm:$0xf]
      %v3456 = vld [vmem:[#allocation2 + $0x2c] sm:$0xf]
      %v3457 = vld [vmem:[#allocation2 + $0x30] sm:$0xf]
      %v3458 = vld [vmem:[#allocation2 + $0x34] sm:$0xf]
      %v3459 = vld [vmem:[#allocation2 + $0x38] sm:$0xf]
      %v3460 = vld [vmem:[#allocation2 + $0x3c] sm:$0xf]
      %v3461 = vld [vmem:[#allocation2 + $0x40] sm:$0xf]
      %v3462 = vld [vmem:[#allocation2 + $0x44] sm:$0xf]
      %v3463 = vld [vmem:[#allocation2 + $0x48] sm:$0xf]
      %v3464 = vld [vmem:[#allocation2 + $0x4c] sm:$0xf]
      %v3465 = vld [vmem:[#allocation2 + $0x50] sm:$0xf]
      %v3466 = vld [vmem:[#allocation2 + $0x54] sm:$0xf]
      %v3467 = vld [vmem:[#allocation2 + $0x58] sm:$0xf]
      %v3468 = vld [vmem:[#allocation2 + $0x5c] sm:$0xf]
      %v3469 = vld [vmem:[#allocation2 + $0x60] sm:$0xf]
      %v3470 = vld [vmem:[#allocation2 + $0x64] sm:$0xf]
      %v3471 = vld [vmem:[#allocation2 + $0x68] sm:$0xf]
      %v3472 = vld [vmem:[#allocation2 + $0x6c] sm:$0xf]
      %v3473 = vld [vmem:[#allocation2 + $0x70] sm:$0xf]
      %v3474 = vld [vmem:[#allocation2 + $0x74] sm:$0xf]
      %v3475 = vld [vmem:[#allocation2 + $0x78] sm:$0xf]
      %v3476 = vld [vmem:[#allocation2 + $0x7c] sm:$0xf]
      %v3477 = vld [vmem:[%s261] sm:$0xf]
      %v3478 = vld [vmem:[%s261 + $0x4] sm:$0xf]
      %v3479 = vld [vmem:[%s261 + $0x8] sm:$0xf]
      %v3480 = vld [vmem:[%s261 + $0xc] sm:$0xf]
      %v3481 = vld [vmem:[%s261 + $0x10] sm:$0x3]
      %v3514 = vunpack.c.l.b16 %v3445
      %v3515 = vunpack.c.l.b16 %v3446
      %v3516 = vunpack.c.l.b16 %v3447
      %v3517 = vunpack.c.l.b16 %v3448
      %v3518 = vunpack.c.l.b16 %v3449
      %v3519 = vunpack.c.l.b16 %v3450
      %v3520 = vunpack.c.l.b16 %v3451
      %v3521 = vunpack.c.l.b16 %v3452
      %v3522 = vunpack.c.l.b16 %v3453
      %v3523 = vunpack.c.l.b16 %v3454
      %v3524 = vunpack.c.l.b16 %v3455
      %v3525 = vunpack.c.l.b16 %v3456
      %v3526 = vunpack.c.l.b16 %v3457
      %v3527 = vunpack.c.l.b16 %v3458
      %v3528 = vunpack.c.l.b16 %v3459
      %v3529 = vunpack.c.l.b16 %v3460
      %v3530 = vunpack.c.l.b16 %v3461
      %v3531 = vunpack.c.l.b16 %v3462
      %v3532 = vunpack.c.l.b16 %v3463
      %v3533 = vunpack.c.l.b16 %v3464
      %v3534 = vunpack.c.l.b16 %v3465
      %v3535 = vunpack.c.l.b16 %v3466
      %v3536 = vunpack.c.l.b16 %v3467
      %v3537 = vunpack.c.l.b16 %v3468
      %v3538 = vunpack.c.l.b16 %v3469
      %v3539 = vunpack.c.l.b16 %v3470
      %v3540 = vunpack.c.l.b16 %v3471
      %v3541 = vunpack.c.l.b16 %v3472
      %v3542 = vunpack.c.l.b16 %v3473
      %v3543 = vunpack.c.l.b16 %v3474
      %v3544 = vunpack.c.l.b16 %v3475
      %v3545 = vunpack.c.l.b16 %v3476
      %v3546 = vpack.c.b16 %v3515, %v3514
      %v3547 = vpack.c.b16 %v3517, %v3516
      %v3548 = vpack.c.b16 %v3519, %v3518
      %v3549 = vpack.c.b16 %v3521, %v3520
      %v3550 = vpack.c.b16 %v3523, %v3522
      %v3551 = vpack.c.b16 %v3525, %v3524
      %v3552 = vpack.c.b16 %v3527, %v3526
      %v3553 = vpack.c.b16 %v3529, %v3528
      %v3554 = vpack.c.b16 %v3531, %v3530
      %v3555 = vpack.c.b16 %v3533, %v3532
      %v3556 = vpack.c.b16 %v3535, %v3534
      %v3557 = vpack.c.b16 %v3537, %v3536
      %v3558 = vpack.c.b16 %v3539, %v3538
      %v3559 = vpack.c.b16 %v3541, %v3540
      %v3560 = vpack.c.b16 %v3543, %v3542
      %v3561 = vpack.c.b16 %v3545, %v3544
      %v3567 = vunpack.c.l.b16 %v3477
      %v3568 = vunpack.c.l.b16 %v3478
      %v3569 = vunpack.c.l.b16 %v3479
      %v3570 = vunpack.c.l.b16 %v3480
      %v3571 = vunpack.c.l.b16 %v3481
      %v3572 = vpack.c.b16 %v3568, %v3567
      %v3573 = vpack.c.b16 %v3570, %v3569
      %v3574 = vpack.c.b16 %v3571, %v3571
      %vm3577 = vcmask 293888
      %v3579 = vsel %vm3577, %v3546, 0
      %v3582 = vsel %vm3577, %v3547, 0
      %v3585 = vsel %vm3577, %v3548, 0
      %v3588 = vsel %vm3577, %v3549, 0
      %v3591 = vsel %vm3577, %v3550, 0
      %v3594 = vsel %vm3577, %v3551, 0
      %v3597 = vsel %vm3577, %v3552, 0
      %v3600 = vsel %vm3577, %v3553, 0
      %v3603 = vsel %vm3577, %v3554, 0
      %v3606 = vsel %vm3577, %v3555, 0
      %v3609 = vsel %vm3577, %v3556, 0
      %v3612 = vsel %vm3577, %v3557, 0
      %v3615 = vsel %vm3577, %v3558, 0
      %v3618 = vsel %vm3577, %v3559, 0
      %v3621 = vsel %vm3577, %v3560, 0
      %v3624 = vsel %vm3577, %v3561, 0
      %vm3626 = vcmask 1041408
      %v3628 = vsel %vm3626, %v3574, 0
      %3630 = vmatpush.bf16.msra.mxu0 0
      %3631 = vmatpush.bf16.msra.mxu0 0
      %3632 = vmatpush.bf16.msra.mxu0 0
      %3633 = vmatpush.bf16.msra.mxu0 0
      %3634 = vmatpush.bf16.msra.mxu0 0
      %3635 = vmatpush.bf16.msra.mxu0 %v3628
      %3636 = vmatpush.bf16.msra.mxu0 %v3573
      %3637 = vmatpush.bf16.msra.mxu0 %v3572
      %3638 = vmatmul.bf16.gmra.mxu0 %v3579
      %v3639 = vpop.f32.mrf.mxu0
      %v3640 = vadd.f32 0.0, %v3639
      %v3641 = vpop.f32.mrf.mxu0
      %v3642 = vadd.f32 0.0, %v3641
      %3643 = vmatmul.bf16.gmra.mxu0 %v3582
      %v3644 = vpop.f32.mrf.mxu0
      %v3645 = vadd.f32 0.0, %v3644
      %v3646 = vpop.f32.mrf.mxu0
      %v3647 = vadd.f32 0.0, %v3646
      %3648 = vmatmul.bf16.gmra.mxu0 %v3585
      %v3649 = vpop.f32.mrf.mxu0
      %v3650 = vadd.f32 0.0, %v3649
      %v3651 = vpop.f32.mrf.mxu0
      %v3652 = vadd.f32 0.0, %v3651
      %3653 = vmatmul.bf16.gmra.mxu0 %v3588
      %v3654 = vpop.f32.mrf.mxu0
      %v3655 = vadd.f32 0.0, %v3654
      %v3656 = vpop.f32.mrf.mxu0
      %v3657 = vadd.f32 0.0, %v3656
      %3658 = vmatmul.bf16.gmra.mxu0 %v3591
      %v3659 = vpop.f32.mrf.mxu0
      %v3660 = vadd.f32 0.0, %v3659
      %v3661 = vpop.f32.mrf.mxu0
      %v3662 = vadd.f32 0.0, %v3661
      %3663 = vmatmul.bf16.gmra.mxu0 %v3594
      %v3664 = vpop.f32.mrf.mxu0
      %v3665 = vadd.f32 0.0, %v3664
      %v3666 = vpop.f32.mrf.mxu0
      %v3667 = vadd.f32 0.0, %v3666
      %3668 = vmatmul.bf16.gmra.mxu0 %v3597
      %v3669 = vpop.f32.mrf.mxu0
      %v3670 = vadd.f32 0.0, %v3669
      %v3671 = vpop.f32.mrf.mxu0
      %v3672 = vadd.f32 0.0, %v3671
      %3673 = vmatmul.bf16.gmra.mxu0 %v3600
      %v3674 = vpop.f32.mrf.mxu0
      %v3675 = vadd.f32 0.0, %v3674
      %v3676 = vpop.f32.mrf.mxu0
      %v3677 = vadd.f32 0.0, %v3676
      %3678 = vmatmul.bf16.gmra.mxu0 %v3603
      %v3679 = vpop.f32.mrf.mxu0
      %v3680 = vadd.f32 0.0, %v3679
      %v3681 = vpop.f32.mrf.mxu0
      %v3682 = vadd.f32 0.0, %v3681
      %3683 = vmatmul.bf16.gmra.mxu0 %v3606
      %v3684 = vpop.f32.mrf.mxu0
      %v3685 = vadd.f32 0.0, %v3684
      %v3686 = vpop.f32.mrf.mxu0
      %v3687 = vadd.f32 0.0, %v3686
      %3688 = vmatmul.bf16.gmra.mxu0 %v3609
      %v3689 = vpop.f32.mrf.mxu0
      %v3690 = vadd.f32 0.0, %v3689
      %v3691 = vpop.f32.mrf.mxu0
      %v3692 = vadd.f32 0.0, %v3691
      %3693 = vmatmul.bf16.gmra.mxu0 %v3612
      %v3694 = vpop.f32.mrf.mxu0
      %v3695 = vadd.f32 0.0, %v3694
      %v3696 = vpop.f32.mrf.mxu0
      %v3697 = vadd.f32 0.0, %v3696
      %3698 = vmatmul.bf16.gmra.mxu0 %v3615
      %v3699 = vpop.f32.mrf.mxu0
      %v3700 = vadd.f32 0.0, %v3699
      %v3701 = vpop.f32.mrf.mxu0
      %v3702 = vadd.f32 0.0, %v3701
      %3703 = vmatmul.bf16.gmra.mxu0 %v3618
      %v3704 = vpop.f32.mrf.mxu0
      %v3705 = vadd.f32 0.0, %v3704
      %v3706 = vpop.f32.mrf.mxu0
      %v3707 = vadd.f32 0.0, %v3706
      %3708 = vmatmul.bf16.gmra.mxu0 %v3621
      %v3709 = vpop.f32.mrf.mxu0
      %v3710 = vadd.f32 0.0, %v3709
      %v3711 = vpop.f32.mrf.mxu0
      %v3712 = vadd.f32 0.0, %v3711
      %3713 = vmatmul.bf16.gmra.mxu0 %v3624
      %v3714 = vpop.f32.mrf.mxu0
      %v3715 = vadd.f32 0.0, %v3714
      %v3716 = vpop.f32.mrf.mxu0
      %v3717 = vadd.f32 0.0, %v3716
      %3718 = vdwg.mxu0
      %v3719 = vld [vmem:[%s264] sm:$0x1]
      %v3721 = vperm.slane %v3719, 0
      %v3723 = vmul.f32 %v3640, %v3721
      %v3724 = vmul.f32 %v3642, %v3721
      %v3725 = vmul.f32 %v3645, %v3721
      %v3726 = vmul.f32 %v3647, %v3721
      %v3727 = vmul.f32 %v3650, %v3721
      %v3728 = vmul.f32 %v3652, %v3721
      %v3729 = vmul.f32 %v3655, %v3721
      %v3730 = vmul.f32 %v3657, %v3721
      %v3731 = vmul.f32 %v3660, %v3721
      %v3732 = vmul.f32 %v3662, %v3721
      %v3733 = vmul.f32 %v3665, %v3721
      %v3734 = vmul.f32 %v3667, %v3721
      %v3735 = vmul.f32 %v3670, %v3721
      %v3736 = vmul.f32 %v3672, %v3721
      %v3737 = vmul.f32 %v3675, %v3721
      %v3738 = vmul.f32 %v3677, %v3721
      %v3739 = vmul.f32 %v3680, %v3721
      %v3740 = vmul.f32 %v3682, %v3721
      %v3741 = vmul.f32 %v3685, %v3721
      %v3742 = vmul.f32 %v3687, %v3721
      %v3743 = vmul.f32 %v3690, %v3721
      %v3744 = vmul.f32 %v3692, %v3721
      %v3745 = vmul.f32 %v3695, %v3721
      %v3746 = vmul.f32 %v3697, %v3721
      %v3747 = vmul.f32 %v3700, %v3721
      %v3748 = vmul.f32 %v3702, %v3721
      %v3749 = vmul.f32 %v3705, %v3721
      %v3750 = vmul.f32 %v3707, %v3721
      %v3751 = vmul.f32 %v3710, %v3721
      %v3752 = vmul.f32 %v3712, %v3721
      %v3753 = vmul.f32 %v3715, %v3721
      %v3754 = vmul.f32 %v3717, %v3721
      %v3755 = vld [vmem:[%s267] sm:$0x1]
      %v3757 = vperm.slane %v3755, 0
      %v3759 = vadd.f32 %v3723, %v3757
      %v3760 = vadd.f32 %v3724, %v3757
      %v3761 = vadd.f32 %v3725, %v3757
      %v3762 = vadd.f32 %v3726, %v3757
      %v3763 = vadd.f32 %v3727, %v3757
      %v3764 = vadd.f32 %v3728, %v3757
      %v3765 = vadd.f32 %v3729, %v3757
      %v3766 = vadd.f32 %v3730, %v3757
      %v3767 = vadd.f32 %v3731, %v3757
      %v3768 = vadd.f32 %v3732, %v3757
      %v3769 = vadd.f32 %v3733, %v3757
      %v3770 = vadd.f32 %v3734, %v3757
      %v3771 = vadd.f32 %v3735, %v3757
      %v3772 = vadd.f32 %v3736, %v3757
      %v3773 = vadd.f32 %v3737, %v3757
      %v3774 = vadd.f32 %v3738, %v3757
      %v3775 = vadd.f32 %v3739, %v3757
      %v3776 = vadd.f32 %v3740, %v3757
      %v3777 = vadd.f32 %v3741, %v3757
      %v3778 = vadd.f32 %v3742, %v3757
      %v3779 = vadd.f32 %v3743, %v3757
      %v3780 = vadd.f32 %v3744, %v3757
      %v3781 = vadd.f32 %v3745, %v3757
      %v3782 = vadd.f32 %v3746, %v3757
      %v3783 = vadd.f32 %v3747, %v3757
      %v3784 = vadd.f32 %v3748, %v3757
      %v3785 = vadd.f32 %v3749, %v3757
      %v3786 = vadd.f32 %v3750, %v3757
      %v3787 = vadd.f32 %v3751, %v3757
      %v3788 = vadd.f32 %v3752, %v3757
      %v3789 = vadd.f32 %v3753, %v3757
      %v3790 = vadd.f32 %v3754, %v3757
      %v3791 = vadd.f32 %v3759, 3.0
      %v3792 = vadd.f32 %v3760, 3.0
      %v3793 = vadd.f32 %v3761, 3.0
      %v3794 = vadd.f32 %v3762, 3.0
      %v3795 = vadd.f32 %v3763, 3.0
      %v3796 = vadd.f32 %v3764, 3.0
      %v3797 = vadd.f32 %v3765, 3.0
      %v3798 = vadd.f32 %v3766, 3.0
      %v3799 = vadd.f32 %v3767, 3.0
      %v3800 = vadd.f32 %v3768, 3.0
      %v3801 = vadd.f32 %v3769, 3.0
      %v3802 = vadd.f32 %v3770, 3.0
      %v3803 = vadd.f32 %v3771, 3.0
      %v3804 = vadd.f32 %v3772, 3.0
      %v3805 = vadd.f32 %v3773, 3.0
      %v3806 = vadd.f32 %v3774, 3.0
      %v3807 = vadd.f32 %v3775, 3.0
      %v3808 = vadd.f32 %v3776, 3.0
      %v3809 = vadd.f32 %v3777, 3.0
      %v3810 = vadd.f32 %v3778, 3.0
      %v3811 = vadd.f32 %v3779, 3.0
      %v3812 = vadd.f32 %v3780, 3.0
      %v3813 = vadd.f32 %v3781, 3.0
      %v3814 = vadd.f32 %v3782, 3.0
      %v3815 = vadd.f32 %v3783, 3.0
      %v3816 = vadd.f32 %v3784, 3.0
      %v3817 = vadd.f32 %v3785, 3.0
      %v3818 = vadd.f32 %v3786, 3.0
      %v3819 = vadd.f32 %v3787, 3.0
      %v3820 = vadd.f32 %v3788, 3.0
      %v3821 = vadd.f32 %v3789, 3.0
      %v3822 = vadd.f32 %v3790, 3.0
      %v3823 = vmax.f32 %v3791, 0.0
      %v3824 = vmax.f32 %v3792, 0.0
      %v3825 = vmax.f32 %v3793, 0.0
      %v3826 = vmax.f32 %v3794, 0.0
      %v3827 = vmax.f32 %v3795, 0.0
      %v3828 = vmax.f32 %v3796, 0.0
      %v3829 = vmax.f32 %v3797, 0.0
      %v3830 = vmax.f32 %v3798, 0.0
      %v3831 = vmax.f32 %v3799, 0.0
      %v3832 = vmax.f32 %v3800, 0.0
      %v3833 = vmax.f32 %v3801, 0.0
      %v3834 = vmax.f32 %v3802, 0.0
      %v3835 = vmax.f32 %v3803, 0.0
      %v3836 = vmax.f32 %v3804, 0.0
      %v3837 = vmax.f32 %v3805, 0.0
      %v3838 = vmax.f32 %v3806, 0.0
      %v3839 = vmax.f32 %v3807, 0.0
      %v3840 = vmax.f32 %v3808, 0.0
      %v3841 = vmax.f32 %v3809, 0.0
      %v3842 = vmax.f32 %v3810, 0.0
      %v3843 = vmax.f32 %v3811, 0.0
      %v3844 = vmax.f32 %v3812, 0.0
      %v3845 = vmax.f32 %v3813, 0.0
      %v3846 = vmax.f32 %v3814, 0.0
      %v3847 = vmax.f32 %v3815, 0.0
      %v3848 = vmax.f32 %v3816, 0.0
      %v3849 = vmax.f32 %v3817, 0.0
      %v3850 = vmax.f32 %v3818, 0.0
      %v3851 = vmax.f32 %v3819, 0.0
      %v3852 = vmax.f32 %v3820, 0.0
      %v3853 = vmax.f32 %v3821, 0.0
      %v3854 = vmax.f32 %v3822, 0.0
      %v3855 = vmin.f32 %v3823, 6.0
      %v3856 = vmin.f32 %v3824, 6.0
      %v3857 = vmin.f32 %v3825, 6.0
      %v3858 = vmin.f32 %v3826, 6.0
      %v3859 = vmin.f32 %v3827, 6.0
      %v3860 = vmin.f32 %v3828, 6.0
      %v3861 = vmin.f32 %v3829, 6.0
      %v3862 = vmin.f32 %v3830, 6.0
      %v3863 = vmin.f32 %v3831, 6.0
      %v3864 = vmin.f32 %v3832, 6.0
      %v3865 = vmin.f32 %v3833, 6.0
      %v3866 = vmin.f32 %v3834, 6.0
      %v3867 = vmin.f32 %v3835, 6.0
      %v3868 = vmin.f32 %v3836, 6.0
      %v3869 = vmin.f32 %v3837, 6.0
      %v3870 = vmin.f32 %v3838, 6.0
      %v3871 = vmin.f32 %v3839, 6.0
      %v3872 = vmin.f32 %v3840, 6.0
      %v3873 = vmin.f32 %v3841, 6.0
      %v3874 = vmin.f32 %v3842, 6.0
      %v3875 = vmin.f32 %v3843, 6.0
      %v3876 = vmin.f32 %v3844, 6.0
      %v3877 = vmin.f32 %v3845, 6.0
      %v3878 = vmin.f32 %v3846, 6.0
      %v3879 = vmin.f32 %v3847, 6.0
      %v3880 = vmin.f32 %v3848, 6.0
      %v3881 = vmin.f32 %v3849, 6.0
      %v3882 = vmin.f32 %v3850, 6.0
      %v3883 = vmin.f32 %v3851, 6.0
      %v3884 = vmin.f32 %v3852, 6.0
      %v3885 = vmin.f32 %v3853, 6.0
      %v3886 = vmin.f32 %v3854, 6.0
      %v3887 = vmul.f32 %v3759, %v3855
      %v3888 = vmul.f32 %v3760, %v3856
      %v3889 = vmul.f32 %v3761, %v3857
      %v3890 = vmul.f32 %v3762, %v3858
      %v3891 = vmul.f32 %v3763, %v3859
      %v3892 = vmul.f32 %v3764, %v3860
      %v3893 = vmul.f32 %v3765, %v3861
      %v3894 = vmul.f32 %v3766, %v3862
      %v3895 = vmul.f32 %v3767, %v3863
      %v3896 = vmul.f32 %v3768, %v3864
      %v3897 = vmul.f32 %v3769, %v3865
      %v3898 = vmul.f32 %v3770, %v3866
      %v3899 = vmul.f32 %v3771, %v3867
      %v3900 = vmul.f32 %v3772, %v3868
      %v3901 = vmul.f32 %v3773, %v3869
      %v3902 = vmul.f32 %v3774, %v3870
      %v3903 = vmul.f32 %v3775, %v3871
      %v3904 = vmul.f32 %v3776, %v3872
      %v3905 = vmul.f32 %v3777, %v3873
      %v3906 = vmul.f32 %v3778, %v3874
      %v3907 = vmul.f32 %v3779, %v3875
      %v3908 = vmul.f32 %v3780, %v3876
      %v3909 = vmul.f32 %v3781, %v3877
      %v3910 = vmul.f32 %v3782, %v3878
      %v3911 = vmul.f32 %v3783, %v3879
      %v3912 = vmul.f32 %v3784, %v3880
      %v3913 = vmul.f32 %v3785, %v3881
      %v3914 = vmul.f32 %v3786, %v3882
      %v3915 = vmul.f32 %v3787, %v3883
      %v3916 = vmul.f32 %v3788, %v3884
      %v3917 = vmul.f32 %v3789, %v3885
      %v3918 = vmul.f32 %v3790, %v3886
      %v3919 = vmul.f32 %v3887, 0.16666667
      %v3920 = vmul.f32 %v3888, 0.16666667
      %v3921 = vmul.f32 %v3889, 0.16666667
      %v3922 = vmul.f32 %v3890, 0.16666667
      %v3923 = vmul.f32 %v3891, 0.16666667
      %v3924 = vmul.f32 %v3892, 0.16666667
      %v3925 = vmul.f32 %v3893, 0.16666667
      %v3926 = vmul.f32 %v3894, 0.16666667
      %v3927 = vmul.f32 %v3895, 0.16666667
      %v3928 = vmul.f32 %v3896, 0.16666667
      %v3929 = vmul.f32 %v3897, 0.16666667
      %v3930 = vmul.f32 %v3898, 0.16666667
      %v3931 = vmul.f32 %v3899, 0.16666667
      %v3932 = vmul.f32 %v3900, 0.16666667
      %v3933 = vmul.f32 %v3901, 0.16666667
      %v3934 = vmul.f32 %v3902, 0.16666667
      %v3935 = vmul.f32 %v3903, 0.16666667
      %v3936 = vmul.f32 %v3904, 0.16666667
      %v3937 = vmul.f32 %v3905, 0.16666667
      %v3938 = vmul.f32 %v3906, 0.16666667
      %v3939 = vmul.f32 %v3907, 0.16666667
      %v3940 = vmul.f32 %v3908, 0.16666667
      %v3941 = vmul.f32 %v3909, 0.16666667
      %v3942 = vmul.f32 %v3910, 0.16666667
      %v3943 = vmul.f32 %v3911, 0.16666667
      %v3944 = vmul.f32 %v3912, 0.16666667
      %v3945 = vmul.f32 %v3913, 0.16666667
      %v3946 = vmul.f32 %v3914, 0.16666667
      %v3947 = vmul.f32 %v3915, 0.16666667
      %v3948 = vmul.f32 %v3916, 0.16666667
      %v3949 = vmul.f32 %v3917, 0.16666667
      %v3950 = vmul.f32 %v3918, 0.16666667
      %v3951 = vpack.c.bf16 %v3919, %v3919
      %v3952 = vpack.c.bf16 %v3920, %v3920
      %v3953 = vpack.c.bf16 %v3921, %v3921
      %v3954 = vpack.c.bf16 %v3922, %v3922
      %v3955 = vpack.c.bf16 %v3923, %v3923
      %v3956 = vpack.c.bf16 %v3924, %v3924
      %v3957 = vpack.c.bf16 %v3925, %v3925
      %v3958 = vpack.c.bf16 %v3926, %v3926
      %v3959 = vpack.c.bf16 %v3927, %v3927
      %v3960 = vpack.c.bf16 %v3928, %v3928
      %v3961 = vpack.c.bf16 %v3929, %v3929
      %v3962 = vpack.c.bf16 %v3930, %v3930
      %v3963 = vpack.c.bf16 %v3931, %v3931
      %v3964 = vpack.c.bf16 %v3932, %v3932
      %v3965 = vpack.c.bf16 %v3933, %v3933
      %v3966 = vpack.c.bf16 %v3934, %v3934
      %v3967 = vpack.c.bf16 %v3935, %v3935
      %v3968 = vpack.c.bf16 %v3936, %v3936
      %v3969 = vpack.c.bf16 %v3937, %v3937
      %v3970 = vpack.c.bf16 %v3938, %v3938
      %v3971 = vpack.c.bf16 %v3939, %v3939
      %v3972 = vpack.c.bf16 %v3940, %v3940
      %v3973 = vpack.c.bf16 %v3941, %v3941
      %v3974 = vpack.c.bf16 %v3942, %v3942
      %v3975 = vpack.c.bf16 %v3943, %v3943
      %v3976 = vpack.c.bf16 %v3944, %v3944
      %v3977 = vpack.c.bf16 %v3945, %v3945
      %v3978 = vpack.c.bf16 %v3946, %v3946
      %v3979 = vpack.c.bf16 %v3947, %v3947
      %v3980 = vpack.c.bf16 %v3948, %v3948
      %v3981 = vpack.c.bf16 %v3949, %v3949
      %v3982 = vpack.c.bf16 %v3950, %v3950
      %3983 = vst [vmem:[%s279] sm:$0xf] %v3951
      %3984 = vst [vmem:[%s279 + $0x4] sm:$0xf] %v3952
      %3985 = vst [vmem:[%s279 + $0x8] sm:$0xf] %v3953
      %3986 = vst [vmem:[%s279 + $0xc] sm:$0xf] %v3954
      %3987 = vst [vmem:[%s279 + $0x10] sm:$0xf] %v3955
      %3988 = vst [vmem:[%s279 + $0x14] sm:$0xf] %v3956
      %3989 = vst [vmem:[%s279 + $0x18] sm:$0xf] %v3957
      %3990 = vst [vmem:[%s279 + $0x1c] sm:$0xf] %v3958
      %3991 = vst [vmem:[%s279 + $0x20] sm:$0xf] %v3959
      %3992 = vst [vmem:[%s279 + $0x24] sm:$0xf] %v3960
      %3993 = vst [vmem:[%s279 + $0x28] sm:$0xf] %v3961
      %3994 = vst [vmem:[%s279 + $0x2c] sm:$0xf] %v3962
      %3995 = vst [vmem:[%s279 + $0x30] sm:$0xf] %v3963
      %3996 = vst [vmem:[%s279 + $0x34] sm:$0xf] %v3964
      %3997 = vst [vmem:[%s279 + $0x38] sm:$0xf] %v3965
      %3998 = vst [vmem:[%s279 + $0x3c] sm:$0xf] %v3966
      %3999 = vst [vmem:[%s279 + $0x40] sm:$0xf] %v3967
      %4000 = vst [vmem:[%s279 + $0x44] sm:$0xf] %v3968
      %4001 = vst [vmem:[%s279 + $0x48] sm:$0xf] %v3969
      %4002 = vst [vmem:[%s279 + $0x4c] sm:$0xf] %v3970
      %4003 = vst [vmem:[%s279 + $0x50] sm:$0xf] %v3971
      %4004 = vst [vmem:[%s279 + $0x54] sm:$0xf] %v3972
      %4005 = vst [vmem:[%s279 + $0x58] sm:$0xf] %v3973
      %4006 = vst [vmem:[%s279 + $0x5c] sm:$0xf] %v3974
      %4007 = vst [vmem:[%s279 + $0x60] sm:$0xf] %v3975
      %4008 = vst [vmem:[%s279 + $0x64] sm:$0xf] %v3976
      %4009 = vst [vmem:[%s279 + $0x68] sm:$0xf] %v3977
      %4010 = vst [vmem:[%s279 + $0x6c] sm:$0xf] %v3978
      %4011 = vst [vmem:[%s279 + $0x70] sm:$0xf] %v3979
      %4012 = vst [vmem:[%s279 + $0x74] sm:$0xf] %v3980
      %4013 = vst [vmem:[%s279 + $0x78] sm:$0xf] %v3981
      %4014 = vst [vmem:[%s279 + $0x7c] sm:$0xf] %v3982
      %s4015 = smul.u32 32, %s22
      %p4016 = scmp.lt.s32.totalorder %s21, 1
      %s4017 = scalar_select %p4016, %s21, 1
      %p4018 = scmp.lt.s32.totalorder %s4015, 31
      %s4019 = scalar_select %p4018, %s4015, 31
      %p4020 = scmp.lt.s32.totalorder %s20, 0
      %s4021 = scalar_select %p4020, %s20, 0
      %s4022 = sadd.s32 %s4021, %s4019
      %s4023 = smul.addr %s4017, 32
      %s4024 = sadd.s32 %s4022, %s4023
      %s4025 = smul.addr %s4024, 4
      %s4026 = scalar_lea.vmem %s4, %s4025
      // Predicated region
      $region37: #{conv_bn_hswish.1} parent=35 // pred_check
        %p4027 = pneg %p160
      $region38: #{conv_bn_hswish.1} parent=35 // pred_check_branch
        %4029 = sbr.rel (%p4027) target = $region40
      $region39: #{conv_bn_hswish.1} parent=35 // pred_region
        %s4030 = smul.u32 32, %s22
      $region40: #{conv_bn_hswish.1} parent=35 // pred_fallthru
        _
    $region36: #{conv_bn_hswish.1} parent=5 // pred_fallthru
      _
    %p4031 = scmp.le.s32.totalorder 2, %s10
    // Predicated region
    $region41: #{conv_bn_hswish.1} parent=5 // pred_check
      %p4032 = pneg %p4031
    $region42: #{conv_bn_hswish.1} parent=5 // pred_check_branch
      %4034 = sbr.rel (%p4032) target = $region44
    $region43: #{conv_bn_hswish.1} parent=5 // pred_region
      %s4035 = ssub.s32 %s10, 2
      // Predicated region
      $region45: #{conv_bn_hswish.1} parent=43 // pred_check
        %p4036 = pneg %p166
      $region46: #{conv_bn_hswish.1} parent=43 // pred_check_branch
        %4038 = sbr.rel (%p4036) target = $region48
      $region47: #{conv_bn_hswish.1} parent=43 // pred_region
        %s4039 = smul.u32 32, %s25
        %p4040 = scmp.lt.s32.totalorder %s24, 1
        %s4041 = scalar_select %p4040, %s24, 1
        %p4042 = scmp.lt.s32.totalorder %s4039, 31
        %s4043 = scalar_select %p4042, %s4039, 31
        %p4044 = scmp.lt.s32.totalorder %s23, 0
        %s4045 = scalar_select %p4044, %s23, 0
        %s4046 = sadd.s32 %s4045, %s4043
        %s4047 = smul.addr %s4041, 32
        %s4048 = sadd.s32 %s4046, %s4047
        %s4049 = smul.addr %s4048, 4
        %s4050 = scalar_lea.vmem %s4, %s4049
      $region48: #{conv_bn_hswish.1} parent=43 // pred_fallthru
        _
    $region44: #{conv_bn_hswish.1} parent=5 // pred_fallthru
      _
  $region6: #{conv_bn_hswish.1} parent=0 // loop_footer
    %s14 = sadd.s32 1, %s10
  $region7: #{conv_bn_hswish.1} parent=0 // loop_footer_branch
    %9 = sbr.rel target = $region3
  $region8: #{conv_bn_hswish.1} parent=0 // loop_exit
    _

// kernel: conv_bn_hswish.1
$region0: #{conv_bn_hswish.1}
  #allocation0 [shape = 'u32[]', space=smem, size = 0x4, offset = 0x4, fixed_abs, tag = 'smem constant byte address 0x4 - core index']
  #allocation1 [shape = 'u32[72,128]{1,0:T(1,128)}', space=vmem, size = 0x9000, scoped, tag = 'internal scratch']
  #allocation2 [shape = 'bf16[256,36]{1,0:T(8,128)(2,1)}', space=vmem, size = 0x10000, scoped, tag = 'scratch operand']
  %s0 = inlined_call_operand.vmem [shape: bf16[2,18,18,4], index: 0, kind: input, shape index: {}]
  %s1 = inlined_call_operand.vmem [shape: bf16[36,128], index: 1, kind: input, shape index: {}]
  %s2 = inlined_call_operand.vmem [shape: f32[1,128], index: 2, kind: input, shape index: {}]
  %s3 = inlined_call_operand.vmem [shape: f32[1,128], index: 3, kind: input, shape index: {}]
  %s4 = inlined_call_operand.vmem [shape: bf16[2,256,128], index: 4, kind: output, shape index: {}]
  %s5 = sld [smem:[#allocation0]]
  $region49: #{conv_bn_hswish.1} parent=0
    _
  %s7 = ssub.s32 1, %s5
  %s8 = scalar_select 0, %s7, %s5
  loop: start=0, step=1, limit=4
  $region2: #{conv_bn_hswish.1} parent=0 // loop_pre_header
    _
  $region3: #{conv_bn_hswish.1} parent=0 // loop_header
    %s10 = sphi 0, %s14
    %p11 = scmp.ge.s32.totalorder %s10, 4
    %s17 = sphi 0, %s36
    %s18 = sphi 0, %s32
    %s19 = sphi 0, %s28
    %s20 = sphi 0, %s17
    %s21 = sphi 0, %s18
    %s22 = sphi 0, %s19
    %s23 = sphi 0, %s20
    %s24 = sphi 0, %s21
    %s25 = sphi 0, %s22
    %s39 = sphi 0, %s41
    %s42 = sphi 0, %s39
    %s43 = sphi 0, %s42
    %s59 = sphi 0, %s43
    %s65 = sphi 0, %s67
    %s68 = sphi 0, %s65
    %s69 = sphi 0, %s68
    %s85 = sphi 0, %s69
    %s91 = sphi 0, %s93
    %s94 = sphi 0, %s91
    %s95 = sphi 0, %s94
    %s111 = sphi 0, %s95
    %s117 = sphi 0, %s119
    %s120 = sphi 0, %s117
    %s121 = sphi 0, %s120
    %s137 = sphi 0, %s121
    %s147 = sphi 0, %s149
    %s150 = sphi 0, %s147
    %s151 = sphi 0, %s150
    %s167 = sphi 0, %s151
  $region4: #{conv_bn_hswish.1} parent=0 // loop_header_branch
    %13 = sbr.rel (%p11) target = $region8
  $region5: #{conv_bn_hswish.1} parent=0 // loop_body
    %s15 = ssub.s32 %s10, 1
    %s16 = ssub.s32 %s10, 2
    %s26 = sadd.s32 1, %s19
    %p27 = scmp.ge.s32.totalorder %s26, 1
    %s28 = scalar_select %p27, 0, %s26
    %s29 = sadd.s32 1, %s18
    %s30 = scalar_select %p27, %s29, %s18
    %p31 = scmp.ge.s32.totalorder %s30, 2
    %s32 = scalar_select %p31, 0, %s30
    %s33 = sadd.s32 1, %s17
    %s34 = scalar_select %p31, %s33, %s17
    %p35 = scmp.ge.s32.totalorder %s34, 1
    %s36 = scalar_select %p35, 0, %s34
    %s37 = ssub.s32 %s18, %s32
    %p38 = scmp.eq.s32.totalorder %s37, 0
    %s40 = sadd.s32 %s39, 1
    %s41 = scalar_select %p38, %s39, %s40
    %p44 = pneg %p38
    %p45 = scmp.eq.s32.totalorder %s10, 1
    %p46 = por %p44, %p45
    %p47 = scmp.ne.s32.totalorder %s39, %s42
    %p48 = scmp.eq.s32.totalorder %s10, 0
    %p49 = por %p47, %p48
    %p50 = scmp.ne.s32.totalorder %s39, %s42
    %p51 = scmp.eq.s32.totalorder %s15, 1
    %p52 = por %p50, %p51
    %p53 = scmp.ne.s32.totalorder %s42, %s43
    %p54 = scmp.eq.s32.totalorder %s15, 0
    %p55 = por %p53, %p54
    %p56 = scmp.ne.s32.totalorder %s42, %s43
    %p57 = scmp.eq.s32.totalorder %s16, 1
    %p58 = por %p56, %p57
    %p60 = scmp.ne.s32.totalorder %s43, %s59
    %p61 = scmp.eq.s32.totalorder %s16, 0
    %p62 = por %p60, %p61
    %s63 = ssub.s32 %s17, %s36
    %p64 = scmp.eq.s32.totalorder %s63, 0
    %s66 = sadd.s32 %s65, 1
    %s67 = scalar_select %p64, %s65, %s66
    %p70 = pneg %p64
    %p71 = scmp.eq.s32.totalorder %s10, 1
    %p72 = por %p70, %p71
    %p73 = scmp.ne.s32.totalorder %s65, %s68
    %p74 = scmp.eq.s32.totalorder %s10, 0
    %p75 = por %p73, %p74
    %p76 = scmp.ne.s32.totalorder %s65, %s68
    %p77 = scmp.eq.s32.totalorder %s15, 1
    %p78 = por %p76, %p77
    %p79 = scmp.ne.s32.totalorder %s68, %s69
    %p80 = scmp.eq.s32.totalorder %s15, 0
    %p81 = por %p79, %p80
    %p82 = scmp.ne.s32.totalorder %s68, %s69
    %p83 = scmp.eq.s32.totalorder %s16, 1
    %p84 = por %p82, %p83
    %p86 = scmp.ne.s32.totalorder %s69, %s85
    %p87 = scmp.eq.s32.totalorder %s16, 0
    %p88 = por %p86, %p87
    %s89 = ssub.s32 %s17, %s36
    %p90 = scmp.eq.s32.totalorder %s89, 0
    %s92 = sadd.s32 %s91, 1
    %s93 = scalar_select %p90, %s91, %s92
    %p96 = pneg %p90
    %p97 = scmp.eq.s32.totalorder %s10, 1
    %p98 = por %p96, %p97
    %p99 = scmp.ne.s32.totalorder %s91, %s94
    %p100 = scmp.eq.s32.totalorder %s10, 0
    %p101 = por %p99, %p100
    %p102 = scmp.ne.s32.totalorder %s91, %s94
    %p103 = scmp.eq.s32.totalorder %s15, 1
    %p104 = por %p102, %p103
    %p105 = scmp.ne.s32.totalorder %s94, %s95
    %p106 = scmp.eq.s32.totalorder %s15, 0
    %p107 = por %p105, %p106
    %p108 = scmp.ne.s32.totalorder %s94, %s95
    %p109 = scmp.eq.s32.totalorder %s16, 1
    %p110 = por %p108, %p109
    %p112 = scmp.ne.s32.totalorder %s95, %s111
    %p113 = scmp.eq.s32.totalorder %s16, 0
    %p114 = por %p112, %p113
    %s115 = ssub.s32 %s17, %s36
    %p116 = scmp.eq.s32.totalorder %s115, 0
    %s118 = sadd.s32 %s117, 1
    %s119 = scalar_select %p116, %s117, %s118
    %p122 = pneg %p116
    %p123 = scmp.eq.s32.totalorder %s10, 1
    %p124 = por %p122, %p123
    %p125 = scmp.ne.s32.totalorder %s117, %s120
    %p126 = scmp.eq.s32.totalorder %s10, 0
    %p127 = por %p125, %p126
    %p128 = scmp.ne.s32.totalorder %s117, %s120
    %p129 = scmp.eq.s32.totalorder %s15, 1
    %p130 = por %p128, %p129
    %p131 = scmp.ne.s32.totalorder %s120, %s121
    %p132 = scmp.eq.s32.totalorder %s15, 0
    %p133 = por %p131, %p132
    %p134 = scmp.ne.s32.totalorder %s120, %s121
    %p135 = scmp.eq.s32.totalorder %s16, 1
    %p136 = por %p134, %p135
    %p138 = scmp.ne.s32.totalorder %s121, %s137
    %p139 = scmp.eq.s32.totalorder %s16, 0
    %p140 = por %p138, %p139
    %s141 = ssub.s32 %s18, %s32
    %s142 = ssub.s32 %s19, %s28
    %s143 = sor.u32 %s141, %s142
    %s144 = ssub.s32 %s17, %s36
    %s145 = sor.u32 %s143, %s144
    %p146 = scmp.eq.s32.totalorder %s145, 0
    %s148 = sadd.s32 %s147, 1
    %s149 = scalar_select %p146, %s147, %s148
    %p152 = pneg %p146
    %p153 = scmp.eq.s32.totalorder %s10, 1
    %p154 = por %p152, %p153
    %p155 = scmp.ne.s32.totalorder %s147, %s150
    %p156 = scmp.eq.s32.totalorder %s10, 0
    %p157 = por %p155, %p156
    %p158 = scmp.ne.s32.totalorder %s147, %s150
    %p159 = scmp.eq.s32.totalorder %s15, 1
    %p160 = por %p158, %p159
    %p161 = scmp.ne.s32.totalorder %s150, %s151
    %p162 = scmp.eq.s32.totalorder %s15, 0
    %p163 = por %p161, %p162
    %p164 = scmp.ne.s32.totalorder %s150, %s151
    %p165 = scmp.eq.s32.totalorder %s16, 1
    %p166 = por %p164, %p165
    %p168 = scmp.ne.s32.totalorder %s151, %s167
    %p169 = scmp.eq.s32.totalorder %s16, 0
    %p170 = por %p168, %p169
    %p171 = scmp.le.s32.totalorder 1, %s10
    %p172 = scmp.lt.s32.totalorder %s10, 3
    %p173 = pnand %p171, %p172
    %p174 = pneg %p173
    // Predicated region
    $region9: #{conv_bn_hswish.1} parent=5 // pred_check
      _
    $region10: #{conv_bn_hswish.1} parent=5 // pred_check_branch
      %176 = sbr.rel (%p173) target = $region12
    $region11: #{conv_bn_hswish.1} parent=5 // pred_region
      %s177 = ssub.s32 %s10, 1
      // Predicated region
      $region13: #{conv_bn_hswish.1} parent=11 // pred_check
        %p178 = pneg %p81
      $region14: #{conv_bn_hswish.1} parent=11 // pred_check_branch
        %180 = sbr.rel (%p178) target = $region16
      $region15: #{conv_bn_hswish.1} parent=11 // pred_region
        %p181 = scmp.lt.s32.totalorder %s20, 0
        %s182 = scalar_select %p181, %s20, 0
        %s183 = smul.addr %s182, 4
        %s184 = scalar_lea.vmem %s1, %s183
      $region16: #{conv_bn_hswish.1} parent=11 // pred_fallthru
        _
      // Predicated region
      $region17: #{conv_bn_hswish.1} parent=11 // pred_check
        %p185 = pneg %p107
      $region18: #{conv_bn_hswish.1} parent=11 // pred_check_branch
        %187 = sbr.rel (%p185) target = $region20
      $region19: #{conv_bn_hswish.1} parent=11 // pred_region
        %p188 = scmp.lt.s32.totalorder %s20, 0
        %s189 = scalar_select %p188, %s20, 0
        %s190 = scalar_lea.vmem %s2, %s189
      $region20: #{conv_bn_hswish.1} parent=11 // pred_fallthru
        _
      // Predicated region
      $region21: #{conv_bn_hswish.1} parent=11 // pred_check
        %p191 = pneg %p133
      $region22: #{conv_bn_hswish.1} parent=11 // pred_check_branch
        %193 = sbr.rel (%p191) target = $region24
      $region23: #{conv_bn_hswish.1} parent=11 // pred_region
        %p194 = scmp.lt.s32.totalorder %s20, 0
        %s195 = scalar_select %p194, %s20, 0
        %s196 = scalar_lea.vmem %s3, %s195
      $region24: #{conv_bn_hswish.1} parent=11 // pred_fallthru
        _
    $region12: #{conv_bn_hswish.1} parent=5 // pred_fallthru
      _
    %p197 = scmp.lt.s32.totalorder %s10, 2
    // Predicated region
    $region25: #{conv_bn_hswish.1} parent=5 // pred_check
      %p198 = pneg %p197
    $region26: #{conv_bn_hswish.1} parent=5 // pred_check_branch
      %200 = sbr.rel (%p198) target = $region28
    $region27: #{conv_bn_hswish.1} parent=5 // pred_region
      // Predicated region
      $region29: #{conv_bn_hswish.1} parent=27 // pred_check
        %p201 = pneg %p49
      $region30: #{conv_bn_hswish.1} parent=27 // pred_check_branch
        %203 = sbr.rel (%p201) target = $region32
      $region31: #{conv_bn_hswish.1} parent=27 // pred_region
        %p204 = scmp.lt.s32.totalorder %s18, 1
        %s205 = scalar_select %p204, %s18, 1
        %s206 = smul.addr %s205, 54
        %s207 = smul.addr %s206, 4
        %s208 = scalar_lea.vmem %s0, %s207
      $region32: #{conv_bn_hswish.1} parent=27 // pred_fallthru
        _
    $region28: #{conv_bn_hswish.1} parent=5 // pred_fallthru
      _
    %p209 = scmp.le.s32.totalorder 1, %s10
    %p210 = scmp.lt.s32.totalorder %s10, 3
    %p211 = pnand %p209, %p210
    %p212 = pneg %p211
    // Predicated region
    $region33: #{conv_bn_hswish.1} parent=5 // pred_check
      _
    $region34: #{conv_bn_hswish.1} parent=5 // pred_check_branch
      %214 = sbr.rel (%p211) target = $region36
    $region35: #{conv_bn_hswish.1} parent=5 // pred_region
      %s215 = ssub.s32 %s10, 1
      %p216 = scmp.lt.s32.totalorder %s21, 1
      %s217 = scalar_select %p216, %s21, 1
      %s218 = smul.addr %s217, 54
      %s219 = smul.addr %s218, 4
      %s220 = scalar_lea.vmem %s0, %s219
      %p221 = pneg %p55
      %p222 = pneg %p52
      %p223 = scmp.lt.s32.totalorder %s20, 0
      %s224 = scalar_select %p223, %s20, 0
      %s225 = smul.addr %s224, 4
      %s226 = scalar_lea.vmem %s1, %s225
      %p227 = pneg %p81
      %p228 = pneg %p78
      %p229 = scmp.lt.s32.totalorder %s20, 0
      %s230 = scalar_select %p229, %s20, 0
      %s231 = scalar_lea.vmem %s2, %s230
      %p232 = pneg %p107
      %p233 = pneg %p104
      %p234 = scmp.lt.s32.totalorder %s20, 0
      %s235 = scalar_select %p234, %s20, 0
      %s236 = scalar_lea.vmem %s3, %s235
      %p237 = pneg %p133
      %p238 = pneg %p130
      %p239 = pneg %p163
      %p240 = pneg %p160
      %s241 = smul.u32 32, %s22
      %p242 = scmp.lt.s32.totalorder %s21, 1
      %s243 = scalar_select %p242, %s21, 1
      %p244 = scmp.lt.s32.totalorder %s241, 31
      %s245 = scalar_select %p244, %s241, 31
      %p246 = scmp.lt.s32.totalorder %s20, 0
      %s247 = scalar_select %p246, %s20, 0
      %s248 = sadd.s32 %s247, %s245
      %s249 = smul.addr %s243, 32
      %s250 = sadd.s32 %s248, %s249
      %s251 = smul.addr %s250, 4
      %s252 = scalar_lea.vmem %s4, %s251
      %p253 = scmp.lt.s32.totalorder %s21, 1
      %s254 = scalar_select %p253, %s21, 1
      %s255 = smul.addr %s254, 54
      %s256 = smul.addr %s255, 4
      %s257 = scalar_lea.vmem %s0, %s256
      %p258 = scmp.lt.s32.totalorder %s20, 0
      %s259 = scalar_select %p258, %s20, 0
      %s260 = smul.addr %s259, 4
      %s261 = scalar_lea.vmem %s1, %s260
      %p262 = scmp.lt.s32.totalorder %s20, 0
      %s263 = scalar_select %p262, %s20, 0
      %s264 = scalar_lea.vmem %s2, %s263
      %p265 = scmp.lt.s32.totalorder %s20, 0
      %s266 = scalar_select %p265, %s20, 0
      %s267 = scalar_lea.vmem %s3, %s266
      %s268 = smul.u32 32, %s22
      %p269 = scmp.lt.s32.totalorder %s21, 1
      %s270 = scalar_select %p269, %s21, 1
      %p271 = scmp.lt.s32.totalorder %s268, 31
      %s272 = scalar_select %p271, %s268, 31
      %p273 = scmp.lt.s32.totalorder %s20, 0
      %s274 = scalar_select %p273, %s20, 0
      %s275 = sadd.s32 %s274, %s272
      %s276 = smul.addr %s270, 32
      %s277 = sadd.s32 %s275, %s276
      %s278 = smul.addr %s277, 4
      %s279 = scalar_lea.vmem %s4, %s278
      %s280 = smul.u32 32, %s22
      %s282 = smul.u32 %s22, 16
      %s283 = smul.u32 %s282, 3
      %s284 = smul.addr %s283, 4
      %s285 = scalar_lea.vmem %s257, %s284
      %v286 = vld [vmem:[%s285] sm:$0xf]
      %v287 = vld [vmem:[%s285 + $0x4] sm:$0xf]
      %vm288 = vcmask 27648
      %289 = vst.msk [vmem:[#allocation2] sm:$0xf] %vm288, %v286
      %290 = vst.msk [vmem:[#allocation2 + $0x4] sm:$0xf] %vm288, %v287
      %s291 = sadd.s32 %s282, 1
      %s292 = smul.u32 %s291, 3
      %s293 = smul.addr %s292, 4
      %s294 = scalar_lea.vmem %s257, %s293
      %v295 = vld [vmem:[%s294] sm:$0xf]
      %v296 = vld [vmem:[%s294 + $0x4] sm:$0xf]
      %297 = vst.msk [vmem:[#allocation2 + $0x8] sm:$0xf] %vm288, %v295
      %298 = vst.msk [vmem:[#allocation2 + $0xc] sm:$0xf] %vm288, %v296
      %s299 = sadd.s32 %s282, 2
      %s300 = smul.u32 %s299, 3
      %s301 = smul.addr %s300, 4
      %s302 = scalar_lea.vmem %s257, %s301
      %v303 = vld [vmem:[%s302] sm:$0xf]
      %v304 = vld [vmem:[%s302 + $0x4] sm:$0xf]
      %305 = vst.msk [vmem:[#allocation2 + $0x10] sm:$0xf] %vm288, %v303
      %306 = vst.msk [vmem:[#allocation2 + $0x14] sm:$0xf] %vm288, %v304
      %s307 = sadd.s32 %s282, 3
      %s308 = smul.u32 %s307, 3
      %s309 = smul.addr %s308, 4
      %s310 = scalar_lea.vmem %s257, %s309
      %v311 = vld [vmem:[%s310] sm:$0xf]
      %v312 = vld [vmem:[%s310 + $0x4] sm:$0xf]
      %313 = vst.msk [vmem:[#allocation2 + $0x18] sm:$0xf] %vm288, %v311
      %314 = vst.msk [vmem:[#allocation2 + $0x1c] sm:$0xf] %vm288, %v312
      %s315 = sadd.s32 %s282, 4
      %s316 = smul.u32 %s315, 3
      %s317 = smul.addr %s316, 4
      %s318 = scalar_lea.vmem %s257, %s317
      %v319 = vld [vmem:[%s318] sm:$0xf]
      %v320 = vld [vmem:[%s318 + $0x4] sm:$0xf]
      %321 = vst.msk [vmem:[#allocation2 + $0x20] sm:$0xf] %vm288, %v319
      %322 = vst.msk [vmem:[#allocation2 + $0x24] sm:$0xf] %vm288, %v320
      %s323 = sadd.s32 %s282, 5
      %s324 = smul.u32 %s323, 3
      %s325 = smul.addr %s324, 4
      %s326 = scalar_lea.vmem %s257, %s325
      %v327 = vld [vmem:[%s326] sm:$0xf]
      %v328 = vld [vmem:[%s326 + $0x4] sm:$0xf]
      %329 = vst.msk [vmem:[#allocation2 + $0x28] sm:$0xf] %vm288, %v327
      %330 = vst.msk [vmem:[#allocation2 + $0x2c] sm:$0xf] %vm288, %v328
      %s331 = sadd.s32 %s282, 6
      %s332 = smul.u32 %s331, 3
      %s333 = smul.addr %s332, 4
      %s334 = scalar_lea.vmem %s257, %s333
      %v335 = vld [vmem:[%s334] sm:$0xf]
      %v336 = vld [vmem:[%s334 + $0x4] sm:$0xf]
      %337 = vst.msk [vmem:[#allocation2 + $0x30] sm:$0xf] %vm288, %v335
      %338 = vst.msk [vmem:[#allocation2 + $0x34] sm:$0xf] %vm288, %v336
      %s339 = sadd.s32 %s282, 7
      %s340 = smul.u32 %s339, 3
      %s341 = smul.addr %s340, 4
      %s342 = scalar_lea.vmem %s257, %s341
      %v343 = vld [vmem:[%s342] sm:$0xf]
      %v344 = vld [vmem:[%s342 + $0x4] sm:$0xf]
      %345 = vst.msk [vmem:[#allocation2 + $0x38] sm:$0xf] %vm288, %v343
      %346 = vst.msk [vmem:[#allocation2 + $0x3c] sm:$0xf] %vm288, %v344
      %s347 = sadd.s32 %s282, 8
      %s348 = smul.u32 %s347, 3
      %s349 = smul.addr %s348, 4
      %s350 = scalar_lea.vmem %s257, %s349
      %v351 = vld [vmem:[%s350] sm:$0xf]
      %v352 = vld [vmem:[%s350 + $0x4] sm:$0xf]
      %353 = vst.msk [vmem:[#allocation2 + $0x40] sm:$0xf] %vm288, %v351
      %354 = vst.msk [vmem:[#allocation2 + $0x44] sm:$0xf] %vm288, %v352
      %s355 = sadd.s32 %s282, 9
      %s356 = smul.u32 %s355, 3
      %s357 = smul.addr %s356, 4
      %s358 = scalar_lea.vmem %s257, %s357
      %v359 = vld [vmem:[%s358] sm:$0xf]
      %v360 = vld [vmem:[%s358 + $0x4] sm:$0xf]
      %361 = vst.msk [vmem:[#allocation2 + $0x48] sm:$0xf] %vm288, %v359
      %362 = vst.msk [vmem:[#allocation2 + $0x4c] sm:$0xf] %vm288, %v360
      %s363 = sadd.s32 %s282, 10
      %s364 = smul.u32 %s363, 3
      %s365 = smul.addr %s364, 4
      %s366 = scalar_lea.vmem %s257, %s365
      %v367 = vld [vmem:[%s366] sm:$0xf]
      %v368 = vld [vmem:[%s366 + $0x4] sm:$0xf]
      %369 = vst.msk [vmem:[#allocation2 + $0x50] sm:$0xf] %vm288, %v367
      %370 = vst.msk [vmem:[#allocation2 + $0x54] sm:$0xf] %vm288, %v368
      %s371 = sadd.s32 %s282, 11
      %s372 = smul.u32 %s371, 3
      %s373 = smul.addr %s372, 4
      %s374 = scalar_lea.vmem %s257, %s373
      %v375 = vld [vmem:[%s374] sm:$0xf]
      %v376 = vld [vmem:[%s374 + $0x4] sm:$0xf]
      %377 = vst.msk [vmem:[#allocation2 + $0x58] sm:$0xf] %vm288, %v375
      %378 = vst.msk [vmem:[#allocation2 + $0x5c] sm:$0xf] %vm288, %v376
      %s379 = sadd.s32 %s282, 12
      %s380 = smul.u32 %s379, 3
      %s381 = smul.addr %s380, 4
      %s382 = scalar_lea.vmem %s257, %s381
      %v383 = vld [vmem:[%s382] sm:$0xf]
      %v384 = vld [vmem:[%s382 + $0x4] sm:$0xf]
      %385 = vst.msk [vmem:[#allocation2 + $0x60] sm:$0xf] %vm288, %v383
      %386 = vst.msk [vmem:[#allocation2 + $0x64] sm:$0xf] %vm288, %v384
      %s387 = sadd.s32 %s282, 13
      %s388 = smul.u32 %s387, 3
      %s389 = smul.addr %s388, 4
      %s390 = scalar_lea.vmem %s257, %s389
      %v391 = vld [vmem:[%s390] sm:$0xf]
      %v392 = vld [vmem:[%s390 + $0x4] sm:$0xf]
      %393 = vst.msk [vmem:[#allocation2 + $0x68] sm:$0xf] %vm288, %v391
      %394 = vst.msk [vmem:[#allocation2 + $0x6c] sm:$0xf] %vm288, %v392
      %s395 = sadd.s32 %s282, 14
      %s396 = smul.u32 %s395, 3
      %s397 = smul.addr %s396, 4
      %s398 = scalar_lea.vmem %s257, %s397
      %v399 = vld [vmem:[%s398] sm:$0xf]
      %v400 = vld [vmem:[%s398 + $0x4] sm:$0xf]
      %401 = vst.msk [vmem:[#allocation2 + $0x70] sm:$0xf] %vm288, %v399
      %402 = vst.msk [vmem:[#allocation2 + $0x74] sm:$0xf] %vm288, %v400
      %s403 = sadd.s32 %s282, 15
      %s404 = smul.u32 %s403, 3
      %s405 = smul.addr %s404, 4
      %s406 = scalar_lea.vmem %s257, %s405
      %v407 = vld [vmem:[%s406] sm:$0xf]
      %v408 = vld [vmem:[%s406 + $0x4] sm:$0xf]
      %409 = vst.msk [vmem:[#allocation2 + $0x78] sm:$0xf] %vm288, %v407
      %410 = vst.msk [vmem:[#allocation2 + $0x7c] sm:$0xf] %vm288, %v408
      %v411 = vld [vmem:[%s285] sm:$0xf]
      %v412 = vld [vmem:[%s285 + $0x4] sm:$0xf]
      %v413 = vld [vmem:[%s285 + $0x8] sm:$0x1]
      %vm414 = vsmask.f32 3328
      %vm415 = vsmask.f32 7440
      %vm416 = vmor %vm414, %vm415
      %v418 = vshrl.u32 %v411, 16
      %v420 = vrot.slane %v418, 4
      %v421 = vshll.u32 %v411, 16
      %v423 = vrot.slane %v421, 5
      %v424 = vor.u32 %v420, %v423
      %v425 = vrot.slane %v424, 4
      %v427 = vshll.u32 %v412, 16
      %v429 = vrot.slane %v427, 5
      %v430 = vsel %vm416, %v425, %v429
      %v431 = vshrl.u32 %v412, 16
      %v433 = vrot.slane %v431, 4
      %v434 = vor.u32 %v433, %v429
      %v435 = vrot.slane %v434, 4
      %v437 = vshll.u32 %v413, 16
      %v439 = vrot.slane %v437, 5
      %v440 = vsel %vm416, %v435, %v439
      %441 = vrot.lane.b32.xlu0 %v430, 4
      %v442 = vpop.permute.xlu0 %441
      %443 = vrot.lane.b32.xlu0 %v440, 4
      %v444 = vpop.permute.xlu0 %443
      %vm447 = vcmask 60448
      %448 = vst.msk [vmem:[#allocation2] sm:$0xf] %vm447, %v442
      %449 = vst.msk [vmem:[#allocation2 + $0x4] sm:$0xf] %vm447, %v444
      %v450 = vld [vmem:[%s294] sm:$0xf]
      %v451 = vld [vmem:[%s294 + $0x4] sm:$0xf]
      %v452 = vld [vmem:[%s294 + $0x8] sm:$0x1]
      %v454 = vshrl.u32 %v450, 16
      %v456 = vrot.slane %v454, 4
      %v457 = vshll.u32 %v450, 16
      %v459 = vrot.slane %v457, 5
      %v460 = vor.u32 %v456, %v459
      %v461 = vrot.slane %v460, 4
      %v463 = vshll.u32 %v451, 16
      %v465 = vrot.slane %v463, 5
      %v466 = vsel %vm416, %v461, %v465
      %v467 = vshrl.u32 %v451, 16
      %v469 = vrot.slane %v467, 4
      %v470 = vor.u32 %v469, %v465
      %v471 = vrot.slane %v470, 4
      %v473 = vshll.u32 %v452, 16
      %v475 = vrot.slane %v473, 5
      %v476 = vsel %vm416, %v471, %v475
      %477 = vrot.lane.b32.xlu0 %v466, 4
      %v478 = vpop.permute.xlu0 %477
      %479 = vrot.lane.b32.xlu0 %v476, 4
      %v480 = vpop.permute.xlu0 %479
      %483 = vst.msk [vmem:[#allocation2 + $0x8] sm:$0xf] %vm447, %v478
      %484 = vst.msk [vmem:[#allocation2 + $0xc] sm:$0xf] %vm447, %v480
      %v485 = vld [vmem:[%s302] sm:$0xf]
      %v486 = vld [vmem:[%s302 + $0x4] sm:$0xf]
      %v487 = vld [vmem:[%s302 + $0x8] sm:$0x1]
      %v489 = vshrl.u32 %v485, 16
      %v491 = vrot.slane %v489, 4
      %v492 = vshll.u32 %v485, 16
      %v494 = vrot.slane %v492, 5
      %v495 = vor.u32 %v491, %v494
      %v496 = vrot.slane %v495, 4
      %v498 = vshll.u32 %v486, 16
      %v500 = vrot.slane %v498, 5
      %v501 = vsel %vm416, %v496, %v500
      %v502 = vshrl.u32 %v486, 16
      %v504 = vrot.slane %v502, 4
      %v505 = vor.u32 %v504, %v500
      %v506 = vrot.slane %v505, 4
      %v508 = vshll.u32 %v487, 16
      %v510 = vrot.slane %v508, 5
      %v511 = vsel %vm416, %v506, %v510
      %512 = vrot.lane.b32.xlu0 %v501, 4
      %v513 = vpop.permute.xlu0 %512
      %514 = vrot.lane.b32.xlu0 %v511, 4
      %v515 = vpop.permute.xlu0 %514
      %518 = vst.msk [vmem:[#allocation2 + $0x10] sm:$0xf] %vm447, %v513
      %519 = vst.msk [vmem:[#allocation2 + $0x14] sm:$0xf] %vm447, %v515
      %v520 = vld [vmem:[%s310] sm:$0xf]
      %v521 = vld [vmem:[%s310 + $0x4] sm:$0xf]
      %v522 = vld [vmem:[%s310 + $0x8] sm:$0x1]
      %v524 = vshrl.u32 %v520, 16
      %v526 = vrot.slane %v524, 4
      %v527 = vshll.u32 %v520, 16
      %v529 = vrot.slane %v527, 5
      %v530 = vor.u32 %v526, %v529
      %v531 = vrot.slane %v530, 4
      %v533 = vshll.u32 %v521, 16
      %v535 = vrot.slane %v533, 5
      %v536 = vsel %vm416, %v531, %v535
      %v537 = vshrl.u32 %v521, 16
      %v539 = vrot.slane %v537, 4
      %v540 = vor.u32 %v539, %v535
      %v541 = vrot.slane %v540, 4
      %v543 = vshll.u32 %v522, 16
      %v545 = vrot.slane %v543, 5
      %v546 = vsel %vm416, %v541, %v545
      %547 = vrot.lane.b32.xlu0 %v536, 4
      %v548 = vpop.permute.xlu0 %547
      %549 = vrot.lane.b32.xlu0 %v546, 4
      %v550 = vpop.permute.xlu0 %549
      %553 = vst.msk [vmem:[#allocation2 + $0x18] sm:$0xf] %vm447, %v548
      %554 = vst.msk [vmem:[#allocation2 + $0x1c] sm:$0xf] %vm447, %v550
      %v555 = vld [vmem:[%s318] sm:$0xf]
      %v556 = vld [vmem:[%s318 + $0x4] sm:$0xf]
      %v557 = vld [vmem:[%s318 + $0x8] sm:$0x1]
      %v559 = vshrl.u32 %v555, 16
      %v561 = vrot.slane %v559, 4
      %v562 = vshll.u32 %v555, 16
      %v564 = vrot.slane %v562, 5
      %v565 = vor.u32 %v561, %v564
      %v566 = vrot.slane %v565, 4
      %v568 = vshll.u32 %v556, 16
      %v570 = vrot.slane %v568, 5
      %v571 = vsel %vm416, %v566, %v570
      %v572 = vshrl.u32 %v556, 16
      %v574 = vrot.slane %v572, 4
      %v575 = vor.u32 %v574, %v570
      %v576 = vrot.slane %v575, 4
      %v578 = vshll.u32 %v557, 16
      %v580 = vrot.slane %v578, 5
      %v581 = vsel %vm416, %v576, %v580
      %582 = vrot.lane.b32.xlu0 %v571, 4
      %v583 = vpop.permute.xlu0 %582
      %584 = vrot.lane.b32.xlu0 %v581, 4
      %v585 = vpop.permute.xlu0 %584
      %588 = vst.msk [vmem:[#allocation2 + $0x20] sm:$0xf] %vm447, %v583
      %589 = vst.msk [vmem:[#allocation2 + $0x24] sm:$0xf] %vm447, %v585
      %v590 = vld [vmem:[%s326] sm:$0xf]
      %v591 = vld [vmem:[%s326 + $0x4] sm:$0xf]
      %v592 = vld [vmem:[%s326 + $0x8] sm:$0x1]
      %v594 = vshrl.u32 %v590, 16
      %v596 = vrot.slane %v594, 4
      %v597 = vshll.u32 %v590, 16
      %v599 = vrot.slane %v597, 5
      %v600 = vor.u32 %v596, %v599
      %v601 = vrot.slane %v600, 4
      %v603 = vshll.u32 %v591, 16
      %v605 = vrot.slane %v603, 5
      %v606 = vsel %vm416, %v601, %v605
      %v607 = vshrl.u32 %v591, 16
      %v609 = vrot.slane %v607, 4
      %v610 = vor.u32 %v609, %v605
      %v611 = vrot.slane %v610, 4
      %v613 = vshll.u32 %v592, 16
      %v615 = vrot.slane %v613, 5
      %v616 = vsel %vm416, %v611, %v615
      %617 = vrot.lane.b32.xlu0 %v606, 4
      %v618 = vpop.permute.xlu0 %617
      %619 = vrot.lane.b32.xlu0 %v616, 4
      %v620 = vpop.permute.xlu0 %619
      %623 = vst.msk [vmem:[#allocation2 + $0x28] sm:$0xf] %vm447, %v618
      %624 = vst.msk [vmem:[#allocation2 + $0x2c] sm:$0xf] %vm447, %v620
      %v625 = vld [vmem:[%s334] sm:$0xf]
      %v626 = vld [vmem:[%s334 + $0x4] sm:$0xf]
      %v627 = vld [vmem:[%s334 + $0x8] sm:$0x1]
      %v629 = vshrl.u32 %v625, 16
      %v631 = vrot.slane %v629, 4
      %v632 = vshll.u32 %v625, 16
      %v634 = vrot.slane %v632, 5
      %v635 = vor.u32 %v631, %v634
      %v636 = vrot.slane %v635, 4
      %v638 = vshll.u32 %v626, 16
      %v640 = vrot.slane %v638, 5
      %v641 = vsel %vm416, %v636, %v640
      %v642 = vshrl.u32 %v626, 16
      %v644 = vrot.slane %v642, 4
      %v645 = vor.u32 %v644, %v640
      %v646 = vrot.slane %v645, 4
      %v648 = vshll.u32 %v627, 16
      %v650 = vrot.slane %v648, 5
      %v651 = vsel %vm416, %v646, %v650
      %652 = vrot.lane.b32.xlu0 %v641, 4
      %v653 = vpop.permute.xlu0 %652
      %654 = vrot.lane.b32.xlu0 %v651, 4
      %v655 = vpop.permute.xlu0 %654
      %658 = vst.msk [vmem:[#allocation2 + $0x30] sm:$0xf] %vm447, %v653
      %659 = vst.msk [vmem:[#allocation2 + $0x34] sm:$0xf] %vm447, %v655
      %v660 = vld [vmem:[%s342] sm:$0xf]
      %v661 = vld [vmem:[%s342 + $0x4] sm:$0xf]
      %v662 = vld [vmem:[%s342 + $0x8] sm:$0x1]
      %v664 = vshrl.u32 %v660, 16
      %v666 = vrot.slane %v664, 4
      %v667 = vshll.u32 %v660, 16
      %v669 = vrot.slane %v667, 5
      %v670 = vor.u32 %v666, %v669
      %v671 = vrot.slane %v670, 4
      %v673 = vshll.u32 %v661, 16
      %v675 = vrot.slane %v673, 5
      %v676 = vsel %vm416, %v671, %v675
      %v677 = vshrl.u32 %v661, 16
      %v679 = vrot.slane %v677, 4
      %v680 = vor.u32 %v679, %v675
      %v681 = vrot.slane %v680, 4
      %v683 = vshll.u32 %v662, 16
      %v685 = vrot.slane %v683, 5
      %v686 = vsel %vm416, %v681, %v685
      %687 = vrot.lane.b32.xlu0 %v676, 4
      %v688 = vpop.permute.xlu0 %687
      %689 = vrot.lane.b32.xlu0 %v686, 4
      %v690 = vpop.permute.xlu0 %689
      %693 = vst.msk [vmem:[#allocation2 + $0x38] sm:$0xf] %vm447, %v688
      %694 = vst.msk [vmem:[#allocation2 + $0x3c] sm:$0xf] %vm447, %v690
      %v695 = vld [vmem:[%s350] sm:$0xf]
      %v696 = vld [vmem:[%s350 + $0x4] sm:$0xf]
      %v697 = vld [vmem:[%s350 + $0x8] sm:$0x1]
      %v699 = vshrl.u32 %v695, 16
      %v701 = vrot.slane %v699, 4
      %v702 = vshll.u32 %v695, 16
      %v704 = vrot.slane %v702, 5
      %v705 = vor.u32 %v701, %v704
      %v706 = vrot.slane %v705, 4
      %v708 = vshll.u32 %v696, 16
      %v710 = vrot.slane %v708, 5
      %v711 = vsel %vm416, %v706, %v710
      %v712 = vshrl.u32 %v696, 16
      %v714 = vrot.slane %v712, 4
      %v715 = vor.u32 %v714, %v710
      %v716 = vrot.slane %v715, 4
      %v718 = vshll.u32 %v697, 16
      %v720 = vrot.slane %v718, 5
      %v721 = vsel %vm416, %v716, %v720
      %722 = vrot.lane.b32.xlu0 %v711, 4
      %v723 = vpop.permute.xlu0 %722
      %724 = vrot.lane.b32.xlu0 %v721, 4
      %v725 = vpop.permute.xlu0 %724
      %728 = vst.msk [vmem:[#allocation2 + $0x40] sm:$0xf] %vm447, %v723
      %729 = vst.msk [vmem:[#allocation2 + $0x44] sm:$0xf] %vm447, %v725
      %v730 = vld [vmem:[%s358] sm:$0xf]
      %v731 = vld [vmem:[%s358 + $0x4] sm:$0xf]
      %v732 = vld [vmem:[%s358 + $0x8] sm:$0x1]
      %v734 = vshrl.u32 %v730, 16
      %v736 = vrot.slane %v734, 4
      %v737 = vshll.u32 %v730, 16
      %v739 = vrot.slane %v737, 5
      %v740 = vor.u32 %v736, %v739
      %v741 = vrot.slane %v740, 4
      %v743 = vshll.u32 %v731, 16
      %v745 = vrot.slane %v743, 5
      %v746 = vsel %vm416, %v741, %v745
      %v747 = vshrl.u32 %v731, 16
      %v749 = vrot.slane %v747, 4
      %v750 = vor.u32 %v749, %v745
      %v751 = vrot.slane %v750, 4
      %v753 = vshll.u32 %v732, 16
      %v755 = vrot.slane %v753, 5
      %v756 = vsel %vm416, %v751, %v755
      %757 = vrot.lane.b32.xlu0 %v746, 4
      %v758 = vpop.permute.xlu0 %757
      %759 = vrot.lane.b32.xlu0 %v756, 4
      %v760 = vpop.permute.xlu0 %759
      %763 = vst.msk [vmem:[#allocation2 + $0x48] sm:$0xf] %vm447, %v758
      %764 = vst.msk [vmem:[#allocation2 + $0x4c] sm:$0xf] %vm447, %v760
      %v765 = vld [vmem:[%s366] sm:$0xf]
      %v766 = vld [vmem:[%s366 + $0x4] sm:$0xf]
      %v767 = vld [vmem:[%s366 + $0x8] sm:$0x1]
      %v769 = vshrl.u32 %v765, 16
      %v771 = vrot.slane %v769, 4
      %v772 = vshll.u32 %v765, 16
      %v774 = vrot.slane %v772, 5
      %v775 = vor.u32 %v771, %v774
      %v776 = vrot.slane %v775, 4
      %v778 = vshll.u32 %v766, 16
      %v780 = vrot.slane %v778, 5
      %v781 = vsel %vm416, %v776, %v780
      %v782 = vshrl.u32 %v766, 16
      %v784 = vrot.slane %v782, 4
      %v785 = vor.u32 %v784, %v780
      %v786 = vrot.slane %v785, 4
      %v788 = vshll.u32 %v767, 16
      %v790 = vrot.slane %v788, 5
      %v791 = vsel %vm416, %v786, %v790
      %792 = vrot.lane.b32.xlu0 %v781, 4
      %v793 = vpop.permute.xlu0 %792
      %794 = vrot.lane.b32.xlu0 %v791, 4
      %v795 = vpop.permute.xlu0 %794
      %798 = vst.msk [vmem:[#allocation2 + $0x50] sm:$0xf] %vm447, %v793
      %799 = vst.msk [vmem:[#allocation2 + $0x54] sm:$0xf] %vm447, %v795
      %v800 = vld [vmem:[%s374] sm:$0xf]
      %v801 = vld [vmem:[%s374 + $0x4] sm:$0xf]
      %v802 = vld [vmem:[%s374 + $0x8] sm:$0x1]
      %v804 = vshrl.u32 %v800, 16
      %v806 = vrot.slane %v804, 4
      %v807 = vshll.u32 %v800, 16
      %v809 = vrot.slane %v807, 5
      %v810 = vor.u32 %v806, %v809
      %v811 = vrot.slane %v810, 4
      %v813 = vshll.u32 %v801, 16
      %v815 = vrot.slane %v813, 5
      %v816 = vsel %vm416, %v811, %v815
      %v817 = vshrl.u32 %v801, 16
      %v819 = vrot.slane %v817, 4
      %v820 = vor.u32 %v819, %v815
      %v821 = vrot.slane %v820, 4
      %v823 = vshll.u32 %v802, 16
      %v825 = vrot.slane %v823, 5
      %v826 = vsel %vm416, %v821, %v825
      %827 = vrot.lane.b32.xlu0 %v816, 4
      %v828 = vpop.permute.xlu0 %827
      %829 = vrot.lane.b32.xlu0 %v826, 4
      %v830 = vpop.permute.xlu0 %829
      %833 = vst.msk [vmem:[#allocation2 + $0x58] sm:$0xf] %vm447, %v828
      %834 = vst.msk [vmem:[#allocation2 + $0x5c] sm:$0xf] %vm447, %v830
      %v835 = vld [vmem:[%s382] sm:$0xf]
      %v836 = vld [vmem:[%s382 + $0x4] sm:$0xf]
      %v837 = vld [vmem:[%s382 + $0x8] sm:$0x1]
      %v839 = vshrl.u32 %v835, 16
      %v841 = vrot.slane %v839, 4
      %v842 = vshll.u32 %v835, 16
      %v844 = vrot.slane %v842, 5
      %v845 = vor.u32 %v841, %v844
      %v846 = vrot.slane %v845, 4
      %v848 = vshll.u32 %v836, 16
      %v850 = vrot.slane %v848, 5
      %v851 = vsel %vm416, %v846, %v850
      %v852 = vshrl.u32 %v836, 16
      %v854 = vrot.slane %v852, 4
      %v855 = vor.u32 %v854, %v850
      %v856 = vrot.slane %v855, 4
      %v858 = vshll.u32 %v837, 16
      %v860 = vrot.slane %v858, 5
      %v861 = vsel %vm416, %v856, %v860
      %862 = vrot.lane.b32.xlu0 %v851, 4
      %v863 = vpop.permute.xlu0 %862
      %864 = vrot.lane.b32.xlu0 %v861, 4
      %v865 = vpop.permute.xlu0 %864
      %868 = vst.msk [vmem:[#allocation2 + $0x60] sm:$0xf] %vm447, %v863
      %869 = vst.msk [vmem:[#allocation2 + $0x64] sm:$0xf] %vm447, %v865
      %v870 = vld [vmem:[%s390] sm:$0xf]
      %v871 = vld [vmem:[%s390 + $0x4] sm:$0xf]
      %v872 = vld [vmem:[%s390 + $0x8] sm:$0x1]
      %v874 = vshrl.u32 %v870, 16
      %v876 = vrot.slane %v874, 4
      %v877 = vshll.u32 %v870, 16
      %v879 = vrot.slane %v877, 5
      %v880 = vor.u32 %v876, %v879
      %v881 = vrot.slane %v880, 4
      %v883 = vshll.u32 %v871, 16
      %v885 = vrot.slane %v883, 5
      %v886 = vsel %vm416, %v881, %v885
      %v887 = vshrl.u32 %v871, 16
      %v889 = vrot.slane %v887, 4
      %v890 = vor.u32 %v889, %v885
      %v891 = vrot.slane %v890, 4
      %v893 = vshll.u32 %v872, 16
      %v895 = vrot.slane %v893, 5
      %v896 = vsel %vm416, %v891, %v895
      %897 = vrot.lane.b32.xlu0 %v886, 4
      %v898 = vpop.permute.xlu0 %897
      %899 = vrot.lane.b32.xlu0 %v896, 4
      %v900 = vpop.permute.xlu0 %899
      %903 = vst.msk [vmem:[#allocation2 + $0x68] sm:$0xf] %vm447, %v898
      %904 = vst.msk [vmem:[#allocation2 + $0x6c] sm:$0xf] %vm447, %v900
      %v905 = vld [vmem:[%s398] sm:$0xf]
      %v906 = vld [vmem:[%s398 + $0x4] sm:$0xf]
      %v907 = vld [vmem:[%s398 + $0x8] sm:$0x1]
      %v909 = vshrl.u32 %v905, 16
      %v911 = vrot.slane %v909, 4
      %v912 = vshll.u32 %v905, 16
      %v914 = vrot.slane %v912, 5
      %v915 = vor.u32 %v911, %v914
      %v916 = vrot.slane %v915, 4
      %v918 = vshll.u32 %v906, 16
      %v920 = vrot.slane %v918, 5
      %v921 = vsel %vm416, %v916, %v920
      %v922 = vshrl.u32 %v906, 16
      %v924 = vrot.slane %v922, 4
      %v925 = vor.u32 %v924, %v920
      %v926 = vrot.slane %v925, 4
      %v928 = vshll.u32 %v907, 16
      %v930 = vrot.slane %v928, 5
      %v931 = vsel %vm416, %v926, %v930
      %932 = vrot.lane.b32.xlu0 %v921, 4
      %v933 = vpop.permute.xlu0 %932
      %934 = vrot.lane.b32.xlu0 %v931, 4
      %v935 = vpop.permute.xlu0 %934
      %938 = vst.msk [vmem:[#allocation2 + $0x70] sm:$0xf] %vm447, %v933
      %939 = vst.msk [vmem:[#allocation2 + $0x74] sm:$0xf] %vm447, %v935
      %v940 = vld [vmem:[%s406] sm:$0xf]
      %v941 = vld [vmem:[%s406 + $0x4] sm:$0xf]
      %v942 = vld [vmem:[%s406 + $0x8] sm:$0x1]
      %v944 = vshrl.u32 %v940, 16
      %v946 = vrot.slane %v944, 4
      %v947 = vshll.u32 %v940, 16
      %v949 = vrot.slane %v947, 5
      %v950 = vor.u32 %v946, %v949
      %v951 = vrot.slane %v950, 4
      %v953 = vshll.u32 %v941, 16
      %v955 = vrot.slane %v953, 5
      %v956 = vsel %vm416, %v951, %v955
      %v957 = vshrl.u32 %v941, 16
      %v959 = vrot.slane %v957, 4
      %v960 = vor.u32 %v959, %v955
      %v961 = vrot.slane %v960, 4
      %v963 = vshll.u32 %v942, 16
      %v965 = vrot.slane %v963, 5
      %v966 = vsel %vm416, %v961, %v965
      %967 = vrot.lane.b32.xlu0 %v956, 4
      %v968 = vpop.permute.xlu0 %967
      %969 = vrot.lane.b32.xlu0 %v966, 4
      %v970 = vpop.permute.xlu0 %969
      %973 = vst.msk [vmem:[#allocation2 + $0x78] sm:$0xf] %vm447, %v968
      %974 = vst.msk [vmem:[#allocation2 + $0x7c] sm:$0xf] %vm447, %v970
      %v975 = vld [vmem:[%s285] sm:$0xe]
      %v976 = vld [vmem:[%s285 + $0x4] sm:$0xf]
      %v977 = vld [vmem:[%s285 + $0x8] sm:$0x1]
      %vm981 = vcmask 1042432
      %vm982 = vcmask 1046532
      %vm983 = vmor %vm981, %vm982
      %v984 = vrot.slane %v975, 5
      %v985 = vrot.slane %v984, 4
      %v986 = vrot.slane %v976, 5
      %v987 = vsel %vm983, %v985, %v986
      %v988 = vrot.slane %v986, 4
      %v989 = vrot.slane %v977, 5
      %v990 = vsel %vm983, %v988, %v989
      %991 = vrot.lane.b32.xlu0 %v987, 8
      %v992 = vpop.permute.xlu0 %991
      %993 = vrot.lane.b32.xlu0 %v990, 8
      %v994 = vpop.permute.xlu0 %993
      %vm997 = vcmask 93248
      %998 = vst.msk [vmem:[#allocation2] sm:$0xf] %vm997, %v992
      %999 = vst.msk [vmem:[#allocation2 + $0x4] sm:$0xf] %vm997, %v994
      %v1000 = vld [vmem:[%s294] sm:$0xe]
      %v1001 = vld [vmem:[%s294 + $0x4] sm:$0xf]
      %v1002 = vld [vmem:[%s294 + $0x8] sm:$0x1]
      %v1006 = vrot.slane %v1000, 5
      %v1007 = vrot.slane %v1006, 4
      %v1008 = vrot.slane %v1001, 5
      %v1009 = vsel %vm983, %v1007, %v1008
      %v1010 = vrot.slane %v1008, 4
      %v1011 = vrot.slane %v1002, 5
      %v1012 = vsel %vm983, %v1010, %v1011
      %1013 = vrot.lane.b32.xlu0 %v1009, 8
      %v1014 = vpop.permute.xlu0 %1013
      %1015 = vrot.lane.b32.xlu0 %v1012, 8
      %v1016 = vpop.permute.xlu0 %1015
      %1019 = vst.msk [vmem:[#allocation2 + $0x8] sm:$0xf] %vm997, %v1014
      %1020 = vst.msk [vmem:[#allocation2 + $0xc] sm:$0xf] %vm997, %v1016
      %v1021 = vld [vmem:[%s302] sm:$0xe]
      %v1022 = vld [vmem:[%s302 + $0x4] sm:$0xf]
      %v1023 = vld [vmem:[%s302 + $0x8] sm:$0x1]
      %v1027 = vrot.slane %v1021, 5
      %v1028 = vrot.slane %v1027, 4
      %v1029 = vrot.slane %v1022, 5
      %v1030 = vsel %vm983, %v1028, %v1029
      %v1031 = vrot.slane %v1029, 4
      %v1032 = vrot.slane %v1023, 5
      %v1033 = vsel %vm983, %v1031, %v1032
      %1034 = vrot.lane.b32.xlu0 %v1030, 8
      %v1035 = vpop.permute.xlu0 %1034
      %1036 = vrot.lane.b32.xlu0 %v1033, 8
      %v1037 = vpop.permute.xlu0 %1036
      %1040 = vst.msk [vmem:[#allocation2 + $0x10] sm:$0xf] %vm997, %v1035
      %1041 = vst.msk [vmem:[#allocation2 + $0x14] sm:$0xf] %vm997, %v1037
      %v1042 = vld [vmem:[%s310] sm:$0xe]
      %v1043 = vld [vmem:[%s310 + $0x4] sm:$0xf]
      %v1044 = vld [vmem:[%s310 + $0x8] sm:$0x1]
      %v1048 = vrot.slane %v1042, 5
      %v1049 = vrot.slane %v1048, 4
      %v1050 = vrot.slane %v1043, 5
      %v1051 = vsel %vm983, %v1049, %v1050
      %v1052 = vrot.slane %v1050, 4
      %v1053 = vrot.slane %v1044, 5
      %v1054 = vsel %vm983, %v1052, %v1053
      %1055 = vrot.lane.b32.xlu0 %v1051, 8
      %v1056 = vpop.permute.xlu0 %1055
      %1057 = vrot.lane.b32.xlu0 %v1054, 8
      %v1058 = vpop.permute.xlu0 %1057
      %1061 = vst.msk [vmem:[#allocation2 + $0x18] sm:$0xf] %vm997, %v1056
      %1062 = vst.msk [vmem:[#allocation2 + $0x1c] sm:$0xf] %vm997, %v1058
      %v1063 = vld [vmem:[%s318] sm:$0xe]
      %v1064 = vld [vmem:[%s318 + $0x4] sm:$0xf]
      %v1065 = vld [vmem:[%s318 + $0x8] sm:$0x1]
      %v1069 = vrot.slane %v1063, 5
      %v1070 = vrot.slane %v1069, 4
      %v1071 = vrot.slane %v1064, 5
      %v1072 = vsel %vm983, %v1070, %v1071
      %v1073 = vrot.slane %v1071, 4
      %v1074 = vrot.slane %v1065, 5
      %v1075 = vsel %vm983, %v1073, %v1074
      %1076 = vrot.lane.b32.xlu0 %v1072, 8
      %v1077 = vpop.permute.xlu0 %1076
      %1078 = vrot.lane.b32.xlu0 %v1075, 8
      %v1079 = vpop.permute.xlu0 %1078
      %1082 = vst.msk [vmem:[#allocation2 + $0x20] sm:$0xf] %vm997, %v1077
      %1083 = vst.msk [vmem:[#allocation2 + $0x24] sm:$0xf] %vm997, %v1079
      %v1084 = vld [vmem:[%s326] sm:$0xe]
      %v1085 = vld [vmem:[%s326 + $0x4] sm:$0xf]
      %v1086 = vld [vmem:[%s326 + $0x8] sm:$0x1]
      %v1090 = vrot.slane %v1084, 5
      %v1091 = vrot.slane %v1090, 4
      %v1092 = vrot.slane %v1085, 5
      %v1093 = vsel %vm983, %v1091, %v1092
      %v1094 = vrot.slane %v1092, 4
      %v1095 = vrot.slane %v1086, 5
      %v1096 = vsel %vm983, %v1094, %v1095
      %1097 = vrot.lane.b32.xlu0 %v1093, 8
      %v1098 = vpop.permute.xlu0 %1097
      %1099 = vrot.lane.b32.xlu0 %v1096, 8
      %v1100 = vpop.permute.xlu0 %1099
      %1103 = vst.msk [vmem:[#allocation2 + $0x28] sm:$0xf] %vm997, %v1098
      %1104 = vst.msk [vmem:[#allocation2 + $0x2c] sm:$0xf] %vm997, %v1100
      %v1105 = vld [vmem:[%s334] sm:$0xe]
      %v1106 = vld [vmem:[%s334 + $0x4] sm:$0xf]
      %v1107 = vld [vmem:[%s334 + $0x8] sm:$0x1]
      %v1111 = vrot.slane %v1105, 5
      %v1112 = vrot.slane %v1111, 4
      %v1113 = vrot.slane %v1106, 5
      %v1114 = vsel %vm983, %v1112, %v1113
      %v1115 = vrot.slane %v1113, 4
      %v1116 = vrot.slane %v1107, 5
      %v1117 = vsel %vm983, %v1115, %v1116
      %1118 = vrot.lane.b32.xlu0 %v1114, 8
      %v1119 = vpop.permute.xlu0 %1118
      %1120 = vrot.lane.b32.xlu0 %v1117, 8
      %v1121 = vpop.permute.xlu0 %1120
      %1124 = vst.msk [vmem:[#allocation2 + $0x30] sm:$0xf] %vm997, %v1119
      %1125 = vst.msk [vmem:[#allocation2 + $0x34] sm:$0xf] %vm997, %v1121
      %v1126 = vld [vmem:[%s342] sm:$0xe]
      %v1127 = vld [vmem:[%s342 + $0x4] sm:$0xf]
      %v1128 = vld [vmem:[%s342 + $0x8] sm:$0x1]
      %v1132 = vrot.slane %v1126, 5
      %v1133 = vrot.slane %v1132, 4
      %v1134 = vrot.slane %v1127, 5
      %v1135 = vsel %vm983, %v1133, %v1134
      %v1136 = vrot.slane %v1134, 4
      %v1137 = vrot.slane %v1128, 5
      %v1138 = vsel %vm983, %v1136, %v1137
      %1139 = vrot.lane.b32.xlu0 %v1135, 8
      %v1140 = vpop.permute.xlu0 %1139
      %1141 = vrot.lane.b32.xlu0 %v1138, 8
      %v1142 = vpop.permute.xlu0 %1141
      %1145 = vst.msk [vmem:[#allocation2 + $0x38] sm:$0xf] %vm997, %v1140
      %1146 = vst.msk [vmem:[#allocation2 + $0x3c] sm:$0xf] %vm997, %v1142
      %v1147 = vld [vmem:[%s350] sm:$0xe]
      %v1148 = vld [vmem:[%s350 + $0x4] sm:$0xf]
      %v1149 = vld [vmem:[%s350 + $0x8] sm:$0x1]
      %v1153 = vrot.slane %v1147, 5
      %v1154 = vrot.slane %v1153, 4
      %v1155 = vrot.slane %v1148, 5
      %v1156 = vsel %vm983, %v1154, %v1155
      %v1157 = vrot.slane %v1155, 4
      %v1158 = vrot.slane %v1149, 5
      %v1159 = vsel %vm983, %v1157, %v1158
      %1160 = vrot.lane.b32.xlu0 %v1156, 8
      %v1161 = vpop.permute.xlu0 %1160
      %1162 = vrot.lane.b32.xlu0 %v1159, 8
      %v1163 = vpop.permute.xlu0 %1162
      %1166 = vst.msk [vmem:[#allocation2 + $0x40] sm:$0xf] %vm997, %v1161
      %1167 = vst.msk [vmem:[#allocation2 + $0x44] sm:$0xf] %vm997, %v1163
      %v1168 = vld [vmem:[%s358] sm:$0xe]
      %v1169 = vld [vmem:[%s358 + $0x4] sm:$0xf]
      %v1170 = vld [vmem:[%s358 + $0x8] sm:$0x1]
      %v1174 = vrot.slane %v1168, 5
      %v1175 = vrot.slane %v1174, 4
      %v1176 = vrot.slane %v1169, 5
      %v1177 = vsel %vm983, %v1175, %v1176
      %v1178 = vrot.slane %v1176, 4
      %v1179 = vrot.slane %v1170, 5
      %v1180 = vsel %vm983, %v1178, %v1179
      %1181 = vrot.lane.b32.xlu0 %v1177, 8
      %v1182 = vpop.permute.xlu0 %1181
      %1183 = vrot.lane.b32.xlu0 %v1180, 8
      %v1184 = vpop.permute.xlu0 %1183
      %1187 = vst.msk [vmem:[#allocation2 + $0x48] sm:$0xf] %vm997, %v1182
      %1188 = vst.msk [vmem:[#allocation2 + $0x4c] sm:$0xf] %vm997, %v1184
      %v1189 = vld [vmem:[%s366] sm:$0xe]
      %v1190 = vld [vmem:[%s366 + $0x4] sm:$0xf]
      %v1191 = vld [vmem:[%s366 + $0x8] sm:$0x1]
      %v1195 = vrot.slane %v1189, 5
      %v1196 = vrot.slane %v1195, 4
      %v1197 = vrot.slane %v1190, 5
      %v1198 = vsel %vm983, %v1196, %v1197
      %v1199 = vrot.slane %v1197, 4
      %v1200 = vrot.slane %v1191, 5
      %v1201 = vsel %vm983, %v1199, %v1200
      %1202 = vrot.lane.b32.xlu0 %v1198, 8
      %v1203 = vpop.permute.xlu0 %1202
      %1204 = vrot.lane.b32.xlu0 %v1201, 8
      %v1205 = vpop.permute.xlu0 %1204
      %1208 = vst.msk [vmem:[#allocation2 + $0x50] sm:$0xf] %vm997, %v1203
      %1209 = vst.msk [vmem:[#allocation2 + $0x54] sm:$0xf] %vm997, %v1205
      %v1210 = vld [vmem:[%s374] sm:$0xe]
      %v1211 = vld [vmem:[%s374 + $0x4] sm:$0xf]
      %v1212 = vld [vmem:[%s374 + $0x8] sm:$0x1]
      %v1216 = vrot.slane %v1210, 5
      %v1217 = vrot.slane %v1216, 4
      %v1218 = vrot.slane %v1211, 5
      %v1219 = vsel %vm983, %v1217, %v1218
      %v1220 = vrot.slane %v1218, 4
      %v1221 = vrot.slane %v1212, 5
      %v1222 = vsel %vm983, %v1220, %v1221
      %1223 = vrot.lane.b32.xlu0 %v1219, 8
      %v1224 = vpop.permute.xlu0 %1223
      %1225 = vrot.lane.b32.xlu0 %v1222, 8
      %v1226 = vpop.permute.xlu0 %1225
      %1229 = vst.msk [vmem:[#allocation2 + $0x58] sm:$0xf] %vm997, %v1224
      %1230 = vst.msk [vmem:[#allocation2 + $0x5c] sm:$0xf] %vm997, %v1226
      %v1231 = vld [vmem:[%s382] sm:$0xe]
      %v1232 = vld [vmem:[%s382 + $0x4] sm:$0xf]
      %v1233 = vld [vmem:[%s382 + $0x8] sm:$0x1]
      %v1237 = vrot.slane %v1231, 5
      %v1238 = vrot.slane %v1237, 4
      %v1239 = vrot.slane %v1232, 5
      %v1240 = vsel %vm983, %v1238, %v1239
      %v1241 = vrot.slane %v1239, 4
      %v1242 = vrot.slane %v1233, 5
      %v1243 = vsel %vm983, %v1241, %v1242
      %1244 = vrot.lane.b32.xlu0 %v1240, 8
      %v1245 = vpop.permute.xlu0 %1244
      %1246 = vrot.lane.b32.xlu0 %v1243, 8
      %v1247 = vpop.permute.xlu0 %1246
      %1250 = vst.msk [vmem:[#allocation2 + $0x60] sm:$0xf] %vm997, %v1245
      %1251 = vst.msk [vmem:[#allocation2 + $0x64] sm:$0xf] %vm997, %v1247
      %v1252 = vld [vmem:[%s390] sm:$0xe]
      %v1253 = vld [vmem:[%s390 + $0x4] sm:$0xf]
      %v1254 = vld [vmem:[%s390 + $0x8] sm:$0x1]
      %v1258 = vrot.slane %v1252, 5
      %v1259 = vrot.slane %v1258, 4
      %v1260 = vrot.slane %v1253, 5
      %v1261 = vsel %vm983, %v1259, %v1260
      %v1262 = vrot.slane %v1260, 4
      %v1263 = vrot.slane %v1254, 5
      %v1264 = vsel %vm983, %v1262, %v1263
      %1265 = vrot.lane.b32.xlu0 %v1261, 8
      %v1266 = vpop.permute.xlu0 %1265
      %1267 = vrot.lane.b32.xlu0 %v1264, 8
      %v1268 = vpop.permute.xlu0 %1267
      %1271 = vst.msk [vmem:[#allocation2 + $0x68] sm:$0xf] %vm997, %v1266
      %1272 = vst.msk [vmem:[#allocation2 + $0x6c] sm:$0xf] %vm997, %v1268
      %v1273 = vld [vmem:[%s398] sm:$0xe]
      %v1274 = vld [vmem:[%s398 + $0x4] sm:$0xf]
      %v1275 = vld [vmem:[%s398 + $0x8] sm:$0x1]
      %v1279 = vrot.slane %v1273, 5
      %v1280 = vrot.slane %v1279, 4
      %v1281 = vrot.slane %v1274, 5
      %v1282 = vsel %vm983, %v1280, %v1281
      %v1283 = vrot.slane %v1281, 4
      %v1284 = vrot.slane %v1275, 5
      %v1285 = vsel %vm983, %v1283, %v1284
      %1286 = vrot.lane.b32.xlu0 %v1282, 8
      %v1287 = vpop.permute.xlu0 %1286
      %1288 = vrot.lane.b32.xlu0 %v1285, 8
      %v1289 = vpop.permute.xlu0 %1288
      %1292 = vst.msk [vmem:[#allocation2 + $0x70] sm:$0xf] %vm997, %v1287
      %1293 = vst.msk [vmem:[#allocation2 + $0x74] sm:$0xf] %vm997, %v1289
      %v1294 = vld [vmem:[%s406] sm:$0xe]
      %v1295 = vld [vmem:[%s406 + $0x4] sm:$0xf]
      %v1296 = vld [vmem:[%s406 + $0x8] sm:$0x1]
      %v1300 = vrot.slane %v1294, 5
      %v1301 = vrot.slane %v1300, 4
      %v1302 = vrot.slane %v1295, 5
      %v1303 = vsel %vm983, %v1301, %v1302
      %v1304 = vrot.slane %v1302, 4
      %v1305 = vrot.slane %v1296, 5
      %v1306 = vsel %vm983, %v1304, %v1305
      %1307 = vrot.lane.b32.xlu0 %v1303, 8
      %v1308 = vpop.permute.xlu0 %1307
      %1309 = vrot.lane.b32.xlu0 %v1306, 8
      %v1310 = vpop.permute.xlu0 %1309
      %1313 = vst.msk [vmem:[#allocation2 + $0x78] sm:$0xf] %vm997, %v1308
      %1314 = vst.msk [vmem:[#allocation2 + $0x7c] sm:$0xf] %vm997, %v1310
      %v1315 = vld [vmem:[%s294] sm:$0xf]
      %v1316 = vld [vmem:[%s294 + $0x4] sm:$0xf]
      %1319 = vrot.lane.b32.xlu0 %v1315, 12
      %v1320 = vpop.permute.xlu0 %1319
      %1321 = vrot.lane.b32.xlu0 %v1316, 12
      %v1322 = vpop.permute.xlu0 %1321
      %vm1325 = vcmask 126048
      %1326 = vst.msk [vmem:[#allocation2] sm:$0xf] %vm1325, %v1320
      %1327 = vst.msk [vmem:[#allocation2 + $0x4] sm:$0xf] %vm1325, %v1322
      %v1328 = vld [vmem:[%s302] sm:$0xf]
      %v1329 = vld [vmem:[%s302 + $0x4] sm:$0xf]
      %1332 = vrot.lane.b32.xlu0 %v1328, 12
      %v1333 = vpop.permute.xlu0 %1332
      %1334 = vrot.lane.b32.xlu0 %v1329, 12
      %v1335 = vpop.permute.xlu0 %1334
      %1338 = vst.msk [vmem:[#allocation2 + $0x8] sm:$0xf] %vm1325, %v1333
      %1339 = vst.msk [vmem:[#allocation2 + $0xc] sm:$0xf] %vm1325, %v1335
      %v1340 = vld [vmem:[%s310] sm:$0xf]
      %v1341 = vld [vmem:[%s310 + $0x4] sm:$0xf]
      %1344 = vrot.lane.b32.xlu0 %v1340, 12
      %v1345 = vpop.permute.xlu0 %1344
      %1346 = vrot.lane.b32.xlu0 %v1341, 12
      %v1347 = vpop.permute.xlu0 %1346
      %1350 = vst.msk [vmem:[#allocation2 + $0x10] sm:$0xf] %vm1325, %v1345
      %1351 = vst.msk [vmem:[#allocation2 + $0x14] sm:$0xf] %vm1325, %v1347
      %v1352 = vld [vmem:[%s318] sm:$0xf]
      %v1353 = vld [vmem:[%s318 + $0x4] sm:$0xf]
      %1356 = vrot.lane.b32.xlu0 %v1352, 12
      %v1357 = vpop.permute.xlu0 %1356
      %1358 = vrot.lane.b32.xlu0 %v1353, 12
      %v1359 = vpop.permute.xlu0 %1358
      %1362 = vst.msk [vmem:[#allocation2 + $0x18] sm:$0xf] %vm1325, %v1357
      %1363 = vst.msk [vmem:[#allocation2 + $0x1c] sm:$0xf] %vm1325, %v1359
      %v1364 = vld [vmem:[%s326] sm:$0xf]
      %v1365 = vld [vmem:[%s326 + $0x4] sm:$0xf]
      %1368 = vrot.lane.b32.xlu0 %v1364, 12
      %v1369 = vpop.permute.xlu0 %1368
      %1370 = vrot.lane.b32.xlu0 %v1365, 12
      %v1371 = vpop.permute.xlu0 %1370
      %1374 = vst.msk [vmem:[#allocation2 + $0x20] sm:$0xf] %vm1325, %v1369
      %1375 = vst.msk [vmem:[#allocation2 + $0x24] sm:$0xf] %vm1325, %v1371
      %v1376 = vld [vmem:[%s334] sm:$0xf]
      %v1377 = vld [vmem:[%s334 + $0x4] sm:$0xf]
      %1380 = vrot.lane.b32.xlu0 %v1376, 12
      %v1381 = vpop.permute.xlu0 %1380
      %1382 = vrot.lane.b32.xlu0 %v1377, 12
      %v1383 = vpop.permute.xlu0 %1382
      %1386 = vst.msk [vmem:[#allocation2 + $0x28] sm:$0xf] %vm1325, %v1381
      %1387 = vst.msk [vmem:[#allocation2 + $0x2c] sm:$0xf] %vm1325, %v1383
      %v1388 = vld [vmem:[%s342] sm:$0xf]
      %v1389 = vld [vmem:[%s342 + $0x4] sm:$0xf]
      %1392 = vrot.lane.b32.xlu0 %v1388, 12
      %v1393 = vpop.permute.xlu0 %1392
      %1394 = vrot.lane.b32.xlu0 %v1389, 12
      %v1395 = vpop.permute.xlu0 %1394
      %1398 = vst.msk [vmem:[#allocation2 + $0x30] sm:$0xf] %vm1325, %v1393
      %1399 = vst.msk [vmem:[#allocation2 + $0x34] sm:$0xf] %vm1325, %v1395
      %v1400 = vld [vmem:[%s350] sm:$0xf]
      %v1401 = vld [vmem:[%s350 + $0x4] sm:$0xf]
      %1404 = vrot.lane.b32.xlu0 %v1400, 12
      %v1405 = vpop.permute.xlu0 %1404
      %1406 = vrot.lane.b32.xlu0 %v1401, 12
      %v1407 = vpop.permute.xlu0 %1406
      %1410 = vst.msk [vmem:[#allocation2 + $0x38] sm:$0xf] %vm1325, %v1405
      %1411 = vst.msk [vmem:[#allocation2 + $0x3c] sm:$0xf] %vm1325, %v1407
      %v1412 = vld [vmem:[%s358] sm:$0xf]
      %v1413 = vld [vmem:[%s358 + $0x4] sm:$0xf]
      %1416 = vrot.lane.b32.xlu0 %v1412, 12
      %v1417 = vpop.permute.xlu0 %1416
      %1418 = vrot.lane.b32.xlu0 %v1413, 12
      %v1419 = vpop.permute.xlu0 %1418
      %1422 = vst.msk [vmem:[#allocation2 + $0x40] sm:$0xf] %vm1325, %v1417
      %1423 = vst.msk [vmem:[#allocation2 + $0x44] sm:$0xf] %vm1325, %v1419
      %v1424 = vld [vmem:[%s366] sm:$0xf]
      %v1425 = vld [vmem:[%s366 + $0x4] sm:$0xf]
      %1428 = vrot.lane.b32.xlu0 %v1424, 12
      %v1429 = vpop.permute.xlu0 %1428
      %1430 = vrot.lane.b32.xlu0 %v1425, 12
      %v1431 = vpop.permute.xlu0 %1430
      %1434 = vst.msk [vmem:[#allocation2 + $0x48] sm:$0xf] %vm1325, %v1429
      %1435 = vst.msk [vmem:[#allocation2 + $0x4c] sm:$0xf] %vm1325, %v1431
      %v1436 = vld [vmem:[%s374] sm:$0xf]
      %v1437 = vld [vmem:[%s374 + $0x4] sm:$0xf]
      %1440 = vrot.lane.b32.xlu0 %v1436, 12
      %v1441 = vpop.permute.xlu0 %1440
      %1442 = vrot.lane.b32.xlu0 %v1437, 12
      %v1443 = vpop.permute.xlu0 %1442
      %1446 = vst.msk [vmem:[#allocation2 + $0x50] sm:$0xf] %vm1325, %v1441
      %1447 = vst.msk [vmem:[#allocation2 + $0x54] sm:$0xf] %vm1325, %v1443
      %v1448 = vld [vmem:[%s382] sm:$0xf]
      %v1449 = vld [vmem:[%s382 + $0x4] sm:$0xf]
      %1452 = vrot.lane.b32.xlu0 %v1448, 12
      %v1453 = vpop.permute.xlu0 %1452
      %1454 = vrot.lane.b32.xlu0 %v1449, 12
      %v1455 = vpop.permute.xlu0 %1454
      %1458 = vst.msk [vmem:[#allocation2 + $0x58] sm:$0xf] %vm1325, %v1453
      %1459 = vst.msk [vmem:[#allocation2 + $0x5c] sm:$0xf] %vm1325, %v1455
      %v1460 = vld [vmem:[%s390] sm:$0xf]
      %v1461 = vld [vmem:[%s390 + $0x4] sm:$0xf]
      %1464 = vrot.lane.b32.xlu0 %v1460, 12
      %v1465 = vpop.permute.xlu0 %1464
      %1466 = vrot.lane.b32.xlu0 %v1461, 12
      %v1467 = vpop.permute.xlu0 %1466
      %1470 = vst.msk [vmem:[#allocation2 + $0x60] sm:$0xf] %vm1325, %v1465
      %1471 = vst.msk [vmem:[#allocation2 + $0x64] sm:$0xf] %vm1325, %v1467
      %v1472 = vld [vmem:[%s398] sm:$0xf]
      %v1473 = vld [vmem:[%s398 + $0x4] sm:$0xf]
      %1476 = vrot.lane.b32.xlu0 %v1472, 12
      %v1477 = vpop.permute.xlu0 %1476
      %1478 = vrot.lane.b32.xlu0 %v1473, 12
      %v1479 = vpop.permute.xlu0 %1478
      %1482 = vst.msk [vmem:[#allocation2 + $0x68] sm:$0xf] %vm1325, %v1477
      %1483 = vst.msk [vmem:[#allocation2 + $0x6c] sm:$0xf] %vm1325, %v1479
      %v1484 = vld [vmem:[%s406] sm:$0xf]
      %v1485 = vld [vmem:[%s406 + $0x4] sm:$0xf]
      %1488 = vrot.lane.b32.xlu0 %v1484, 12
      %v1489 = vpop.permute.xlu0 %1488
      %1490 = vrot.lane.b32.xlu0 %v1485, 12
      %v1491 = vpop.permute.xlu0 %1490
      %1494 = vst.msk [vmem:[#allocation2 + $0x70] sm:$0xf] %vm1325, %v1489
      %1495 = vst.msk [vmem:[#allocation2 + $0x74] sm:$0xf] %vm1325, %v1491
      %s1496 = sadd.s32 %s282, 16
      %s1497 = smul.u32 %s1496, 3
      %s1498 = smul.addr %s1497, 4
      %s1499 = scalar_lea.vmem %s257, %s1498
      %v1500 = vld [vmem:[%s1499] sm:$0xf]
      %v1501 = vld [vmem:[%s1499 + $0x4] sm:$0xf]
      %1504 = vrot.lane.b32.xlu0 %v1500, 12
      %v1505 = vpop.permute.xlu0 %1504
      %1506 = vrot.lane.b32.xlu0 %v1501, 12
      %v1507 = vpop.permute.xlu0 %1506
      %1510 = vst.msk [vmem:[#allocation2 + $0x78] sm:$0xf] %vm1325, %v1505
      %1511 = vst.msk [vmem:[#allocation2 + $0x7c] sm:$0xf] %vm1325, %v1507
      %v1512 = vld [vmem:[%s294] sm:$0xf]
      %v1513 = vld [vmem:[%s294 + $0x4] sm:$0xf]
      %v1514 = vld [vmem:[%s294 + $0x8] sm:$0x1]
      %v1516 = vshrl.u32 %v1512, 16
      %v1518 = vrot.slane %v1516, 4
      %v1519 = vshll.u32 %v1512, 16
      %v1521 = vrot.slane %v1519, 5
      %v1522 = vor.u32 %v1518, %v1521
      %v1523 = vrot.slane %v1522, 4
      %v1525 = vshll.u32 %v1513, 16
      %v1527 = vrot.slane %v1525, 5
      %v1528 = vsel %vm416, %v1523, %v1527
      %v1529 = vshrl.u32 %v1513, 16
      %v1531 = vrot.slane %v1529, 4
      %v1532 = vor.u32 %v1531, %v1527
      %v1533 = vrot.slane %v1532, 4
      %v1535 = vshll.u32 %v1514, 16
      %v1537 = vrot.slane %v1535, 5
      %v1538 = vsel %vm416, %v1533, %v1537
      %1539 = vrot.lane.b32.xlu0 %v1528, 16
      %v1540 = vpop.permute.xlu0 %1539
      %1541 = vrot.lane.b32.xlu0 %v1538, 16
      %v1542 = vpop.permute.xlu0 %1541
      %vm1545 = vcmask 158848
      %1546 = vst.msk [vmem:[#allocation2] sm:$0xf] %vm1545, %v1540
      %1547 = vst.msk [vmem:[#allocation2 + $0x4] sm:$0xf] %vm1545, %v1542
      %v1548 = vld [vmem:[%s302] sm:$0xf]
      %v1549 = vld [vmem:[%s302 + $0x4] sm:$0xf]
      %v1550 = vld [vmem:[%s302 + $0x8] sm:$0x1]
      %v1552 = vshrl.u32 %v1548, 16
      %v1554 = vrot.slane %v1552, 4
      %v1555 = vshll.u32 %v1548, 16
      %v1557 = vrot.slane %v1555, 5
      %v1558 = vor.u32 %v1554, %v1557
      %v1559 = vrot.slane %v1558, 4
      %v1561 = vshll.u32 %v1549, 16
      %v1563 = vrot.slane %v1561, 5
      %v1564 = vsel %vm416, %v1559, %v1563
      %v1565 = vshrl.u32 %v1549, 16
      %v1567 = vrot.slane %v1565, 4
      %v1568 = vor.u32 %v1567, %v1563
      %v1569 = vrot.slane %v1568, 4
      %v1571 = vshll.u32 %v1550, 16
      %v1573 = vrot.slane %v1571, 5
      %v1574 = vsel %vm416, %v1569, %v1573
      %1575 = vrot.lane.b32.xlu0 %v1564, 16
      %v1576 = vpop.permute.xlu0 %1575
      %1577 = vrot.lane.b32.xlu0 %v1574, 16
      %v1578 = vpop.permute.xlu0 %1577
      %1581 = vst.msk [vmem:[#allocation2 + $0x8] sm:$0xf] %vm1545, %v1576
      %1582 = vst.msk [vmem:[#allocation2 + $0xc] sm:$0xf] %vm1545, %v1578
      %v1583 = vld [vmem:[%s310] sm:$0xf]
      %v1584 = vld [vmem:[%s310 + $0x4] sm:$0xf]
      %v1585 = vld [vmem:[%s310 + $0x8] sm:$0x1]
      %v1587 = vshrl.u32 %v1583, 16
      %v1589 = vrot.slane %v1587, 4
      %v1590 = vshll.u32 %v1583, 16
      %v1592 = vrot.slane %v1590, 5
      %v1593 = vor.u32 %v1589, %v1592
      %v1594 = vrot.slane %v1593, 4
      %v1596 = vshll.u32 %v1584, 16
      %v1598 = vrot.slane %v1596, 5
      %v1599 = vsel %vm416, %v1594, %v1598
      %v1600 = vshrl.u32 %v1584, 16
      %v1602 = vrot.slane %v1600, 4
      %v1603 = vor.u32 %v1602, %v1598
      %v1604 = vrot.slane %v1603, 4
      %v1606 = vshll.u32 %v1585, 16
      %v1608 = vrot.slane %v1606, 5
      %v1609 = vsel %vm416, %v1604, %v1608
      %1610 = vrot.lane.b32.xlu0 %v1599, 16
      %v1611 = vpop.permute.xlu0 %1610
      %1612 = vrot.lane.b32.xlu0 %v1609, 16
      %v1613 = vpop.permute.xlu0 %1612
      %1616 = vst.msk [vmem:[#allocation2 + $0x10] sm:$0xf] %vm1545, %v1611
      %1617 = vst.msk [vmem:[#allocation2 + $0x14] sm:$0xf] %vm1545, %v1613
      %v1618 = vld [vmem:[%s318] sm:$0xf]
      %v1619 = vld [vmem:[%s318 + $0x4] sm:$0xf]
      %v1620 = vld [vmem:[%s318 + $0x8] sm:$0x1]
      %v1622 = vshrl.u32 %v1618, 16
      %v1624 = vrot.slane %v1622, 4
      %v1625 = vshll.u32 %v1618, 16
      %v1627 = vrot.slane %v1625, 5
      %v1628 = vor.u32 %v1624, %v1627
      %v1629 = vrot.slane %v1628, 4
      %v1631 = vshll.u32 %v1619, 16
      %v1633 = vrot.slane %v1631, 5
      %v1634 = vsel %vm416, %v1629, %v1633
      %v1635 = vshrl.u32 %v1619, 16
      %v1637 = vrot.slane %v1635, 4
      %v1638 = vor.u32 %v1637, %v1633
      %v1639 = vrot.slane %v1638, 4
      %v1641 = vshll.u32 %v1620, 16
      %v1643 = vrot.slane %v1641, 5
      %v1644 = vsel %vm416, %v1639, %v1643
      %1645 = vrot.lane.b32.xlu0 %v1634, 16
      %v1646 = vpop.permute.xlu0 %1645
      %1647 = vrot.lane.b32.xlu0 %v1644, 16
      %v1648 = vpop.permute.xlu0 %1647
      %1651 = vst.msk [vmem:[#allocation2 + $0x18] sm:$0xf] %vm1545, %v1646
      %1652 = vst.msk [vmem:[#allocation2 + $0x1c] sm:$0xf] %vm1545, %v1648
      %v1653 = vld [vmem:[%s326] sm:$0xf]
      %v1654 = vld [vmem:[%s326 + $0x4] sm:$0xf]
      %v1655 = vld [vmem:[%s326 + $0x8] sm:$0x1]
      %v1657 = vshrl.u32 %v1653, 16
      %v1659 = vrot.slane %v1657, 4
      %v1660 = vshll.u32 %v1653, 16
      %v1662 = vrot.slane %v1660, 5
      %v1663 = vor.u32 %v1659, %v1662
      %v1664 = vrot.slane %v1663, 4
      %v1666 = vshll.u32 %v1654, 16
      %v1668 = vrot.slane %v1666, 5
      %v1669 = vsel %vm416, %v1664, %v1668
      %v1670 = vshrl.u32 %v1654, 16
      %v1672 = vrot.slane %v1670, 4
      %v1673 = vor.u32 %v1672, %v1668
      %v1674 = vrot.slane %v1673, 4
      %v1676 = vshll.u32 %v1655, 16
      %v1678 = vrot.slane %v1676, 5
      %v1679 = vsel %vm416, %v1674, %v1678
      %1680 = vrot.lane.b32.xlu0 %v1669, 16
      %v1681 = vpop.permute.xlu0 %1680
      %1682 = vrot.lane.b32.xlu0 %v1679, 16
      %v1683 = vpop.permute.xlu0 %1682
      %1686 = vst.msk [vmem:[#allocation2 + $0x20] sm:$0xf] %vm1545, %v1681
      %1687 = vst.msk [vmem:[#allocation2 + $0x24] sm:$0xf] %vm1545, %v1683
      %v1688 = vld [vmem:[%s334] sm:$0xf]
      %v1689 = vld [vmem:[%s334 + $0x4] sm:$0xf]
      %v1690 = vld [vmem:[%s334 + $0x8] sm:$0x1]
      %v1692 = vshrl.u32 %v1688, 16
      %v1694 = vrot.slane %v1692, 4
      %v1695 = vshll.u32 %v1688, 16
      %v1697 = vrot.slane %v1695, 5
      %v1698 = vor.u32 %v1694, %v1697
      %v1699 = vrot.slane %v1698, 4
      %v1701 = vshll.u32 %v1689, 16
      %v1703 = vrot.slane %v1701, 5
      %v1704 = vsel %vm416, %v1699, %v1703
      %v1705 = vshrl.u32 %v1689, 16
      %v1707 = vrot.slane %v1705, 4
      %v1708 = vor.u32 %v1707, %v1703
      %v1709 = vrot.slane %v1708, 4
      %v1711 = vshll.u32 %v1690, 16
      %v1713 = vrot.slane %v1711, 5
      %v1714 = vsel %vm416, %v1709, %v1713
      %1715 = vrot.lane.b32.xlu0 %v1704, 16
      %v1716 = vpop.permute.xlu0 %1715
      %1717 = vrot.lane.b32.xlu0 %v1714, 16
      %v1718 = vpop.permute.xlu0 %1717
      %1721 = vst.msk [vmem:[#allocation2 + $0x28] sm:$0xf] %vm1545, %v1716
      %1722 = vst.msk [vmem:[#allocation2 + $0x2c] sm:$0xf] %vm1545, %v1718
      %v1723 = vld [vmem:[%s342] sm:$0xf]
      %v1724 = vld [vmem:[%s342 + $0x4] sm:$0xf]
      %v1725 = vld [vmem:[%s342 + $0x8] sm:$0x1]
      %v1727 = vshrl.u32 %v1723, 16
      %v1729 = vrot.slane %v1727, 4
      %v1730 = vshll.u32 %v1723, 16
      %v1732 = vrot.slane %v1730, 5
      %v1733 = vor.u32 %v1729, %v1732
      %v1734 = vrot.slane %v1733, 4
      %v1736 = vshll.u32 %v1724, 16
      %v1738 = vrot.slane %v1736, 5
      %v1739 = vsel %vm416, %v1734, %v1738
      %v1740 = vshrl.u32 %v1724, 16
      %v1742 = vrot.slane %v1740, 4
      %v1743 = vor.u32 %v1742, %v1738
      %v1744 = vrot.slane %v1743, 4
      %v1746 = vshll.u32 %v1725, 16
      %v1748 = vrot.slane %v1746, 5
      %v1749 = vsel %vm416, %v1744, %v1748
      %1750 = vrot.lane.b32.xlu0 %v1739, 16
      %v1751 = vpop.permute.xlu0 %1750
      %1752 = vrot.lane.b32.xlu0 %v1749, 16
      %v1753 = vpop.permute.xlu0 %1752
      %1756 = vst.msk [vmem:[#allocation2 + $0x30] sm:$0xf] %vm1545, %v1751
      %1757 = vst.msk [vmem:[#allocation2 + $0x34] sm:$0xf] %vm1545, %v1753
      %v1758 = vld [vmem:[%s350] sm:$0xf]
      %v1759 = vld [vmem:[%s350 + $0x4] sm:$0xf]
      %v1760 = vld [vmem:[%s350 + $0x8] sm:$0x1]
      %v1762 = vshrl.u32 %v1758, 16
      %v1764 = vrot.slane %v1762, 4
      %v1765 = vshll.u32 %v1758, 16
      %v1767 = vrot.slane %v1765, 5
      %v1768 = vor.u32 %v1764, %v1767
      %v1769 = vrot.slane %v1768, 4
      %v1771 = vshll.u32 %v1759, 16
      %v1773 = vrot.slane %v1771, 5
      %v1774 = vsel %vm416, %v1769, %v1773
      %v1775 = vshrl.u32 %v1759, 16
      %v1777 = vrot.slane %v1775, 4
      %v1778 = vor.u32 %v1777, %v1773
      %v1779 = vrot.slane %v1778, 4
      %v1781 = vshll.u32 %v1760, 16
      %v1783 = vrot.slane %v1781, 5
      %v1784 = vsel %vm416, %v1779, %v1783
      %1785 = vrot.lane.b32.xlu0 %v1774, 16
      %v1786 = vpop.permute.xlu0 %1785
      %1787 = vrot.lane.b32.xlu0 %v1784, 16
      %v1788 = vpop.permute.xlu0 %1787
      %1791 = vst.msk [vmem:[#allocation2 + $0x38] sm:$0xf] %vm1545, %v1786
      %1792 = vst.msk [vmem:[#allocation2 + $0x3c] sm:$0xf] %vm1545, %v1788
      %v1793 = vld [vmem:[%s358] sm:$0xf]
      %v1794 = vld [vmem:[%s358 + $0x4] sm:$0xf]
      %v1795 = vld [vmem:[%s358 + $0x8] sm:$0x1]
      %v1797 = vshrl.u32 %v1793, 16
      %v1799 = vrot.slane %v1797, 4
      %v1800 = vshll.u32 %v1793, 16
      %v1802 = vrot.slane %v1800, 5
      %v1803 = vor.u32 %v1799, %v1802
      %v1804 = vrot.slane %v1803, 4
      %v1806 = vshll.u32 %v1794, 16
      %v1808 = vrot.slane %v1806, 5
      %v1809 = vsel %vm416, %v1804, %v1808
      %v1810 = vshrl.u32 %v1794, 16
      %v1812 = vrot.slane %v1810, 4
      %v1813 = vor.u32 %v1812, %v1808
      %v1814 = vrot.slane %v1813, 4
      %v1816 = vshll.u32 %v1795, 16
      %v1818 = vrot.slane %v1816, 5
      %v1819 = vsel %vm416, %v1814, %v1818
      %1820 = vrot.lane.b32.xlu0 %v1809, 16
      %v1821 = vpop.permute.xlu0 %1820
      %1822 = vrot.lane.b32.xlu0 %v1819, 16
      %v1823 = vpop.permute.xlu0 %1822
      %1826 = vst.msk [vmem:[#allocation2 + $0x40] sm:$0xf] %vm1545, %v1821
      %1827 = vst.msk [vmem:[#allocation2 + $0x44] sm:$0xf] %vm1545, %v1823
      %v1828 = vld [vmem:[%s366] sm:$0xf]
      %v1829 = vld [vmem:[%s366 + $0x4] sm:$0xf]
      %v1830 = vld [vmem:[%s366 + $0x8] sm:$0x1]
      %v1832 = vshrl.u32 %v1828, 16
      %v1834 = vrot.slane %v1832, 4
      %v1835 = vshll.u32 %v1828, 16
      %v1837 = vrot.slane %v1835, 5
      %v1838 = vor.u32 %v1834, %v1837
      %v1839 = vrot.slane %v1838, 4
      %v1841 = vshll.u32 %v1829, 16
      %v1843 = vrot.slane %v1841, 5
      %v1844 = vsel %vm416, %v1839, %v1843
      %v1845 = vshrl.u32 %v1829, 16
      %v1847 = vrot.slane %v1845, 4
      %v1848 = vor.u32 %v1847, %v1843
      %v1849 = vrot.slane %v1848, 4
      %v1851 = vshll.u32 %v1830, 16
      %v1853 = vrot.slane %v1851, 5
      %v1854 = vsel %vm416, %v1849, %v1853
      %1855 = vrot.lane.b32.xlu0 %v1844, 16
      %v1856 = vpop.permute.xlu0 %1855
      %1857 = vrot.lane.b32.xlu0 %v1854, 16
      %v1858 = vpop.permute.xlu0 %1857
      %1861 = vst.msk [vmem:[#allocation2 + $0x48] sm:$0xf] %vm1545, %v1856
      %1862 = vst.msk [vmem:[#allocation2 + $0x4c] sm:$0xf] %vm1545, %v1858
      %v1863 = vld [vmem:[%s374] sm:$0xf]
      %v1864 = vld [vmem:[%s374 + $0x4] sm:$0xf]
      %v1865 = vld [vmem:[%s374 + $0x8] sm:$0x1]
      %v1867 = vshrl.u32 %v1863, 16
      %v1869 = vrot.slane %v1867, 4
      %v1870 = vshll.u32 %v1863, 16
      %v1872 = vrot.slane %v1870, 5
      %v1873 = vor.u32 %v1869, %v1872
      %v1874 = vrot.slane %v1873, 4
      %v1876 = vshll.u32 %v1864, 16
      %v1878 = vrot.slane %v1876, 5
      %v1879 = vsel %vm416, %v1874, %v1878
      %v1880 = vshrl.u32 %v1864, 16
      %v1882 = vrot.slane %v1880, 4
      %v1883 = vor.u32 %v1882, %v1878
      %v1884 = vrot.slane %v1883, 4
      %v1886 = vshll.u32 %v1865, 16
      %v1888 = vrot.slane %v1886, 5
      %v1889 = vsel %vm416, %v1884, %v1888
      %1890 = vrot.lane.b32.xlu0 %v1879, 16
      %v1891 = vpop.permute.xlu0 %1890
      %1892 = vrot.lane.b32.xlu0 %v1889, 16
      %v1893 = vpop.permute.xlu0 %1892
      %1896 = vst.msk [vmem:[#allocation2 + $0x50] sm:$0xf] %vm1545, %v1891
      %1897 = vst.msk [vmem:[#allocation2 + $0x54] sm:$0xf] %vm1545, %v1893
      %v1898 = vld [vmem:[%s382] sm:$0xf]
      %v1899 = vld [vmem:[%s382 + $0x4] sm:$0xf]
      %v1900 = vld [vmem:[%s382 + $0x8] sm:$0x1]
      %v1902 = vshrl.u32 %v1898, 16
      %v1904 = vrot.slane %v1902, 4
      %v1905 = vshll.u32 %v1898, 16
      %v1907 = vrot.slane %v1905, 5
      %v1908 = vor.u32 %v1904, %v1907
      %v1909 = vrot.slane %v1908, 4
      %v1911 = vshll.u32 %v1899, 16
      %v1913 = vrot.slane %v1911, 5
      %v1914 = vsel %vm416, %v1909, %v1913
      %v1915 = vshrl.u32 %v1899, 16
      %v1917 = vrot.slane %v1915, 4
      %v1918 = vor.u32 %v1917, %v1913
      %v1919 = vrot.slane %v1918, 4
      %v1921 = vshll.u32 %v1900, 16
      %v1923 = vrot.slane %v1921, 5
      %v1924 = vsel %vm416, %v1919, %v1923
      %1925 = vrot.lane.b32.xlu0 %v1914, 16
      %v1926 = vpop.permute.xlu0 %1925
      %1927 = vrot.lane.b32.xlu0 %v1924, 16
      %v1928 = vpop.permute.xlu0 %1927
      %1931 = vst.msk [vmem:[#allocation2 + $0x58] sm:$0xf] %vm1545, %v1926
      %1932 = vst.msk [vmem:[#allocation2 + $0x5c] sm:$0xf] %vm1545, %v1928
      %v1933 = vld [vmem:[%s390] sm:$0xf]
      %v1934 = vld [vmem:[%s390 + $0x4] sm:$0xf]
      %v1935 = vld [vmem:[%s390 + $0x8] sm:$0x1]
      %v1937 = vshrl.u32 %v1933, 16
      %v1939 = vrot.slane %v1937, 4
      %v1940 = vshll.u32 %v1933, 16
      %v1942 = vrot.slane %v1940, 5
      %v1943 = vor.u32 %v1939, %v1942
      %v1944 = vrot.slane %v1943, 4
      %v1946 = vshll.u32 %v1934, 16
      %v1948 = vrot.slane %v1946, 5
      %v1949 = vsel %vm416, %v1944, %v1948
      %v1950 = vshrl.u32 %v1934, 16
      %v1952 = vrot.slane %v1950, 4
      %v1953 = vor.u32 %v1952, %v1948
      %v1954 = vrot.slane %v1953, 4
      %v1956 = vshll.u32 %v1935, 16
      %v1958 = vrot.slane %v1956, 5
      %v1959 = vsel %vm416, %v1954, %v1958
      %1960 = vrot.lane.b32.xlu0 %v1949, 16
      %v1961 = vpop.permute.xlu0 %1960
      %1962 = vrot.lane.b32.xlu0 %v1959, 16
      %v1963 = vpop.permute.xlu0 %1962
      %1966 = vst.msk [vmem:[#allocation2 + $0x60] sm:$0xf] %vm1545, %v1961
      %1967 = vst.msk [vmem:[#allocation2 + $0x64] sm:$0xf] %vm1545, %v1963
      %v1968 = vld [vmem:[%s398] sm:$0xf]
      %v1969 = vld [vmem:[%s398 + $0x4] sm:$0xf]
      %v1970 = vld [vmem:[%s398 + $0x8] sm:$0x1]
      %v1972 = vshrl.u32 %v1968, 16
      %v1974 = vrot.slane %v1972, 4
      %v1975 = vshll.u32 %v1968, 16
      %v1977 = vrot.slane %v1975, 5
      %v1978 = vor.u32 %v1974, %v1977
      %v1979 = vrot.slane %v1978, 4
      %v1981 = vshll.u32 %v1969, 16
      %v1983 = vrot.slane %v1981, 5
      %v1984 = vsel %vm416, %v1979, %v1983
      %v1985 = vshrl.u32 %v1969, 16
      %v1987 = vrot.slane %v1985, 4
      %v1988 = vor.u32 %v1987, %v1983
      %v1989 = vrot.slane %v1988, 4
      %v1991 = vshll.u32 %v1970, 16
      %v1993 = vrot.slane %v1991, 5
      %v1994 = vsel %vm416, %v1989, %v1993
      %1995 = vrot.lane.b32.xlu0 %v1984, 16
      %v1996 = vpop.permute.xlu0 %1995
      %1997 = vrot.lane.b32.xlu0 %v1994, 16
      %v1998 = vpop.permute.xlu0 %1997
      %2001 = vst.msk [vmem:[#allocation2 + $0x68] sm:$0xf] %vm1545, %v1996
      %2002 = vst.msk [vmem:[#allocation2 + $0x6c] sm:$0xf] %vm1545, %v1998
      %v2003 = vld [vmem:[%s406] sm:$0xf]
      %v2004 = vld [vmem:[%s406 + $0x4] sm:$0xf]
      %v2005 = vld [vmem:[%s406 + $0x8] sm:$0x1]
      %v2007 = vshrl.u32 %v2003, 16
      %v2009 = vrot.slane %v2007, 4
      %v2010 = vshll.u32 %v2003, 16
      %v2012 = vrot.slane %v2010, 5
      %v2013 = vor.u32 %v2009, %v2012
      %v2014 = vrot.slane %v2013, 4
      %v2016 = vshll.u32 %v2004, 16
      %v2018 = vrot.slane %v2016, 5
      %v2019 = vsel %vm416, %v2014, %v2018
      %v2020 = vshrl.u32 %v2004, 16
      %v2022 = vrot.slane %v2020, 4
      %v2023 = vor.u32 %v2022, %v2018
      %v2024 = vrot.slane %v2023, 4
      %v2026 = vshll.u32 %v2005, 16
      %v2028 = vrot.slane %v2026, 5
      %v2029 = vsel %vm416, %v2024, %v2028
      %2030 = vrot.lane.b32.xlu0 %v2019, 16
      %v2031 = vpop.permute.xlu0 %2030
      %2032 = vrot.lane.b32.xlu0 %v2029, 16
      %v2033 = vpop.permute.xlu0 %2032
      %2036 = vst.msk [vmem:[#allocation2 + $0x70] sm:$0xf] %vm1545, %v2031
      %2037 = vst.msk [vmem:[#allocation2 + $0x74] sm:$0xf] %vm1545, %v2033
      %v2038 = vld [vmem:[%s1499] sm:$0xf]
      %v2039 = vld [vmem:[%s1499 + $0x4] sm:$0xf]
      %v2040 = vld [vmem:[%s1499 + $0x8] sm:$0x1]
      %v2042 = vshrl.u32 %v2038, 16
      %v2044 = vrot.slane %v2042, 4
      %v2045 = vshll.u32 %v2038, 16
      %v2047 = vrot.slane %v2045, 5
      %v2048 = vor.u32 %v2044, %v2047
      %v2049 = vrot.slane %v2048, 4
      %v2051 = vshll.u32 %v2039, 16
      %v2053 = vrot.slane %v2051, 5
      %v2054 = vsel %vm416, %v2049, %v2053
      %v2055 = vshrl.u32 %v2039, 16
      %v2057 = vrot.slane %v2055, 4
      %v2058 = vor.u32 %v2057, %v2053
      %v2059 = vrot.slane %v2058, 4
      %v2061 = vshll.u32 %v2040, 16
      %v2063 = vrot.slane %v2061, 5
      %v2064 = vsel %vm416, %v2059, %v2063
      %2065 = vrot.lane.b32.xlu0 %v2054, 16
      %v2066 = vpop.permute.xlu0 %2065
      %2067 = vrot.lane.b32.xlu0 %v2064, 16
      %v2068 = vpop.permute.xlu0 %2067
      %2071 = vst.msk [vmem:[#allocation2 + $0x78] sm:$0xf] %vm1545, %v2066
      %2072 = vst.msk [vmem:[#allocation2 + $0x7c] sm:$0xf] %vm1545, %v2068
      %v2073 = vld [vmem:[%s294] sm:$0xe]
      %v2074 = vld [vmem:[%s294 + $0x4] sm:$0xf]
      %v2075 = vld [vmem:[%s294 + $0x8] sm:$0x1]
      %v2079 = vrot.slane %v2073, 5
      %v2080 = vrot.slane %v2079, 4
      %v2081 = vrot.slane %v2074, 5
      %v2082 = vsel %vm983, %v2080, %v2081
      %v2083 = vrot.slane %v2081, 4
      %v2084 = vrot.slane %v2075, 5
      %v2085 = vsel %vm983, %v2083, %v2084
      %2086 = vrot.lane.b32.xlu0 %v2082, 20
      %v2087 = vpop.permute.xlu0 %2086
      %2088 = vrot.lane.b32.xlu0 %v2085, 20
      %v2089 = vpop.permute.xlu0 %2088
      %vm2092 = vcmask 191648
      %2093 = vst.msk [vmem:[#allocation2] sm:$0xf] %vm2092, %v2087
      %2094 = vst.msk [vmem:[#allocation2 + $0x4] sm:$0xf] %vm2092, %v2089
      %v2095 = vld [vmem:[%s302] sm:$0xe]
      %v2096 = vld [vmem:[%s302 + $0x4] sm:$0xf]
      %v2097 = vld [vmem:[%s302 + $0x8] sm:$0x1]
      %v2101 = vrot.slane %v2095, 5
      %v2102 = vrot.slane %v2101, 4
      %v2103 = vrot.slane %v2096, 5
      %v2104 = vsel %vm983, %v2102, %v2103
      %v2105 = vrot.slane %v2103, 4
      %v2106 = vrot.slane %v2097, 5
      %v2107 = vsel %vm983, %v2105, %v2106
      %2108 = vrot.lane.b32.xlu0 %v2104, 20
      %v2109 = vpop.permute.xlu0 %2108
      %2110 = vrot.lane.b32.xlu0 %v2107, 20
      %v2111 = vpop.permute.xlu0 %2110
      %2114 = vst.msk [vmem:[#allocation2 + $0x8] sm:$0xf] %vm2092, %v2109
      %2115 = vst.msk [vmem:[#allocation2 + $0xc] sm:$0xf] %vm2092, %v2111
      %v2116 = vld [vmem:[%s310] sm:$0xe]
      %v2117 = vld [vmem:[%s310 + $0x4] sm:$0xf]
      %v2118 = vld [vmem:[%s310 + $0x8] sm:$0x1]
      %v2122 = vrot.slane %v2116, 5
      %v2123 = vrot.slane %v2122, 4
      %v2124 = vrot.slane %v2117, 5
      %v2125 = vsel %vm983, %v2123, %v2124
      %v2126 = vrot.slane %v2124, 4
      %v2127 = vrot.slane %v2118, 5
      %v2128 = vsel %vm983, %v2126, %v2127
      %2129 = vrot.lane.b32.xlu0 %v2125, 20
      %v2130 = vpop.permute.xlu0 %2129
      %2131 = vrot.lane.b32.xlu0 %v2128, 20
      %v2132 = vpop.permute.xlu0 %2131
      %2135 = vst.msk [vmem:[#allocation2 + $0x10] sm:$0xf] %vm2092, %v2130
      %2136 = vst.msk [vmem:[#allocation2 + $0x14] sm:$0xf] %vm2092, %v2132
      %v2137 = vld [vmem:[%s318] sm:$0xe]
      %v2138 = vld [vmem:[%s318 + $0x4] sm:$0xf]
      %v2139 = vld [vmem:[%s318 + $0x8] sm:$0x1]
      %v2143 = vrot.slane %v2137, 5
      %v2144 = vrot.slane %v2143, 4
      %v2145 = vrot.slane %v2138, 5
      %v2146 = vsel %vm983, %v2144, %v2145
      %v2147 = vrot.slane %v2145, 4
      %v2148 = vrot.slane %v2139, 5
      %v2149 = vsel %vm983, %v2147, %v2148
      %2150 = vrot.lane.b32.xlu0 %v2146, 20
      %v2151 = vpop.permute.xlu0 %2150
      %2152 = vrot.lane.b32.xlu0 %v2149, 20
      %v2153 = vpop.permute.xlu0 %2152
      %2156 = vst.msk [vmem:[#allocation2 + $0x18] sm:$0xf] %vm2092, %v2151
      %2157 = vst.msk [vmem:[#allocation2 + $0x1c] sm:$0xf] %vm2092, %v2153
      %v2158 = vld [vmem:[%s326] sm:$0xe]
      %v2159 = vld [vmem:[%s326 + $0x4] sm:$0xf]
      %v2160 = vld [vmem:[%s326 + $0x8] sm:$0x1]
      %v2164 = vrot.slane %v2158, 5
      %v2165 = vrot.slane %v2164, 4
      %v2166 = vrot.slane %v2159, 5
      %v2167 = vsel %vm983, %v2165, %v2166
      %v2168 = vrot.slane %v2166, 4
      %v2169 = vrot.slane %v2160, 5
      %v2170 = vsel %vm983, %v2168, %v2169
      %2171 = vrot.lane.b32.xlu0 %v2167, 20
      %v2172 = vpop.permute.xlu0 %2171
      %2173 = vrot.lane.b32.xlu0 %v2170, 20
      %v2174 = vpop.permute.xlu0 %2173
      %2177 = vst.msk [vmem:[#allocation2 + $0x20] sm:$0xf] %vm2092, %v2172
      %2178 = vst.msk [vmem:[#allocation2 + $0x24] sm:$0xf] %vm2092, %v2174
      %v2179 = vld [vmem:[%s334] sm:$0xe]
      %v2180 = vld [vmem:[%s334 + $0x4] sm:$0xf]
      %v2181 = vld [vmem:[%s334 + $0x8] sm:$0x1]
      %v2185 = vrot.slane %v2179, 5
      %v2186 = vrot.slane %v2185, 4
      %v2187 = vrot.slane %v2180, 5
      %v2188 = vsel %vm983, %v2186, %v2187
      %v2189 = vrot.slane %v2187, 4
      %v2190 = vrot.slane %v2181, 5
      %v2191 = vsel %vm983, %v2189, %v2190
      %2192 = vrot.lane.b32.xlu0 %v2188, 20
      %v2193 = vpop.permute.xlu0 %2192
      %2194 = vrot.lane.b32.xlu0 %v2191, 20
      %v2195 = vpop.permute.xlu0 %2194
      %2198 = vst.msk [vmem:[#allocation2 + $0x28] sm:$0xf] %vm2092, %v2193
      %2199 = vst.msk [vmem:[#allocation2 + $0x2c] sm:$0xf] %vm2092, %v2195
      %v2200 = vld [vmem:[%s342] sm:$0xe]
      %v2201 = vld [vmem:[%s342 + $0x4] sm:$0xf]
      %v2202 = vld [vmem:[%s342 + $0x8] sm:$0x1]
      %v2206 = vrot.slane %v2200, 5
      %v2207 = vrot.slane %v2206, 4
      %v2208 = vrot.slane %v2201, 5
      %v2209 = vsel %vm983, %v2207, %v2208
      %v2210 = vrot.slane %v2208, 4
      %v2211 = vrot.slane %v2202, 5
      %v2212 = vsel %vm983, %v2210, %v2211
      %2213 = vrot.lane.b32.xlu0 %v2209, 20
      %v2214 = vpop.permute.xlu0 %2213
      %2215 = vrot.lane.b32.xlu0 %v2212, 20
      %v2216 = vpop.permute.xlu0 %2215
      %2219 = vst.msk [vmem:[#allocation2 + $0x30] sm:$0xf] %vm2092, %v2214
      %2220 = vst.msk [vmem:[#allocation2 + $0x34] sm:$0xf] %vm2092, %v2216
      %v2221 = vld [vmem:[%s350] sm:$0xe]
      %v2222 = vld [vmem:[%s350 + $0x4] sm:$0xf]
      %v2223 = vld [vmem:[%s350 + $0x8] sm:$0x1]
      %v2227 = vrot.slane %v2221, 5
      %v2228 = vrot.slane %v2227, 4
      %v2229 = vrot.slane %v2222, 5
      %v2230 = vsel %vm983, %v2228, %v2229
      %v2231 = vrot.slane %v2229, 4
      %v2232 = vrot.slane %v2223, 5
      %v2233 = vsel %vm983, %v2231, %v2232
      %2234 = vrot.lane.b32.xlu0 %v2230, 20
      %v2235 = vpop.permute.xlu0 %2234
      %2236 = vrot.lane.b32.xlu0 %v2233, 20
      %v2237 = vpop.permute.xlu0 %2236
      %2240 = vst.msk [vmem:[#allocation2 + $0x38] sm:$0xf] %vm2092, %v2235
      %2241 = vst.msk [vmem:[#allocation2 + $0x3c] sm:$0xf] %vm2092, %v2237
      %v2242 = vld [vmem:[%s358] sm:$0xe]
      %v2243 = vld [vmem:[%s358 + $0x4] sm:$0xf]
      %v2244 = vld [vmem:[%s358 + $0x8] sm:$0x1]
      %v2248 = vrot.slane %v2242, 5
      %v2249 = vrot.slane %v2248, 4
      %v2250 = vrot.slane %v2243, 5
      %v2251 = vsel %vm983, %v2249, %v2250
      %v2252 = vrot.slane %v2250, 4
      %v2253 = vrot.slane %v2244, 5
      %v2254 = vsel %vm983, %v2252, %v2253
      %2255 = vrot.lane.b32.xlu0 %v2251, 20
      %v2256 = vpop.permute.xlu0 %2255
      %2257 = vrot.lane.b32.xlu0 %v2254, 20
      %v2258 = vpop.permute.xlu0 %2257
      %2261 = vst.msk [vmem:[#allocation2 + $0x40] sm:$0xf] %vm2092, %v2256
      %2262 = vst.msk [vmem:[#allocation2 + $0x44] sm:$0xf] %vm2092, %v2258
      %v2263 = vld [vmem:[%s366] sm:$0xe]
      %v2264 = vld [vmem:[%s366 + $0x4] sm:$0xf]
      %v2265 = vld [vmem:[%s366 + $0x8] sm:$0x1]
      %v2269 = vrot.slane %v2263, 5
      %v2270 = vrot.slane %v2269, 4
      %v2271 = vrot.slane %v2264, 5
      %v2272 = vsel %vm983, %v2270, %v2271
      %v2273 = vrot.slane %v2271, 4
      %v2274 = vrot.slane %v2265, 5
      %v2275 = vsel %vm983, %v2273, %v2274
      %2276 = vrot.lane.b32.xlu0 %v2272, 20
      %v2277 = vpop.permute.xlu0 %2276
      %2278 = vrot.lane.b32.xlu0 %v2275, 20
      %v2279 = vpop.permute.xlu0 %2278
      %2282 = vst.msk [vmem:[#allocation2 + $0x48] sm:$0xf] %vm2092, %v2277
      %2283 = vst.msk [vmem:[#allocation2 + $0x4c] sm:$0xf] %vm2092, %v2279
      %v2284 = vld [vmem:[%s374] sm:$0xe]
      %v2285 = vld [vmem:[%s374 + $0x4] sm:$0xf]
      %v2286 = vld [vmem:[%s374 + $0x8] sm:$0x1]
      %v2290 = vrot.slane %v2284, 5
      %v2291 = vrot.slane %v2290, 4
      %v2292 = vrot.slane %v2285, 5
      %v2293 = vsel %vm983, %v2291, %v2292
      %v2294 = vrot.slane %v2292, 4
      %v2295 = vrot.slane %v2286, 5
      %v2296 = vsel %vm983, %v2294, %v2295
      %2297 = vrot.lane.b32.xlu0 %v2293, 20
      %v2298 = vpop.permute.xlu0 %2297
      %2299 = vrot.lane.b32.xlu0 %v2296, 20
      %v2300 = vpop.permute.xlu0 %2299
      %2303 = vst.msk [vmem:[#allocation2 + $0x50] sm:$0xf] %vm2092, %v2298
      %2304 = vst.msk [vmem:[#allocation2 + $0x54] sm:$0xf] %vm2092, %v2300
      %v2305 = vld [vmem:[%s382] sm:$0xe]
      %v2306 = vld [vmem:[%s382 + $0x4] sm:$0xf]
      %v2307 = vld [vmem:[%s382 + $0x8] sm:$0x1]
      %v2311 = vrot.slane %v2305, 5
      %v2312 = vrot.slane %v2311, 4
      %v2313 = vrot.slane %v2306, 5
      %v2314 = vsel %vm983, %v2312, %v2313
      %v2315 = vrot.slane %v2313, 4
      %v2316 = vrot.slane %v2307, 5
      %v2317 = vsel %vm983, %v2315, %v2316
      %2318 = vrot.lane.b32.xlu0 %v2314, 20
      %v2319 = vpop.permute.xlu0 %2318
      %2320 = vrot.lane.b32.xlu0 %v2317, 20
      %v2321 = vpop.permute.xlu0 %2320
      %2324 = vst.msk [vmem:[#allocation2 + $0x58] sm:$0xf] %vm2092, %v2319
      %2325 = vst.msk [vmem:[#allocation2 + $0x5c] sm:$0xf] %vm2092, %v2321
      %v2326 = vld [vmem:[%s390] sm:$0xe]
      %v2327 = vld [vmem:[%s390 + $0x4] sm:$0xf]
      %v2328 = vld [vmem:[%s390 + $0x8] sm:$0x1]
      %v2332 = vrot.slane %v2326, 5
      %v2333 = vrot.slane %v2332, 4
      %v2334 = vrot.slane %v2327, 5
      %v2335 = vsel %vm983, %v2333, %v2334
      %v2336 = vrot.slane %v2334, 4
      %v2337 = vrot.slane %v2328, 5
      %v2338 = vsel %vm983, %v2336, %v2337
      %2339 = vrot.lane.b32.xlu0 %v2335, 20
      %v2340 = vpop.permute.xlu0 %2339
      %2341 = vrot.lane.b32.xlu0 %v2338, 20
      %v2342 = vpop.permute.xlu0 %2341
      %2345 = vst.msk [vmem:[#allocation2 + $0x60] sm:$0xf] %vm2092, %v2340
      %2346 = vst.msk [vmem:[#allocation2 + $0x64] sm:$0xf] %vm2092, %v2342
      %v2347 = vld [vmem:[%s398] sm:$0xe]
      %v2348 = vld [vmem:[%s398 + $0x4] sm:$0xf]
      %v2349 = vld [vmem:[%s398 + $0x8] sm:$0x1]
      %v2353 = vrot.slane %v2347, 5
      %v2354 = vrot.slane %v2353, 4
      %v2355 = vrot.slane %v2348, 5
      %v2356 = vsel %vm983, %v2354, %v2355
      %v2357 = vrot.slane %v2355, 4
      %v2358 = vrot.slane %v2349, 5
      %v2359 = vsel %vm983, %v2357, %v2358
      %2360 = vrot.lane.b32.xlu0 %v2356, 20
      %v2361 = vpop.permute.xlu0 %2360
      %2362 = vrot.lane.b32.xlu0 %v2359, 20
      %v2363 = vpop.permute.xlu0 %2362
      %2366 = vst.msk [vmem:[#allocation2 + $0x68] sm:$0xf] %vm2092, %v2361
      %2367 = vst.msk [vmem:[#allocation2 + $0x6c] sm:$0xf] %vm2092, %v2363
      %v2368 = vld [vmem:[%s406] sm:$0xe]
      %v2369 = vld [vmem:[%s406 + $0x4] sm:$0xf]
      %v2370 = vld [vmem:[%s406 + $0x8] sm:$0x1]
      %v2374 = vrot.slane %v2368, 5
      %v2375 = vrot.slane %v2374, 4
      %v2376 = vrot.slane %v2369, 5
      %v2377 = vsel %vm983, %v2375, %v2376
      %v2378 = vrot.slane %v2376, 4
      %v2379 = vrot.slane %v2370, 5
      %v2380 = vsel %vm983, %v2378, %v2379
      %2381 = vrot.lane.b32.xlu0 %v2377, 20
      %v2382 = vpop.permute.xlu0 %2381
      %2383 = vrot.lane.b32.xlu0 %v2380, 20
      %v2384 = vpop.permute.xlu0 %2383
      %2387 = vst.msk [vmem:[#allocation2 + $0x70] sm:$0xf] %vm2092, %v2382
      %2388 = vst.msk [vmem:[#allocation2 + $0x74] sm:$0xf] %vm2092, %v2384
      %v2389 = vld [vmem:[%s1499] sm:$0xe]
      %v2390 = vld [vmem:[%s1499 + $0x4] sm:$0xf]
      %v2391 = vld [vmem:[%s1499 + $0x8] sm:$0x1]
      %v2395 = vrot.slane %v2389, 5
      %v2396 = vrot.slane %v2395, 4
      %v2397 = vrot.slane %v2390, 5
      %v2398 = vsel %vm983, %v2396, %v2397
      %v2399 = vrot.slane %v2397, 4
      %v2400 = vrot.slane %v2391, 5
      %v2401 = vsel %vm983, %v2399, %v2400
      %2402 = vrot.lane.b32.xlu0 %v2398, 20
      %v2403 = vpop.permute.xlu0 %2402
      %2404 = vrot.lane.b32.xlu0 %v2401, 20
      %v2405 = vpop.permute.xlu0 %2404
      %2408 = vst.msk [vmem:[#allocation2 + $0x78] sm:$0xf] %vm2092, %v2403
      %2409 = vst.msk [vmem:[#allocation2 + $0x7c] sm:$0xf] %vm2092, %v2405
      %v2410 = vld [vmem:[%s302] sm:$0xf]
      %v2411 = vld [vmem:[%s302 + $0x4] sm:$0xf]
      %2414 = vrot.lane.b32.xlu0 %v2410, 24
      %v2415 = vpop.permute.xlu0 %2414
      %2416 = vrot.lane.b32.xlu0 %v2411, 24
      %v2417 = vpop.permute.xlu0 %2416
      %vm2420 = vcmask 224448
      %2421 = vst.msk [vmem:[#allocation2] sm:$0xf] %vm2420, %v2415
      %2422 = vst.msk [vmem:[#allocation2 + $0x4] sm:$0xf] %vm2420, %v2417
      %v2423 = vld [vmem:[%s310] sm:$0xf]
      %v2424 = vld [vmem:[%s310 + $0x4] sm:$0xf]
      %2427 = vrot.lane.b32.xlu0 %v2423, 24
      %v2428 = vpop.permute.xlu0 %2427
      %2429 = vrot.lane.b32.xlu0 %v2424, 24
      %v2430 = vpop.permute.xlu0 %2429
      %2433 = vst.msk [vmem:[#allocation2 + $0x8] sm:$0xf] %vm2420, %v2428
      %2434 = vst.msk [vmem:[#allocation2 + $0xc] sm:$0xf] %vm2420, %v2430
      %v2435 = vld [vmem:[%s318] sm:$0xf]
      %v2436 = vld [vmem:[%s318 + $0x4] sm:$0xf]
      %2439 = vrot.lane.b32.xlu0 %v2435, 24
      %v2440 = vpop.permute.xlu0 %2439
      %2441 = vrot.lane.b32.xlu0 %v2436, 24
      %v2442 = vpop.permute.xlu0 %2441
      %2445 = vst.msk [vmem:[#allocation2 + $0x10] sm:$0xf] %vm2420, %v2440
      %2446 = vst.msk [vmem:[#allocation2 + $0x14] sm:$0xf] %vm2420, %v2442
      %v2447 = vld [vmem:[%s326] sm:$0xf]
      %v2448 = vld [vmem:[%s326 + $0x4] sm:$0xf]
      %2451 = vrot.lane.b32.xlu0 %v2447, 24
      %v2452 = vpop.permute.xlu0 %2451
      %2453 = vrot.lane.b32.xlu0 %v2448, 24
      %v2454 = vpop.permute.xlu0 %2453
      %2457 = vst.msk [vmem:[#allocation2 + $0x18] sm:$0xf] %vm2420, %v2452
      %2458 = vst.msk [vmem:[#allocation2 + $0x1c] sm:$0xf] %vm2420, %v2454
      %v2459 = vld [vmem:[%s334] sm:$0xf]
      %v2460 = vld [vmem:[%s334 + $0x4] sm:$0xf]
      %2463 = vrot.lane.b32.xlu0 %v2459, 24
      %v2464 = vpop.permute.xlu0 %2463
      %2465 = vrot.lane.b32.xlu0 %v2460, 24
      %v2466 = vpop.permute.xlu0 %2465
      %2469 = vst.msk [vmem:[#allocation2 + $0x20] sm:$0xf] %vm2420, %v2464
      %2470 = vst.msk [vmem:[#allocation2 + $0x24] sm:$0xf] %vm2420, %v2466
      %v2471 = vld [vmem:[%s342] sm:$0xf]
      %v2472 = vld [vmem:[%s342 + $0x4] sm:$0xf]
      %2475 = vrot.lane.b32.xlu0 %v2471, 24
      %v2476 = vpop.permute.xlu0 %2475
      %2477 = vrot.lane.b32.xlu0 %v2472, 24
      %v2478 = vpop.permute.xlu0 %2477
      %2481 = vst.msk [vmem:[#allocation2 + $0x28] sm:$0xf] %vm2420, %v2476
      %2482 = vst.msk [vmem:[#allocation2 + $0x2c] sm:$0xf] %vm2420, %v2478
      %v2483 = vld [vmem:[%s350] sm:$0xf]
      %v2484 = vld [vmem:[%s350 + $0x4] sm:$0xf]
      %2487 = vrot.lane.b32.xlu0 %v2483, 24
      %v2488 = vpop.permute.xlu0 %2487
      %2489 = vrot.lane.b32.xlu0 %v2484, 24
      %v2490 = vpop.permute.xlu0 %2489
      %2493 = vst.msk [vmem:[#allocation2 + $0x30] sm:$0xf] %vm2420, %v2488
      %2494 = vst.msk [vmem:[#allocation2 + $0x34] sm:$0xf] %vm2420, %v2490
      %v2495 = vld [vmem:[%s358] sm:$0xf]
      %v2496 = vld [vmem:[%s358 + $0x4] sm:$0xf]
      %2499 = vrot.lane.b32.xlu0 %v2495, 24
      %v2500 = vpop.permute.xlu0 %2499
      %2501 = vrot.lane.b32.xlu0 %v2496, 24
      %v2502 = vpop.permute.xlu0 %2501
      %2505 = vst.msk [vmem:[#allocation2 + $0x38] sm:$0xf] %vm2420, %v2500
      %2506 = vst.msk [vmem:[#allocation2 + $0x3c] sm:$0xf] %vm2420, %v2502
      %v2507 = vld [vmem:[%s366] sm:$0xf]
      %v2508 = vld [vmem:[%s366 + $0x4] sm:$0xf]
      %2511 = vrot.lane.b32.xlu0 %v2507, 24
      %v2512 = vpop.permute.xlu0 %2511
      %2513 = vrot.lane.b32.xlu0 %v2508, 24
      %v2514 = vpop.permute.xlu0 %2513
      %2517 = vst.msk [vmem:[#allocation2 + $0x40] sm:$0xf] %vm2420, %v2512
      %2518 = vst.msk [vmem:[#allocation2 + $0x44] sm:$0xf] %vm2420, %v2514
      %v2519 = vld [vmem:[%s374] sm:$0xf]
      %v2520 = vld [vmem:[%s374 + $0x4] sm:$0xf]
      %2523 = vrot.lane.b32.xlu0 %v2519, 24
      %v2524 = vpop.permute.xlu0 %2523
      %2525 = vrot.lane.b32.xlu0 %v2520, 24
      %v2526 = vpop.permute.xlu0 %2525
      %2529 = vst.msk [vmem:[#allocation2 + $0x48] sm:$0xf] %vm2420, %v2524
      %2530 = vst.msk [vmem:[#allocation2 + $0x4c] sm:$0xf] %vm2420, %v2526
      %v2531 = vld [vmem:[%s382] sm:$0xf]
      %v2532 = vld [vmem:[%s382 + $0x4] sm:$0xf]
      %2535 = vrot.lane.b32.xlu0 %v2531, 24
      %v2536 = vpop.permute.xlu0 %2535
      %2537 = vrot.lane.b32.xlu0 %v2532, 24
      %v2538 = vpop.permute.xlu0 %2537
      %2541 = vst.msk [vmem:[#allocation2 + $0x50] sm:$0xf] %vm2420, %v2536
      %2542 = vst.msk [vmem:[#allocation2 + $0x54] sm:$0xf] %vm2420, %v2538
      %v2543 = vld [vmem:[%s390] sm:$0xf]
      %v2544 = vld [vmem:[%s390 + $0x4] sm:$0xf]
      %2547 = vrot.lane.b32.xlu0 %v2543, 24
      %v2548 = vpop.permute.xlu0 %2547
      %2549 = vrot.lane.b32.xlu0 %v2544, 24
      %v2550 = vpop.permute.xlu0 %2549
      %2553 = vst.msk [vmem:[#allocation2 + $0x58] sm:$0xf] %vm2420, %v2548
      %2554 = vst.msk [vmem:[#allocation2 + $0x5c] sm:$0xf] %vm2420, %v2550
      %v2555 = vld [vmem:[%s398] sm:$0xf]
      %v2556 = vld [vmem:[%s398 + $0x4] sm:$0xf]
      %2559 = vrot.lane.b32.xlu0 %v2555, 24
      %v2560 = vpop.permute.xlu0 %2559
      %2561 = vrot.lane.b32.xlu0 %v2556, 24
      %v2562 = vpop.permute.xlu0 %2561
      %2565 = vst.msk [vmem:[#allocation2 + $0x60] sm:$0xf] %vm2420, %v2560
      %2566 = vst.msk [vmem:[#allocation2 + $0x64] sm:$0xf] %vm2420, %v2562
      %v2567 = vld [vmem:[%s406] sm:$0xf]
      %v2568 = vld [vmem:[%s406 + $0x4] sm:$0xf]
      %2571 = vrot.lane.b32.xlu0 %v2567, 24
      %v2572 = vpop.permute.xlu0 %2571
      %2573 = vrot.lane.b32.xlu0 %v2568, 24
      %v2574 = vpop.permute.xlu0 %2573
      %2577 = vst.msk [vmem:[#allocation2 + $0x68] sm:$0xf] %vm2420, %v2572
      %2578 = vst.msk [vmem:[#allocation2 + $0x6c] sm:$0xf] %vm2420, %v2574
      %v2579 = vld [vmem:[%s1499] sm:$0xf]
      %v2580 = vld [vmem:[%s1499 + $0x4] sm:$0xf]
      %2583 = vrot.lane.b32.xlu0 %v2579, 24
      %v2584 = vpop.permute.xlu0 %2583
      %2585 = vrot.lane.b32.xlu0 %v2580, 24
      %v2586 = vpop.permute.xlu0 %2585
      %2589 = vst.msk [vmem:[#allocation2 + $0x70] sm:$0xf] %vm2420, %v2584
      %2590 = vst.msk [vmem:[#allocation2 + $0x74] sm:$0xf] %vm2420, %v2586
      %s2591 = sadd.s32 %s282, 17
      %s2592 = smul.u32 %s2591, 3
      %s2593 = smul.addr %s2592, 4
      %s2594 = scalar_lea.vmem %s257, %s2593
      %v2595 = vld [vmem:[%s2594] sm:$0xf]
      %v2596 = vld [vmem:[%s2594 + $0x4] sm:$0xf]
      %2599 = vrot.lane.b32.xlu0 %v2595, 24
      %v2600 = vpop.permute.xlu0 %2599
      %2601 = vrot.lane.b32.xlu0 %v2596, 24
      %v2602 = vpop.permute.xlu0 %2601
      %2605 = vst.msk [vmem:[#allocation2 + $0x78] sm:$0xf] %vm2420, %v2600
      %2606 = vst.msk [vmem:[#allocation2 + $0x7c] sm:$0xf] %vm2420, %v2602
      %v2607 = vld [vmem:[%s302] sm:$0xf]
      %v2608 = vld [vmem:[%s302 + $0x4] sm:$0xf]
      %v2609 = vld [vmem:[%s302 + $0x8] sm:$0x1]
      %v2611 = vshrl.u32 %v2607, 16
      %v2613 = vrot.slane %v2611, 4
      %v2614 = vshll.u32 %v2607, 16
      %v2616 = vrot.slane %v2614, 5
      %v2617 = vor.u32 %v2613, %v2616
      %v2618 = vrot.slane %v2617, 4
      %v2620 = vshll.u32 %v2608, 16
      %v2622 = vrot.slane %v2620, 5
      %v2623 = vsel %vm416, %v2618, %v2622
      %v2624 = vshrl.u32 %v2608, 16
      %v2626 = vrot.slane %v2624, 4
      %v2627 = vor.u32 %v2626, %v2622
      %v2628 = vrot.slane %v2627, 4
      %v2630 = vshll.u32 %v2609, 16
      %v2632 = vrot.slane %v2630, 5
      %v2633 = vsel %vm416, %v2628, %v2632
      %2634 = vrot.lane.b32.xlu0 %v2623, 28
      %v2635 = vpop.permute.xlu0 %2634
      %2636 = vrot.lane.b32.xlu0 %v2633, 28
      %v2637 = vpop.permute.xlu0 %2636
      %vm2640 = vcmask 257248
      %2641 = vst.msk [vmem:[#allocation2] sm:$0xf] %vm2640, %v2635
      %2642 = vst.msk [vmem:[#allocation2 + $0x4] sm:$0xf] %vm2640, %v2637
      %v2643 = vld [vmem:[%s310] sm:$0xf]
      %v2644 = vld [vmem:[%s310 + $0x4] sm:$0xf]
      %v2645 = vld [vmem:[%s310 + $0x8] sm:$0x1]
      %v2647 = vshrl.u32 %v2643, 16
      %v2649 = vrot.slane %v2647, 4
      %v2650 = vshll.u32 %v2643, 16
      %v2652 = vrot.slane %v2650, 5
      %v2653 = vor.u32 %v2649, %v2652
      %v2654 = vrot.slane %v2653, 4
      %v2656 = vshll.u32 %v2644, 16
      %v2658 = vrot.slane %v2656, 5
      %v2659 = vsel %vm416, %v2654, %v2658
      %v2660 = vshrl.u32 %v2644, 16
      %v2662 = vrot.slane %v2660, 4
      %v2663 = vor.u32 %v2662, %v2658
      %v2664 = vrot.slane %v2663, 4
      %v2666 = vshll.u32 %v2645, 16
      %v2668 = vrot.slane %v2666, 5
      %v2669 = vsel %vm416, %v2664, %v2668
      %2670 = vrot.lane.b32.xlu0 %v2659, 28
      %v2671 = vpop.permute.xlu0 %2670
      %2672 = vrot.lane.b32.xlu0 %v2669, 28
      %v2673 = vpop.permute.xlu0 %2672
      %2676 = vst.msk [vmem:[#allocation2 + $0x8] sm:$0xf] %vm2640, %v2671
      %2677 = vst.msk [vmem:[#allocation2 + $0xc] sm:$0xf] %vm2640, %v2673
      %v2678 = vld [vmem:[%s318] sm:$0xf]
      %v2679 = vld [vmem:[%s318 + $0x4] sm:$0xf]
      %v2680 = vld [vmem:[%s318 + $0x8] sm:$0x1]
      %v2682 = vshrl.u32 %v2678, 16
      %v2684 = vrot.slane %v2682, 4
      %v2685 = vshll.u32 %v2678, 16
      %v2687 = vrot.slane %v2685, 5
      %v2688 = vor.u32 %v2684, %v2687
      %v2689 = vrot.slane %v2688, 4
      %v2691 = vshll.u32 %v2679, 16
      %v2693 = vrot.slane %v2691, 5
      %v2694 = vsel %vm416, %v2689, %v2693
      %v2695 = vshrl.u32 %v2679, 16
      %v2697 = vrot.slane %v2695, 4
      %v2698 = vor.u32 %v2697, %v2693
      %v2699 = vrot.slane %v2698, 4
      %v2701 = vshll.u32 %v2680, 16
      %v2703 = vrot.slane %v2701, 5
      %v2704 = vsel %vm416, %v2699, %v2703
      %2705 = vrot.lane.b32.xlu0 %v2694, 28
      %v2706 = vpop.permute.xlu0 %2705
      %2707 = vrot.lane.b32.xlu0 %v2704, 28
      %v2708 = vpop.permute.xlu0 %2707
      %2711 = vst.msk [vmem:[#allocation2 + $0x10] sm:$0xf] %vm2640, %v2706
      %2712 = vst.msk [vmem:[#allocation2 + $0x14] sm:$0xf] %vm2640, %v2708
      %v2713 = vld [vmem:[%s326] sm:$0xf]
      %v2714 = vld [vmem:[%s326 + $0x4] sm:$0xf]
      %v2715 = vld [vmem:[%s326 + $0x8] sm:$0x1]
      %v2717 = vshrl.u32 %v2713, 16
      %v2719 = vrot.slane %v2717, 4
      %v2720 = vshll.u32 %v2713, 16
      %v2722 = vrot.slane %v2720, 5
      %v2723 = vor.u32 %v2719, %v2722
      %v2724 = vrot.slane %v2723, 4
      %v2726 = vshll.u32 %v2714, 16
      %v2728 = vrot.slane %v2726, 5
      %v2729 = vsel %vm416, %v2724, %v2728
      %v2730 = vshrl.u32 %v2714, 16
      %v2732 = vrot.slane %v2730, 4
      %v2733 = vor.u32 %v2732, %v2728
      %v2734 = vrot.slane %v2733, 4
      %v2736 = vshll.u32 %v2715, 16
      %v2738 = vrot.slane %v2736, 5
      %v2739 = vsel %vm416, %v2734, %v2738
      %2740 = vrot.lane.b32.xlu0 %v2729, 28
      %v2741 = vpop.permute.xlu0 %2740
      %2742 = vrot.lane.b32.xlu0 %v2739, 28
      %v2743 = vpop.permute.xlu0 %2742
      %2746 = vst.msk [vmem:[#allocation2 + $0x18] sm:$0xf] %vm2640, %v2741
      %2747 = vst.msk [vmem:[#allocation2 + $0x1c] sm:$0xf] %vm2640, %v2743
      %v2748 = vld [vmem:[%s334] sm:$0xf]
      %v2749 = vld [vmem:[%s334 + $0x4] sm:$0xf]
      %v2750 = vld [vmem:[%s334 + $0x8] sm:$0x1]
      %v2752 = vshrl.u32 %v2748, 16
      %v2754 = vrot.slane %v2752, 4
      %v2755 = vshll.u32 %v2748, 16
      %v2757 = vrot.slane %v2755, 5
      %v2758 = vor.u32 %v2754, %v2757
      %v2759 = vrot.slane %v2758, 4
      %v2761 = vshll.u32 %v2749, 16
      %v2763 = vrot.slane %v2761, 5
      %v2764 = vsel %vm416, %v2759, %v2763
      %v2765 = vshrl.u32 %v2749, 16
      %v2767 = vrot.slane %v2765, 4
      %v2768 = vor.u32 %v2767, %v2763
      %v2769 = vrot.slane %v2768, 4
      %v2771 = vshll.u32 %v2750, 16
      %v2773 = vrot.slane %v2771, 5
      %v2774 = vsel %vm416, %v2769, %v2773
      %2775 = vrot.lane.b32.xlu0 %v2764, 28
      %v2776 = vpop.permute.xlu0 %2775
      %2777 = vrot.lane.b32.xlu0 %v2774, 28
      %v2778 = vpop.permute.xlu0 %2777
      %2781 = vst.msk [vmem:[#allocation2 + $0x20] sm:$0xf] %vm2640, %v2776
      %2782 = vst.msk [vmem:[#allocation2 + $0x24] sm:$0xf] %vm2640, %v2778
      %v2783 = vld [vmem:[%s342] sm:$0xf]
      %v2784 = vld [vmem:[%s342 + $0x4] sm:$0xf]
      %v2785 = vld [vmem:[%s342 + $0x8] sm:$0x1]
      %v2787 = vshrl.u32 %v2783, 16
      %v2789 = vrot.slane %v2787, 4
      %v2790 = vshll.u32 %v2783, 16
      %v2792 = vrot.slane %v2790, 5
      %v2793 = vor.u32 %v2789, %v2792
      %v2794 = vrot.slane %v2793, 4
      %v2796 = vshll.u32 %v2784, 16
      %v2798 = vrot.slane %v2796, 5
      %v2799 = vsel %vm416, %v2794, %v2798
      %v2800 = vshrl.u32 %v2784, 16
      %v2802 = vrot.slane %v2800, 4
      %v2803 = vor.u32 %v2802, %v2798
      %v2804 = vrot.slane %v2803, 4
      %v2806 = vshll.u32 %v2785, 16
      %v2808 = vrot.slane %v2806, 5
      %v2809 = vsel %vm416, %v2804, %v2808
      %2810 = vrot.lane.b32.xlu0 %v2799, 28
      %v2811 = vpop.permute.xlu0 %2810
      %2812 = vrot.lane.b32.xlu0 %v2809, 28
      %v2813 = vpop.permute.xlu0 %2812
      %2816 = vst.msk [vmem:[#allocation2 + $0x28] sm:$0xf] %vm2640, %v2811
      %2817 = vst.msk [vmem:[#allocation2 + $0x2c] sm:$0xf] %vm2640, %v2813
      %v2818 = vld [vmem:[%s350] sm:$0xf]
      %v2819 = vld [vmem:[%s350 + $0x4] sm:$0xf]
      %v2820 = vld [vmem:[%s350 + $0x8] sm:$0x1]
      %v2822 = vshrl.u32 %v2818, 16
      %v2824 = vrot.slane %v2822, 4
      %v2825 = vshll.u32 %v2818, 16
      %v2827 = vrot.slane %v2825, 5
      %v2828 = vor.u32 %v2824, %v2827
      %v2829 = vrot.slane %v2828, 4
      %v2831 = vshll.u32 %v2819, 16
      %v2833 = vrot.slane %v2831, 5
      %v2834 = vsel %vm416, %v2829, %v2833
      %v2835 = vshrl.u32 %v2819, 16
      %v2837 = vrot.slane %v2835, 4
      %v2838 = vor.u32 %v2837, %v2833
      %v2839 = vrot.slane %v2838, 4
      %v2841 = vshll.u32 %v2820, 16
      %v2843 = vrot.slane %v2841, 5
      %v2844 = vsel %vm416, %v2839, %v2843
      %2845 = vrot.lane.b32.xlu0 %v2834, 28
      %v2846 = vpop.permute.xlu0 %2845
      %2847 = vrot.lane.b32.xlu0 %v2844, 28
      %v2848 = vpop.permute.xlu0 %2847
      %2851 = vst.msk [vmem:[#allocation2 + $0x30] sm:$0xf] %vm2640, %v2846
      %2852 = vst.msk [vmem:[#allocation2 + $0x34] sm:$0xf] %vm2640, %v2848
      %v2853 = vld [vmem:[%s358] sm:$0xf]
      %v2854 = vld [vmem:[%s358 + $0x4] sm:$0xf]
      %v2855 = vld [vmem:[%s358 + $0x8] sm:$0x1]
      %v2857 = vshrl.u32 %v2853, 16
      %v2859 = vrot.slane %v2857, 4
      %v2860 = vshll.u32 %v2853, 16
      %v2862 = vrot.slane %v2860, 5
      %v2863 = vor.u32 %v2859, %v2862
      %v2864 = vrot.slane %v2863, 4
      %v2866 = vshll.u32 %v2854, 16
      %v2868 = vrot.slane %v2866, 5
      %v2869 = vsel %vm416, %v2864, %v2868
      %v2870 = vshrl.u32 %v2854, 16
      %v2872 = vrot.slane %v2870, 4
      %v2873 = vor.u32 %v2872, %v2868
      %v2874 = vrot.slane %v2873, 4
      %v2876 = vshll.u32 %v2855, 16
      %v2878 = vrot.slane %v2876, 5
      %v2879 = vsel %vm416, %v2874, %v2878
      %2880 = vrot.lane.b32.xlu0 %v2869, 28
      %v2881 = vpop.permute.xlu0 %2880
      %2882 = vrot.lane.b32.xlu0 %v2879, 28
      %v2883 = vpop.permute.xlu0 %2882
      %2886 = vst.msk [vmem:[#allocation2 + $0x38] sm:$0xf] %vm2640, %v2881
      %2887 = vst.msk [vmem:[#allocation2 + $0x3c] sm:$0xf] %vm2640, %v2883
      %v2888 = vld [vmem:[%s366] sm:$0xf]
      %v2889 = vld [vmem:[%s366 + $0x4] sm:$0xf]
      %v2890 = vld [vmem:[%s366 + $0x8] sm:$0x1]
      %v2892 = vshrl.u32 %v2888, 16
      %v2894 = vrot.slane %v2892, 4
      %v2895 = vshll.u32 %v2888, 16
      %v2897 = vrot.slane %v2895, 5
      %v2898 = vor.u32 %v2894, %v2897
      %v2899 = vrot.slane %v2898, 4
      %v2901 = vshll.u32 %v2889, 16
      %v2903 = vrot.slane %v2901, 5
      %v2904 = vsel %vm416, %v2899, %v2903
      %v2905 = vshrl.u32 %v2889, 16
      %v2907 = vrot.slane %v2905, 4
      %v2908 = vor.u32 %v2907, %v2903
      %v2909 = vrot.slane %v2908, 4
      %v2911 = vshll.u32 %v2890, 16
      %v2913 = vrot.slane %v2911, 5
      %v2914 = vsel %vm416, %v2909, %v2913
      %2915 = vrot.lane.b32.xlu0 %v2904, 28
      %v2916 = vpop.permute.xlu0 %2915
      %2917 = vrot.lane.b32.xlu0 %v2914, 28
      %v2918 = vpop.permute.xlu0 %2917
      %2921 = vst.msk [vmem:[#allocation2 + $0x40] sm:$0xf] %vm2640, %v2916
      %2922 = vst.msk [vmem:[#allocation2 + $0x44] sm:$0xf] %vm2640, %v2918
      %v2923 = vld [vmem:[%s374] sm:$0xf]
      %v2924 = vld [vmem:[%s374 + $0x4] sm:$0xf]
      %v2925 = vld [vmem:[%s374 + $0x8] sm:$0x1]
      %v2927 = vshrl.u32 %v2923, 16
      %v2929 = vrot.slane %v2927, 4
      %v2930 = vshll.u32 %v2923, 16
      %v2932 = vrot.slane %v2930, 5
      %v2933 = vor.u32 %v2929, %v2932
      %v2934 = vrot.slane %v2933, 4
      %v2936 = vshll.u32 %v2924, 16
      %v2938 = vrot.slane %v2936, 5
      %v2939 = vsel %vm416, %v2934, %v2938
      %v2940 = vshrl.u32 %v2924, 16
      %v2942 = vrot.slane %v2940, 4
      %v2943 = vor.u32 %v2942, %v2938
      %v2944 = vrot.slane %v2943, 4
      %v2946 = vshll.u32 %v2925, 16
      %v2948 = vrot.slane %v2946, 5
      %v2949 = vsel %vm416, %v2944, %v2948
      %2950 = vrot.lane.b32.xlu0 %v2939, 28
      %v2951 = vpop.permute.xlu0 %2950
      %2952 = vrot.lane.b32.xlu0 %v2949, 28
      %v2953 = vpop.permute.xlu0 %2952
      %2956 = vst.msk [vmem:[#allocation2 + $0x48] sm:$0xf] %vm2640, %v2951
      %2957 = vst.msk [vmem:[#allocation2 + $0x4c] sm:$0xf] %vm2640, %v2953
      %v2958 = vld [vmem:[%s382] sm:$0xf]
      %v2959 = vld [vmem:[%s382 + $0x4] sm:$0xf]
      %v2960 = vld [vmem:[%s382 + $0x8] sm:$0x1]
      %v2962 = vshrl.u32 %v2958, 16
      %v2964 = vrot.slane %v2962, 4
      %v2965 = vshll.u32 %v2958, 16
      %v2967 = vrot.slane %v2965, 5
      %v2968 = vor.u32 %v2964, %v2967
      %v2969 = vrot.slane %v2968, 4
      %v2971 = vshll.u32 %v2959, 16
      %v2973 = vrot.slane %v2971, 5
      %v2974 = vsel %vm416, %v2969, %v2973
      %v2975 = vshrl.u32 %v2959, 16
      %v2977 = vrot.slane %v2975, 4
      %v2978 = vor.u32 %v2977, %v2973
      %v2979 = vrot.slane %v2978, 4
      %v2981 = vshll.u32 %v2960, 16
      %v2983 = vrot.slane %v2981, 5
      %v2984 = vsel %vm416, %v2979, %v2983
      %2985 = vrot.lane.b32.xlu0 %v2974, 28
      %v2986 = vpop.permute.xlu0 %2985
      %2987 = vrot.lane.b32.xlu0 %v2984, 28
      %v2988 = vpop.permute.xlu0 %2987
      %2991 = vst.msk [vmem:[#allocation2 + $0x50] sm:$0xf] %vm2640, %v2986
      %2992 = vst.msk [vmem:[#allocation2 + $0x54] sm:$0xf] %vm2640, %v2988
      %v2993 = vld [vmem:[%s390] sm:$0xf]
      %v2994 = vld [vmem:[%s390 + $0x4] sm:$0xf]
      %v2995 = vld [vmem:[%s390 + $0x8] sm:$0x1]
      %v2997 = vshrl.u32 %v2993, 16
      %v2999 = vrot.slane %v2997, 4
      %v3000 = vshll.u32 %v2993, 16
      %v3002 = vrot.slane %v3000, 5
      %v3003 = vor.u32 %v2999, %v3002
      %v3004 = vrot.slane %v3003, 4
      %v3006 = vshll.u32 %v2994, 16
      %v3008 = vrot.slane %v3006, 5
      %v3009 = vsel %vm416, %v3004, %v3008
      %v3010 = vshrl.u32 %v2994, 16
      %v3012 = vrot.slane %v3010, 4
      %v3013 = vor.u32 %v3012, %v3008
      %v3014 = vrot.slane %v3013, 4
      %v3016 = vshll.u32 %v2995, 16
      %v3018 = vrot.slane %v3016, 5
      %v3019 = vsel %vm416, %v3014, %v3018
      %3020 = vrot.lane.b32.xlu0 %v3009, 28
      %v3021 = vpop.permute.xlu0 %3020
      %3022 = vrot.lane.b32.xlu0 %v3019, 28
      %v3023 = vpop.permute.xlu0 %3022
      %3026 = vst.msk [vmem:[#allocation2 + $0x58] sm:$0xf] %vm2640, %v3021
      %3027 = vst.msk [vmem:[#allocation2 + $0x5c] sm:$0xf] %vm2640, %v3023
      %v3028 = vld [vmem:[%s398] sm:$0xf]
      %v3029 = vld [vmem:[%s398 + $0x4] sm:$0xf]
      %v3030 = vld [vmem:[%s398 + $0x8] sm:$0x1]
      %v3032 = vshrl.u32 %v3028, 16
      %v3034 = vrot.slane %v3032, 4
      %v3035 = vshll.u32 %v3028, 16
      %v3037 = vrot.slane %v3035, 5
      %v3038 = vor.u32 %v3034, %v3037
      %v3039 = vrot.slane %v3038, 4
      %v3041 = vshll.u32 %v3029, 16
      %v3043 = vrot.slane %v3041, 5
      %v3044 = vsel %vm416, %v3039, %v3043
      %v3045 = vshrl.u32 %v3029, 16
      %v3047 = vrot.slane %v3045, 4
      %v3048 = vor.u32 %v3047, %v3043
      %v3049 = vrot.slane %v3048, 4
      %v3051 = vshll.u32 %v3030, 16
      %v3053 = vrot.slane %v3051, 5
      %v3054 = vsel %vm416, %v3049, %v3053
      %3055 = vrot.lane.b32.xlu0 %v3044, 28
      %v3056 = vpop.permute.xlu0 %3055
      %3057 = vrot.lane.b32.xlu0 %v3054, 28
      %v3058 = vpop.permute.xlu0 %3057
      %3061 = vst.msk [vmem:[#allocation2 + $0x60] sm:$0xf] %vm2640, %v3056
      %3062 = vst.msk [vmem:[#allocation2 + $0x64] sm:$0xf] %vm2640, %v3058
      %v3063 = vld [vmem:[%s406] sm:$0xf]
      %v3064 = vld [vmem:[%s406 + $0x4] sm:$0xf]
      %v3065 = vld [vmem:[%s406 + $0x8] sm:$0x1]
      %v3067 = vshrl.u32 %v3063, 16
      %v3069 = vrot.slane %v3067, 4
      %v3070 = vshll.u32 %v3063, 16
      %v3072 = vrot.slane %v3070, 5
      %v3073 = vor.u32 %v3069, %v3072
      %v3074 = vrot.slane %v3073, 4
      %v3076 = vshll.u32 %v3064, 16
      %v3078 = vrot.slane %v3076, 5
      %v3079 = vsel %vm416, %v3074, %v3078
      %v3080 = vshrl.u32 %v3064, 16
      %v3082 = vrot.slane %v3080, 4
      %v3083 = vor.u32 %v3082, %v3078
      %v3084 = vrot.slane %v3083, 4
      %v3086 = vshll.u32 %v3065, 16
      %v3088 = vrot.slane %v3086, 5
      %v3089 = vsel %vm416, %v3084, %v3088
      %3090 = vrot.lane.b32.xlu0 %v3079, 28
      %v3091 = vpop.permute.xlu0 %3090
      %3092 = vrot.lane.b32.xlu0 %v3089, 28
      %v3093 = vpop.permute.xlu0 %3092
      %3096 = vst.msk [vmem:[#allocation2 + $0x68] sm:$0xf] %vm2640, %v3091
      %3097 = vst.msk [vmem:[#allocation2 + $0x6c] sm:$0xf] %vm2640, %v3093
      %v3098 = vld [vmem:[%s1499] sm:$0xf]
      %v3099 = vld [vmem:[%s1499 + $0x4] sm:$0xf]
      %v3100 = vld [vmem:[%s1499 + $0x8] sm:$0x1]
      %v3102 = vshrl.u32 %v3098, 16
      %v3104 = vrot.slane %v3102, 4
      %v3105 = vshll.u32 %v3098, 16
      %v3107 = vrot.slane %v3105, 5
      %v3108 = vor.u32 %v3104, %v3107
      %v3109 = vrot.slane %v3108, 4
      %v3111 = vshll.u32 %v3099, 16
      %v3113 = vrot.slane %v3111, 5
      %v3114 = vsel %vm416, %v3109, %v3113
      %v3115 = vshrl.u32 %v3099, 16
      %v3117 = vrot.slane %v3115, 4
      %v3118 = vor.u32 %v3117, %v3113
      %v3119 = vrot.slane %v3118, 4
      %v3121 = vshll.u32 %v3100, 16
      %v3123 = vrot.slane %v3121, 5
      %v3124 = vsel %vm416, %v3119, %v3123
      %3125 = vrot.lane.b32.xlu0 %v3114, 28
      %v3126 = vpop.permute.xlu0 %3125
      %3127 = vrot.lane.b32.xlu0 %v3124, 28
      %v3128 = vpop.permute.xlu0 %3127
      %3131 = vst.msk [vmem:[#allocation2 + $0x70] sm:$0xf] %vm2640, %v3126
      %3132 = vst.msk [vmem:[#allocation2 + $0x74] sm:$0xf] %vm2640, %v3128
      %v3133 = vld [vmem:[%s2594] sm:$0xf]
      %v3134 = vld [vmem:[%s2594 + $0x4] sm:$0xf]
      %v3135 = vld [vmem:[%s2594 + $0x8] sm:$0x1]
      %v3137 = vshrl.u32 %v3133, 16
      %v3139 = vrot.slane %v3137, 4
      %v3140 = vshll.u32 %v3133, 16
      %v3142 = vrot.slane %v3140, 5
      %v3143 = vor.u32 %v3139, %v3142
      %v3144 = vrot.slane %v3143, 4
      %v3146 = vshll.u32 %v3134, 16
      %v3148 = vrot.slane %v3146, 5
      %v3149 = vsel %vm416, %v3144, %v3148
      %v3150 = vshrl.u32 %v3134, 16
      %v3152 = vrot.slane %v3150, 4
      %v3153 = vor.u32 %v3152, %v3148
      %v3154 = vrot.slane %v3153, 4
      %v3156 = vshll.u32 %v3135, 16
      %v3158 = vrot.slane %v3156, 5
      %v3159 = vsel %vm416, %v3154, %v3158
      %3160 = vrot.lane.b32.xlu0 %v3149, 28
      %v3161 = vpop.permute.xlu0 %3160
      %3162 = vrot.lane.b32.xlu0 %v3159, 28
      %v3163 = vpop.permute.xlu0 %3162
      %3166 = vst.msk [vmem:[#allocation2 + $0x78] sm:$0xf] %vm2640, %v3161
      %3167 = vst.msk [vmem:[#allocation2 + $0x7c] sm:$0xf] %vm2640, %v3163
      %v3168 = vld [vmem:[%s302] sm:$0xe]
      %v3169 = vld [vmem:[%s302 + $0x4] sm:$0xf]
      %v3170 = vld [vmem:[%s302 + $0x8] sm:$0x1]
      %v3174 = vrot.slane %v3168, 5
      %v3175 = vrot.slane %v3174, 4
      %v3176 = vrot.slane %v3169, 5
      %v3177 = vsel %vm983, %v3175, %v3176
      %v3178 = vrot.slane %v3176, 4
      %v3179 = vrot.slane %v3170, 5
      %v3180 = vsel %vm983, %v3178, %v3179
      %3181 = vrot.lane.b32.xlu0 %v3177, 32
      %v3182 = vpop.permute.xlu0 %3181
      %3183 = vrot.lane.b32.xlu0 %v3180, 32
      %v3184 = vpop.permute.xlu0 %3183
      %vm3187 = vcmask 290048
      %3188 = vst.msk [vmem:[#allocation2] sm:$0xf] %vm3187, %v3182
      %3189 = vst.msk [vmem:[#allocation2 + $0x4] sm:$0xf] %vm3187, %v3184
      %v3190 = vld [vmem:[%s310] sm:$0xe]
      %v3191 = vld [vmem:[%s310 + $0x4] sm:$0xf]
      %v3192 = vld [vmem:[%s310 + $0x8] sm:$0x1]
      %v3196 = vrot.slane %v3190, 5
      %v3197 = vrot.slane %v3196, 4
      %v3198 = vrot.slane %v3191, 5
      %v3199 = vsel %vm983, %v3197, %v3198
      %v3200 = vrot.slane %v3198, 4
      %v3201 = vrot.slane %v3192, 5
      %v3202 = vsel %vm983, %v3200, %v3201
      %3203 = vrot.lane.b32.xlu0 %v3199, 32
      %v3204 = vpop.permute.xlu0 %3203
      %3205 = vrot.lane.b32.xlu0 %v3202, 32
      %v3206 = vpop.permute.xlu0 %3205
      %3209 = vst.msk [vmem:[#allocation2 + $0x8] sm:$0xf] %vm3187, %v3204
      %3210 = vst.msk [vmem:[#allocation2 + $0xc] sm:$0xf] %vm3187, %v3206
      %v3211 = vld [vmem:[%s318] sm:$0xe]
      %v3212 = vld [vmem:[%s318 + $0x4] sm:$0xf]
      %v3213 = vld [vmem:[%s318 + $0x8] sm:$0x1]
      %v3217 = vrot.slane %v3211, 5
      %v3218 = vrot.slane %v3217, 4
      %v3219 = vrot.slane %v3212, 5
      %v3220 = vsel %vm983, %v3218, %v3219
      %v3221 = vrot.slane %v3219, 4
      %v3222 = vrot.slane %v3213, 5
      %v3223 = vsel %vm983, %v3221, %v3222
      %3224 = vrot.lane.b32.xlu0 %v3220, 32
      %v3225 = vpop.permute.xlu0 %3224
      %3226 = vrot.lane.b32.xlu0 %v3223, 32
      %v3227 = vpop.permute.xlu0 %3226
      %3230 = vst.msk [vmem:[#allocation2 + $0x10] sm:$0xf] %vm3187, %v3225
      %3231 = vst.msk [vmem:[#allocation2 + $0x14] sm:$0xf] %vm3187, %v3227
      %v3232 = vld [vmem:[%s326] sm:$0xe]
      %v3233 = vld [vmem:[%s326 + $0x4] sm:$0xf]
      %v3234 = vld [vmem:[%s326 + $0x8] sm:$0x1]
      %v3238 = vrot.slane %v3232, 5
      %v3239 = vrot.slane %v3238, 4
      %v3240 = vrot.slane %v3233, 5
      %v3241 = vsel %vm983, %v3239, %v3240
      %v3242 = vrot.slane %v3240, 4
      %v3243 = vrot.slane %v3234, 5
      %v3244 = vsel %vm983, %v3242, %v3243
      %3245 = vrot.lane.b32.xlu0 %v3241, 32
      %v3246 = vpop.permute.xlu0 %3245
      %3247 = vrot.lane.b32.xlu0 %v3244, 32
      %v3248 = vpop.permute.xlu0 %3247
      %3251 = vst.msk [vmem:[#allocation2 + $0x18] sm:$0xf] %vm3187, %v3246
      %3252 = vst.msk [vmem:[#allocation2 + $0x1c] sm:$0xf] %vm3187, %v3248
      %v3253 = vld [vmem:[%s334] sm:$0xe]
      %v3254 = vld [vmem:[%s334 + $0x4] sm:$0xf]
      %v3255 = vld [vmem:[%s334 + $0x8] sm:$0x1]
      %v3259 = vrot.slane %v3253, 5
      %v3260 = vrot.slane %v3259, 4
      %v3261 = vrot.slane %v3254, 5
      %v3262 = vsel %vm983, %v3260, %v3261
      %v3263 = vrot.slane %v3261, 4
      %v3264 = vrot.slane %v3255, 5
      %v3265 = vsel %vm983, %v3263, %v3264
      %3266 = vrot.lane.b32.xlu0 %v3262, 32
      %v3267 = vpop.permute.xlu0 %3266
      %3268 = vrot.lane.b32.xlu0 %v3265, 32
      %v3269 = vpop.permute.xlu0 %3268
      %3272 = vst.msk [vmem:[#allocation2 + $0x20] sm:$0xf] %vm3187, %v3267
      %3273 = vst.msk [vmem:[#allocation2 + $0x24] sm:$0xf] %vm3187, %v3269
      %v3274 = vld [vmem:[%s342] sm:$0xe]
      %v3275 = vld [vmem:[%s342 + $0x4] sm:$0xf]
      %v3276 = vld [vmem:[%s342 + $0x8] sm:$0x1]
      %v3280 = vrot.slane %v3274, 5
      %v3281 = vrot.slane %v3280, 4
      %v3282 = vrot.slane %v3275, 5
      %v3283 = vsel %vm983, %v3281, %v3282
      %v3284 = vrot.slane %v3282, 4
      %v3285 = vrot.slane %v3276, 5
      %v3286 = vsel %vm983, %v3284, %v3285
      %3287 = vrot.lane.b32.xlu0 %v3283, 32
      %v3288 = vpop.permute.xlu0 %3287
      %3289 = vrot.lane.b32.xlu0 %v3286, 32
      %v3290 = vpop.permute.xlu0 %3289
      %3293 = vst.msk [vmem:[#allocation2 + $0x28] sm:$0xf] %vm3187, %v3288
      %3294 = vst.msk [vmem:[#allocation2 + $0x2c] sm:$0xf] %vm3187, %v3290
      %v3295 = vld [vmem:[%s350] sm:$0xe]
      %v3296 = vld [vmem:[%s350 + $0x4] sm:$0xf]
      %v3297 = vld [vmem:[%s350 + $0x8] sm:$0x1]
      %v3301 = vrot.slane %v3295, 5
      %v3302 = vrot.slane %v3301, 4
      %v3303 = vrot.slane %v3296, 5
      %v3304 = vsel %vm983, %v3302, %v3303
      %v3305 = vrot.slane %v3303, 4
      %v3306 = vrot.slane %v3297, 5
      %v3307 = vsel %vm983, %v3305, %v3306
      %3308 = vrot.lane.b32.xlu0 %v3304, 32
      %v3309 = vpop.permute.xlu0 %3308
      %3310 = vrot.lane.b32.xlu0 %v3307, 32
      %v3311 = vpop.permute.xlu0 %3310
      %3314 = vst.msk [vmem:[#allocation2 + $0x30] sm:$0xf] %vm3187, %v3309
      %3315 = vst.msk [vmem:[#allocation2 + $0x34] sm:$0xf] %vm3187, %v3311
      %v3316 = vld [vmem:[%s358] sm:$0xe]
      %v3317 = vld [vmem:[%s358 + $0x4] sm:$0xf]
      %v3318 = vld [vmem:[%s358 + $0x8] sm:$0x1]
      %v3322 = vrot.slane %v3316, 5
      %v3323 = vrot.slane %v3322, 4
      %v3324 = vrot.slane %v3317, 5
      %v3325 = vsel %vm983, %v3323, %v3324
      %v3326 = vrot.slane %v3324, 4
      %v3327 = vrot.slane %v3318, 5
      %v3328 = vsel %vm983, %v3326, %v3327
      %3329 = vrot.lane.b32.xlu0 %v3325, 32
      %v3330 = vpop.permute.xlu0 %3329
      %3331 = vrot.lane.b32.xlu0 %v3328, 32
      %v3332 = vpop.permute.xlu0 %3331
      %3335 = vst.msk [vmem:[#allocation2 + $0x38] sm:$0xf] %vm3187, %v3330
      %3336 = vst.msk [vmem:[#allocation2 + $0x3c] sm:$0xf] %vm3187, %v3332
      %v3337 = vld [vmem:[%s366] sm:$0xe]
      %v3338 = vld [vmem:[%s366 + $0x4] sm:$0xf]
      %v3339 = vld [vmem:[%s366 + $0x8] sm:$0x1]
      %v3343 = vrot.slane %v3337, 5
      %v3344 = vrot.slane %v3343, 4
      %v3345 = vrot.slane %v3338, 5
      %v3346 = vsel %vm983, %v3344, %v3345
      %v3347 = vrot.slane %v3345, 4
      %v3348 = vrot.slane %v3339, 5
      %v3349 = vsel %vm983, %v3347, %v3348
      %3350 = vrot.lane.b32.xlu0 %v3346, 32
      %v3351 = vpop.permute.xlu0 %3350
      %3352 = vrot.lane.b32.xlu0 %v3349, 32
      %v3353 = vpop.permute.xlu0 %3352
      %3356 = vst.msk [vmem:[#allocation2 + $0x40] sm:$0xf] %vm3187, %v3351
      %3357 = vst.msk [vmem:[#allocation2 + $0x44] sm:$0xf] %vm3187, %v3353
      %v3358 = vld [vmem:[%s374] sm:$0xe]
      %v3359 = vld [vmem:[%s374 + $0x4] sm:$0xf]
      %v3360 = vld [vmem:[%s374 + $0x8] sm:$0x1]
      %v3364 = vrot.slane %v3358, 5
      %v3365 = vrot.slane %v3364, 4
      %v3366 = vrot.slane %v3359, 5
      %v3367 = vsel %vm983, %v3365, %v3366
      %v3368 = vrot.slane %v3366, 4
      %v3369 = vrot.slane %v3360, 5
      %v3370 = vsel %vm983, %v3368, %v3369
      %3371 = vrot.lane.b32.xlu0 %v3367, 32
      %v3372 = vpop.permute.xlu0 %3371
      %3373 = vrot.lane.b32.xlu0 %v3370, 32
      %v3374 = vpop.permute.xlu0 %3373
      %3377 = vst.msk [vmem:[#allocation2 + $0x48] sm:$0xf] %vm3187, %v3372
      %3378 = vst.msk [vmem:[#allocation2 + $0x4c] sm:$0xf] %vm3187, %v3374
      %v3379 = vld [vmem:[%s382] sm:$0xe]
      %v3380 = vld [vmem:[%s382 + $0x4] sm:$0xf]
      %v3381 = vld [vmem:[%s382 + $0x8] sm:$0x1]
      %v3385 = vrot.slane %v3379, 5
      %v3386 = vrot.slane %v3385, 4
      %v3387 = vrot.slane %v3380, 5
      %v3388 = vsel %vm983, %v3386, %v3387
      %v3389 = vrot.slane %v3387, 4
      %v3390 = vrot.slane %v3381, 5
      %v3391 = vsel %vm983, %v3389, %v3390
      %3392 = vrot.lane.b32.xlu0 %v3388, 32
      %v3393 = vpop.permute.xlu0 %3392
      %3394 = vrot.lane.b32.xlu0 %v3391, 32
      %v3395 = vpop.permute.xlu0 %3394
      %3398 = vst.msk [vmem:[#allocation2 + $0x50] sm:$0xf] %vm3187, %v3393
      %3399 = vst.msk [vmem:[#allocation2 + $0x54] sm:$0xf] %vm3187, %v3395
      %v3400 = vld [vmem:[%s390] sm:$0xe]
      %v3401 = vld [vmem:[%s390 + $0x4] sm:$0xf]
      %v3402 = vld [vmem:[%s390 + $0x8] sm:$0x1]
      %v3406 = vrot.slane %v3400, 5
      %v3407 = vrot.slane %v3406, 4
      %v3408 = vrot.slane %v3401, 5
      %v3409 = vsel %vm983, %v3407, %v3408
      %v3410 = vrot.slane %v3408, 4
      %v3411 = vrot.slane %v3402, 5
      %v3412 = vsel %vm983, %v3410, %v3411
      %3413 = vrot.lane.b32.xlu0 %v3409, 32
      %v3414 = vpop.permute.xlu0 %3413
      %3415 = vrot.lane.b32.xlu0 %v3412, 32
      %v3416 = vpop.permute.xlu0 %3415
      %3419 = vst.msk [vmem:[#allocation2 + $0x58] sm:$0xf] %vm3187, %v3414
      %3420 = vst.msk [vmem:[#allocation2 + $0x5c] sm:$0xf] %vm3187, %v3416
      %v3421 = vld [vmem:[%s398] sm:$0xe]
      %v3422 = vld [vmem:[%s398 + $0x4] sm:$0xf]
      %v3423 = vld [vmem:[%s398 + $0x8] sm:$0x1]
      %v3427 = vrot.slane %v3421, 5
      %v3428 = vrot.slane %v3427, 4
      %v3429 = vrot.slane %v3422, 5
      %v3430 = vsel %vm983, %v3428, %v3429
      %v3431 = vrot.slane %v3429, 4
      %v3432 = vrot.slane %v3423, 5
      %v3433 = vsel %vm983, %v3431, %v3432
      %3434 = vrot.lane.b32.xlu0 %v3430, 32
      %v3435 = vpop.permute.xlu0 %3434
      %3436 = vrot.lane.b32.xlu0 %v3433, 32
      %v3437 = vpop.permute.xlu0 %3436
      %3440 = vst.msk [vmem:[#allocation2 + $0x60] sm:$0xf] %vm3187, %v3435
      %3441 = vst.msk [vmem:[#allocation2 + $0x64] sm:$0xf] %vm3187, %v3437
      %v3442 = vld [vmem:[%s406] sm:$0xe]
      %v3443 = vld [vmem:[%s406 + $0x4] sm:$0xf]
      %v3444 = vld [vmem:[%s406 + $0x8] sm:$0x1]
      %v3448 = vrot.slane %v3442, 5
      %v3449 = vrot.slane %v3448, 4
      %v3450 = vrot.slane %v3443, 5
      %v3451 = vsel %vm983, %v3449, %v3450
      %v3452 = vrot.slane %v3450, 4
      %v3453 = vrot.slane %v3444, 5
      %v3454 = vsel %vm983, %v3452, %v3453
      %3455 = vrot.lane.b32.xlu0 %v3451, 32
      %v3456 = vpop.permute.xlu0 %3455
      %3457 = vrot.lane.b32.xlu0 %v3454, 32
      %v3458 = vpop.permute.xlu0 %3457
      %3461 = vst.msk [vmem:[#allocation2 + $0x68] sm:$0xf] %vm3187, %v3456
      %3462 = vst.msk [vmem:[#allocation2 + $0x6c] sm:$0xf] %vm3187, %v3458
      %v3463 = vld [vmem:[%s1499] sm:$0xe]
      %v3464 = vld [vmem:[%s1499 + $0x4] sm:$0xf]
      %v3465 = vld [vmem:[%s1499 + $0x8] sm:$0x1]
      %v3469 = vrot.slane %v3463, 5
      %v3470 = vrot.slane %v3469, 4
      %v3471 = vrot.slane %v3464, 5
      %v3472 = vsel %vm983, %v3470, %v3471
      %v3473 = vrot.slane %v3471, 4
      %v3474 = vrot.slane %v3465, 5
      %v3475 = vsel %vm983, %v3473, %v3474
      %3476 = vrot.lane.b32.xlu0 %v3472, 32
      %v3477 = vpop.permute.xlu0 %3476
      %3478 = vrot.lane.b32.xlu0 %v3475, 32
      %v3479 = vpop.permute.xlu0 %3478
      %3482 = vst.msk [vmem:[#allocation2 + $0x70] sm:$0xf] %vm3187, %v3477
      %3483 = vst.msk [vmem:[#allocation2 + $0x74] sm:$0xf] %vm3187, %v3479
      %v3484 = vld [vmem:[%s2594] sm:$0xe]
      %v3485 = vld [vmem:[%s2594 + $0x4] sm:$0xf]
      %v3486 = vld [vmem:[%s2594 + $0x8] sm:$0x1]
      %v3490 = vrot.slane %v3484, 5
      %v3491 = vrot.slane %v3490, 4
      %v3492 = vrot.slane %v3485, 5
      %v3493 = vsel %vm983, %v3491, %v3492
      %v3494 = vrot.slane %v3492, 4
      %v3495 = vrot.slane %v3486, 5
      %v3496 = vsel %vm983, %v3494, %v3495
      %3497 = vrot.lane.b32.xlu0 %v3493, 32
      %v3498 = vpop.permute.xlu0 %3497
      %3499 = vrot.lane.b32.xlu0 %v3496, 32
      %v3500 = vpop.permute.xlu0 %3499
      %3503 = vst.msk [vmem:[#allocation2 + $0x78] sm:$0xf] %vm3187, %v3498
      %3504 = vst.msk [vmem:[#allocation2 + $0x7c] sm:$0xf] %vm3187, %v3500
      %v3505 = vld [vmem:[#allocation2] sm:$0xf]
      %v3506 = vld [vmem:[#allocation2 + $0x4] sm:$0xf]
      %v3507 = vld [vmem:[#allocation2 + $0x8] sm:$0xf]
      %v3508 = vld [vmem:[#allocation2 + $0xc] sm:$0xf]
      %v3509 = vld [vmem:[#allocation2 + $0x10] sm:$0xf]
      %v3510 = vld [vmem:[#allocation2 + $0x14] sm:$0xf]
      %v3511 = vld [vmem:[#allocation2 + $0x18] sm:$0xf]
      %v3512 = vld [vmem:[#allocation2 + $0x1c] sm:$0xf]
      %v3513 = vld [vmem:[#allocation2 + $0x20] sm:$0xf]
      %v3514 = vld [vmem:[#allocation2 + $0x24] sm:$0xf]
      %v3515 = vld [vmem:[#allocation2 + $0x28] sm:$0xf]
      %v3516 = vld [vmem:[#allocation2 + $0x2c] sm:$0xf]
      %v3517 = vld [vmem:[#allocation2 + $0x30] sm:$0xf]
      %v3518 = vld [vmem:[#allocation2 + $0x34] sm:$0xf]
      %v3519 = vld [vmem:[#allocation2 + $0x38] sm:$0xf]
      %v3520 = vld [vmem:[#allocation2 + $0x3c] sm:$0xf]
      %v3521 = vld [vmem:[#allocation2 + $0x40] sm:$0xf]
      %v3522 = vld [vmem:[#allocation2 + $0x44] sm:$0xf]
      %v3523 = vld [vmem:[#allocation2 + $0x48] sm:$0xf]
      %v3524 = vld [vmem:[#allocation2 + $0x4c] sm:$0xf]
      %v3525 = vld [vmem:[#allocation2 + $0x50] sm:$0xf]
      %v3526 = vld [vmem:[#allocation2 + $0x54] sm:$0xf]
      %v3527 = vld [vmem:[#allocation2 + $0x58] sm:$0xf]
      %v3528 = vld [vmem:[#allocation2 + $0x5c] sm:$0xf]
      %v3529 = vld [vmem:[#allocation2 + $0x60] sm:$0xf]
      %v3530 = vld [vmem:[#allocation2 + $0x64] sm:$0xf]
      %v3531 = vld [vmem:[#allocation2 + $0x68] sm:$0xf]
      %v3532 = vld [vmem:[#allocation2 + $0x6c] sm:$0xf]
      %v3533 = vld [vmem:[#allocation2 + $0x70] sm:$0xf]
      %v3534 = vld [vmem:[#allocation2 + $0x74] sm:$0xf]
      %v3535 = vld [vmem:[#allocation2 + $0x78] sm:$0xf]
      %v3536 = vld [vmem:[#allocation2 + $0x7c] sm:$0xf]
      %v3537 = vld [vmem:[%s261] sm:$0xf]
      %v3538 = vld [vmem:[%s261 + $0x4] sm:$0xf]
      %v3539 = vld [vmem:[%s261 + $0x8] sm:$0xf]
      %v3540 = vld [vmem:[%s261 + $0xc] sm:$0xf]
      %v3541 = vld [vmem:[%s261 + $0x10] sm:$0x3]
      %v3574 = vunpack.c.l.b16 %v3505
      %v3575 = vunpack.c.l.b16 %v3506
      %v3576 = vunpack.c.l.b16 %v3507
      %v3577 = vunpack.c.l.b16 %v3508
      %v3578 = vunpack.c.l.b16 %v3509
      %v3579 = vunpack.c.l.b16 %v3510
      %v3580 = vunpack.c.l.b16 %v3511
      %v3581 = vunpack.c.l.b16 %v3512
      %v3582 = vunpack.c.l.b16 %v3513
      %v3583 = vunpack.c.l.b16 %v3514
      %v3584 = vunpack.c.l.b16 %v3515
      %v3585 = vunpack.c.l.b16 %v3516
      %v3586 = vunpack.c.l.b16 %v3517
      %v3587 = vunpack.c.l.b16 %v3518
      %v3588 = vunpack.c.l.b16 %v3519
      %v3589 = vunpack.c.l.b16 %v3520
      %v3590 = vunpack.c.l.b16 %v3521
      %v3591 = vunpack.c.l.b16 %v3522
      %v3592 = vunpack.c.l.b16 %v3523
      %v3593 = vunpack.c.l.b16 %v3524
      %v3594 = vunpack.c.l.b16 %v3525
      %v3595 = vunpack.c.l.b16 %v3526
      %v3596 = vunpack.c.l.b16 %v3527
      %v3597 = vunpack.c.l.b16 %v3528
      %v3598 = vunpack.c.l.b16 %v3529
      %v3599 = vunpack.c.l.b16 %v3530
      %v3600 = vunpack.c.l.b16 %v3531
      %v3601 = vunpack.c.l.b16 %v3532
      %v3602 = vunpack.c.l.b16 %v3533
      %v3603 = vunpack.c.l.b16 %v3534
      %v3604 = vunpack.c.l.b16 %v3535
      %v3605 = vunpack.c.l.b16 %v3536
      %v3606 = vpack.c.b16 %v3575, %v3574
      %v3607 = vpack.c.b16 %v3577, %v3576
      %v3608 = vpack.c.b16 %v3579, %v3578
      %v3609 = vpack.c.b16 %v3581, %v3580
      %v3610 = vpack.c.b16 %v3583, %v3582
      %v3611 = vpack.c.b16 %v3585, %v3584
      %v3612 = vpack.c.b16 %v3587, %v3586
      %v3613 = vpack.c.b16 %v3589, %v3588
      %v3614 = vpack.c.b16 %v3591, %v3590
      %v3615 = vpack.c.b16 %v3593, %v3592
      %v3616 = vpack.c.b16 %v3595, %v3594
      %v3617 = vpack.c.b16 %v3597, %v3596
      %v3618 = vpack.c.b16 %v3599, %v3598
      %v3619 = vpack.c.b16 %v3601, %v3600
      %v3620 = vpack.c.b16 %v3603, %v3602
      %v3621 = vpack.c.b16 %v3605, %v3604
      %v3627 = vunpack.c.l.b16 %v3537
      %v3628 = vunpack.c.l.b16 %v3538
      %v3629 = vunpack.c.l.b16 %v3539
      %v3630 = vunpack.c.l.b16 %v3540
      %v3631 = vunpack.c.l.b16 %v3541
      %v3632 = vpack.c.b16 %v3628, %v3627
      %v3633 = vpack.c.b16 %v3630, %v3629
      %v3634 = vpack.c.b16 %v3631, %v3631
      %vm3637 = vcmask 293888
      %v3639 = vsel %vm3637, %v3606, 0
      %v3642 = vsel %vm3637, %v3607, 0
      %v3645 = vsel %vm3637, %v3608, 0
      %v3648 = vsel %vm3637, %v3609, 0
      %v3651 = vsel %vm3637, %v3610, 0
      %v3654 = vsel %vm3637, %v3611, 0
      %v3657 = vsel %vm3637, %v3612, 0
      %v3660 = vsel %vm3637, %v3613, 0
      %v3663 = vsel %vm3637, %v3614, 0
      %v3666 = vsel %vm3637, %v3615, 0
      %v3669 = vsel %vm3637, %v3616, 0
      %v3672 = vsel %vm3637, %v3617, 0
      %v3675 = vsel %vm3637, %v3618, 0
      %v3678 = vsel %vm3637, %v3619, 0
      %v3681 = vsel %vm3637, %v3620, 0
      %v3684 = vsel %vm3637, %v3621, 0
      %vm3686 = vcmask 1041408
      %v3688 = vsel %vm3686, %v3634, 0
      %3690 = vmatpush.bf16.msra.mxu0 0
      %3691 = vmatpush.bf16.msra.mxu0 0
      %3692 = vmatpush.bf16.msra.mxu0 0
      %3693 = vmatpush.bf16.msra.mxu0 0
      %3694 = vmatpush.bf16.msra.mxu0 0
      %3695 = vmatpush.bf16.msra.mxu0 %v3688
      %3696 = vmatpush.bf16.msra.mxu0 %v3633
      %3697 = vmatpush.bf16.msra.mxu0 %v3632
      %3698 = vmatmul.bf16.gmra.mxu0 %v3639
      %v3699 = vpop.f32.mrf.mxu0
      %v3700 = vadd.f32 0.0, %v3699
      %v3701 = vpop.f32.mrf.mxu0
      %v3702 = vadd.f32 0.0, %v3701
      %3703 = vmatmul.bf16.gmra.mxu0 %v3642
      %v3704 = vpop.f32.mrf.mxu0
      %v3705 = vadd.f32 0.0, %v3704
      %v3706 = vpop.f32.mrf.mxu0
      %v3707 = vadd.f32 0.0, %v3706
      %3708 = vmatmul.bf16.gmra.mxu0 %v3645
      %v3709 = vpop.f32.mrf.mxu0
      %v3710 = vadd.f32 0.0, %v3709
      %v3711 = vpop.f32.mrf.mxu0
      %v3712 = vadd.f32 0.0, %v3711
      %3713 = vmatmul.bf16.gmra.mxu0 %v3648
      %v3714 = vpop.f32.mrf.mxu0
      %v3715 = vadd.f32 0.0, %v3714
      %v3716 = vpop.f32.mrf.mxu0
      %v3717 = vadd.f32 0.0, %v3716
      %3718 = vmatmul.bf16.gmra.mxu0 %v3651
      %v3719 = vpop.f32.mrf.mxu0
      %v3720 = vadd.f32 0.0, %v3719
      %v3721 = vpop.f32.mrf.mxu0
      %v3722 = vadd.f32 0.0, %v3721
      %3723 = vmatmul.bf16.gmra.mxu0 %v3654
      %v3724 = vpop.f32.mrf.mxu0
      %v3725 = vadd.f32 0.0, %v3724
      %v3726 = vpop.f32.mrf.mxu0
      %v3727 = vadd.f32 0.0, %v3726
      %3728 = vmatmul.bf16.gmra.mxu0 %v3657
      %v3729 = vpop.f32.mrf.mxu0
      %v3730 = vadd.f32 0.0, %v3729
      %v3731 = vpop.f32.mrf.mxu0
      %v3732 = vadd.f32 0.0, %v3731
      %3733 = vmatmul.bf16.gmra.mxu0 %v3660
      %v3734 = vpop.f32.mrf.mxu0
      %v3735 = vadd.f32 0.0, %v3734
      %v3736 = vpop.f32.mrf.mxu0
      %v3737 = vadd.f32 0.0, %v3736
      %3738 = vmatmul.bf16.gmra.mxu0 %v3663
      %v3739 = vpop.f32.mrf.mxu0
      %v3740 = vadd.f32 0.0, %v3739
      %v3741 = vpop.f32.mrf.mxu0
      %v3742 = vadd.f32 0.0, %v3741
      %3743 = vmatmul.bf16.gmra.mxu0 %v3666
      %v3744 = vpop.f32.mrf.mxu0
      %v3745 = vadd.f32 0.0, %v3744
      %v3746 = vpop.f32.mrf.mxu0
      %v3747 = vadd.f32 0.0, %v3746
      %3748 = vmatmul.bf16.gmra.mxu0 %v3669
      %v3749 = vpop.f32.mrf.mxu0
      %v3750 = vadd.f32 0.0, %v3749
      %v3751 = vpop.f32.mrf.mxu0
      %v3752 = vadd.f32 0.0, %v3751
      %3753 = vmatmul.bf16.gmra.mxu0 %v3672
      %v3754 = vpop.f32.mrf.mxu0
      %v3755 = vadd.f32 0.0, %v3754
      %v3756 = vpop.f32.mrf.mxu0
      %v3757 = vadd.f32 0.0, %v3756
      %3758 = vmatmul.bf16.gmra.mxu0 %v3675
      %v3759 = vpop.f32.mrf.mxu0
      %v3760 = vadd.f32 0.0, %v3759
      %v3761 = vpop.f32.mrf.mxu0
      %v3762 = vadd.f32 0.0, %v3761
      %3763 = vmatmul.bf16.gmra.mxu0 %v3678
      %v3764 = vpop.f32.mrf.mxu0
      %v3765 = vadd.f32 0.0, %v3764
      %v3766 = vpop.f32.mrf.mxu0
      %v3767 = vadd.f32 0.0, %v3766
      %3768 = vmatmul.bf16.gmra.mxu0 %v3681
      %v3769 = vpop.f32.mrf.mxu0
      %v3770 = vadd.f32 0.0, %v3769
      %v3771 = vpop.f32.mrf.mxu0
      %v3772 = vadd.f32 0.0, %v3771
      %3773 = vmatmul.bf16.gmra.mxu0 %v3684
      %v3774 = vpop.f32.mrf.mxu0
      %v3775 = vadd.f32 0.0, %v3774
      %v3776 = vpop.f32.mrf.mxu0
      %v3777 = vadd.f32 0.0, %v3776
      %3778 = vdwg.mxu0
      %v3779 = vld [vmem:[%s264] sm:$0x1]
      %v3781 = vperm.slane %v3779, 0
      %v3783 = vmul.f32 %v3700, %v3781
      %v3784 = vmul.f32 %v3702, %v3781
      %v3785 = vmul.f32 %v3705, %v3781
      %v3786 = vmul.f32 %v3707, %v3781
      %v3787 = vmul.f32 %v3710, %v3781
      %v3788 = vmul.f32 %v3712, %v3781
      %v3789 = vmul.f32 %v3715, %v3781
      %v3790 = vmul.f32 %v3717, %v3781
      %v3791 = vmul.f32 %v3720, %v3781
      %v3792 = vmul.f32 %v3722, %v3781
      %v3793 = vmul.f32 %v3725, %v3781
      %v3794 = vmul.f32 %v3727, %v3781
      %v3795 = vmul.f32 %v3730, %v3781
      %v3796 = vmul.f32 %v3732, %v3781
      %v3797 = vmul.f32 %v3735, %v3781
      %v3798 = vmul.f32 %v3737, %v3781
      %v3799 = vmul.f32 %v3740, %v3781
      %v3800 = vmul.f32 %v3742, %v3781
      %v3801 = vmul.f32 %v3745, %v3781
      %v3802 = vmul.f32 %v3747, %v3781
      %v3803 = vmul.f32 %v3750, %v3781
      %v3804 = vmul.f32 %v3752, %v3781
      %v3805 = vmul.f32 %v3755, %v3781
      %v3806 = vmul.f32 %v3757, %v3781
      %v3807 = vmul.f32 %v3760, %v3781
      %v3808 = vmul.f32 %v3762, %v3781
      %v3809 = vmul.f32 %v3765, %v3781
      %v3810 = vmul.f32 %v3767, %v3781
      %v3811 = vmul.f32 %v3770, %v3781
      %v3812 = vmul.f32 %v3772, %v3781
      %v3813 = vmul.f32 %v3775, %v3781
      %v3814 = vmul.f32 %v3777, %v3781
      %v3815 = vld [vmem:[%s267] sm:$0x1]
      %v3817 = vperm.slane %v3815, 0
      %v3819 = vadd.f32 %v3783, %v3817
      %v3820 = vadd.f32 %v3784, %v3817
      %v3821 = vadd.f32 %v3785, %v3817
      %v3822 = vadd.f32 %v3786, %v3817
      %v3823 = vadd.f32 %v3787, %v3817
      %v3824 = vadd.f32 %v3788, %v3817
      %v3825 = vadd.f32 %v3789, %v3817
      %v3826 = vadd.f32 %v3790, %v3817
      %v3827 = vadd.f32 %v3791, %v3817
      %v3828 = vadd.f32 %v3792, %v3817
      %v3829 = vadd.f32 %v3793, %v3817
      %v3830 = vadd.f32 %v3794, %v3817
      %v3831 = vadd.f32 %v3795, %v3817
      %v3832 = vadd.f32 %v3796, %v3817
      %v3833 = vadd.f32 %v3797, %v3817
      %v3834 = vadd.f32 %v3798, %v3817
      %v3835 = vadd.f32 %v3799, %v3817
      %v3836 = vadd.f32 %v3800, %v3817
      %v3837 = vadd.f32 %v3801, %v3817
      %v3838 = vadd.f32 %v3802, %v3817
      %v3839 = vadd.f32 %v3803, %v3817
      %v3840 = vadd.f32 %v3804, %v3817
      %v3841 = vadd.f32 %v3805, %v3817
      %v3842 = vadd.f32 %v3806, %v3817
      %v3843 = vadd.f32 %v3807, %v3817
      %v3844 = vadd.f32 %v3808, %v3817
      %v3845 = vadd.f32 %v3809, %v3817
      %v3846 = vadd.f32 %v3810, %v3817
      %v3847 = vadd.f32 %v3811, %v3817
      %v3848 = vadd.f32 %v3812, %v3817
      %v3849 = vadd.f32 %v3813, %v3817
      %v3850 = vadd.f32 %v3814, %v3817
      %v3851 = vadd.f32 %v3819, 3.0
      %v3852 = vadd.f32 %v3820, 3.0
      %v3853 = vadd.f32 %v3821, 3.0
      %v3854 = vadd.f32 %v3822, 3.0
      %v3855 = vadd.f32 %v3823, 3.0
      %v3856 = vadd.f32 %v3824, 3.0
      %v3857 = vadd.f32 %v3825, 3.0
      %v3858 = vadd.f32 %v3826, 3.0
      %v3859 = vadd.f32 %v3827, 3.0
      %v3860 = vadd.f32 %v3828, 3.0
      %v3861 = vadd.f32 %v3829, 3.0
      %v3862 = vadd.f32 %v3830, 3.0
      %v3863 = vadd.f32 %v3831, 3.0
      %v3864 = vadd.f32 %v3832, 3.0
      %v3865 = vadd.f32 %v3833, 3.0
      %v3866 = vadd.f32 %v3834, 3.0
      %v3867 = vadd.f32 %v3835, 3.0
      %v3868 = vadd.f32 %v3836, 3.0
      %v3869 = vadd.f32 %v3837, 3.0
      %v3870 = vadd.f32 %v3838, 3.0
      %v3871 = vadd.f32 %v3839, 3.0
      %v3872 = vadd.f32 %v3840, 3.0
      %v3873 = vadd.f32 %v3841, 3.0
      %v3874 = vadd.f32 %v3842, 3.0
      %v3875 = vadd.f32 %v3843, 3.0
      %v3876 = vadd.f32 %v3844, 3.0
      %v3877 = vadd.f32 %v3845, 3.0
      %v3878 = vadd.f32 %v3846, 3.0
      %v3879 = vadd.f32 %v3847, 3.0
      %v3880 = vadd.f32 %v3848, 3.0
      %v3881 = vadd.f32 %v3849, 3.0
      %v3882 = vadd.f32 %v3850, 3.0
      %v3883 = vmax.f32 %v3851, 0.0
      %v3884 = vmax.f32 %v3852, 0.0
      %v3885 = vmax.f32 %v3853, 0.0
      %v3886 = vmax.f32 %v3854, 0.0
      %v3887 = vmax.f32 %v3855, 0.0
      %v3888 = vmax.f32 %v3856, 0.0
      %v3889 = vmax.f32 %v3857, 0.0
      %v3890 = vmax.f32 %v3858, 0.0
      %v3891 = vmax.f32 %v3859, 0.0
      %v3892 = vmax.f32 %v3860, 0.0
      %v3893 = vmax.f32 %v3861, 0.0
      %v3894 = vmax.f32 %v3862, 0.0
      %v3895 = vmax.f32 %v3863, 0.0
      %v3896 = vmax.f32 %v3864, 0.0
      %v3897 = vmax.f32 %v3865, 0.0
      %v3898 = vmax.f32 %v3866, 0.0
      %v3899 = vmax.f32 %v3867, 0.0
      %v3900 = vmax.f32 %v3868, 0.0
      %v3901 = vmax.f32 %v3869, 0.0
      %v3902 = vmax.f32 %v3870, 0.0
      %v3903 = vmax.f32 %v3871, 0.0
      %v3904 = vmax.f32 %v3872, 0.0
      %v3905 = vmax.f32 %v3873, 0.0
      %v3906 = vmax.f32 %v3874, 0.0
      %v3907 = vmax.f32 %v3875, 0.0
      %v3908 = vmax.f32 %v3876, 0.0
      %v3909 = vmax.f32 %v3877, 0.0
      %v3910 = vmax.f32 %v3878, 0.0
      %v3911 = vmax.f32 %v3879, 0.0
      %v3912 = vmax.f32 %v3880, 0.0
      %v3913 = vmax.f32 %v3881, 0.0
      %v3914 = vmax.f32 %v3882, 0.0
      %v3915 = vmin.f32 %v3883, 6.0
      %v3916 = vmin.f32 %v3884, 6.0
      %v3917 = vmin.f32 %v3885, 6.0
      %v3918 = vmin.f32 %v3886, 6.0
      %v3919 = vmin.f32 %v3887, 6.0
      %v3920 = vmin.f32 %v3888, 6.0
      %v3921 = vmin.f32 %v3889, 6.0
      %v3922 = vmin.f32 %v3890, 6.0
      %v3923 = vmin.f32 %v3891, 6.0
      %v3924 = vmin.f32 %v3892, 6.0
      %v3925 = vmin.f32 %v3893, 6.0
      %v3926 = vmin.f32 %v3894, 6.0
      %v3927 = vmin.f32 %v3895, 6.0
      %v3928 = vmin.f32 %v3896, 6.0
      %v3929 = vmin.f32 %v3897, 6.0
      %v3930 = vmin.f32 %v3898, 6.0
      %v3931 = vmin.f32 %v3899, 6.0
      %v3932 = vmin.f32 %v3900, 6.0
      %v3933 = vmin.f32 %v3901, 6.0
      %v3934 = vmin.f32 %v3902, 6.0
      %v3935 = vmin.f32 %v3903, 6.0
      %v3936 = vmin.f32 %v3904, 6.0
      %v3937 = vmin.f32 %v3905, 6.0
      %v3938 = vmin.f32 %v3906, 6.0
      %v3939 = vmin.f32 %v3907, 6.0
      %v3940 = vmin.f32 %v3908, 6.0
      %v3941 = vmin.f32 %v3909, 6.0
      %v3942 = vmin.f32 %v3910, 6.0
      %v3943 = vmin.f32 %v3911, 6.0
      %v3944 = vmin.f32 %v3912, 6.0
      %v3945 = vmin.f32 %v3913, 6.0
      %v3946 = vmin.f32 %v3914, 6.0
      %v3947 = vmul.f32 %v3819, %v3915
      %v3948 = vmul.f32 %v3820, %v3916
      %v3949 = vmul.f32 %v3821, %v3917
      %v3950 = vmul.f32 %v3822, %v3918
      %v3951 = vmul.f32 %v3823, %v3919
      %v3952 = vmul.f32 %v3824, %v3920
      %v3953 = vmul.f32 %v3825, %v3921
      %v3954 = vmul.f32 %v3826, %v3922
      %v3955 = vmul.f32 %v3827, %v3923
      %v3956 = vmul.f32 %v3828, %v3924
      %v3957 = vmul.f32 %v3829, %v3925
      %v3958 = vmul.f32 %v3830, %v3926
      %v3959 = vmul.f32 %v3831, %v3927
      %v3960 = vmul.f32 %v3832, %v3928
      %v3961 = vmul.f32 %v3833, %v3929
      %v3962 = vmul.f32 %v3834, %v3930
      %v3963 = vmul.f32 %v3835, %v3931
      %v3964 = vmul.f32 %v3836, %v3932
      %v3965 = vmul.f32 %v3837, %v3933
      %v3966 = vmul.f32 %v3838, %v3934
      %v3967 = vmul.f32 %v3839, %v3935
      %v3968 = vmul.f32 %v3840, %v3936
      %v3969 = vmul.f32 %v3841, %v3937
      %v3970 = vmul.f32 %v3842, %v3938
      %v3971 = vmul.f32 %v3843, %v3939
      %v3972 = vmul.f32 %v3844, %v3940
      %v3973 = vmul.f32 %v3845, %v3941
      %v3974 = vmul.f32 %v3846, %v3942
      %v3975 = vmul.f32 %v3847, %v3943
      %v3976 = vmul.f32 %v3848, %v3944
      %v3977 = vmul.f32 %v3849, %v3945
      %v3978 = vmul.f32 %v3850, %v3946
      %v3979 = vmul.f32 %v3947, 0.16666667
      %v3980 = vmul.f32 %v3948, 0.16666667
      %v3981 = vmul.f32 %v3949, 0.16666667
      %v3982 = vmul.f32 %v3950, 0.16666667
      %v3983 = vmul.f32 %v3951, 0.16666667
      %v3984 = vmul.f32 %v3952, 0.16666667
      %v3985 = vmul.f32 %v3953, 0.16666667
      %v3986 = vmul.f32 %v3954, 0.16666667
      %v3987 = vmul.f32 %v3955, 0.16666667
      %v3988 = vmul.f32 %v3956, 0.16666667
      %v3989 = vmul.f32 %v3957, 0.16666667
      %v3990 = vmul.f32 %v3958, 0.16666667
      %v3991 = vmul.f32 %v3959, 0.16666667
      %v3992 = vmul.f32 %v3960, 0.16666667
      %v3993 = vmul.f32 %v3961, 0.16666667
      %v3994 = vmul.f32 %v3962, 0.16666667
      %v3995 = vmul.f32 %v3963, 0.16666667
      %v3996 = vmul.f32 %v3964, 0.16666667
      %v3997 = vmul.f32 %v3965, 0.16666667
      %v3998 = vmul.f32 %v3966, 0.16666667
      %v3999 = vmul.f32 %v3967, 0.16666667
      %v4000 = vmul.f32 %v3968, 0.16666667
      %v4001 = vmul.f32 %v3969, 0.16666667
      %v4002 = vmul.f32 %v3970, 0.16666667
      %v4003 = vmul.f32 %v3971, 0.16666667
      %v4004 = vmul.f32 %v3972, 0.16666667
      %v4005 = vmul.f32 %v3973, 0.16666667
      %v4006 = vmul.f32 %v3974, 0.16666667
      %v4007 = vmul.f32 %v3975, 0.16666667
      %v4008 = vmul.f32 %v3976, 0.16666667
      %v4009 = vmul.f32 %v3977, 0.16666667
      %v4010 = vmul.f32 %v3978, 0.16666667
      %v4011 = vpack.c.bf16 %v3979, %v3979
      %v4012 = vpack.c.bf16 %v3980, %v3980
      %v4013 = vpack.c.bf16 %v3981, %v3981
      %v4014 = vpack.c.bf16 %v3982, %v3982
      %v4015 = vpack.c.bf16 %v3983, %v3983
      %v4016 = vpack.c.bf16 %v3984, %v3984
      %v4017 = vpack.c.bf16 %v3985, %v3985
      %v4018 = vpack.c.bf16 %v3986, %v3986
      %v4019 = vpack.c.bf16 %v3987, %v3987
      %v4020 = vpack.c.bf16 %v3988, %v3988
      %v4021 = vpack.c.bf16 %v3989, %v3989
      %v4022 = vpack.c.bf16 %v3990, %v3990
      %v4023 = vpack.c.bf16 %v3991, %v3991
      %v4024 = vpack.c.bf16 %v3992, %v3992
      %v4025 = vpack.c.bf16 %v3993, %v3993
      %v4026 = vpack.c.bf16 %v3994, %v3994
      %v4027 = vpack.c.bf16 %v3995, %v3995
      %v4028 = vpack.c.bf16 %v3996, %v3996
      %v4029 = vpack.c.bf16 %v3997, %v3997
      %v4030 = vpack.c.bf16 %v3998, %v3998
      %v4031 = vpack.c.bf16 %v3999, %v3999
      %v4032 = vpack.c.bf16 %v4000, %v4000
      %v4033 = vpack.c.bf16 %v4001, %v4001
      %v4034 = vpack.c.bf16 %v4002, %v4002
      %v4035 = vpack.c.bf16 %v4003, %v4003
      %v4036 = vpack.c.bf16 %v4004, %v4004
      %v4037 = vpack.c.bf16 %v4005, %v4005
      %v4038 = vpack.c.bf16 %v4006, %v4006
      %v4039 = vpack.c.bf16 %v4007, %v4007
      %v4040 = vpack.c.bf16 %v4008, %v4008
      %v4041 = vpack.c.bf16 %v4009, %v4009
      %v4042 = vpack.c.bf16 %v4010, %v4010
      %4043 = vst [vmem:[%s279] sm:$0xf] %v4011
      %4044 = vst [vmem:[%s279 + $0x4] sm:$0xf] %v4012
      %4045 = vst [vmem:[%s279 + $0x8] sm:$0xf] %v4013
      %4046 = vst [vmem:[%s279 + $0xc] sm:$0xf] %v4014
      %4047 = vst [vmem:[%s279 + $0x10] sm:$0xf] %v4015
      %4048 = vst [vmem:[%s279 + $0x14] sm:$0xf] %v4016
      %4049 = vst [vmem:[%s279 + $0x18] sm:$0xf] %v4017
      %4050 = vst [vmem:[%s279 + $0x1c] sm:$0xf] %v4018
      %4051 = vst [vmem:[%s279 + $0x20] sm:$0xf] %v4019
      %4052 = vst [vmem:[%s279 + $0x24] sm:$0xf] %v4020
      %4053 = vst [vmem:[%s279 + $0x28] sm:$0xf] %v4021
      %4054 = vst [vmem:[%s279 + $0x2c] sm:$0xf] %v4022
      %4055 = vst [vmem:[%s279 + $0x30] sm:$0xf] %v4023
      %4056 = vst [vmem:[%s279 + $0x34] sm:$0xf] %v4024
      %4057 = vst [vmem:[%s279 + $0x38] sm:$0xf] %v4025
      %4058 = vst [vmem:[%s279 + $0x3c] sm:$0xf] %v4026
      %4059 = vst [vmem:[%s279 + $0x40] sm:$0xf] %v4027
      %4060 = vst [vmem:[%s279 + $0x44] sm:$0xf] %v4028
      %4061 = vst [vmem:[%s279 + $0x48] sm:$0xf] %v4029
      %4062 = vst [vmem:[%s279 + $0x4c] sm:$0xf] %v4030
      %4063 = vst [vmem:[%s279 + $0x50] sm:$0xf] %v4031
      %4064 = vst [vmem:[%s279 + $0x54] sm:$0xf] %v4032
      %4065 = vst [vmem:[%s279 + $0x58] sm:$0xf] %v4033
      %4066 = vst [vmem:[%s279 + $0x5c] sm:$0xf] %v4034
      %4067 = vst [vmem:[%s279 + $0x60] sm:$0xf] %v4035
      %4068 = vst [vmem:[%s279 + $0x64] sm:$0xf] %v4036
      %4069 = vst [vmem:[%s279 + $0x68] sm:$0xf] %v4037
      %4070 = vst [vmem:[%s279 + $0x6c] sm:$0xf] %v4038
      %4071 = vst [vmem:[%s279 + $0x70] sm:$0xf] %v4039
      %4072 = vst [vmem:[%s279 + $0x74] sm:$0xf] %v4040
      %4073 = vst [vmem:[%s279 + $0x78] sm:$0xf] %v4041
      %4074 = vst [vmem:[%s279 + $0x7c] sm:$0xf] %v4042
      %s4075 = smul.u32 32, %s22
      %p4076 = scmp.lt.s32.totalorder %s21, 1
      %s4077 = scalar_select %p4076, %s21, 1
      %p4078 = scmp.lt.s32.totalorder %s4075, 31
      %s4079 = scalar_select %p4078, %s4075, 31
      %p4080 = scmp.lt.s32.totalorder %s20, 0
      %s4081 = scalar_select %p4080, %s20, 0
      %s4082 = sadd.s32 %s4081, %s4079
      %s4083 = smul.addr %s4077, 32
      %s4084 = sadd.s32 %s4082, %s4083
      %s4085 = smul.addr %s4084, 4
      %s4086 = scalar_lea.vmem %s4, %s4085
      // Predicated region
      $region37: #{conv_bn_hswish.1} parent=35 // pred_check
        %p4087 = pneg %p160
      $region38: #{conv_bn_hswish.1} parent=35 // pred_check_branch
        %4089 = sbr.rel (%p4087) target = $region40
      $region39: #{conv_bn_hswish.1} parent=35 // pred_region
        %s4090 = smul.u32 32, %s22
      $region40: #{conv_bn_hswish.1} parent=35 // pred_fallthru
        _
    $region36: #{conv_bn_hswish.1} parent=5 // pred_fallthru
      _
    %p4091 = scmp.le.s32.totalorder 2, %s10
    // Predicated region
    $region41: #{conv_bn_hswish.1} parent=5 // pred_check
      %p4092 = pneg %p4091
    $region42: #{conv_bn_hswish.1} parent=5 // pred_check_branch
      %4094 = sbr.rel (%p4092) target = $region44
    $region43: #{conv_bn_hswish.1} parent=5 // pred_region
      %s4095 = ssub.s32 %s10, 2
      // Predicated region
      $region45: #{conv_bn_hswish.1} parent=43 // pred_check
        %p4096 = pneg %p166
      $region46: #{conv_bn_hswish.1} parent=43 // pred_check_branch
        %4098 = sbr.rel (%p4096) target = $region48
      $region47: #{conv_bn_hswish.1} parent=43 // pred_region
        %s4099 = smul.u32 32, %s25
        %p4100 = scmp.lt.s32.totalorder %s24, 1
        %s4101 = scalar_select %p4100, %s24, 1
        %p4102 = scmp.lt.s32.totalorder %s4099, 31
        %s4103 = scalar_select %p4102, %s4099, 31
        %p4104 = scmp.lt.s32.totalorder %s23, 0
        %s4105 = scalar_select %p4104, %s23, 0
        %s4106 = sadd.s32 %s4105, %s4103
        %s4107 = smul.addr %s4101, 32
        %s4108 = sadd.s32 %s4106, %s4107
        %s4109 = smul.addr %s4108, 4
        %s4110 = scalar_lea.vmem %s4, %s4109
      $region48: #{conv_bn_hswish.1} parent=43 // pred_fallthru
        _
    $region44: #{conv_bn_hswish.1} parent=5 // pred_fallthru
      _
  $region6: #{conv_bn_hswish.1} parent=0 // loop_footer
    %s14 = sadd.s32 1, %s10
  $region7: #{conv_bn_hswish.1} parent=0 // loop_footer_branch
    %9 = sbr.rel target = $region3
  $region8: #{conv_bn_hswish.1} parent=0 // loop_exit
    _

</llo_original>
